<compile_context>
chip_gen: v6e
topology: v6e:2x2x1
jax: 0.10.0
libtpu: 0.0.40
codegen_flags: <defaults>
</compile_context>

<pallas_src>
import functools

import jax
import jax.numpy as jnp
from jax.experimental import pallas as pl
from jax.experimental.pallas import tpu as pltpu


MXU_DTYPE = jnp.bfloat16   # MXU operand / scratch dtype (f32 accumulate)
LANE = 128                 # lane width: mid/out channels padded to this
PAD = 8                    # leading/trailing guard slots of the flat layouts
TAPS = [(dy, dx) for dy in range(3) for dx in range(3)]


def _round_up(x, m):
    return (x + m - 1) // m * m


# ---------------------------------------------------------------------------
# Tile-depth selection (per-generation VMEM budget).
# ---------------------------------------------------------------------------
def _vmem_bytes(th, wp, cinp, cmp_, cop):
    """Pessimistic per-tile VMEM estimate."""
    s1 = (th + 4) * wp + 2 * PAD          # input slab rows (flat)
    s2 = (th + 2) * wp + 2 * PAD          # mid scratch rows (flat)
    m1 = (th + 2) * wp                    # stage-1 matmul M
    m2 = th * wp                          # stage-2 matmul M
    b = 0
    b += 2 * s1 * cinp * 2                # input slab, bf16, double buffered
    b += 2 * m2 * cop * 4                 # output block, f32, double buffered
    b += s2 * cmp_ * 2                    # mid-tensor scratch, bf16
    b += 2 * 9 * cinp * cmp_ * 2          # w1 (double buffered)
    b += 2 * 9 * cmp_ * cop * 2           # w2 (double buffered)
    b += m1 * cmp_ * 4 + m2 * cop * 4     # f32 accumulators
    b += m1 * cinp * 2 + m2 * cmp_ * 2    # live tap slices
    return b


def _pick_tile_h(H, W, cinp, cmp_, cop, budget):
    """Largest divisor of H whose per-tile VMEM estimate fits the budget."""
    best = 1
    for th in range(1, H + 1):
        if H % th == 0 and _vmem_bytes(th, W + 2, cinp, cmp_, cop) <= budget:
            best = th
    return best


# ---------------------------------------------------------------------------
# Kernel.
# ---------------------------------------------------------------------------
def double_conv_kernel(x_ref, w1_ref, s1_ref, t1_ref, w2_ref, s2_ref, t2_ref,
                       o_ref, h_ref, *, TH, Wp):
    # x_ref : ((TH+4)*Wp + 2*PAD, CINP)  bf16  halo'd input slab, flat row-major
    #         stride Wp (= W+2, one zero column each side), data starts at PAD.
    # w1_ref: (9*CINP, CMP)              bf16  per-tap conv1 weights (BN folded)
    # s1/t1 : (1, CMP)                   f32   folded BN scale / shift, conv1
    # w2_ref: (9*CMP, COP)               bf16  per-tap conv2 weights
    # s2/t2 : (1, COP)                   f32   folded BN scale / shift, conv2
    # o_ref : (TH*Wp, COP)               f32   lane-dense flat output block
    # h_ref : ((TH+2)*Wp + 2*PAD, CMP)   bf16  flat mid-tensor scratch
    t = pl.program_id(1)
    CINP = x_ref.shape[1]
    CMP = h_ref.shape[1]
    COP = o_ref.shape[1]
    M1 = (TH + 2) * Wp                    # h1 rows produced (incl. row halo)
    M2 = TH * Wp                          # output rows produced

    # ---- stage 1: conv1 + BN1 + ReLU, 9 accumulated K=CINP dots ------------
    acc1 = jnp.zeros((M1, CMP), jnp.float32)
    for k, (dy, dx) in enumerate(TAPS):
        tap = x_ref[pl.ds(PAD + dy * Wp + dx - 1, M1), :]          # pure slice
        acc1 = acc1 + jnp.dot(tap, w1_ref[pl.ds(k * CINP, CINP), :],
                              preferred_element_type=jnp.float32)
    h1 = jnp.maximum(acc1 * s1_ref[...] + t1_ref[...], 0.0)
    # Zero the two guard columns of h1: they are conv2's horizontal zero pad.
    col = jax.lax.broadcasted_iota(jnp.int32, (M1, 1), 0) % Wp
    pad_col = jnp.logical_or(col == 0, col == Wp - 1)
    h_ref[pl.ds(PAD, M1), :] = jnp.where(pad_col, 0.0, h1).astype(h_ref.dtype)

    # Vertical zero padding of h1 for conv2 at the true image top/bottom.
    # (Unconditional per tile -> safe under "parallel"/megacore sharding.)
    @pl.when(t == 0)
    def _():
        h_ref[pl.ds(PAD, Wp), :] = jnp.zeros((Wp, CMP), h_ref.dtype)

    @pl.when(t == pl.num_programs(1) - 1)
    def _():
        h_ref[pl.ds(PAD + (TH + 1) * Wp, Wp), :] = jnp.zeros((Wp, CMP),
                                                             h_ref.dtype)

    # ---- stage 2: conv2 + BN2 + ReLU, 9 accumulated K=CMP dots -------------
    acc2 = jnp.zeros((M2, COP), jnp.float32)
    for k, (dy, dx) in enumerate(TAPS):
        tap = h_ref[pl.ds(PAD + dy * Wp + dx - 1, M2), :]          # pure slice
        acc2 = acc2 + jnp.dot(tap, w2_ref[pl.ds(k * CMP, CMP), :],
                              preferred_element_type=jnp.float32)
    y = jnp.maximum(acc2 * s2_ref[...] + t2_ref[...], 0.0)
    o_ref[...] = y.astype(o_ref.dtype)    # full lane+sublane-dense store


# ---------------------------------------------------------------------------
# Parameter packing (BN folded into per-tap weights + scale/shift).
# ---------------------------------------------------------------------------
def _fold_bn(conv_bias, gamma, beta, run_mean, run_var, eps, cpad):
    scale = gamma / jnp.sqrt(run_var + eps)
    shift = (conv_bias - run_mean) * scale + beta
    c = scale.shape[0]
    scale = jnp.pad(scale, (0, cpad - c)).reshape(1, cpad).astype(jnp.float32)
    shift = jnp.pad(shift, (0, cpad - c)).reshape(1, cpad).astype(jnp.float32)
    return scale, shift


def _pack_weights(w_oihw, cin_pad, cout_pad):
    # (Cout, Cin, 3, 3) -> (3, 3, Cin, Cout) -> zero-pad channels
    #                   -> (9*cin_pad, cout_pad) per-tap RHS, bf16.
    cout, cin = w_oihw.shape[0], w_oihw.shape[1]
    w = jnp.transpose(w_oihw, (2, 3, 1, 0))
    w = jnp.pad(w, ((0, 0), (0, 0), (0, cin_pad - cin), (0, cout_pad - cout)))
    return w.reshape(9 * cin_pad, cout_pad).astype(MXU_DTYPE)


# ---------------------------------------------------------------------------
# Wrapper.
# ---------------------------------------------------------------------------
def double_conv(x_nchw, params, eps=1e-5, tile_h=None,
                vmem_budget_bytes=24 << 20):
    """Equivalent of DoubleConv.forward on NCHW input; returns NCHW output."""
    N, Cin, H, W = x_nchw.shape
    Cmid = params["w1"].shape[0]
    Cout = params["w2"].shape[0]
    CINP = _round_up(Cin, 8)         # sublane-aligned input channels
    CMP = _round_up(Cmid, LANE)      # lane-dense mid channels
    COP = _round_up(Cout, LANE)      # lane-dense out channels
    Wp = W + 2                       # row stride: +1 zero guard column per side

    if tile_h is None:
        tile_h = _pick_tile_h(H, W, CINP, CMP, COP, vmem_budget_bytes)
    assert H % tile_h == 0, "tile_h must divide H"
    TH = tile_h
    n_tiles = H // TH
    S1 = (TH + 4) * Wp + 2 * PAD
    M2 = TH * Wp

    # NCHW -> NHWC, bf16; zero-pad 2 rows top/bottom (conv1+conv2 row halo),
    # 1 column left/right (horizontal zero padding), channels to CINP.
    x = jnp.transpose(x_nchw, (0, 2, 3, 1)).astype(MXU_DTYPE)
    x = jnp.pad(x, ((0, 0), (2, 2), (1, 1), (0, CINP - Cin)))
    # Overlapping (TH+4)-row slabs per tile.  BlockSpec blocks cannot overlap,
    # so the 4 halo rows per tile are duplicated here with one gather.
    rows = jnp.arange(n_tiles)[:, None] * TH + jnp.arange(TH + 4)[None, :]
    slab = x[:, rows]                                 # (N, nt, TH+4, Wp, CINP)
    slab = slab.reshape(N, n_tiles, (TH + 4) * Wp, CINP)
    slab = jnp.pad(slab, ((0, 0), (0, 0), (PAD, PAD), (0, 0)))   # guard slots

    w1 = _pack_weights(params["w1"], CINP, CMP)
    w2 = _pack_weights(params["w2"], CMP, COP)
    s1, t1 = _fold_bn(params["b1"], params["g1"], params["be1"],
                      params["rm1"], params["rv1"], eps, CMP)
    s2, t2 = _fold_bn(params["b2"], params["g2"], params["be2"],
                      params["rm2"], params["rv2"], eps, COP)

    kernel = functools.partial(double_conv_kernel, TH=TH, Wp=Wp)

    out = pl.pallas_call(
        kernel,
        out_shape=jax.ShapeDtypeStruct((N, n_tiles, M2, COP), jnp.float32),
        grid_spec=pltpu.PrefetchScalarGridSpec(
            num_scalar_prefetch=0,
            grid=(N, n_tiles),
            in_specs=[
                pl.BlockSpec((None, None, S1, CINP), lambda n, t: (n, t, 0, 0)),
                pl.BlockSpec((9 * CINP, CMP), lambda n, t: (0, 0)),
                pl.BlockSpec((1, CMP), lambda n, t: (0, 0)),
                pl.BlockSpec((1, CMP), lambda n, t: (0, 0)),
                pl.BlockSpec((9 * CMP, COP), lambda n, t: (0, 0)),
                pl.BlockSpec((1, COP), lambda n, t: (0, 0)),
                pl.BlockSpec((1, COP), lambda n, t: (0, 0)),
            ],
            out_specs=pl.BlockSpec((None, None, M2, COP),
                                   lambda n, t: (n, t, 0, 0)),
            scratch_shapes=[
                pltpu.VMEM(((TH + 2) * Wp + 2 * PAD, CMP), MXU_DTYPE),
            ],
        ),
        compiler_params=pltpu.CompilerParams(
            dimension_semantics=("parallel", "parallel"),
            vmem_limit_bytes=48 << 20),
    )(slab, w1, s1, t1, w2, s2, t2)

    # Drop guard columns / padded channels, back to NCHW.  XLA fuses the slice
    # with the (unavoidable) layout transpose.
    out = out.reshape(N, H, Wp, COP)[:, :, 1:W + 1, :Cout]
    return jnp.transpose(out, (0, 3, 1, 2))


# ---------------------------------------------------------------------------
# Pure-JAX f32 reference (lax.conv) for the correctness check.
# ---------------------------------------------------------------------------
def _ref_conv_bn_relu(x_nhwc, w_oihw, b, g, be, rm, rv, eps=1e-5):
    w_hwio = jnp.transpose(w_oihw, (2, 3, 1, 0))
    out = jax.lax.conv_general_dilated(
        x_nhwc, w_hwio, window_strides=(1, 1), padding="SAME",
        dimension_numbers=("NHWC", "HWIO", "NHWC"))
    out = out + b
    out = (out - rm) / jnp.sqrt(rv + eps) * g + be
    return jnp.maximum(out, 0.0)


def _ref_double_conv(x_nchw, p):
    x = jnp.transpose(x_nchw, (0, 2, 3, 1))
    h = _ref_conv_bn_relu(x, p["w1"], p["b1"], p["g1"], p["be1"],
                          p["rm1"], p["rv1"])
    y = _ref_conv_bn_relu(h, p["w2"], p["b2"], p["g2"], p["be2"],
                          p["rm2"], p["rv2"])
    return jnp.transpose(y, (0, 3, 1, 2))


if __name__ == "__main__":
    key = jax.random.PRNGKey(0)
    N, Cin, H, W = 2, 4, 16, 16
    Cmid = 8   # mid_channels defaults to out_channels
    Cout = 8

    ks = jax.random.split(key, 16)
    x = jax.random.normal(ks[0], (N, Cin, H, W), dtype=jnp.float32)

    params = {
        # first conv + BN
        "w1":  0.1 * jax.random.normal(ks[1], (Cmid, Cin, 3, 3), jnp.float32),
        "b1":  0.1 * jax.random.normal(ks[2], (Cmid,), jnp.float32),
        "g1":  1.0 + 0.1 * jax.random.normal(ks[3], (Cmid,), jnp.float32),
        "be1": 0.1 * jax.random.normal(ks[4], (Cmid,), jnp.float32),
        "rm1": 0.1 * jax.random.normal(ks[5], (Cmid,), jnp.float32),
        "rv1": 1.0 + 0.1 * jax.random.uniform(ks[6], (Cmid,), jnp.float32),
        # second conv + BN
        "w2":  0.1 * jax.random.normal(ks[7], (Cout, Cmid, 3, 3), jnp.float32),
        "b2":  0.1 * jax.random.normal(ks[8], (Cout,), jnp.float32),
        "g2":  1.0 + 0.1 * jax.random.normal(ks[9], (Cout,), jnp.float32),
        "be2": 0.1 * jax.random.normal(ks[10], (Cout,), jnp.float32),
        "rm2": 0.1 * jax.random.normal(ks[11], (Cout,), jnp.float32),
        "rv2": 1.0 + 0.1 * jax.random.uniform(ks[12], (Cout,), jnp.float32),
    }

    ref = jax.block_until_ready(_ref_double_conv(x, params))
    tol = 5e-2 if MXU_DTYPE == jnp.bfloat16 else 1e-4

    # Run both the auto tile choice (single tile at this tiny H) and a forced
    # 4-row tiling (4 tiles: top boundary, two interior, bottom boundary) to
    # exercise the halo-duplication / boundary-zeroing paths.
    for th in (None, 4):
        run = jax.jit(functools.partial(double_conv, tile_h=th))
        out = jax.block_until_ready(run(x, params))
        assert out.shape == (N, Cout, H, W), out.shape
        err = float(jnp.max(jnp.abs(out - ref)))
        assert jnp.allclose(out, ref, atol=tol, rtol=tol), (th, err)

    print("KERNEL_OK")
</pallas_src>

<mosaic_0001>
module attributes {stable_mosaic.version = 11 : i64} {
  func.func @double_conv_kernel(%arg0: i32, %arg1: i32, %arg2: memref<1x1x376x8xbf16, #tpu.memory_space<vmem>>, %arg3: memref<72x128xbf16, #tpu.memory_space<vmem>>, %arg4: memref<1x128xf32, #tpu.memory_space<vmem>>, %arg5: memref<1x128xf32, #tpu.memory_space<vmem>>, %arg6: memref<1152x128xbf16, #tpu.memory_space<vmem>>, %arg7: memref<1x128xf32, #tpu.memory_space<vmem>>, %arg8: memref<1x128xf32, #tpu.memory_space<vmem>>, %arg9: memref<1x1x288x128xf32, #tpu.memory_space<vmem>>, %arg10: memref<340x128xbf16, #tpu.memory_space<vmem>>) attributes {dimension_semantics = [#tpu.dimension_semantics<parallel>, #tpu.dimension_semantics<parallel>], iteration_bounds = array<i64: 2, 1>, scalar_prefetch = 0 : i64, scratch_operands = 1 : i64, tpu.core_type = #tpu.core_type<tc>, window_params = [{transform_indices = @transform_0, window_bounds = array<i64: 1, 1, 376, 8>}, {pipeline_mode = #tpu.pipeline_mode<synchronous>, transform_indices = @transform_1, window_bounds = array<i64: 72, 128>}, {pipeline_mode = #tpu.pipeline_mode<synchronous>, transform_indices = @transform_2, window_bounds = array<i64: 1, 128>}, {pipeline_mode = #tpu.pipeline_mode<synchronous>, transform_indices = @transform_3, window_bounds = array<i64: 1, 128>}, {pipeline_mode = #tpu.pipeline_mode<synchronous>, transform_indices = @transform_4, window_bounds = array<i64: 1152, 128>}, {pipeline_mode = #tpu.pipeline_mode<synchronous>, transform_indices = @transform_5, window_bounds = array<i64: 1, 128>}, {pipeline_mode = #tpu.pipeline_mode<synchronous>, transform_indices = @transform_6, window_bounds = array<i64: 1, 128>}, {transform_indices = @transform_7, window_bounds = array<i64: 1, 1, 288, 128>}]} {
    %cst = arith.constant 0.000000e+00 : f32
    %0 = vector.broadcast %cst : f32 to vector<324x128xf32>
    %c0 = arith.constant 0 : index
    %c0_0 = arith.constant 0 : index
    %c7 = arith.constant 7 : index
    %c0_1 = arith.constant 0 : index
    %1 = vector.load %arg2[%c0, %c0_0, %c7, %c0_1] : memref<1x1x376x8xbf16, #tpu.memory_space<vmem>>, vector<1x1x324x8xbf16>
    %2 = vector.shape_cast %1 : vector<1x1x324x8xbf16> to vector<324x8xbf16>
    %c0_2 = arith.constant 0 : index
    %c0_3 = arith.constant 0 : index
    %3 = vector.load %arg3[%c0_2, %c0_3] : memref<72x128xbf16, #tpu.memory_space<vmem>>, vector<8x128xbf16>
    %cst_4 = arith.constant dense<0.000000e+00> : vector<324x128xf32>
    %4 = tpu.matmul %2, %3, %cst_4 {dimension_numbers = #tpu.dot_dimension_numbers<[1], [0], [0], [1], [0, 0, 1, 1], [], []>} : vector<324x8xbf16>, vector<8x128xbf16>, vector<324x128xf32> -> vector<324x128xf32>
    %5 = arith.addf %0, %4 : vector<324x128xf32>
    %c0_5 = arith.constant 0 : index
    %c0_6 = arith.constant 0 : index
    %c8 = arith.constant 8 : index
    %c0_7 = arith.constant 0 : index
    %6 = vector.load %arg2[%c0_5, %c0_6, %c8, %c0_7] : memref<1x1x376x8xbf16, #tpu.memory_space<vmem>>, vector<1x1x324x8xbf16>
    %7 = vector.shape_cast %6 : vector<1x1x324x8xbf16> to vector<324x8xbf16>
    %c8_8 = arith.constant 8 : index
    %c0_9 = arith.constant 0 : index
    %8 = vector.load %arg3[%c8_8, %c0_9] : memref<72x128xbf16, #tpu.memory_space<vmem>>, vector<8x128xbf16>
    %cst_10 = arith.constant dense<0.000000e+00> : vector<324x128xf32>
    %9 = tpu.matmul %7, %8, %cst_10 {dimension_numbers = #tpu.dot_dimension_numbers<[1], [0], [0], [1], [0, 0, 1, 1], [], []>} : vector<324x8xbf16>, vector<8x128xbf16>, vector<324x128xf32> -> vector<324x128xf32>
    %10 = arith.addf %5, %9 : vector<324x128xf32>
    %c0_11 = arith.constant 0 : index
    %c0_12 = arith.constant 0 : index
    %c9 = arith.constant 9 : index
    %c0_13 = arith.constant 0 : index
    %11 = vector.load %arg2[%c0_11, %c0_12, %c9, %c0_13] : memref<1x1x376x8xbf16, #tpu.memory_space<vmem>>, vector<1x1x324x8xbf16>
    %12 = vector.shape_cast %11 : vector<1x1x324x8xbf16> to vector<324x8xbf16>
    %c16 = arith.constant 16 : index
    %c0_14 = arith.constant 0 : index
    %13 = vector.load %arg3[%c16, %c0_14] : memref<72x128xbf16, #tpu.memory_space<vmem>>, vector<8x128xbf16>
    %cst_15 = arith.constant dense<0.000000e+00> : vector<324x128xf32>
    %14 = tpu.matmul %12, %13, %cst_15 {dimension_numbers = #tpu.dot_dimension_numbers<[1], [0], [0], [1], [0, 0, 1, 1], [], []>} : vector<324x8xbf16>, vector<8x128xbf16>, vector<324x128xf32> -> vector<324x128xf32>
    %15 = arith.addf %10, %14 : vector<324x128xf32>
    %c0_16 = arith.constant 0 : index
    %c0_17 = arith.constant 0 : index
    %c25 = arith.constant 25 : index
    %c0_18 = arith.constant 0 : index
    %16 = vector.load %arg2[%c0_16, %c0_17, %c25, %c0_18] : memref<1x1x376x8xbf16, #tpu.memory_space<vmem>>, vector<1x1x324x8xbf16>
    %17 = vector.shape_cast %16 : vector<1x1x324x8xbf16> to vector<324x8xbf16>
    %c24 = arith.constant 24 : index
    %c0_19 = arith.constant 0 : index
    %18 = vector.load %arg3[%c24, %c0_19] : memref<72x128xbf16, #tpu.memory_space<vmem>>, vector<8x128xbf16>
    %cst_20 = arith.constant dense<0.000000e+00> : vector<324x128xf32>
    %19 = tpu.matmul %17, %18, %cst_20 {dimension_numbers = #tpu.dot_dimension_numbers<[1], [0], [0], [1], [0, 0, 1, 1], [], []>} : vector<324x8xbf16>, vector<8x128xbf16>, vector<324x128xf32> -> vector<324x128xf32>
    %20 = arith.addf %15, %19 : vector<324x128xf32>
    %c0_21 = arith.constant 0 : index
    %c0_22 = arith.constant 0 : index
    %c26 = arith.constant 26 : index
    %c0_23 = arith.constant 0 : index
    %21 = vector.load %arg2[%c0_21, %c0_22, %c26, %c0_23] : memref<1x1x376x8xbf16, #tpu.memory_space<vmem>>, vector<1x1x324x8xbf16>
    %22 = vector.shape_cast %21 : vector<1x1x324x8xbf16> to vector<324x8xbf16>
    %c32 = arith.constant 32 : index
    %c0_24 = arith.constant 0 : index
    %23 = vector.load %arg3[%c32, %c0_24] : memref<72x128xbf16, #tpu.memory_space<vmem>>, vector<8x128xbf16>
    %cst_25 = arith.constant dense<0.000000e+00> : vector<324x128xf32>
    %24 = tpu.matmul %22, %23, %cst_25 {dimension_numbers = #tpu.dot_dimension_numbers<[1], [0], [0], [1], [0, 0, 1, 1], [], []>} : vector<324x8xbf16>, vector<8x128xbf16>, vector<324x128xf32> -> vector<324x128xf32>
    %25 = arith.addf %20, %24 : vector<324x128xf32>
    %c0_26 = arith.constant 0 : index
    %c0_27 = arith.constant 0 : index
    %c27 = arith.constant 27 : index
    %c0_28 = arith.constant 0 : index
    %26 = vector.load %arg2[%c0_26, %c0_27, %c27, %c0_28] : memref<1x1x376x8xbf16, #tpu.memory_space<vmem>>, vector<1x1x324x8xbf16>
    %27 = vector.shape_cast %26 : vector<1x1x324x8xbf16> to vector<324x8xbf16>
    %c40 = arith.constant 40 : index
    %c0_29 = arith.constant 0 : index
    %28 = vector.load %arg3[%c40, %c0_29] : memref<72x128xbf16, #tpu.memory_space<vmem>>, vector<8x128xbf16>
    %cst_30 = arith.constant dense<0.000000e+00> : vector<324x128xf32>
    %29 = tpu.matmul %27, %28, %cst_30 {dimension_numbers = #tpu.dot_dimension_numbers<[1], [0], [0], [1], [0, 0, 1, 1], [], []>} : vector<324x8xbf16>, vector<8x128xbf16>, vector<324x128xf32> -> vector<324x128xf32>
    %30 = arith.addf %25, %29 : vector<324x128xf32>
    %c0_31 = arith.constant 0 : index
    %c0_32 = arith.constant 0 : index
    %c43 = arith.constant 43 : index
    %c0_33 = arith.constant 0 : index
    %31 = vector.load %arg2[%c0_31, %c0_32, %c43, %c0_33] : memref<1x1x376x8xbf16, #tpu.memory_space<vmem>>, vector<1x1x324x8xbf16>
    %32 = vector.shape_cast %31 : vector<1x1x324x8xbf16> to vector<324x8xbf16>
    %c48 = arith.constant 48 : index
    %c0_34 = arith.constant 0 : index
    %33 = vector.load %arg3[%c48, %c0_34] : memref<72x128xbf16, #tpu.memory_space<vmem>>, vector<8x128xbf16>
    %cst_35 = arith.constant dense<0.000000e+00> : vector<324x128xf32>
    %34 = tpu.matmul %32, %33, %cst_35 {dimension_numbers = #tpu.dot_dimension_numbers<[1], [0], [0], [1], [0, 0, 1, 1], [], []>} : vector<324x8xbf16>, vector<8x128xbf16>, vector<324x128xf32> -> vector<324x128xf32>
    %35 = arith.addf %30, %34 : vector<324x128xf32>
    %c0_36 = arith.constant 0 : index
    %c0_37 = arith.constant 0 : index
    %c44 = arith.constant 44 : index
    %c0_38 = arith.constant 0 : index
    %36 = vector.load %arg2[%c0_36, %c0_37, %c44, %c0_38] : memref<1x1x376x8xbf16, #tpu.memory_space<vmem>>, vector<1x1x324x8xbf16>
    %37 = vector.shape_cast %36 : vector<1x1x324x8xbf16> to vector<324x8xbf16>
    %c56 = arith.constant 56 : index
    %c0_39 = arith.constant 0 : index
    %38 = vector.load %arg3[%c56, %c0_39] : memref<72x128xbf16, #tpu.memory_space<vmem>>, vector<8x128xbf16>
    %cst_40 = arith.constant dense<0.000000e+00> : vector<324x128xf32>
    %39 = tpu.matmul %37, %38, %cst_40 {dimension_numbers = #tpu.dot_dimension_numbers<[1], [0], [0], [1], [0, 0, 1, 1], [], []>} : vector<324x8xbf16>, vector<8x128xbf16>, vector<324x128xf32> -> vector<324x128xf32>
    %40 = arith.addf %35, %39 : vector<324x128xf32>
    %c0_41 = arith.constant 0 : index
    %c0_42 = arith.constant 0 : index
    %c45 = arith.constant 45 : index
    %c0_43 = arith.constant 0 : index
    %41 = vector.load %arg2[%c0_41, %c0_42, %c45, %c0_43] : memref<1x1x376x8xbf16, #tpu.memory_space<vmem>>, vector<1x1x324x8xbf16>
    %42 = vector.shape_cast %41 : vector<1x1x324x8xbf16> to vector<324x8xbf16>
    %c64 = arith.constant 64 : index
    %c0_44 = arith.constant 0 : index
    %43 = vector.load %arg3[%c64, %c0_44] : memref<72x128xbf16, #tpu.memory_space<vmem>>, vector<8x128xbf16>
    %cst_45 = arith.constant dense<0.000000e+00> : vector<324x128xf32>
    %44 = tpu.matmul %42, %43, %cst_45 {dimension_numbers = #tpu.dot_dimension_numbers<[1], [0], [0], [1], [0, 0, 1, 1], [], []>} : vector<324x8xbf16>, vector<8x128xbf16>, vector<324x128xf32> -> vector<324x128xf32>
    %45 = arith.addf %40, %44 : vector<324x128xf32>
    %c0_46 = arith.constant 0 : index
    %c0_47 = arith.constant 0 : index
    %46 = vector.load %arg4[%c0_46, %c0_47] : memref<1x128xf32, #tpu.memory_space<vmem>>, vector<1x128xf32>
    %47 = vector.broadcast %46 : vector<1x128xf32> to vector<324x128xf32>
    %48 = arith.mulf %45, %47 : vector<324x128xf32>
    %c0_48 = arith.constant 0 : index
    %c0_49 = arith.constant 0 : index
    %49 = vector.load %arg5[%c0_48, %c0_49] : memref<1x128xf32, #tpu.memory_space<vmem>>, vector<1x128xf32>
    %50 = vector.broadcast %49 : vector<1x128xf32> to vector<324x128xf32>
    %51 = arith.addf %48, %50 : vector<324x128xf32>
    %cst_50 = arith.constant 0.000000e+00 : f32
    %52 = vector.broadcast %cst_50 : f32 to vector<324x128xf32>
    %53 = arith.maximumf %51, %52 : vector<324x128xf32>
    %54 = tpu.iota {dimensions = array<i32: 0>} : vector<324x1xi32>
    %c18_i32 = arith.constant 18 : i32
    %c0_i32 = arith.constant 0 : i32
    %55 = arith.cmpi eq, %c18_i32, %c0_i32 : i32
    %c1_i32 = arith.constant 1 : i32
    %56 = arith.select %55, %c1_i32, %c18_i32 : i32
    %57 = vector.broadcast %56 : i32 to vector<324x1xi32>
    %58 = arith.remsi %54, %57 : vector<324x1xi32>
    %c0_i32_51 = arith.constant 0 : i32
    %59 = vector.broadcast %c0_i32_51 : i32 to vector<324x1xi32>
    %60 = arith.cmpi ne, %58, %59 : vector<324x1xi32>
    %c0_i32_52 = arith.constant 0 : i32
    %61 = vector.broadcast %c0_i32_52 : i32 to vector<324x1xi32>
    %62 = arith.cmpi slt, %58, %61 : vector<324x1xi32>
    %c0_i32_53 = arith.constant 0 : i32
    %63 = arith.cmpi slt, %56, %c0_i32_53 : i32
    %64 = vector.broadcast %63 : i1 to vector<324x1xi1>
    %65 = vector.broadcast %64 : vector<324x1xi1> to vector<324x1xi1>
    %66 = arith.xori %62, %65 : vector<324x1xi1>
    %67 = arith.andi %66, %60 : vector<324x1xi1>
    %68 = vector.broadcast %56 : i32 to vector<324x1xi32>
    %69 = arith.addi %58, %68 : vector<324x1xi32>
    %70 = arith.select %67, %69, %58 : vector<324x1xi1>, vector<324x1xi32>
    %c0_i32_54 = arith.constant 0 : i32
    %71 = vector.broadcast %c0_i32_54 : i32 to vector<324x1xi32>
    %72 = arith.cmpi eq, %70, %71 : vector<324x1xi32>
    %c17_i32 = arith.constant 17 : i32
    %73 = vector.broadcast %c17_i32 : i32 to vector<324x1xi32>
    %74 = arith.cmpi eq, %70, %73 : vector<324x1xi32>
    %75 = arith.ori %72, %74 : vector<324x1xi1>
    %cst_55 = arith.constant 0.000000e+00 : f32
    %76 = vector.shape_cast %75 : vector<324x1xi1> to vector<324x1xi1>
    %77 = vector.broadcast %76 : vector<324x1xi1> to vector<324x128xi1>
    %78 = vector.broadcast %cst_55 : f32 to vector<324x128xf32>
    %79 = arith.select %77, %78, %53 : vector<324x128xi1>, vector<324x128xf32>
    %80 = arith.truncf %79 : vector<324x128xf32> to vector<324x128xbf16>
    %c8_56 = arith.constant 8 : index
    %c0_57 = arith.constant 0 : index
    %81 = vector.load %arg10[%c8_56, %c0_57] : memref<340x128xbf16, #tpu.memory_space<vmem>>, vector<324x128xbf16>
    tpu.vector_store %arg10[%c8_56, %c0_57], %80 {strides = array<i32>} : memref<340x128xbf16, #tpu.memory_space<vmem>>, vector<324x128xbf16>,
    %c0_i32_58 = arith.constant 0 : i32
    %82 = arith.cmpi eq, %arg1, %c0_i32_58 : i32
    %83 = arith.extui %82 : i1 to i32
    %c0_i32_59 = arith.constant 0 : i32
    %84 = arith.cmpi ne, %83, %c0_i32_59 : i32
    scf.if %84 {
      %cst_109 = arith.constant 0.000000e+00 : bf16
      %136 = vector.broadcast %cst_109 : bf16 to vector<18x128xbf16>
      %c8_110 = arith.constant 8 : index
      %c0_111 = arith.constant 0 : index
      %137 = vector.load %arg10[%c8_110, %c0_111] : memref<340x128xbf16, #tpu.memory_space<vmem>>, vector<18x128xbf16>
      tpu.vector_store %arg10[%c8_110, %c0_111], %136 {strides = array<i32>} : memref<340x128xbf16, #tpu.memory_space<vmem>>, vector<18x128xbf16>,
    } else {
    }
    %c0_i32_60 = arith.constant 0 : i32
    %85 = arith.cmpi eq, %arg1, %c0_i32_60 : i32
    %86 = arith.extui %85 : i1 to i32
    %c0_i32_61 = arith.constant 0 : i32
    %87 = arith.cmpi ne, %86, %c0_i32_61 : i32
    scf.if %87 {
      %cst_109 = arith.constant 0.000000e+00 : bf16
      %136 = vector.broadcast %cst_109 : bf16 to vector<18x128xbf16>
      %c314 = arith.constant 314 : index
      %c0_110 = arith.constant 0 : index
      %137 = vector.load %arg10[%c314, %c0_110] : memref<340x128xbf16, #tpu.memory_space<vmem>>, vector<18x128xbf16>
      tpu.vector_store %arg10[%c314, %c0_110], %136 {strides = array<i32>} : memref<340x128xbf16, #tpu.memory_space<vmem>>, vector<18x128xbf16>,
    } else {
    }
    %cst_62 = arith.constant 0.000000e+00 : f32
    %88 = vector.broadcast %cst_62 : f32 to vector<288x128xf32>
    %c7_63 = arith.constant 7 : index
    %c0_64 = arith.constant 0 : index
    %89 = vector.load %arg10[%c7_63, %c0_64] : memref<340x128xbf16, #tpu.memory_space<vmem>>, vector<288x128xbf16>
    %c0_65 = arith.constant 0 : index
    %c0_66 = arith.constant 0 : index
    %90 = vector.load %arg6[%c0_65, %c0_66] : memref<1152x128xbf16, #tpu.memory_space<vmem>>, vector<128x128xbf16>
    %cst_67 = arith.constant dense<0.000000e+00> : vector<288x128xf32>
    %91 = tpu.matmul %89, %90, %cst_67 {dimension_numbers = #tpu.dot_dimension_numbers<[1], [0], [0], [1], [0, 0, 1, 1], [], []>} : vector<288x128xbf16>, vector<128x128xbf16>, vector<288x128xf32> -> vector<288x128xf32>
    %92 = arith.addf %88, %91 : vector<288x128xf32>
    %c8_68 = arith.constant 8 : index
    %c0_69 = arith.constant 0 : index
    %93 = vector.load %arg10[%c8_68, %c0_69] : memref<340x128xbf16, #tpu.memory_space<vmem>>, vector<288x128xbf16>
    %c128 = arith.constant 128 : index
    %c0_70 = arith.constant 0 : index
    %94 = vector.load %arg6[%c128, %c0_70] : memref<1152x128xbf16, #tpu.memory_space<vmem>>, vector<128x128xbf16>
    %cst_71 = arith.constant dense<0.000000e+00> : vector<288x128xf32>
    %95 = tpu.matmul %93, %94, %cst_71 {dimension_numbers = #tpu.dot_dimension_numbers<[1], [0], [0], [1], [0, 0, 1, 1], [], []>} : vector<288x128xbf16>, vector<128x128xbf16>, vector<288x128xf32> -> vector<288x128xf32>
    %96 = arith.addf %92, %95 : vector<288x128xf32>
    %c9_72 = arith.constant 9 : index
    %c0_73 = arith.constant 0 : index
    %97 = vector.load %arg10[%c9_72, %c0_73] : memref<340x128xbf16, #tpu.memory_space<vmem>>, vector<288x128xbf16>
    %c256 = arith.constant 256 : index
    %c0_74 = arith.constant 0 : index
    %98 = vector.load %arg6[%c256, %c0_74] : memref<1152x128xbf16, #tpu.memory_space<vmem>>, vector<128x128xbf16>
    %cst_75 = arith.constant dense<0.000000e+00> : vector<288x128xf32>
    %99 = tpu.matmul %97, %98, %cst_75 {dimension_numbers = #tpu.dot_dimension_numbers<[1], [0], [0], [1], [0, 0, 1, 1], [], []>} : vector<288x128xbf16>, vector<128x128xbf16>, vector<288x128xf32> -> vector<288x128xf32>
    %100 = arith.addf %96, %99 : vector<288x128xf32>
    %c25_76 = arith.constant 25 : index
    %c0_77 = arith.constant 0 : index
    %101 = vector.load %arg10[%c25_76, %c0_77] : memref<340x128xbf16, #tpu.memory_space<vmem>>, vector<288x128xbf16>
    %c384 = arith.constant 384 : index
    %c0_78 = arith.constant 0 : index
    %102 = vector.load %arg6[%c384, %c0_78] : memref<1152x128xbf16, #tpu.memory_space<vmem>>, vector<128x128xbf16>
    %cst_79 = arith.constant dense<0.000000e+00> : vector<288x128xf32>
    %103 = tpu.matmul %101, %102, %cst_79 {dimension_numbers = #tpu.dot_dimension_numbers<[1], [0], [0], [1], [0, 0, 1, 1], [], []>} : vector<288x128xbf16>, vector<128x128xbf16>, vector<288x128xf32> -> vector<288x128xf32>
    %104 = arith.addf %100, %103 : vector<288x128xf32>
    %c26_80 = arith.constant 26 : index
    %c0_81 = arith.constant 0 : index
    %105 = vector.load %arg10[%c26_80, %c0_81] : memref<340x128xbf16, #tpu.memory_space<vmem>>, vector<288x128xbf16>
    %c512 = arith.constant 512 : index
    %c0_82 = arith.constant 0 : index
    %106 = vector.load %arg6[%c512, %c0_82] : memref<1152x128xbf16, #tpu.memory_space<vmem>>, vector<128x128xbf16>
    %cst_83 = arith.constant dense<0.000000e+00> : vector<288x128xf32>
    %107 = tpu.matmul %105, %106, %cst_83 {dimension_numbers = #tpu.dot_dimension_numbers<[1], [0], [0], [1], [0, 0, 1, 1], [], []>} : vector<288x128xbf16>, vector<128x128xbf16>, vector<288x128xf32> -> vector<288x128xf32>
    %108 = arith.addf %104, %107 : vector<288x128xf32>
    %c27_84 = arith.constant 27 : index
    %c0_85 = arith.constant 0 : index
    %109 = vector.load %arg10[%c27_84, %c0_85] : memref<340x128xbf16, #tpu.memory_space<vmem>>, vector<288x128xbf16>
    %c640 = arith.constant 640 : index
    %c0_86 = arith.constant 0 : index
    %110 = vector.load %arg6[%c640, %c0_86] : memref<1152x128xbf16, #tpu.memory_space<vmem>>, vector<128x128xbf16>
    %cst_87 = arith.constant dense<0.000000e+00> : vector<288x128xf32>
    %111 = tpu.matmul %109, %110, %cst_87 {dimension_numbers = #tpu.dot_dimension_numbers<[1], [0], [0], [1], [0, 0, 1, 1], [], []>} : vector<288x128xbf16>, vector<128x128xbf16>, vector<288x128xf32> -> vector<288x128xf32>
    %112 = arith.addf %108, %111 : vector<288x128xf32>
    %c43_88 = arith.constant 43 : index
    %c0_89 = arith.constant 0 : index
    %113 = vector.load %arg10[%c43_88, %c0_89] : memref<340x128xbf16, #tpu.memory_space<vmem>>, vector<288x128xbf16>
    %c768 = arith.constant 768 : index
    %c0_90 = arith.constant 0 : index
    %114 = vector.load %arg6[%c768, %c0_90] : memref<1152x128xbf16, #tpu.memory_space<vmem>>, vector<128x128xbf16>
    %cst_91 = arith.constant dense<0.000000e+00> : vector<288x128xf32>
    %115 = tpu.matmul %113, %114, %cst_91 {dimension_numbers = #tpu.dot_dimension_numbers<[1], [0], [0], [1], [0, 0, 1, 1], [], []>} : vector<288x128xbf16>, vector<128x128xbf16>, vector<288x128xf32> -> vector<288x128xf32>
    %116 = arith.addf %112, %115 : vector<288x128xf32>
    %c44_92 = arith.constant 44 : index
    %c0_93 = arith.constant 0 : index
    %117 = vector.load %arg10[%c44_92, %c0_93] : memref<340x128xbf16, #tpu.memory_space<vmem>>, vector<288x128xbf16>
    %c896 = arith.constant 896 : index
    %c0_94 = arith.constant 0 : index
    %118 = vector.load %arg6[%c896, %c0_94] : memref<1152x128xbf16, #tpu.memory_space<vmem>>, vector<128x128xbf16>
    %cst_95 = arith.constant dense<0.000000e+00> : vector<288x128xf32>
    %119 = tpu.matmul %117, %118, %cst_95 {dimension_numbers = #tpu.dot_dimension_numbers<[1], [0], [0], [1], [0, 0, 1, 1], [], []>} : vector<288x128xbf16>, vector<128x128xbf16>, vector<288x128xf32> -> vector<288x128xf32>
    %120 = arith.addf %116, %119 : vector<288x128xf32>
    %c45_96 = arith.constant 45 : index
    %c0_97 = arith.constant 0 : index
    %121 = vector.load %arg10[%c45_96, %c0_97] : memref<340x128xbf16, #tpu.memory_space<vmem>>, vector<288x128xbf16>
    %c1024 = arith.constant 1024 : index
    %c0_98 = arith.constant 0 : index
    %122 = vector.load %arg6[%c1024, %c0_98] : memref<1152x128xbf16, #tpu.memory_space<vmem>>, vector<128x128xbf16>
    %cst_99 = arith.constant dense<0.000000e+00> : vector<288x128xf32>
    %123 = tpu.matmul %121, %122, %cst_99 {dimension_numbers = #tpu.dot_dimension_numbers<[1], [0], [0], [1], [0, 0, 1, 1], [], []>} : vector<288x128xbf16>, vector<128x128xbf16>, vector<288x128xf32> -> vector<288x128xf32>
    %124 = arith.addf %120, %123 : vector<288x128xf32>
    %c0_100 = arith.constant 0 : index
    %c0_101 = arith.constant 0 : index
    %125 = vector.load %arg7[%c0_100, %c0_101] : memref<1x128xf32, #tpu.memory_space<vmem>>, vector<1x128xf32>
    %126 = vector.broadcast %125 : vector<1x128xf32> to vector<288x128xf32>
    %127 = arith.mulf %124, %126 : vector<288x128xf32>
    %c0_102 = arith.constant 0 : index
    %c0_103 = arith.constant 0 : index
    %128 = vector.load %arg8[%c0_102, %c0_103] : memref<1x128xf32, #tpu.memory_space<vmem>>, vector<1x128xf32>
    %129 = vector.broadcast %128 : vector<1x128xf32> to vector<288x128xf32>
    %130 = arith.addf %127, %129 : vector<288x128xf32>
    %cst_104 = arith.constant 0.000000e+00 : f32
    %131 = vector.broadcast %cst_104 : f32 to vector<288x128xf32>
    %132 = arith.maximumf %130, %131 : vector<288x128xf32>
    %c0_105 = arith.constant 0 : index
    %c0_106 = arith.constant 0 : index
    %c0_107 = arith.constant 0 : index
    %c0_108 = arith.constant 0 : index
    %133 = vector.load %arg9[%c0_105, %c0_106, %c0_107, %c0_108] : memref<1x1x288x128xf32, #tpu.memory_space<vmem>>, vector<1x1x288x128xf32>
    %134 = vector.shape_cast %133 : vector<1x1x288x128xf32> to vector<288x128xf32>
    %135 = vector.shape_cast %132 : vector<288x128xf32> to vector<1x1x288x128xf32>
    tpu.vector_store %arg9[%c0_105, %c0_106, %c0_107, %c0_108], %135 {strides = array<i32>} : memref<1x1x288x128xf32, #tpu.memory_space<vmem>>, vector<1x1x288x128xf32>,
    return
  }
  func.func @transform_0(%arg0: i32, %arg1: i32) -> (i32, i32, i32, i32) {
    %c0_i32 = arith.constant 0 : i32
    %c0_i32_0 = arith.constant 0 : i32
    %c0_i32_1 = arith.constant 0 : i32
    return %arg0, %arg1, %c0_i32, %c0_i32_0 : i32, i32, i32, i32
  }
  func.func @transform_1(%arg0: i32, %arg1: i32) -> (i32, i32) {
    %c0_i32 = arith.constant 0 : i32
    %c0_i32_0 = arith.constant 0 : i32
    %c0_i32_1 = arith.constant 0 : i32
    return %c0_i32, %c0_i32_0 : i32, i32
  }
  func.func @transform_2(%arg0: i32, %arg1: i32) -> (i32, i32) {
    %c0_i32 = arith.constant 0 : i32
    %c0_i32_0 = arith.constant 0 : i32
    %c0_i32_1 = arith.constant 0 : i32
    return %c0_i32, %c0_i32_0 : i32, i32
  }
  func.func @transform_3(%arg0: i32, %arg1: i32) -> (i32, i32) {
    %c0_i32 = arith.constant 0 : i32
    %c0_i32_0 = arith.constant 0 : i32
    %c0_i32_1 = arith.constant 0 : i32
    return %c0_i32, %c0_i32_0 : i32, i32
  }
  func.func @transform_4(%arg0: i32, %arg1: i32) -> (i32, i32) {
    %c0_i32 = arith.constant 0 : i32
    %c0_i32_0 = arith.constant 0 : i32
    %c0_i32_1 = arith.constant 0 : i32
    return %c0_i32, %c0_i32_0 : i32, i32
  }
  func.func @transform_5(%arg0: i32, %arg1: i32) -> (i32, i32) {
    %c0_i32 = arith.constant 0 : i32
    %c0_i32_0 = arith.constant 0 : i32
    %c0_i32_1 = arith.constant 0 : i32
    return %c0_i32, %c0_i32_0 : i32, i32
  }
  func.func @transform_6(%arg0: i32, %arg1: i32) -> (i32, i32) {
    %c0_i32 = arith.constant 0 : i32
    %c0_i32_0 = arith.constant 0 : i32
    %c0_i32_1 = arith.constant 0 : i32
    return %c0_i32, %c0_i32_0 : i32, i32
  }
  func.func @transform_7(%arg0: i32, %arg1: i32) -> (i32, i32, i32, i32) {
    %c0_i32 = arith.constant 0 : i32
    %c0_i32_0 = arith.constant 0 : i32
    %c0_i32_1 = arith.constant 0 : i32
    return %arg0, %arg1, %c0_i32, %c0_i32_0 : i32, i32, i32, i32
  }
}

</mosaic_0001>

<llo_original>
// kernel: double_conv.1
$region0: #{double_conv.1}
  #allocation0 [shape = 'u32[]', space=smem, size = 0x4, offset = 0x4, fixed_abs, tag = 'smem constant byte address 0x4 - core index']
  #allocation1 [shape = 'u32[144,128]{1,0:T(1,128)}', space=vmem, size = 0x12000, scoped, tag = 'internal scratch']
  #allocation2 [shape = 'bf16[340,128]{1,0:T(8,128)(2,1)}', space=vmem, size = 0x15800, scoped, tag = 'scratch operand']
  %s0 = inlined_call_operand.vmem [shape: bf16[2,1,376,8], index: 0, kind: input, shape index: {}]
  %s1 = inlined_call_operand.vmem [shape: bf16[72,128], index: 1, kind: input, shape index: {}]
  %s2 = inlined_call_operand.vmem [shape: f32[1,128], index: 2, kind: input, shape index: {}]
  %s3 = inlined_call_operand.vmem [shape: f32[1,128], index: 3, kind: input, shape index: {}]
  %s4 = inlined_call_operand.vmem [shape: bf16[1152,128], index: 4, kind: input, shape index: {}]
  %s5 = inlined_call_operand.vmem [shape: f32[1,128], index: 5, kind: input, shape index: {}]
  %s6 = inlined_call_operand.vmem [shape: f32[1,128], index: 6, kind: input, shape index: {}]
  %s7 = inlined_call_operand.vmem [shape: f32[2,1,288,128], index: 7, kind: output, shape index: {}]
  %s8 = sld [smem:[#allocation0]]
  $region65: #{double_conv.1} parent=0
    _
  %s10 = ssub.s32 1, %s8
  %s11 = scalar_select 0, %s10, %s8
  loop: start=0, step=1, limit=4
  $region2: #{double_conv.1} parent=0 // loop_pre_header
    _
  $region3: #{double_conv.1} parent=0 // loop_header
    %s13 = sphi 0, %s17
    %p14 = scmp.ge.s32.totalorder %s13, 4
    %s20 = sphi 0, %s32
    %s21 = sphi 0, %s28
    %s22 = sphi 0, %s20
    %s23 = sphi 0, %s21
    %s24 = sphi 0, %s22
    %s25 = sphi 0, %s23
    %s37 = sphi 0, %s39
    %s40 = sphi 0, %s37
    %s41 = sphi 0, %s40
    %s57 = sphi 0, %s41
    %s61 = sphi 0, %s61
    %s63 = sphi 0, %s61
    %s64 = sphi 0, %s63
    %s78 = sphi 0, %s64
    %s82 = sphi 0, %s82
    %s84 = sphi 0, %s82
    %s85 = sphi 0, %s84
    %s99 = sphi 0, %s85
    %s103 = sphi 0, %s103
    %s105 = sphi 0, %s103
    %s106 = sphi 0, %s105
    %s120 = sphi 0, %s106
    %s124 = sphi 0, %s124
    %s126 = sphi 0, %s124
    %s127 = sphi 0, %s126
    %s141 = sphi 0, %s127
    %s145 = sphi 0, %s145
    %s147 = sphi 0, %s145
    %s148 = sphi 0, %s147
    %s162 = sphi 0, %s148
    %s166 = sphi 0, %s166
    %s168 = sphi 0, %s166
    %s169 = sphi 0, %s168
    %s183 = sphi 0, %s169
    %s191 = sphi 0, %s193
    %s194 = sphi 0, %s191
    %s195 = sphi 0, %s194
    %s211 = sphi 0, %s195
  $region4: #{double_conv.1} parent=0 // loop_header_branch
    %16 = sbr.rel (%p14) target = $region8
  $region5: #{double_conv.1} parent=0 // loop_body
    %s18 = ssub.s32 %s13, 1
    %s19 = ssub.s32 %s13, 2
    %s26 = sadd.s32 1, %s21
    %p27 = scmp.ge.s32.totalorder %s26, 1
    %s28 = scalar_select %p27, 0, %s26
    %s29 = sadd.s32 1, %s20
    %s30 = scalar_select %p27, %s29, %s20
    %p31 = scmp.ge.s32.totalorder %s30, 2
    %s32 = scalar_select %p31, 0, %s30
    %s33 = ssub.s32 %s20, %s32
    %s34 = ssub.s32 %s21, %s28
    %s35 = sor.u32 %s33, %s34
    %p36 = scmp.eq.s32.totalorder %s35, 0
    %s38 = sadd.s32 %s37, 1
    %s39 = scalar_select %p36, %s37, %s38
    %p42 = pneg %p36
    %p43 = scmp.eq.s32.totalorder %s13, 1
    %p44 = por %p42, %p43
    %p45 = scmp.ne.s32.totalorder %s37, %s40
    %p46 = scmp.eq.s32.totalorder %s13, 0
    %p47 = por %p45, %p46
    %p48 = scmp.ne.s32.totalorder %s37, %s40
    %p49 = scmp.eq.s32.totalorder %s18, 1
    %p50 = por %p48, %p49
    %p51 = scmp.ne.s32.totalorder %s40, %s41
    %p52 = scmp.eq.s32.totalorder %s18, 0
    %p53 = por %p51, %p52
    %p54 = scmp.ne.s32.totalorder %s40, %s41
    %p55 = scmp.eq.s32.totalorder %s19, 1
    %p56 = por %p54, %p55
    %p58 = scmp.ne.s32.totalorder %s41, %s57
    %p59 = scmp.eq.s32.totalorder %s19, 0
    %p60 = por %p58, %p59
    %s62 = sadd.s32 %s61, 1
    %p65 = scmp.eq.s32.totalorder %s13, 1
    %p66 = scmp.ne.s32.totalorder %s61, %s63
    %p67 = scmp.eq.s32.totalorder %s13, 0
    %p68 = por %p66, %p67
    %p69 = scmp.ne.s32.totalorder %s61, %s63
    %p70 = scmp.eq.s32.totalorder %s18, 1
    %p71 = por %p69, %p70
    %p72 = scmp.ne.s32.totalorder %s63, %s64
    %p73 = scmp.eq.s32.totalorder %s18, 0
    %p74 = por %p72, %p73
    %p75 = scmp.ne.s32.totalorder %s63, %s64
    %p76 = scmp.eq.s32.totalorder %s19, 1
    %p77 = por %p75, %p76
    %p79 = scmp.ne.s32.totalorder %s64, %s78
    %p80 = scmp.eq.s32.totalorder %s19, 0
    %p81 = por %p79, %p80
    %s83 = sadd.s32 %s82, 1
    %p86 = scmp.eq.s32.totalorder %s13, 1
    %p87 = scmp.ne.s32.totalorder %s82, %s84
    %p88 = scmp.eq.s32.totalorder %s13, 0
    %p89 = por %p87, %p88
    %p90 = scmp.ne.s32.totalorder %s82, %s84
    %p91 = scmp.eq.s32.totalorder %s18, 1
    %p92 = por %p90, %p91
    %p93 = scmp.ne.s32.totalorder %s84, %s85
    %p94 = scmp.eq.s32.totalorder %s18, 0
    %p95 = por %p93, %p94
    %p96 = scmp.ne.s32.totalorder %s84, %s85
    %p97 = scmp.eq.s32.totalorder %s19, 1
    %p98 = por %p96, %p97
    %p100 = scmp.ne.s32.totalorder %s85, %s99
    %p101 = scmp.eq.s32.totalorder %s19, 0
    %p102 = por %p100, %p101
    %s104 = sadd.s32 %s103, 1
    %p107 = scmp.eq.s32.totalorder %s13, 1
    %p108 = scmp.ne.s32.totalorder %s103, %s105
    %p109 = scmp.eq.s32.totalorder %s13, 0
    %p110 = por %p108, %p109
    %p111 = scmp.ne.s32.totalorder %s103, %s105
    %p112 = scmp.eq.s32.totalorder %s18, 1
    %p113 = por %p111, %p112
    %p114 = scmp.ne.s32.totalorder %s105, %s106
    %p115 = scmp.eq.s32.totalorder %s18, 0
    %p116 = por %p114, %p115
    %p117 = scmp.ne.s32.totalorder %s105, %s106
    %p118 = scmp.eq.s32.totalorder %s19, 1
    %p119 = por %p117, %p118
    %p121 = scmp.ne.s32.totalorder %s106, %s120
    %p122 = scmp.eq.s32.totalorder %s19, 0
    %p123 = por %p121, %p122
    %s125 = sadd.s32 %s124, 1
    %p128 = scmp.eq.s32.totalorder %s13, 1
    %p129 = scmp.ne.s32.totalorder %s124, %s126
    %p130 = scmp.eq.s32.totalorder %s13, 0
    %p131 = por %p129, %p130
    %p132 = scmp.ne.s32.totalorder %s124, %s126
    %p133 = scmp.eq.s32.totalorder %s18, 1
    %p134 = por %p132, %p133
    %p135 = scmp.ne.s32.totalorder %s126, %s127
    %p136 = scmp.eq.s32.totalorder %s18, 0
    %p137 = por %p135, %p136
    %p138 = scmp.ne.s32.totalorder %s126, %s127
    %p139 = scmp.eq.s32.totalorder %s19, 1
    %p140 = por %p138, %p139
    %p142 = scmp.ne.s32.totalorder %s127, %s141
    %p143 = scmp.eq.s32.totalorder %s19, 0
    %p144 = por %p142, %p143
    %s146 = sadd.s32 %s145, 1
    %p149 = scmp.eq.s32.totalorder %s13, 1
    %p150 = scmp.ne.s32.totalorder %s145, %s147
    %p151 = scmp.eq.s32.totalorder %s13, 0
    %p152 = por %p150, %p151
    %p153 = scmp.ne.s32.totalorder %s145, %s147
    %p154 = scmp.eq.s32.totalorder %s18, 1
    %p155 = por %p153, %p154
    %p156 = scmp.ne.s32.totalorder %s147, %s148
    %p157 = scmp.eq.s32.totalorder %s18, 0
    %p158 = por %p156, %p157
    %p159 = scmp.ne.s32.totalorder %s147, %s148
    %p160 = scmp.eq.s32.totalorder %s19, 1
    %p161 = por %p159, %p160
    %p163 = scmp.ne.s32.totalorder %s148, %s162
    %p164 = scmp.eq.s32.totalorder %s19, 0
    %p165 = por %p163, %p164
    %s167 = sadd.s32 %s166, 1
    %p170 = scmp.eq.s32.totalorder %s13, 1
    %p171 = scmp.ne.s32.totalorder %s166, %s168
    %p172 = scmp.eq.s32.totalorder %s13, 0
    %p173 = por %p171, %p172
    %p174 = scmp.ne.s32.totalorder %s166, %s168
    %p175 = scmp.eq.s32.totalorder %s18, 1
    %p176 = por %p174, %p175
    %p177 = scmp.ne.s32.totalorder %s168, %s169
    %p178 = scmp.eq.s32.totalorder %s18, 0
    %p179 = por %p177, %p178
    %p180 = scmp.ne.s32.totalorder %s168, %s169
    %p181 = scmp.eq.s32.totalorder %s19, 1
    %p182 = por %p180, %p181
    %p184 = scmp.ne.s32.totalorder %s169, %s183
    %p185 = scmp.eq.s32.totalorder %s19, 0
    %p186 = por %p184, %p185
    %s187 = ssub.s32 %s20, %s32
    %s188 = ssub.s32 %s21, %s28
    %s189 = sor.u32 %s187, %s188
    %p190 = scmp.eq.s32.totalorder %s189, 0
    %s192 = sadd.s32 %s191, 1
    %s193 = scalar_select %p190, %s191, %s192
    %p196 = pneg %p190
    %p197 = scmp.eq.s32.totalorder %s13, 1
    %p198 = por %p196, %p197
    %p199 = scmp.ne.s32.totalorder %s191, %s194
    %p200 = scmp.eq.s32.totalorder %s13, 0
    %p201 = por %p199, %p200
    %p202 = scmp.ne.s32.totalorder %s191, %s194
    %p203 = scmp.eq.s32.totalorder %s18, 1
    %p204 = por %p202, %p203
    %p205 = scmp.ne.s32.totalorder %s194, %s195
    %p206 = scmp.eq.s32.totalorder %s18, 0
    %p207 = por %p205, %p206
    %p208 = scmp.ne.s32.totalorder %s194, %s195
    %p209 = scmp.eq.s32.totalorder %s19, 1
    %p210 = por %p208, %p209
    %p212 = scmp.ne.s32.totalorder %s195, %s211
    %p213 = scmp.eq.s32.totalorder %s19, 0
    %p214 = por %p212, %p213
    %p215 = scmp.le.s32.totalorder 1, %s13
    %p216 = scmp.lt.s32.totalorder %s13, 3
    %p217 = pnand %p215, %p216
    %p218 = pneg %p217
    // Predicated region
    $region9: #{double_conv.1} parent=5 // pred_check
      _
    $region10: #{double_conv.1} parent=5 // pred_check_branch
      %220 = sbr.rel (%p217) target = $region12
    $region11: #{double_conv.1} parent=5 // pred_region
      %s221 = ssub.s32 %s13, 1
      // Predicated region
      $region13: #{double_conv.1} parent=11 // pred_check
        %p222 = pneg %p74
      $region14: #{double_conv.1} parent=11 // pred_check_branch
        %224 = sbr.rel (%p222) target = $region16
      $region15: #{double_conv.1} parent=11 // pred_region
        _
      $region16: #{double_conv.1} parent=11 // pred_fallthru
        _
      // Predicated region
      $region17: #{double_conv.1} parent=11 // pred_check
        %p225 = pneg %p95
      $region18: #{double_conv.1} parent=11 // pred_check_branch
        %227 = sbr.rel (%p225) target = $region20
      $region19: #{double_conv.1} parent=11 // pred_region
        _
      $region20: #{double_conv.1} parent=11 // pred_fallthru
        _
      // Predicated region
      $region21: #{double_conv.1} parent=11 // pred_check
        %p228 = pneg %p116
      $region22: #{double_conv.1} parent=11 // pred_check_branch
        %230 = sbr.rel (%p228) target = $region24
      $region23: #{double_conv.1} parent=11 // pred_region
        _
      $region24: #{double_conv.1} parent=11 // pred_fallthru
        _
      // Predicated region
      $region25: #{double_conv.1} parent=11 // pred_check
        %p231 = pneg %p137
      $region26: #{double_conv.1} parent=11 // pred_check_branch
        %233 = sbr.rel (%p231) target = $region28
      $region27: #{double_conv.1} parent=11 // pred_region
        _
      $region28: #{double_conv.1} parent=11 // pred_fallthru
        _
      // Predicated region
      $region29: #{double_conv.1} parent=11 // pred_check
        %p234 = pneg %p158
      $region30: #{double_conv.1} parent=11 // pred_check_branch
        %236 = sbr.rel (%p234) target = $region32
      $region31: #{double_conv.1} parent=11 // pred_region
        _
      $region32: #{double_conv.1} parent=11 // pred_fallthru
        _
      // Predicated region
      $region33: #{double_conv.1} parent=11 // pred_check
        %p237 = pneg %p179
      $region34: #{double_conv.1} parent=11 // pred_check_branch
        %239 = sbr.rel (%p237) target = $region36
      $region35: #{double_conv.1} parent=11 // pred_region
        _
      $region36: #{double_conv.1} parent=11 // pred_fallthru
        _
    $region12: #{double_conv.1} parent=5 // pred_fallthru
      _
    %p240 = scmp.lt.s32.totalorder %s13, 2
    // Predicated region
    $region37: #{double_conv.1} parent=5 // pred_check
      %p241 = pneg %p240
    $region38: #{double_conv.1} parent=5 // pred_check_branch
      %243 = sbr.rel (%p241) target = $region40
    $region39: #{double_conv.1} parent=5 // pred_region
      // Predicated region
      $region41: #{double_conv.1} parent=39 // pred_check
        %p244 = pneg %p47
      $region42: #{double_conv.1} parent=39 // pred_check_branch
        %246 = sbr.rel (%p244) target = $region44
      $region43: #{double_conv.1} parent=39 // pred_region
        %p247 = scmp.lt.s32.totalorder %s20, 1
        %s248 = scalar_select %p247, %s20, 1
        %p249 = scmp.lt.s32.totalorder %s21, 0
        %s250 = scalar_select %p249, %s21, 0
        %s251 = smul.addr %s250, 47
        %s252 = smul.addr %s248, 47
        %s253 = sadd.s32 %s251, %s252
        %s254 = smul.addr %s253, 4
        %s255 = scalar_lea.vmem %s0, %s254
      $region44: #{double_conv.1} parent=39 // pred_fallthru
        _
    $region40: #{double_conv.1} parent=5 // pred_fallthru
      _
    %p256 = scmp.le.s32.totalorder 1, %s13
    %p257 = scmp.lt.s32.totalorder %s13, 3
    %p258 = pnand %p256, %p257
    %p259 = pneg %p258
    // Predicated region
    $region45: #{double_conv.1} parent=5 // pred_check
      _
    $region46: #{double_conv.1} parent=5 // pred_check_branch
      %261 = sbr.rel (%p258) target = $region48
    $region47: #{double_conv.1} parent=5 // pred_region
      %s262 = ssub.s32 %s13, 1
      %p263 = scmp.lt.s32.totalorder %s22, 1
      %s264 = scalar_select %p263, %s22, 1
      %p265 = scmp.lt.s32.totalorder %s23, 0
      %s266 = scalar_select %p265, %s23, 0
      %s267 = smul.addr %s266, 47
      %s268 = smul.addr %s264, 47
      %s269 = sadd.s32 %s267, %s268
      %s270 = smul.addr %s269, 4
      %s271 = scalar_lea.vmem %s0, %s270
      %p272 = pneg %p53
      %p273 = pneg %p50
      %p274 = pneg %p74
      %p275 = pneg %p71
      %p276 = pneg %p95
      %p277 = pneg %p92
      %p278 = pneg %p116
      %p279 = pneg %p113
      %p280 = pneg %p137
      %p281 = pneg %p134
      %p282 = pneg %p158
      %p283 = pneg %p155
      %p284 = pneg %p179
      %p285 = pneg %p176
      %p286 = pneg %p207
      %p287 = pneg %p204
      %p288 = scmp.lt.s32.totalorder %s22, 1
      %s289 = scalar_select %p288, %s22, 1
      %p290 = scmp.lt.s32.totalorder %s23, 0
      %s291 = scalar_select %p290, %s23, 0
      %s292 = smul.addr %s291, 36
      %s293 = smul.addr %s289, 36
      %s294 = sadd.s32 %s292, %s293
      %s295 = smul.addr %s294, 8
      %s296 = scalar_lea.vmem %s7, %s295
      %p297 = scmp.lt.s32.totalorder %s22, 1
      %s298 = scalar_select %p297, %s22, 1
      %p299 = scmp.lt.s32.totalorder %s23, 0
      %s300 = scalar_select %p299, %s23, 0
      %s301 = smul.addr %s300, 47
      %s302 = smul.addr %s298, 47
      %s303 = sadd.s32 %s301, %s302
      %s304 = smul.addr %s303, 4
      %s305 = scalar_lea.vmem %s0, %s304
      %p306 = scmp.lt.s32.totalorder %s22, 1
      %s307 = scalar_select %p306, %s22, 1
      %p308 = scmp.lt.s32.totalorder %s23, 0
      %s309 = scalar_select %p308, %s23, 0
      %s310 = smul.addr %s309, 36
      %s311 = smul.addr %s307, 36
      %s312 = sadd.s32 %s310, %s311
      %s313 = smul.addr %s312, 8
      %s314 = scalar_lea.vmem %s7, %s313
      %v316 = vld [vmem:[%s305] sm:$0x8]
      %v317 = vld [vmem:[%s305 + $0x4] sm:$0xf]
      %v318 = vld [vmem:[%s305 + $0x8] sm:$0xf]
      %v319 = vld [vmem:[%s305 + $0xc] sm:$0xf]
      %v320 = vld [vmem:[%s305 + $0x10] sm:$0xf]
      %v321 = vld [vmem:[%s305 + $0x14] sm:$0xf]
      %v322 = vld [vmem:[%s305 + $0x18] sm:$0xf]
      %v323 = vld [vmem:[%s305 + $0x1c] sm:$0xf]
      %v324 = vld [vmem:[%s305 + $0x20] sm:$0xf]
      %v325 = vld [vmem:[%s305 + $0x24] sm:$0xf]
      %v326 = vld [vmem:[%s305 + $0x28] sm:$0xf]
      %v327 = vld [vmem:[%s305 + $0x2c] sm:$0xf]
      %v328 = vld [vmem:[%s305 + $0x30] sm:$0xf]
      %v329 = vld [vmem:[%s305 + $0x34] sm:$0xf]
      %v330 = vld [vmem:[%s305 + $0x38] sm:$0xf]
      %v331 = vld [vmem:[%s305 + $0x3c] sm:$0xf]
      %v332 = vld [vmem:[%s305 + $0x40] sm:$0xf]
      %v333 = vld [vmem:[%s305 + $0x44] sm:$0xf]
      %v334 = vld [vmem:[%s305 + $0x48] sm:$0xf]
      %v335 = vld [vmem:[%s305 + $0x4c] sm:$0xf]
      %v336 = vld [vmem:[%s305 + $0x50] sm:$0xf]
      %v337 = vld [vmem:[%s305 + $0x54] sm:$0xf]
      %v338 = vld [vmem:[%s305 + $0x58] sm:$0xf]
      %v339 = vld [vmem:[%s305 + $0x5c] sm:$0xf]
      %v340 = vld [vmem:[%s305 + $0x60] sm:$0xf]
      %v341 = vld [vmem:[%s305 + $0x64] sm:$0xf]
      %v342 = vld [vmem:[%s305 + $0x68] sm:$0xf]
      %v343 = vld [vmem:[%s305 + $0x6c] sm:$0xf]
      %v344 = vld [vmem:[%s305 + $0x70] sm:$0xf]
      %v345 = vld [vmem:[%s305 + $0x74] sm:$0xf]
      %v346 = vld [vmem:[%s305 + $0x78] sm:$0xf]
      %v347 = vld [vmem:[%s305 + $0x7c] sm:$0xf]
      %v348 = vld [vmem:[%s305 + $0x80] sm:$0xf]
      %v349 = vld [vmem:[%s305 + $0x84] sm:$0xf]
      %v350 = vld [vmem:[%s305 + $0x88] sm:$0xf]
      %v351 = vld [vmem:[%s305 + $0x8c] sm:$0xf]
      %v352 = vld [vmem:[%s305 + $0x90] sm:$0xf]
      %v353 = vld [vmem:[%s305 + $0x94] sm:$0xf]
      %v354 = vld [vmem:[%s305 + $0x98] sm:$0xf]
      %v355 = vld [vmem:[%s305 + $0x9c] sm:$0xf]
      %v356 = vld [vmem:[%s305 + $0xa0] sm:$0xf]
      %v357 = vld [vmem:[%s305 + $0xa4] sm:$0x3]
      %v358 = vld [vmem:[%s1] sm:$0xf]
      %v359 = vld [vmem:[%s1 + $0x4] sm:$0xf]
      %v401 = vunpack.c.l.b16 %v317
      %v402 = vunpack.c.l.b16 %v318
      %v403 = vunpack.c.l.b16 %v319
      %v404 = vunpack.c.l.b16 %v320
      %v405 = vunpack.c.l.b16 %v321
      %v406 = vunpack.c.l.b16 %v322
      %v407 = vunpack.c.l.b16 %v323
      %v408 = vunpack.c.l.b16 %v324
      %v409 = vunpack.c.l.b16 %v325
      %v410 = vunpack.c.l.b16 %v326
      %v411 = vunpack.c.l.b16 %v327
      %v412 = vunpack.c.l.b16 %v328
      %v413 = vunpack.c.l.b16 %v329
      %v414 = vunpack.c.l.b16 %v330
      %v415 = vunpack.c.l.b16 %v331
      %v416 = vunpack.c.l.b16 %v332
      %v417 = vunpack.c.l.b16 %v333
      %v418 = vunpack.c.l.b16 %v334
      %v419 = vunpack.c.l.b16 %v335
      %v420 = vunpack.c.l.b16 %v336
      %v421 = vunpack.c.l.b16 %v337
      %v422 = vunpack.c.l.b16 %v338
      %v423 = vunpack.c.l.b16 %v339
      %v424 = vunpack.c.l.b16 %v340
      %v425 = vunpack.c.l.b16 %v341
      %v426 = vunpack.c.l.b16 %v342
      %v427 = vunpack.c.l.b16 %v343
      %v428 = vunpack.c.l.b16 %v344
      %v429 = vunpack.c.l.b16 %v345
      %v430 = vunpack.c.l.b16 %v346
      %v431 = vunpack.c.l.b16 %v347
      %v432 = vunpack.c.l.b16 %v348
      %v433 = vunpack.c.l.b16 %v349
      %v434 = vunpack.c.l.b16 %v350
      %v435 = vunpack.c.l.b16 %v351
      %v436 = vunpack.c.l.b16 %v352
      %v437 = vunpack.c.l.b16 %v353
      %v438 = vunpack.c.l.b16 %v354
      %v439 = vunpack.c.l.b16 %v355
      %v440 = vunpack.c.l.b16 %v356
      %v441 = vunpack.c.l.b16 %v357
      %v442 = vpack.c.b16 %v402, %v401
      %v443 = vpack.c.b16 %v404, %v403
      %v444 = vpack.c.b16 %v406, %v405
      %v445 = vpack.c.b16 %v408, %v407
      %v446 = vpack.c.b16 %v410, %v409
      %v447 = vpack.c.b16 %v412, %v411
      %v448 = vpack.c.b16 %v414, %v413
      %v449 = vpack.c.b16 %v416, %v415
      %v450 = vpack.c.b16 %v418, %v417
      %v451 = vpack.c.b16 %v420, %v419
      %v452 = vpack.c.b16 %v422, %v421
      %v453 = vpack.c.b16 %v424, %v423
      %v454 = vpack.c.b16 %v426, %v425
      %v455 = vpack.c.b16 %v428, %v427
      %v456 = vpack.c.b16 %v430, %v429
      %v457 = vpack.c.b16 %v432, %v431
      %v458 = vpack.c.b16 %v434, %v433
      %v459 = vpack.c.b16 %v436, %v435
      %v460 = vpack.c.b16 %v438, %v437
      %v461 = vpack.c.b16 %v440, %v439
      %v462 = vpack.c.b16 %v441, %v441
      %vm463 = vcmask 64512
      %v465 = vsel %vm463, %v442, 0
      %v468 = vsel %vm463, %v443, 0
      %v471 = vsel %vm463, %v444, 0
      %v474 = vsel %vm463, %v445, 0
      %v477 = vsel %vm463, %v446, 0
      %v480 = vsel %vm463, %v447, 0
      %v483 = vsel %vm463, %v448, 0
      %v486 = vsel %vm463, %v449, 0
      %v489 = vsel %vm463, %v450, 0
      %v492 = vsel %vm463, %v451, 0
      %v495 = vsel %vm463, %v452, 0
      %v498 = vsel %vm463, %v453, 0
      %v501 = vsel %vm463, %v454, 0
      %v504 = vsel %vm463, %v455, 0
      %v507 = vsel %vm463, %v456, 0
      %v510 = vsel %vm463, %v457, 0
      %v513 = vsel %vm463, %v458, 0
      %v516 = vsel %vm463, %v459, 0
      %v519 = vsel %vm463, %v460, 0
      %v522 = vsel %vm463, %v461, 0
      %v525 = vsel %vm463, %v462, 0
      %vm527 = vcmask 1043456
      %v529 = vsel %vm527, %v359, 0
      %531 = vmatprep.subr.bf16.mxu0 0
      %532 = vmatpush1.bf16.msra.mxu0 0
      %533 = vmatprep.subr.bf16.mxu0 0
      %534 = vmatpush1.bf16.msra.mxu0 0
      %535 = vmatprep.subr.bf16.mxu0 0
      %536 = vmatpush1.bf16.msra.mxu0 0
      %537 = vmatprep.subr.bf16.mxu0 0
      %538 = vmatpush1.bf16.msra.mxu0 0
      %539 = vmatprep.subr.bf16.mxu0 0
      %540 = vmatpush1.bf16.msra.mxu0 0
      %541 = vmatprep.subr.bf16.mxu0 0
      %542 = vmatpush1.bf16.msra.mxu0 0
      %543 = vmatprep.subr.bf16.mxu0 0
      %544 = vmatpush1.bf16.msra.mxu0 0
      %545 = vmatprep.subr.bf16.mxu0 0
      %546 = vmatpush1.bf16.msra.mxu0 %v529
      %547 = vmatprep.subr.bf16.mxu0 0
      %548 = vmatpush2.bf16.msra.mxu0 0
      %549 = vmatprep.subr.bf16.mxu0 0
      %550 = vmatpush2.bf16.msra.mxu0 0
      %551 = vmatprep.subr.bf16.mxu0 0
      %552 = vmatpush2.bf16.msra.mxu0 0
      %553 = vmatprep.subr.bf16.mxu0 0
      %554 = vmatpush2.bf16.msra.mxu0 0
      %555 = vmatprep.subr.bf16.mxu0 0
      %556 = vmatpush2.bf16.msra.mxu0 0
      %557 = vmatprep.subr.bf16.mxu0 0
      %558 = vmatpush2.bf16.msra.mxu0 0
      %559 = vmatprep.subr.bf16.mxu0 0
      %560 = vmatpush2.bf16.msra.mxu0 0
      %561 = vmatprep.subr.bf16.mxu0 0
      %562 = vmatpush2.bf16.msra.mxu0 0
      %563 = vmatprep.mubr.bf16.mxu0 0
      %564 = vmatmul.mubr.bf16.gmra.mxu0 %v465
      %v565 = vpop.f32.mrf.mxu0
      %v566 = vadd.f32 0.0, %v565
      %v567 = vpop.f32.mrf.mxu0
      %v568 = vpop.f32.mrf.mxu0
      %v569 = vadd.f32 0.0, %v568
      %v570 = vpop.f32.mrf.mxu0
      %571 = vmatprep.mubr.bf16.mxu0 0
      %572 = vmatmul.mubr.bf16.gmra.mxu0 %v468
      %v573 = vpop.f32.mrf.mxu0
      %v574 = vadd.f32 0.0, %v573
      %v575 = vpop.f32.mrf.mxu0
      %v576 = vpop.f32.mrf.mxu0
      %v577 = vadd.f32 0.0, %v576
      %v578 = vpop.f32.mrf.mxu0
      %579 = vmatprep.mubr.bf16.mxu0 0
      %580 = vmatmul.mubr.bf16.gmra.mxu0 %v471
      %v581 = vpop.f32.mrf.mxu0
      %v582 = vadd.f32 0.0, %v581
      %v583 = vpop.f32.mrf.mxu0
      %v584 = vpop.f32.mrf.mxu0
      %v585 = vadd.f32 0.0, %v584
      %v586 = vpop.f32.mrf.mxu0
      %587 = vmatprep.mubr.bf16.mxu0 0
      %588 = vmatmul.mubr.bf16.gmra.mxu0 %v474
      %v589 = vpop.f32.mrf.mxu0
      %v590 = vadd.f32 0.0, %v589
      %v591 = vpop.f32.mrf.mxu0
      %v592 = vpop.f32.mrf.mxu0
      %v593 = vadd.f32 0.0, %v592
      %v594 = vpop.f32.mrf.mxu0
      %595 = vmatprep.mubr.bf16.mxu0 0
      %596 = vmatmul.mubr.bf16.gmra.mxu0 %v477
      %v597 = vpop.f32.mrf.mxu0
      %v598 = vadd.f32 0.0, %v597
      %v599 = vpop.f32.mrf.mxu0
      %v600 = vpop.f32.mrf.mxu0
      %v601 = vadd.f32 0.0, %v600
      %v602 = vpop.f32.mrf.mxu0
      %603 = vmatprep.mubr.bf16.mxu0 0
      %604 = vmatmul.mubr.bf16.gmra.mxu0 %v480
      %v605 = vpop.f32.mrf.mxu0
      %v606 = vadd.f32 0.0, %v605
      %v607 = vpop.f32.mrf.mxu0
      %v608 = vpop.f32.mrf.mxu0
      %v609 = vadd.f32 0.0, %v608
      %v610 = vpop.f32.mrf.mxu0
      %611 = vmatprep.mubr.bf16.mxu0 0
      %612 = vmatmul.mubr.bf16.gmra.mxu0 %v483
      %v613 = vpop.f32.mrf.mxu0
      %v614 = vadd.f32 0.0, %v613
      %v615 = vpop.f32.mrf.mxu0
      %v616 = vpop.f32.mrf.mxu0
      %v617 = vadd.f32 0.0, %v616
      %v618 = vpop.f32.mrf.mxu0
      %619 = vmatprep.mubr.bf16.mxu0 0
      %620 = vmatmul.mubr.bf16.gmra.mxu0 %v486
      %v621 = vpop.f32.mrf.mxu0
      %v622 = vadd.f32 0.0, %v621
      %v623 = vpop.f32.mrf.mxu0
      %v624 = vpop.f32.mrf.mxu0
      %v625 = vadd.f32 0.0, %v624
      %v626 = vpop.f32.mrf.mxu0
      %627 = vmatprep.mubr.bf16.mxu0 0
      %628 = vmatmul.mubr.bf16.gmra.mxu0 %v489
      %v629 = vpop.f32.mrf.mxu0
      %v630 = vadd.f32 0.0, %v629
      %v631 = vpop.f32.mrf.mxu0
      %v632 = vpop.f32.mrf.mxu0
      %v633 = vadd.f32 0.0, %v632
      %v634 = vpop.f32.mrf.mxu0
      %635 = vmatprep.mubr.bf16.mxu0 0
      %636 = vmatmul.mubr.bf16.gmra.mxu0 %v492
      %v637 = vpop.f32.mrf.mxu0
      %v638 = vadd.f32 0.0, %v637
      %v639 = vpop.f32.mrf.mxu0
      %v640 = vpop.f32.mrf.mxu0
      %v641 = vadd.f32 0.0, %v640
      %v642 = vpop.f32.mrf.mxu0
      %643 = vmatprep.mubr.bf16.mxu0 0
      %644 = vmatmul.mubr.bf16.gmra.mxu0 %v495
      %v645 = vpop.f32.mrf.mxu0
      %v646 = vadd.f32 0.0, %v645
      %v647 = vpop.f32.mrf.mxu0
      %v648 = vpop.f32.mrf.mxu0
      %v649 = vadd.f32 0.0, %v648
      %v650 = vpop.f32.mrf.mxu0
      %651 = vmatprep.mubr.bf16.mxu0 0
      %652 = vmatmul.mubr.bf16.gmra.mxu0 %v498
      %v653 = vpop.f32.mrf.mxu0
      %v654 = vadd.f32 0.0, %v653
      %v655 = vpop.f32.mrf.mxu0
      %v656 = vpop.f32.mrf.mxu0
      %v657 = vadd.f32 0.0, %v656
      %v658 = vpop.f32.mrf.mxu0
      %659 = vmatprep.mubr.bf16.mxu0 0
      %660 = vmatmul.mubr.bf16.gmra.mxu0 %v501
      %v661 = vpop.f32.mrf.mxu0
      %v662 = vadd.f32 0.0, %v661
      %v663 = vpop.f32.mrf.mxu0
      %v664 = vpop.f32.mrf.mxu0
      %v665 = vadd.f32 0.0, %v664
      %v666 = vpop.f32.mrf.mxu0
      %667 = vmatprep.mubr.bf16.mxu0 0
      %668 = vmatmul.mubr.bf16.gmra.mxu0 %v504
      %v669 = vpop.f32.mrf.mxu0
      %v670 = vadd.f32 0.0, %v669
      %v671 = vpop.f32.mrf.mxu0
      %v672 = vpop.f32.mrf.mxu0
      %v673 = vadd.f32 0.0, %v672
      %v674 = vpop.f32.mrf.mxu0
      %675 = vmatprep.mubr.bf16.mxu0 0
      %676 = vmatmul.mubr.bf16.gmra.mxu0 %v507
      %v677 = vpop.f32.mrf.mxu0
      %v678 = vadd.f32 0.0, %v677
      %v679 = vpop.f32.mrf.mxu0
      %v680 = vpop.f32.mrf.mxu0
      %v681 = vadd.f32 0.0, %v680
      %v682 = vpop.f32.mrf.mxu0
      %683 = vmatprep.mubr.bf16.mxu0 0
      %684 = vmatmul.mubr.bf16.gmra.mxu0 %v510
      %v685 = vpop.f32.mrf.mxu0
      %v686 = vadd.f32 0.0, %v685
      %v687 = vpop.f32.mrf.mxu0
      %v688 = vpop.f32.mrf.mxu0
      %v689 = vadd.f32 0.0, %v688
      %v690 = vpop.f32.mrf.mxu0
      %691 = vmatprep.mubr.bf16.mxu0 0
      %692 = vmatmul.mubr.bf16.gmra.mxu0 %v513
      %v693 = vpop.f32.mrf.mxu0
      %v694 = vadd.f32 0.0, %v693
      %v695 = vpop.f32.mrf.mxu0
      %v696 = vpop.f32.mrf.mxu0
      %v697 = vadd.f32 0.0, %v696
      %v698 = vpop.f32.mrf.mxu0
      %699 = vmatprep.mubr.bf16.mxu0 0
      %700 = vmatmul.mubr.bf16.gmra.mxu0 %v516
      %v701 = vpop.f32.mrf.mxu0
      %v702 = vadd.f32 0.0, %v701
      %v703 = vpop.f32.mrf.mxu0
      %v704 = vpop.f32.mrf.mxu0
      %v705 = vadd.f32 0.0, %v704
      %v706 = vpop.f32.mrf.mxu0
      %707 = vmatprep.mubr.bf16.mxu0 0
      %708 = vmatmul.mubr.bf16.gmra.mxu0 %v519
      %v709 = vpop.f32.mrf.mxu0
      %v710 = vadd.f32 0.0, %v709
      %v711 = vpop.f32.mrf.mxu0
      %v712 = vpop.f32.mrf.mxu0
      %v713 = vadd.f32 0.0, %v712
      %v714 = vpop.f32.mrf.mxu0
      %715 = vmatprep.mubr.bf16.mxu0 0
      %716 = vmatmul.mubr.bf16.gmra.mxu0 %v522
      %v717 = vpop.f32.mrf.mxu0
      %v718 = vadd.f32 0.0, %v717
      %v719 = vpop.f32.mrf.mxu0
      %v720 = vpop.f32.mrf.mxu0
      %v721 = vadd.f32 0.0, %v720
      %v722 = vpop.f32.mrf.mxu0
      %723 = vmatprep.mubr.bf16.mxu0 0
      %724 = vmatmul.mubr.bf16.gmra.mxu0 %v525
      %v725 = vpop.f32.mrf.mxu0
      %v726 = vadd.f32 0.0, %v725
      %v727 = vpop.f32.mrf.mxu0
      %v728 = vpop.f32.mrf.mxu0
      %v729 = vpop.f32.mrf.mxu0
      %730 = vdwg.mxu0
      %v732 = vunpack.c.l.b16 %v316
      %v733 = vpack.c.b16 %v401, %v732
      %v734 = vpack.c.b16 %v403, %v402
      %v735 = vpack.c.b16 %v405, %v404
      %v736 = vpack.c.b16 %v407, %v406
      %v737 = vpack.c.b16 %v409, %v408
      %v738 = vpack.c.b16 %v411, %v410
      %v739 = vpack.c.b16 %v413, %v412
      %v740 = vpack.c.b16 %v415, %v414
      %v741 = vpack.c.b16 %v417, %v416
      %v742 = vpack.c.b16 %v419, %v418
      %v743 = vpack.c.b16 %v421, %v420
      %v744 = vpack.c.b16 %v423, %v422
      %v745 = vpack.c.b16 %v425, %v424
      %v746 = vpack.c.b16 %v427, %v426
      %v747 = vpack.c.b16 %v429, %v428
      %v748 = vpack.c.b16 %v431, %v430
      %v749 = vpack.c.b16 %v433, %v432
      %v750 = vpack.c.b16 %v435, %v434
      %v751 = vpack.c.b16 %v437, %v436
      %v752 = vpack.c.b16 %v439, %v438
      %v753 = vpack.c.b16 %v441, %v440
      %vm754 = vsmask.f32 4352
      %v756 = vshrl.u32 %v733, 16
      %v758 = vrot.slane %v756, 3
      %v759 = vshll.u32 %v733, 16
      %v761 = vrot.slane %v759, 4
      %v762 = vor.u32 %v758, %v761
      %v764 = vshrl.u32 %v734, 16
      %v766 = vrot.slane %v764, 3
      %v767 = vshll.u32 %v734, 16
      %v769 = vrot.slane %v767, 4
      %v770 = vor.u32 %v766, %v769
      %v771 = vsel %vm754, %v762, %v770
      %v773 = vshrl.u32 %v735, 16
      %v775 = vrot.slane %v773, 3
      %v776 = vshll.u32 %v735, 16
      %v778 = vrot.slane %v776, 4
      %v779 = vor.u32 %v775, %v778
      %v780 = vsel %vm754, %v770, %v779
      %v782 = vshrl.u32 %v736, 16
      %v784 = vrot.slane %v782, 3
      %v785 = vshll.u32 %v736, 16
      %v787 = vrot.slane %v785, 4
      %v788 = vor.u32 %v784, %v787
      %v789 = vsel %vm754, %v779, %v788
      %v791 = vshrl.u32 %v737, 16
      %v793 = vrot.slane %v791, 3
      %v794 = vshll.u32 %v737, 16
      %v796 = vrot.slane %v794, 4
      %v797 = vor.u32 %v793, %v796
      %v798 = vsel %vm754, %v788, %v797
      %v800 = vshrl.u32 %v738, 16
      %v802 = vrot.slane %v800, 3
      %v803 = vshll.u32 %v738, 16
      %v805 = vrot.slane %v803, 4
      %v806 = vor.u32 %v802, %v805
      %v807 = vsel %vm754, %v797, %v806
      %v809 = vshrl.u32 %v739, 16
      %v811 = vrot.slane %v809, 3
      %v812 = vshll.u32 %v739, 16
      %v814 = vrot.slane %v812, 4
      %v815 = vor.u32 %v811, %v814
      %v816 = vsel %vm754, %v806, %v815
      %v818 = vshrl.u32 %v740, 16
      %v820 = vrot.slane %v818, 3
      %v821 = vshll.u32 %v740, 16
      %v823 = vrot.slane %v821, 4
      %v824 = vor.u32 %v820, %v823
      %v825 = vsel %vm754, %v815, %v824
      %v827 = vshrl.u32 %v741, 16
      %v829 = vrot.slane %v827, 3
      %v830 = vshll.u32 %v741, 16
      %v832 = vrot.slane %v830, 4
      %v833 = vor.u32 %v829, %v832
      %v834 = vsel %vm754, %v824, %v833
      %v836 = vshrl.u32 %v742, 16
      %v838 = vrot.slane %v836, 3
      %v839 = vshll.u32 %v742, 16
      %v841 = vrot.slane %v839, 4
      %v842 = vor.u32 %v838, %v841
      %v843 = vsel %vm754, %v833, %v842
      %v845 = vshrl.u32 %v743, 16
      %v847 = vrot.slane %v845, 3
      %v848 = vshll.u32 %v743, 16
      %v850 = vrot.slane %v848, 4
      %v851 = vor.u32 %v847, %v850
      %v852 = vsel %vm754, %v842, %v851
      %v854 = vshrl.u32 %v744, 16
      %v856 = vrot.slane %v854, 3
      %v857 = vshll.u32 %v744, 16
      %v859 = vrot.slane %v857, 4
      %v860 = vor.u32 %v856, %v859
      %v861 = vsel %vm754, %v851, %v860
      %v863 = vshrl.u32 %v745, 16
      %v865 = vrot.slane %v863, 3
      %v866 = vshll.u32 %v745, 16
      %v868 = vrot.slane %v866, 4
      %v869 = vor.u32 %v865, %v868
      %v870 = vsel %vm754, %v860, %v869
      %v872 = vshrl.u32 %v746, 16
      %v874 = vrot.slane %v872, 3
      %v875 = vshll.u32 %v746, 16
      %v877 = vrot.slane %v875, 4
      %v878 = vor.u32 %v874, %v877
      %v879 = vsel %vm754, %v869, %v878
      %v881 = vshrl.u32 %v747, 16
      %v883 = vrot.slane %v881, 3
      %v884 = vshll.u32 %v747, 16
      %v886 = vrot.slane %v884, 4
      %v887 = vor.u32 %v883, %v886
      %v888 = vsel %vm754, %v878, %v887
      %v890 = vshrl.u32 %v748, 16
      %v892 = vrot.slane %v890, 3
      %v893 = vshll.u32 %v748, 16
      %v895 = vrot.slane %v893, 4
      %v896 = vor.u32 %v892, %v895
      %v897 = vsel %vm754, %v887, %v896
      %v899 = vshrl.u32 %v749, 16
      %v901 = vrot.slane %v899, 3
      %v902 = vshll.u32 %v749, 16
      %v904 = vrot.slane %v902, 4
      %v905 = vor.u32 %v901, %v904
      %v906 = vsel %vm754, %v896, %v905
      %v908 = vshrl.u32 %v750, 16
      %v910 = vrot.slane %v908, 3
      %v911 = vshll.u32 %v750, 16
      %v913 = vrot.slane %v911, 4
      %v914 = vor.u32 %v910, %v913
      %v915 = vsel %vm754, %v905, %v914
      %v917 = vshrl.u32 %v751, 16
      %v919 = vrot.slane %v917, 3
      %v920 = vshll.u32 %v751, 16
      %v922 = vrot.slane %v920, 4
      %v923 = vor.u32 %v919, %v922
      %v924 = vsel %vm754, %v914, %v923
      %v926 = vshrl.u32 %v752, 16
      %v928 = vrot.slane %v926, 3
      %v929 = vshll.u32 %v752, 16
      %v931 = vrot.slane %v929, 4
      %v932 = vor.u32 %v928, %v931
      %v933 = vsel %vm754, %v923, %v932
      %v935 = vshrl.u32 %v753, 16
      %v937 = vrot.slane %v935, 3
      %v938 = vshll.u32 %v753, 16
      %v940 = vrot.slane %v938, 4
      %v941 = vor.u32 %v937, %v940
      %v942 = vsel %vm754, %v932, %v941
      %v944 = vsel %vm463, %v771, 0
      %v947 = vsel %vm463, %v780, 0
      %v950 = vsel %vm463, %v789, 0
      %v953 = vsel %vm463, %v798, 0
      %v956 = vsel %vm463, %v807, 0
      %v959 = vsel %vm463, %v816, 0
      %v962 = vsel %vm463, %v825, 0
      %v965 = vsel %vm463, %v834, 0
      %v968 = vsel %vm463, %v843, 0
      %v971 = vsel %vm463, %v852, 0
      %v974 = vsel %vm463, %v861, 0
      %v977 = vsel %vm463, %v870, 0
      %v980 = vsel %vm463, %v879, 0
      %v983 = vsel %vm463, %v888, 0
      %v986 = vsel %vm463, %v897, 0
      %v989 = vsel %vm463, %v906, 0
      %v992 = vsel %vm463, %v915, 0
      %v995 = vsel %vm463, %v924, 0
      %v998 = vsel %vm463, %v933, 0
      %v1001 = vsel %vm463, %v942, 0
      %v1004 = vsel %vm463, %v941, 0
      %v1007 = vsel %vm527, %v358, 0
      %1009 = vmatprep.subr.bf16.mxu0 0
      %1010 = vmatpush1.bf16.msra.mxu0 0
      %1011 = vmatprep.subr.bf16.mxu0 0
      %1012 = vmatpush1.bf16.msra.mxu0 0
      %1013 = vmatprep.subr.bf16.mxu0 0
      %1014 = vmatpush1.bf16.msra.mxu0 0
      %1015 = vmatprep.subr.bf16.mxu0 0
      %1016 = vmatpush1.bf16.msra.mxu0 0
      %1017 = vmatprep.subr.bf16.mxu0 0
      %1018 = vmatpush1.bf16.msra.mxu0 0
      %1019 = vmatprep.subr.bf16.mxu0 0
      %1020 = vmatpush1.bf16.msra.mxu0 0
      %1021 = vmatprep.subr.bf16.mxu0 0
      %1022 = vmatpush1.bf16.msra.mxu0 0
      %1023 = vmatprep.subr.bf16.mxu0 0
      %1024 = vmatpush1.bf16.msra.mxu0 %v1007
      %1025 = vmatprep.subr.bf16.mxu0 0
      %1026 = vmatpush2.bf16.msra.mxu0 0
      %1027 = vmatprep.subr.bf16.mxu0 0
      %1028 = vmatpush2.bf16.msra.mxu0 0
      %1029 = vmatprep.subr.bf16.mxu0 0
      %1030 = vmatpush2.bf16.msra.mxu0 0
      %1031 = vmatprep.subr.bf16.mxu0 0
      %1032 = vmatpush2.bf16.msra.mxu0 0
      %1033 = vmatprep.subr.bf16.mxu0 0
      %1034 = vmatpush2.bf16.msra.mxu0 0
      %1035 = vmatprep.subr.bf16.mxu0 0
      %1036 = vmatpush2.bf16.msra.mxu0 0
      %1037 = vmatprep.subr.bf16.mxu0 0
      %1038 = vmatpush2.bf16.msra.mxu0 0
      %1039 = vmatprep.subr.bf16.mxu0 0
      %1040 = vmatpush2.bf16.msra.mxu0 0
      %1041 = vmatprep.mubr.bf16.mxu0 0
      %1042 = vmatmul.mubr.bf16.gmra.mxu0 %v944
      %v1043 = vpop.f32.mrf.mxu0
      %v1044 = vadd.f32 %v566, %v1043
      %v1045 = vpop.f32.mrf.mxu0
      %v1046 = vpop.f32.mrf.mxu0
      %v1047 = vadd.f32 %v569, %v1046
      %v1048 = vpop.f32.mrf.mxu0
      %1049 = vmatprep.mubr.bf16.mxu0 0
      %1050 = vmatmul.mubr.bf16.gmra.mxu0 %v947
      %v1051 = vpop.f32.mrf.mxu0
      %v1052 = vadd.f32 %v574, %v1051
      %v1053 = vpop.f32.mrf.mxu0
      %v1054 = vpop.f32.mrf.mxu0
      %v1055 = vadd.f32 %v577, %v1054
      %v1056 = vpop.f32.mrf.mxu0
      %1057 = vmatprep.mubr.bf16.mxu0 0
      %1058 = vmatmul.mubr.bf16.gmra.mxu0 %v950
      %v1059 = vpop.f32.mrf.mxu0
      %v1060 = vadd.f32 %v582, %v1059
      %v1061 = vpop.f32.mrf.mxu0
      %v1062 = vpop.f32.mrf.mxu0
      %v1063 = vadd.f32 %v585, %v1062
      %v1064 = vpop.f32.mrf.mxu0
      %1065 = vmatprep.mubr.bf16.mxu0 0
      %1066 = vmatmul.mubr.bf16.gmra.mxu0 %v953
      %v1067 = vpop.f32.mrf.mxu0
      %v1068 = vadd.f32 %v590, %v1067
      %v1069 = vpop.f32.mrf.mxu0
      %v1070 = vpop.f32.mrf.mxu0
      %v1071 = vadd.f32 %v593, %v1070
      %v1072 = vpop.f32.mrf.mxu0
      %1073 = vmatprep.mubr.bf16.mxu0 0
      %1074 = vmatmul.mubr.bf16.gmra.mxu0 %v956
      %v1075 = vpop.f32.mrf.mxu0
      %v1076 = vadd.f32 %v598, %v1075
      %v1077 = vpop.f32.mrf.mxu0
      %v1078 = vpop.f32.mrf.mxu0
      %v1079 = vadd.f32 %v601, %v1078
      %v1080 = vpop.f32.mrf.mxu0
      %1081 = vmatprep.mubr.bf16.mxu0 0
      %1082 = vmatmul.mubr.bf16.gmra.mxu0 %v959
      %v1083 = vpop.f32.mrf.mxu0
      %v1084 = vadd.f32 %v606, %v1083
      %v1085 = vpop.f32.mrf.mxu0
      %v1086 = vpop.f32.mrf.mxu0
      %v1087 = vadd.f32 %v609, %v1086
      %v1088 = vpop.f32.mrf.mxu0
      %1089 = vmatprep.mubr.bf16.mxu0 0
      %1090 = vmatmul.mubr.bf16.gmra.mxu0 %v962
      %v1091 = vpop.f32.mrf.mxu0
      %v1092 = vadd.f32 %v614, %v1091
      %v1093 = vpop.f32.mrf.mxu0
      %v1094 = vpop.f32.mrf.mxu0
      %v1095 = vadd.f32 %v617, %v1094
      %v1096 = vpop.f32.mrf.mxu0
      %1097 = vmatprep.mubr.bf16.mxu0 0
      %1098 = vmatmul.mubr.bf16.gmra.mxu0 %v965
      %v1099 = vpop.f32.mrf.mxu0
      %v1100 = vadd.f32 %v622, %v1099
      %v1101 = vpop.f32.mrf.mxu0
      %v1102 = vpop.f32.mrf.mxu0
      %v1103 = vadd.f32 %v625, %v1102
      %v1104 = vpop.f32.mrf.mxu0
      %1105 = vmatprep.mubr.bf16.mxu0 0
      %1106 = vmatmul.mubr.bf16.gmra.mxu0 %v968
      %v1107 = vpop.f32.mrf.mxu0
      %v1108 = vadd.f32 %v630, %v1107
      %v1109 = vpop.f32.mrf.mxu0
      %v1110 = vpop.f32.mrf.mxu0
      %v1111 = vadd.f32 %v633, %v1110
      %v1112 = vpop.f32.mrf.mxu0
      %1113 = vmatprep.mubr.bf16.mxu0 0
      %1114 = vmatmul.mubr.bf16.gmra.mxu0 %v971
      %v1115 = vpop.f32.mrf.mxu0
      %v1116 = vadd.f32 %v638, %v1115
      %v1117 = vpop.f32.mrf.mxu0
      %v1118 = vpop.f32.mrf.mxu0
      %v1119 = vadd.f32 %v641, %v1118
      %v1120 = vpop.f32.mrf.mxu0
      %1121 = vmatprep.mubr.bf16.mxu0 0
      %1122 = vmatmul.mubr.bf16.gmra.mxu0 %v974
      %v1123 = vpop.f32.mrf.mxu0
      %v1124 = vadd.f32 %v646, %v1123
      %v1125 = vpop.f32.mrf.mxu0
      %v1126 = vpop.f32.mrf.mxu0
      %v1127 = vadd.f32 %v649, %v1126
      %v1128 = vpop.f32.mrf.mxu0
      %1129 = vmatprep.mubr.bf16.mxu0 0
      %1130 = vmatmul.mubr.bf16.gmra.mxu0 %v977
      %v1131 = vpop.f32.mrf.mxu0
      %v1132 = vadd.f32 %v654, %v1131
      %v1133 = vpop.f32.mrf.mxu0
      %v1134 = vpop.f32.mrf.mxu0
      %v1135 = vadd.f32 %v657, %v1134
      %v1136 = vpop.f32.mrf.mxu0
      %1137 = vmatprep.mubr.bf16.mxu0 0
      %1138 = vmatmul.mubr.bf16.gmra.mxu0 %v980
      %v1139 = vpop.f32.mrf.mxu0
      %v1140 = vadd.f32 %v662, %v1139
      %v1141 = vpop.f32.mrf.mxu0
      %v1142 = vpop.f32.mrf.mxu0
      %v1143 = vadd.f32 %v665, %v1142
      %v1144 = vpop.f32.mrf.mxu0
      %1145 = vmatprep.mubr.bf16.mxu0 0
      %1146 = vmatmul.mubr.bf16.gmra.mxu0 %v983
      %v1147 = vpop.f32.mrf.mxu0
      %v1148 = vadd.f32 %v670, %v1147
      %v1149 = vpop.f32.mrf.mxu0
      %v1150 = vpop.f32.mrf.mxu0
      %v1151 = vadd.f32 %v673, %v1150
      %v1152 = vpop.f32.mrf.mxu0
      %1153 = vmatprep.mubr.bf16.mxu0 0
      %1154 = vmatmul.mubr.bf16.gmra.mxu0 %v986
      %v1155 = vpop.f32.mrf.mxu0
      %v1156 = vadd.f32 %v678, %v1155
      %v1157 = vpop.f32.mrf.mxu0
      %v1158 = vpop.f32.mrf.mxu0
      %v1159 = vadd.f32 %v681, %v1158
      %v1160 = vpop.f32.mrf.mxu0
      %1161 = vmatprep.mubr.bf16.mxu0 0
      %1162 = vmatmul.mubr.bf16.gmra.mxu0 %v989
      %v1163 = vpop.f32.mrf.mxu0
      %v1164 = vadd.f32 %v686, %v1163
      %v1165 = vpop.f32.mrf.mxu0
      %v1166 = vpop.f32.mrf.mxu0
      %v1167 = vadd.f32 %v689, %v1166
      %v1168 = vpop.f32.mrf.mxu0
      %1169 = vmatprep.mubr.bf16.mxu0 0
      %1170 = vmatmul.mubr.bf16.gmra.mxu0 %v992
      %v1171 = vpop.f32.mrf.mxu0
      %v1172 = vadd.f32 %v694, %v1171
      %v1173 = vpop.f32.mrf.mxu0
      %v1174 = vpop.f32.mrf.mxu0
      %v1175 = vadd.f32 %v697, %v1174
      %v1176 = vpop.f32.mrf.mxu0
      %1177 = vmatprep.mubr.bf16.mxu0 0
      %1178 = vmatmul.mubr.bf16.gmra.mxu0 %v995
      %v1179 = vpop.f32.mrf.mxu0
      %v1180 = vadd.f32 %v702, %v1179
      %v1181 = vpop.f32.mrf.mxu0
      %v1182 = vpop.f32.mrf.mxu0
      %v1183 = vadd.f32 %v705, %v1182
      %v1184 = vpop.f32.mrf.mxu0
      %1185 = vmatprep.mubr.bf16.mxu0 0
      %1186 = vmatmul.mubr.bf16.gmra.mxu0 %v998
      %v1187 = vpop.f32.mrf.mxu0
      %v1188 = vadd.f32 %v710, %v1187
      %v1189 = vpop.f32.mrf.mxu0
      %v1190 = vpop.f32.mrf.mxu0
      %v1191 = vadd.f32 %v713, %v1190
      %v1192 = vpop.f32.mrf.mxu0
      %1193 = vmatprep.mubr.bf16.mxu0 0
      %1194 = vmatmul.mubr.bf16.gmra.mxu0 %v1001
      %v1195 = vpop.f32.mrf.mxu0
      %v1196 = vadd.f32 %v718, %v1195
      %v1197 = vpop.f32.mrf.mxu0
      %v1198 = vpop.f32.mrf.mxu0
      %v1199 = vadd.f32 %v721, %v1198
      %v1200 = vpop.f32.mrf.mxu0
      %1201 = vmatprep.mubr.bf16.mxu0 0
      %1202 = vmatmul.mubr.bf16.gmra.mxu0 %v1004
      %v1203 = vpop.f32.mrf.mxu0
      %v1204 = vadd.f32 %v726, %v1203
      %v1205 = vpop.f32.mrf.mxu0
      %v1206 = vpop.f32.mrf.mxu0
      %v1207 = vpop.f32.mrf.mxu0
      %1208 = vdwg.mxu0
      %v1209 = vld [vmem:[%s305 + $0xa4] sm:$0x7]
      %v1210 = vld [vmem:[%s1 + $0x8] sm:$0xf]
      %v1212 = vunpack.c.l.b16 %v1209
      %v1213 = vpack.c.b16 %v1212, %v1212
      %vm1214 = vsmask.f32 7424
      %v1215 = vshrl.u32 %v442, 16
      %v1217 = vshll.u32 %v442, 16
      %v1219 = vrot.slane %v1217, 1
      %v1220 = vor.u32 %v1215, %v1219
      %v1221 = vshll.u32 %v443, 16
      %v1223 = vrot.slane %v1221, 1
      %v1224 = vsel %vm1214, %v1220, %v1223
      %v1225 = vshrl.u32 %v443, 16
      %v1227 = vor.u32 %v1225, %v1223
      %v1228 = vshll.u32 %v444, 16
      %v1230 = vrot.slane %v1228, 1
      %v1231 = vsel %vm1214, %v1227, %v1230
      %v1232 = vshrl.u32 %v444, 16
      %v1234 = vor.u32 %v1232, %v1230
      %v1235 = vshll.u32 %v445, 16
      %v1237 = vrot.slane %v1235, 1
      %v1238 = vsel %vm1214, %v1234, %v1237
      %v1239 = vshrl.u32 %v445, 16
      %v1241 = vor.u32 %v1239, %v1237
      %v1242 = vshll.u32 %v446, 16
      %v1244 = vrot.slane %v1242, 1
      %v1245 = vsel %vm1214, %v1241, %v1244
      %v1246 = vshrl.u32 %v446, 16
      %v1248 = vor.u32 %v1246, %v1244
      %v1249 = vshll.u32 %v447, 16
      %v1251 = vrot.slane %v1249, 1
      %v1252 = vsel %vm1214, %v1248, %v1251
      %v1253 = vshrl.u32 %v447, 16
      %v1255 = vor.u32 %v1253, %v1251
      %v1256 = vshll.u32 %v448, 16
      %v1258 = vrot.slane %v1256, 1
      %v1259 = vsel %vm1214, %v1255, %v1258
      %v1260 = vshrl.u32 %v448, 16
      %v1262 = vor.u32 %v1260, %v1258
      %v1263 = vshll.u32 %v449, 16
      %v1265 = vrot.slane %v1263, 1
      %v1266 = vsel %vm1214, %v1262, %v1265
      %v1267 = vshrl.u32 %v449, 16
      %v1269 = vor.u32 %v1267, %v1265
      %v1270 = vshll.u32 %v450, 16
      %v1272 = vrot.slane %v1270, 1
      %v1273 = vsel %vm1214, %v1269, %v1272
      %v1274 = vshrl.u32 %v450, 16
      %v1276 = vor.u32 %v1274, %v1272
      %v1277 = vshll.u32 %v451, 16
      %v1279 = vrot.slane %v1277, 1
      %v1280 = vsel %vm1214, %v1276, %v1279
      %v1281 = vshrl.u32 %v451, 16
      %v1283 = vor.u32 %v1281, %v1279
      %v1284 = vshll.u32 %v452, 16
      %v1286 = vrot.slane %v1284, 1
      %v1287 = vsel %vm1214, %v1283, %v1286
      %v1288 = vshrl.u32 %v452, 16
      %v1290 = vor.u32 %v1288, %v1286
      %v1291 = vshll.u32 %v453, 16
      %v1293 = vrot.slane %v1291, 1
      %v1294 = vsel %vm1214, %v1290, %v1293
      %v1295 = vshrl.u32 %v453, 16
      %v1297 = vor.u32 %v1295, %v1293
      %v1298 = vshll.u32 %v454, 16
      %v1300 = vrot.slane %v1298, 1
      %v1301 = vsel %vm1214, %v1297, %v1300
      %v1302 = vshrl.u32 %v454, 16
      %v1304 = vor.u32 %v1302, %v1300
      %v1305 = vshll.u32 %v455, 16
      %v1307 = vrot.slane %v1305, 1
      %v1308 = vsel %vm1214, %v1304, %v1307
      %v1309 = vshrl.u32 %v455, 16
      %v1311 = vor.u32 %v1309, %v1307
      %v1312 = vshll.u32 %v456, 16
      %v1314 = vrot.slane %v1312, 1
      %v1315 = vsel %vm1214, %v1311, %v1314
      %v1316 = vshrl.u32 %v456, 16
      %v1318 = vor.u32 %v1316, %v1314
      %v1319 = vshll.u32 %v457, 16
      %v1321 = vrot.slane %v1319, 1
      %v1322 = vsel %vm1214, %v1318, %v1321
      %v1323 = vshrl.u32 %v457, 16
      %v1325 = vor.u32 %v1323, %v1321
      %v1326 = vshll.u32 %v458, 16
      %v1328 = vrot.slane %v1326, 1
      %v1329 = vsel %vm1214, %v1325, %v1328
      %v1330 = vshrl.u32 %v458, 16
      %v1332 = vor.u32 %v1330, %v1328
      %v1333 = vshll.u32 %v459, 16
      %v1335 = vrot.slane %v1333, 1
      %v1336 = vsel %vm1214, %v1332, %v1335
      %v1337 = vshrl.u32 %v459, 16
      %v1339 = vor.u32 %v1337, %v1335
      %v1340 = vshll.u32 %v460, 16
      %v1342 = vrot.slane %v1340, 1
      %v1343 = vsel %vm1214, %v1339, %v1342
      %v1344 = vshrl.u32 %v460, 16
      %v1346 = vor.u32 %v1344, %v1342
      %v1347 = vshll.u32 %v461, 16
      %v1349 = vrot.slane %v1347, 1
      %v1350 = vsel %vm1214, %v1346, %v1349
      %v1351 = vshrl.u32 %v461, 16
      %v1353 = vor.u32 %v1351, %v1349
      %v1355 = vshll.u32 %v1213, 16
      %v1357 = vrot.slane %v1355, 1
      %v1358 = vsel %vm1214, %v1353, %v1357
      %v1359 = vshrl.u32 %v1213, 16
      %v1361 = vor.u32 %v1359, %v1357
      %v1363 = vsel %vm463, %v1224, 0
      %v1366 = vsel %vm463, %v1231, 0
      %v1369 = vsel %vm463, %v1238, 0
      %v1372 = vsel %vm463, %v1245, 0
      %v1375 = vsel %vm463, %v1252, 0
      %v1378 = vsel %vm463, %v1259, 0
      %v1381 = vsel %vm463, %v1266, 0
      %v1384 = vsel %vm463, %v1273, 0
      %v1387 = vsel %vm463, %v1280, 0
      %v1390 = vsel %vm463, %v1287, 0
      %v1393 = vsel %vm463, %v1294, 0
      %v1396 = vsel %vm463, %v1301, 0
      %v1399 = vsel %vm463, %v1308, 0
      %v1402 = vsel %vm463, %v1315, 0
      %v1405 = vsel %vm463, %v1322, 0
      %v1408 = vsel %vm463, %v1329, 0
      %v1411 = vsel %vm463, %v1336, 0
      %v1414 = vsel %vm463, %v1343, 0
      %v1417 = vsel %vm463, %v1350, 0
      %v1420 = vsel %vm463, %v1358, 0
      %v1423 = vsel %vm463, %v1361, 0
      %v1426 = vsel %vm527, %v1210, 0
      %1428 = vmatprep.subr.bf16.mxu0 0
      %1429 = vmatpush1.bf16.msra.mxu0 0
      %1430 = vmatprep.subr.bf16.mxu0 0
      %1431 = vmatpush1.bf16.msra.mxu0 0
      %1432 = vmatprep.subr.bf16.mxu0 0
      %1433 = vmatpush1.bf16.msra.mxu0 0
      %1434 = vmatprep.subr.bf16.mxu0 0
      %1435 = vmatpush1.bf16.msra.mxu0 0
      %1436 = vmatprep.subr.bf16.mxu0 0
      %1437 = vmatpush1.bf16.msra.mxu0 0
      %1438 = vmatprep.subr.bf16.mxu0 0
      %1439 = vmatpush1.bf16.msra.mxu0 0
      %1440 = vmatprep.subr.bf16.mxu0 0
      %1441 = vmatpush1.bf16.msra.mxu0 0
      %1442 = vmatprep.subr.bf16.mxu0 0
      %1443 = vmatpush1.bf16.msra.mxu0 %v1426
      %1444 = vmatprep.subr.bf16.mxu0 0
      %1445 = vmatpush2.bf16.msra.mxu0 0
      %1446 = vmatprep.subr.bf16.mxu0 0
      %1447 = vmatpush2.bf16.msra.mxu0 0
      %1448 = vmatprep.subr.bf16.mxu0 0
      %1449 = vmatpush2.bf16.msra.mxu0 0
      %1450 = vmatprep.subr.bf16.mxu0 0
      %1451 = vmatpush2.bf16.msra.mxu0 0
      %1452 = vmatprep.subr.bf16.mxu0 0
      %1453 = vmatpush2.bf16.msra.mxu0 0
      %1454 = vmatprep.subr.bf16.mxu0 0
      %1455 = vmatpush2.bf16.msra.mxu0 0
      %1456 = vmatprep.subr.bf16.mxu0 0
      %1457 = vmatpush2.bf16.msra.mxu0 0
      %1458 = vmatprep.subr.bf16.mxu0 0
      %1459 = vmatpush2.bf16.msra.mxu0 0
      %1460 = vmatprep.mubr.bf16.mxu0 0
      %1461 = vmatmul.mubr.bf16.gmra.mxu0 %v1363
      %v1462 = vpop.f32.mrf.mxu0
      %v1463 = vadd.f32 0.0, %v1462
      %v1464 = vpop.f32.mrf.mxu0
      %v1465 = vpop.f32.mrf.mxu0
      %v1466 = vadd.f32 0.0, %v1465
      %v1467 = vpop.f32.mrf.mxu0
      %1468 = vmatprep.mubr.bf16.mxu0 0
      %1469 = vmatmul.mubr.bf16.gmra.mxu0 %v1366
      %v1470 = vpop.f32.mrf.mxu0
      %v1471 = vadd.f32 0.0, %v1470
      %v1472 = vpop.f32.mrf.mxu0
      %v1473 = vpop.f32.mrf.mxu0
      %v1474 = vadd.f32 0.0, %v1473
      %v1475 = vpop.f32.mrf.mxu0
      %1476 = vmatprep.mubr.bf16.mxu0 0
      %1477 = vmatmul.mubr.bf16.gmra.mxu0 %v1369
      %v1478 = vpop.f32.mrf.mxu0
      %v1479 = vadd.f32 0.0, %v1478
      %v1480 = vpop.f32.mrf.mxu0
      %v1481 = vpop.f32.mrf.mxu0
      %v1482 = vadd.f32 0.0, %v1481
      %v1483 = vpop.f32.mrf.mxu0
      %1484 = vmatprep.mubr.bf16.mxu0 0
      %1485 = vmatmul.mubr.bf16.gmra.mxu0 %v1372
      %v1486 = vpop.f32.mrf.mxu0
      %v1487 = vadd.f32 0.0, %v1486
      %v1488 = vpop.f32.mrf.mxu0
      %v1489 = vpop.f32.mrf.mxu0
      %v1490 = vadd.f32 0.0, %v1489
      %v1491 = vpop.f32.mrf.mxu0
      %1492 = vmatprep.mubr.bf16.mxu0 0
      %1493 = vmatmul.mubr.bf16.gmra.mxu0 %v1375
      %v1494 = vpop.f32.mrf.mxu0
      %v1495 = vadd.f32 0.0, %v1494
      %v1496 = vpop.f32.mrf.mxu0
      %v1497 = vpop.f32.mrf.mxu0
      %v1498 = vadd.f32 0.0, %v1497
      %v1499 = vpop.f32.mrf.mxu0
      %1500 = vmatprep.mubr.bf16.mxu0 0
      %1501 = vmatmul.mubr.bf16.gmra.mxu0 %v1378
      %v1502 = vpop.f32.mrf.mxu0
      %v1503 = vadd.f32 0.0, %v1502
      %v1504 = vpop.f32.mrf.mxu0
      %v1505 = vpop.f32.mrf.mxu0
      %v1506 = vadd.f32 0.0, %v1505
      %v1507 = vpop.f32.mrf.mxu0
      %1508 = vmatprep.mubr.bf16.mxu0 0
      %1509 = vmatmul.mubr.bf16.gmra.mxu0 %v1381
      %v1510 = vpop.f32.mrf.mxu0
      %v1511 = vadd.f32 0.0, %v1510
      %v1512 = vpop.f32.mrf.mxu0
      %v1513 = vpop.f32.mrf.mxu0
      %v1514 = vadd.f32 0.0, %v1513
      %v1515 = vpop.f32.mrf.mxu0
      %1516 = vmatprep.mubr.bf16.mxu0 0
      %1517 = vmatmul.mubr.bf16.gmra.mxu0 %v1384
      %v1518 = vpop.f32.mrf.mxu0
      %v1519 = vadd.f32 0.0, %v1518
      %v1520 = vpop.f32.mrf.mxu0
      %v1521 = vpop.f32.mrf.mxu0
      %v1522 = vadd.f32 0.0, %v1521
      %v1523 = vpop.f32.mrf.mxu0
      %1524 = vmatprep.mubr.bf16.mxu0 0
      %1525 = vmatmul.mubr.bf16.gmra.mxu0 %v1387
      %v1526 = vpop.f32.mrf.mxu0
      %v1527 = vadd.f32 0.0, %v1526
      %v1528 = vpop.f32.mrf.mxu0
      %v1529 = vpop.f32.mrf.mxu0
      %v1530 = vadd.f32 0.0, %v1529
      %v1531 = vpop.f32.mrf.mxu0
      %1532 = vmatprep.mubr.bf16.mxu0 0
      %1533 = vmatmul.mubr.bf16.gmra.mxu0 %v1390
      %v1534 = vpop.f32.mrf.mxu0
      %v1535 = vadd.f32 0.0, %v1534
      %v1536 = vpop.f32.mrf.mxu0
      %v1537 = vpop.f32.mrf.mxu0
      %v1538 = vadd.f32 0.0, %v1537
      %v1539 = vpop.f32.mrf.mxu0
      %1540 = vmatprep.mubr.bf16.mxu0 0
      %1541 = vmatmul.mubr.bf16.gmra.mxu0 %v1393
      %v1542 = vpop.f32.mrf.mxu0
      %v1543 = vadd.f32 0.0, %v1542
      %v1544 = vpop.f32.mrf.mxu0
      %v1545 = vpop.f32.mrf.mxu0
      %v1546 = vadd.f32 0.0, %v1545
      %v1547 = vpop.f32.mrf.mxu0
      %1548 = vmatprep.mubr.bf16.mxu0 0
      %1549 = vmatmul.mubr.bf16.gmra.mxu0 %v1396
      %v1550 = vpop.f32.mrf.mxu0
      %v1551 = vadd.f32 0.0, %v1550
      %v1552 = vpop.f32.mrf.mxu0
      %v1553 = vpop.f32.mrf.mxu0
      %v1554 = vadd.f32 0.0, %v1553
      %v1555 = vpop.f32.mrf.mxu0
      %1556 = vmatprep.mubr.bf16.mxu0 0
      %1557 = vmatmul.mubr.bf16.gmra.mxu0 %v1399
      %v1558 = vpop.f32.mrf.mxu0
      %v1559 = vadd.f32 0.0, %v1558
      %v1560 = vpop.f32.mrf.mxu0
      %v1561 = vpop.f32.mrf.mxu0
      %v1562 = vadd.f32 0.0, %v1561
      %v1563 = vpop.f32.mrf.mxu0
      %1564 = vmatprep.mubr.bf16.mxu0 0
      %1565 = vmatmul.mubr.bf16.gmra.mxu0 %v1402
      %v1566 = vpop.f32.mrf.mxu0
      %v1567 = vadd.f32 0.0, %v1566
      %v1568 = vpop.f32.mrf.mxu0
      %v1569 = vpop.f32.mrf.mxu0
      %v1570 = vadd.f32 0.0, %v1569
      %v1571 = vpop.f32.mrf.mxu0
      %1572 = vmatprep.mubr.bf16.mxu0 0
      %1573 = vmatmul.mubr.bf16.gmra.mxu0 %v1405
      %v1574 = vpop.f32.mrf.mxu0
      %v1575 = vadd.f32 0.0, %v1574
      %v1576 = vpop.f32.mrf.mxu0
      %v1577 = vpop.f32.mrf.mxu0
      %v1578 = vadd.f32 0.0, %v1577
      %v1579 = vpop.f32.mrf.mxu0
      %1580 = vmatprep.mubr.bf16.mxu0 0
      %1581 = vmatmul.mubr.bf16.gmra.mxu0 %v1408
      %v1582 = vpop.f32.mrf.mxu0
      %v1583 = vadd.f32 0.0, %v1582
      %v1584 = vpop.f32.mrf.mxu0
      %v1585 = vpop.f32.mrf.mxu0
      %v1586 = vadd.f32 0.0, %v1585
      %v1587 = vpop.f32.mrf.mxu0
      %1588 = vmatprep.mubr.bf16.mxu0 0
      %1589 = vmatmul.mubr.bf16.gmra.mxu0 %v1411
      %v1590 = vpop.f32.mrf.mxu0
      %v1591 = vadd.f32 0.0, %v1590
      %v1592 = vpop.f32.mrf.mxu0
      %v1593 = vpop.f32.mrf.mxu0
      %v1594 = vadd.f32 0.0, %v1593
      %v1595 = vpop.f32.mrf.mxu0
      %1596 = vmatprep.mubr.bf16.mxu0 0
      %1597 = vmatmul.mubr.bf16.gmra.mxu0 %v1414
      %v1598 = vpop.f32.mrf.mxu0
      %v1599 = vadd.f32 0.0, %v1598
      %v1600 = vpop.f32.mrf.mxu0
      %v1601 = vpop.f32.mrf.mxu0
      %v1602 = vadd.f32 0.0, %v1601
      %v1603 = vpop.f32.mrf.mxu0
      %1604 = vmatprep.mubr.bf16.mxu0 0
      %1605 = vmatmul.mubr.bf16.gmra.mxu0 %v1417
      %v1606 = vpop.f32.mrf.mxu0
      %v1607 = vadd.f32 0.0, %v1606
      %v1608 = vpop.f32.mrf.mxu0
      %v1609 = vpop.f32.mrf.mxu0
      %v1610 = vadd.f32 0.0, %v1609
      %v1611 = vpop.f32.mrf.mxu0
      %1612 = vmatprep.mubr.bf16.mxu0 0
      %1613 = vmatmul.mubr.bf16.gmra.mxu0 %v1420
      %v1614 = vpop.f32.mrf.mxu0
      %v1615 = vadd.f32 0.0, %v1614
      %v1616 = vpop.f32.mrf.mxu0
      %v1617 = vpop.f32.mrf.mxu0
      %v1618 = vadd.f32 0.0, %v1617
      %v1619 = vpop.f32.mrf.mxu0
      %1620 = vmatprep.mubr.bf16.mxu0 0
      %1621 = vmatmul.mubr.bf16.gmra.mxu0 %v1423
      %v1622 = vpop.f32.mrf.mxu0
      %v1623 = vadd.f32 0.0, %v1622
      %v1624 = vpop.f32.mrf.mxu0
      %v1625 = vpop.f32.mrf.mxu0
      %v1626 = vpop.f32.mrf.mxu0
      %1627 = vdwg.mxu0
      %v1628 = vadd.f32 %v1044, %v1463
      %v1629 = vadd.f32 %v1047, %v1466
      %v1630 = vadd.f32 %v1052, %v1471
      %v1631 = vadd.f32 %v1055, %v1474
      %v1632 = vadd.f32 %v1060, %v1479
      %v1633 = vadd.f32 %v1063, %v1482
      %v1634 = vadd.f32 %v1068, %v1487
      %v1635 = vadd.f32 %v1071, %v1490
      %v1636 = vadd.f32 %v1076, %v1495
      %v1637 = vadd.f32 %v1079, %v1498
      %v1638 = vadd.f32 %v1084, %v1503
      %v1639 = vadd.f32 %v1087, %v1506
      %v1640 = vadd.f32 %v1092, %v1511
      %v1641 = vadd.f32 %v1095, %v1514
      %v1642 = vadd.f32 %v1100, %v1519
      %v1643 = vadd.f32 %v1103, %v1522
      %v1644 = vadd.f32 %v1108, %v1527
      %v1645 = vadd.f32 %v1111, %v1530
      %v1646 = vadd.f32 %v1116, %v1535
      %v1647 = vadd.f32 %v1119, %v1538
      %v1648 = vadd.f32 %v1124, %v1543
      %v1649 = vadd.f32 %v1127, %v1546
      %v1650 = vadd.f32 %v1132, %v1551
      %v1651 = vadd.f32 %v1135, %v1554
      %v1652 = vadd.f32 %v1140, %v1559
      %v1653 = vadd.f32 %v1143, %v1562
      %v1654 = vadd.f32 %v1148, %v1567
      %v1655 = vadd.f32 %v1151, %v1570
      %v1656 = vadd.f32 %v1156, %v1575
      %v1657 = vadd.f32 %v1159, %v1578
      %v1658 = vadd.f32 %v1164, %v1583
      %v1659 = vadd.f32 %v1167, %v1586
      %v1660 = vadd.f32 %v1172, %v1591
      %v1661 = vadd.f32 %v1175, %v1594
      %v1662 = vadd.f32 %v1180, %v1599
      %v1663 = vadd.f32 %v1183, %v1602
      %v1664 = vadd.f32 %v1188, %v1607
      %v1665 = vadd.f32 %v1191, %v1610
      %v1666 = vadd.f32 %v1196, %v1615
      %v1667 = vadd.f32 %v1199, %v1618
      %v1668 = vadd.f32 %v1204, %v1623
      %v1669 = vld [vmem:[%s305 + $0xc] sm:$0xf]
      %v1670 = vld [vmem:[%s305 + $0x10] sm:$0xf]
      %v1671 = vld [vmem:[%s305 + $0x14] sm:$0xf]
      %v1672 = vld [vmem:[%s305 + $0x18] sm:$0xf]
      %v1673 = vld [vmem:[%s305 + $0x1c] sm:$0xf]
      %v1674 = vld [vmem:[%s305 + $0x20] sm:$0xf]
      %v1675 = vld [vmem:[%s305 + $0x24] sm:$0xf]
      %v1676 = vld [vmem:[%s305 + $0x28] sm:$0xf]
      %v1677 = vld [vmem:[%s305 + $0x2c] sm:$0xf]
      %v1678 = vld [vmem:[%s305 + $0x30] sm:$0xf]
      %v1679 = vld [vmem:[%s305 + $0x34] sm:$0xf]
      %v1680 = vld [vmem:[%s305 + $0x38] sm:$0xf]
      %v1681 = vld [vmem:[%s305 + $0x3c] sm:$0xf]
      %v1682 = vld [vmem:[%s305 + $0x40] sm:$0xf]
      %v1683 = vld [vmem:[%s305 + $0x44] sm:$0xf]
      %v1684 = vld [vmem:[%s305 + $0x48] sm:$0xf]
      %v1685 = vld [vmem:[%s305 + $0x4c] sm:$0xf]
      %v1686 = vld [vmem:[%s305 + $0x50] sm:$0xf]
      %v1687 = vld [vmem:[%s305 + $0x54] sm:$0xf]
      %v1688 = vld [vmem:[%s305 + $0x58] sm:$0xf]
      %v1689 = vld [vmem:[%s305 + $0x5c] sm:$0xf]
      %v1690 = vld [vmem:[%s305 + $0x60] sm:$0xf]
      %v1691 = vld [vmem:[%s305 + $0x64] sm:$0xf]
      %v1692 = vld [vmem:[%s305 + $0x68] sm:$0xf]
      %v1693 = vld [vmem:[%s305 + $0x6c] sm:$0xf]
      %v1694 = vld [vmem:[%s305 + $0x70] sm:$0xf]
      %v1695 = vld [vmem:[%s305 + $0x74] sm:$0xf]
      %v1696 = vld [vmem:[%s305 + $0x78] sm:$0xf]
      %v1697 = vld [vmem:[%s305 + $0x7c] sm:$0xf]
      %v1698 = vld [vmem:[%s305 + $0x80] sm:$0xf]
      %v1699 = vld [vmem:[%s305 + $0x84] sm:$0xf]
      %v1700 = vld [vmem:[%s305 + $0x88] sm:$0xf]
      %v1701 = vld [vmem:[%s305 + $0x8c] sm:$0xf]
      %v1702 = vld [vmem:[%s305 + $0x90] sm:$0xf]
      %v1703 = vld [vmem:[%s305 + $0x94] sm:$0xf]
      %v1704 = vld [vmem:[%s305 + $0x98] sm:$0xf]
      %v1705 = vld [vmem:[%s305 + $0x9c] sm:$0xf]
      %v1706 = vld [vmem:[%s305 + $0xa0] sm:$0xf]
      %v1707 = vld [vmem:[%s305 + $0xa4] sm:$0xf]
      %v1708 = vld [vmem:[%s305 + $0xa8] sm:$0xf]
      %v1709 = vld [vmem:[%s305 + $0xac] sm:$0x7]
      %v1710 = vld [vmem:[%s1 + $0xc] sm:$0xf]
      %v1752 = vunpack.c.l.b16 %v1669
      %v1753 = vunpack.c.l.b16 %v1670
      %v1754 = vunpack.c.l.b16 %v1671
      %v1755 = vunpack.c.l.b16 %v1672
      %v1756 = vunpack.c.l.b16 %v1673
      %v1757 = vunpack.c.l.b16 %v1674
      %v1758 = vunpack.c.l.b16 %v1675
      %v1759 = vunpack.c.l.b16 %v1676
      %v1760 = vunpack.c.l.b16 %v1677
      %v1761 = vunpack.c.l.b16 %v1678
      %v1762 = vunpack.c.l.b16 %v1679
      %v1763 = vunpack.c.l.b16 %v1680
      %v1764 = vunpack.c.l.b16 %v1681
      %v1765 = vunpack.c.l.b16 %v1682
      %v1766 = vunpack.c.l.b16 %v1683
      %v1767 = vunpack.c.l.b16 %v1684
      %v1768 = vunpack.c.l.b16 %v1685
      %v1769 = vunpack.c.l.b16 %v1686
      %v1770 = vunpack.c.l.b16 %v1687
      %v1771 = vunpack.c.l.b16 %v1688
      %v1772 = vunpack.c.l.b16 %v1689
      %v1773 = vunpack.c.l.b16 %v1690
      %v1774 = vunpack.c.l.b16 %v1691
      %v1775 = vunpack.c.l.b16 %v1692
      %v1776 = vunpack.c.l.b16 %v1693
      %v1777 = vunpack.c.l.b16 %v1694
      %v1778 = vunpack.c.l.b16 %v1695
      %v1779 = vunpack.c.l.b16 %v1696
      %v1780 = vunpack.c.l.b16 %v1697
      %v1781 = vunpack.c.l.b16 %v1698
      %v1782 = vunpack.c.l.b16 %v1699
      %v1783 = vunpack.c.l.b16 %v1700
      %v1784 = vunpack.c.l.b16 %v1701
      %v1785 = vunpack.c.l.b16 %v1702
      %v1786 = vunpack.c.l.b16 %v1703
      %v1787 = vunpack.c.l.b16 %v1704
      %v1788 = vunpack.c.l.b16 %v1705
      %v1789 = vunpack.c.l.b16 %v1706
      %v1790 = vunpack.c.l.b16 %v1707
      %v1791 = vunpack.c.l.b16 %v1708
      %v1792 = vunpack.c.l.b16 %v1709
      %v1793 = vpack.c.b16 %v1753, %v1752
      %v1794 = vpack.c.b16 %v1755, %v1754
      %v1795 = vpack.c.b16 %v1757, %v1756
      %v1796 = vpack.c.b16 %v1759, %v1758
      %v1797 = vpack.c.b16 %v1761, %v1760
      %v1798 = vpack.c.b16 %v1763, %v1762
      %v1799 = vpack.c.b16 %v1765, %v1764
      %v1800 = vpack.c.b16 %v1767, %v1766
      %v1801 = vpack.c.b16 %v1769, %v1768
      %v1802 = vpack.c.b16 %v1771, %v1770
      %v1803 = vpack.c.b16 %v1773, %v1772
      %v1804 = vpack.c.b16 %v1775, %v1774
      %v1805 = vpack.c.b16 %v1777, %v1776
      %v1806 = vpack.c.b16 %v1779, %v1778
      %v1807 = vpack.c.b16 %v1781, %v1780
      %v1808 = vpack.c.b16 %v1783, %v1782
      %v1809 = vpack.c.b16 %v1785, %v1784
      %v1810 = vpack.c.b16 %v1787, %v1786
      %v1811 = vpack.c.b16 %v1789, %v1788
      %v1812 = vpack.c.b16 %v1791, %v1790
      %v1813 = vpack.c.b16 %v1792, %v1792
      %v1815 = vshrl.u32 %v1793, 16
      %v1817 = vshll.u32 %v1793, 16
      %v1819 = vrot.slane %v1817, 1
      %v1820 = vor.u32 %v1815, %v1819
      %v1822 = vshll.u32 %v1794, 16
      %v1824 = vrot.slane %v1822, 1
      %v1825 = vsel %vm1214, %v1820, %v1824
      %v1826 = vshrl.u32 %v1794, 16
      %v1828 = vor.u32 %v1826, %v1824
      %v1830 = vshll.u32 %v1795, 16
      %v1832 = vrot.slane %v1830, 1
      %v1833 = vsel %vm1214, %v1828, %v1832
      %v1834 = vshrl.u32 %v1795, 16
      %v1836 = vor.u32 %v1834, %v1832
      %v1838 = vshll.u32 %v1796, 16
      %v1840 = vrot.slane %v1838, 1
      %v1841 = vsel %vm1214, %v1836, %v1840
      %v1842 = vshrl.u32 %v1796, 16
      %v1844 = vor.u32 %v1842, %v1840
      %v1846 = vshll.u32 %v1797, 16
      %v1848 = vrot.slane %v1846, 1
      %v1849 = vsel %vm1214, %v1844, %v1848
      %v1850 = vshrl.u32 %v1797, 16
      %v1852 = vor.u32 %v1850, %v1848
      %v1854 = vshll.u32 %v1798, 16
      %v1856 = vrot.slane %v1854, 1
      %v1857 = vsel %vm1214, %v1852, %v1856
      %v1858 = vshrl.u32 %v1798, 16
      %v1860 = vor.u32 %v1858, %v1856
      %v1862 = vshll.u32 %v1799, 16
      %v1864 = vrot.slane %v1862, 1
      %v1865 = vsel %vm1214, %v1860, %v1864
      %v1866 = vshrl.u32 %v1799, 16
      %v1868 = vor.u32 %v1866, %v1864
      %v1870 = vshll.u32 %v1800, 16
      %v1872 = vrot.slane %v1870, 1
      %v1873 = vsel %vm1214, %v1868, %v1872
      %v1874 = vshrl.u32 %v1800, 16
      %v1876 = vor.u32 %v1874, %v1872
      %v1878 = vshll.u32 %v1801, 16
      %v1880 = vrot.slane %v1878, 1
      %v1881 = vsel %vm1214, %v1876, %v1880
      %v1882 = vshrl.u32 %v1801, 16
      %v1884 = vor.u32 %v1882, %v1880
      %v1886 = vshll.u32 %v1802, 16
      %v1888 = vrot.slane %v1886, 1
      %v1889 = vsel %vm1214, %v1884, %v1888
      %v1890 = vshrl.u32 %v1802, 16
      %v1892 = vor.u32 %v1890, %v1888
      %v1894 = vshll.u32 %v1803, 16
      %v1896 = vrot.slane %v1894, 1
      %v1897 = vsel %vm1214, %v1892, %v1896
      %v1898 = vshrl.u32 %v1803, 16
      %v1900 = vor.u32 %v1898, %v1896
      %v1902 = vshll.u32 %v1804, 16
      %v1904 = vrot.slane %v1902, 1
      %v1905 = vsel %vm1214, %v1900, %v1904
      %v1906 = vshrl.u32 %v1804, 16
      %v1908 = vor.u32 %v1906, %v1904
      %v1910 = vshll.u32 %v1805, 16
      %v1912 = vrot.slane %v1910, 1
      %v1913 = vsel %vm1214, %v1908, %v1912
      %v1914 = vshrl.u32 %v1805, 16
      %v1916 = vor.u32 %v1914, %v1912
      %v1918 = vshll.u32 %v1806, 16
      %v1920 = vrot.slane %v1918, 1
      %v1921 = vsel %vm1214, %v1916, %v1920
      %v1922 = vshrl.u32 %v1806, 16
      %v1924 = vor.u32 %v1922, %v1920
      %v1926 = vshll.u32 %v1807, 16
      %v1928 = vrot.slane %v1926, 1
      %v1929 = vsel %vm1214, %v1924, %v1928
      %v1930 = vshrl.u32 %v1807, 16
      %v1932 = vor.u32 %v1930, %v1928
      %v1934 = vshll.u32 %v1808, 16
      %v1936 = vrot.slane %v1934, 1
      %v1937 = vsel %vm1214, %v1932, %v1936
      %v1938 = vshrl.u32 %v1808, 16
      %v1940 = vor.u32 %v1938, %v1936
      %v1942 = vshll.u32 %v1809, 16
      %v1944 = vrot.slane %v1942, 1
      %v1945 = vsel %vm1214, %v1940, %v1944
      %v1946 = vshrl.u32 %v1809, 16
      %v1948 = vor.u32 %v1946, %v1944
      %v1950 = vshll.u32 %v1810, 16
      %v1952 = vrot.slane %v1950, 1
      %v1953 = vsel %vm1214, %v1948, %v1952
      %v1954 = vshrl.u32 %v1810, 16
      %v1956 = vor.u32 %v1954, %v1952
      %v1958 = vshll.u32 %v1811, 16
      %v1960 = vrot.slane %v1958, 1
      %v1961 = vsel %vm1214, %v1956, %v1960
      %v1962 = vshrl.u32 %v1811, 16
      %v1964 = vor.u32 %v1962, %v1960
      %v1966 = vshll.u32 %v1812, 16
      %v1968 = vrot.slane %v1966, 1
      %v1969 = vsel %vm1214, %v1964, %v1968
      %v1970 = vshrl.u32 %v1812, 16
      %v1972 = vor.u32 %v1970, %v1968
      %v1974 = vshll.u32 %v1813, 16
      %v1976 = vrot.slane %v1974, 1
      %v1977 = vsel %vm1214, %v1972, %v1976
      %v1978 = vshrl.u32 %v1813, 16
      %v1980 = vor.u32 %v1978, %v1976
      %v1982 = vsel %vm463, %v1825, 0
      %v1985 = vsel %vm463, %v1833, 0
      %v1988 = vsel %vm463, %v1841, 0
      %v1991 = vsel %vm463, %v1849, 0
      %v1994 = vsel %vm463, %v1857, 0
      %v1997 = vsel %vm463, %v1865, 0
      %v2000 = vsel %vm463, %v1873, 0
      %v2003 = vsel %vm463, %v1881, 0
      %v2006 = vsel %vm463, %v1889, 0
      %v2009 = vsel %vm463, %v1897, 0
      %v2012 = vsel %vm463, %v1905, 0
      %v2015 = vsel %vm463, %v1913, 0
      %v2018 = vsel %vm463, %v1921, 0
      %v2021 = vsel %vm463, %v1929, 0
      %v2024 = vsel %vm463, %v1937, 0
      %v2027 = vsel %vm463, %v1945, 0
      %v2030 = vsel %vm463, %v1953, 0
      %v2033 = vsel %vm463, %v1961, 0
      %v2036 = vsel %vm463, %v1969, 0
      %v2039 = vsel %vm463, %v1977, 0
      %v2042 = vsel %vm463, %v1980, 0
      %v2045 = vsel %vm527, %v1710, 0
      %2047 = vmatprep.subr.bf16.mxu0 0
      %2048 = vmatpush1.bf16.msra.mxu0 0
      %2049 = vmatprep.subr.bf16.mxu0 0
      %2050 = vmatpush1.bf16.msra.mxu0 0
      %2051 = vmatprep.subr.bf16.mxu0 0
      %2052 = vmatpush1.bf16.msra.mxu0 0
      %2053 = vmatprep.subr.bf16.mxu0 0
      %2054 = vmatpush1.bf16.msra.mxu0 0
      %2055 = vmatprep.subr.bf16.mxu0 0
      %2056 = vmatpush1.bf16.msra.mxu0 0
      %2057 = vmatprep.subr.bf16.mxu0 0
      %2058 = vmatpush1.bf16.msra.mxu0 0
      %2059 = vmatprep.subr.bf16.mxu0 0
      %2060 = vmatpush1.bf16.msra.mxu0 0
      %2061 = vmatprep.subr.bf16.mxu0 0
      %2062 = vmatpush1.bf16.msra.mxu0 %v2045
      %2063 = vmatprep.subr.bf16.mxu0 0
      %2064 = vmatpush2.bf16.msra.mxu0 0
      %2065 = vmatprep.subr.bf16.mxu0 0
      %2066 = vmatpush2.bf16.msra.mxu0 0
      %2067 = vmatprep.subr.bf16.mxu0 0
      %2068 = vmatpush2.bf16.msra.mxu0 0
      %2069 = vmatprep.subr.bf16.mxu0 0
      %2070 = vmatpush2.bf16.msra.mxu0 0
      %2071 = vmatprep.subr.bf16.mxu0 0
      %2072 = vmatpush2.bf16.msra.mxu0 0
      %2073 = vmatprep.subr.bf16.mxu0 0
      %2074 = vmatpush2.bf16.msra.mxu0 0
      %2075 = vmatprep.subr.bf16.mxu0 0
      %2076 = vmatpush2.bf16.msra.mxu0 0
      %2077 = vmatprep.subr.bf16.mxu0 0
      %2078 = vmatpush2.bf16.msra.mxu0 0
      %2079 = vmatprep.mubr.bf16.mxu0 0
      %2080 = vmatmul.mubr.bf16.gmra.mxu0 %v1982
      %v2081 = vpop.f32.mrf.mxu0
      %v2082 = vadd.f32 0.0, %v2081
      %v2083 = vpop.f32.mrf.mxu0
      %v2084 = vpop.f32.mrf.mxu0
      %v2085 = vadd.f32 0.0, %v2084
      %v2086 = vpop.f32.mrf.mxu0
      %2087 = vmatprep.mubr.bf16.mxu0 0
      %2088 = vmatmul.mubr.bf16.gmra.mxu0 %v1985
      %v2089 = vpop.f32.mrf.mxu0
      %v2090 = vadd.f32 0.0, %v2089
      %v2091 = vpop.f32.mrf.mxu0
      %v2092 = vpop.f32.mrf.mxu0
      %v2093 = vadd.f32 0.0, %v2092
      %v2094 = vpop.f32.mrf.mxu0
      %2095 = vmatprep.mubr.bf16.mxu0 0
      %2096 = vmatmul.mubr.bf16.gmra.mxu0 %v1988
      %v2097 = vpop.f32.mrf.mxu0
      %v2098 = vadd.f32 0.0, %v2097
      %v2099 = vpop.f32.mrf.mxu0
      %v2100 = vpop.f32.mrf.mxu0
      %v2101 = vadd.f32 0.0, %v2100
      %v2102 = vpop.f32.mrf.mxu0
      %2103 = vmatprep.mubr.bf16.mxu0 0
      %2104 = vmatmul.mubr.bf16.gmra.mxu0 %v1991
      %v2105 = vpop.f32.mrf.mxu0
      %v2106 = vadd.f32 0.0, %v2105
      %v2107 = vpop.f32.mrf.mxu0
      %v2108 = vpop.f32.mrf.mxu0
      %v2109 = vadd.f32 0.0, %v2108
      %v2110 = vpop.f32.mrf.mxu0
      %2111 = vmatprep.mubr.bf16.mxu0 0
      %2112 = vmatmul.mubr.bf16.gmra.mxu0 %v1994
      %v2113 = vpop.f32.mrf.mxu0
      %v2114 = vadd.f32 0.0, %v2113
      %v2115 = vpop.f32.mrf.mxu0
      %v2116 = vpop.f32.mrf.mxu0
      %v2117 = vadd.f32 0.0, %v2116
      %v2118 = vpop.f32.mrf.mxu0
      %2119 = vmatprep.mubr.bf16.mxu0 0
      %2120 = vmatmul.mubr.bf16.gmra.mxu0 %v1997
      %v2121 = vpop.f32.mrf.mxu0
      %v2122 = vadd.f32 0.0, %v2121
      %v2123 = vpop.f32.mrf.mxu0
      %v2124 = vpop.f32.mrf.mxu0
      %v2125 = vadd.f32 0.0, %v2124
      %v2126 = vpop.f32.mrf.mxu0
      %2127 = vmatprep.mubr.bf16.mxu0 0
      %2128 = vmatmul.mubr.bf16.gmra.mxu0 %v2000
      %v2129 = vpop.f32.mrf.mxu0
      %v2130 = vadd.f32 0.0, %v2129
      %v2131 = vpop.f32.mrf.mxu0
      %v2132 = vpop.f32.mrf.mxu0
      %v2133 = vadd.f32 0.0, %v2132
      %v2134 = vpop.f32.mrf.mxu0
      %2135 = vmatprep.mubr.bf16.mxu0 0
      %2136 = vmatmul.mubr.bf16.gmra.mxu0 %v2003
      %v2137 = vpop.f32.mrf.mxu0
      %v2138 = vadd.f32 0.0, %v2137
      %v2139 = vpop.f32.mrf.mxu0
      %v2140 = vpop.f32.mrf.mxu0
      %v2141 = vadd.f32 0.0, %v2140
      %v2142 = vpop.f32.mrf.mxu0
      %2143 = vmatprep.mubr.bf16.mxu0 0
      %2144 = vmatmul.mubr.bf16.gmra.mxu0 %v2006
      %v2145 = vpop.f32.mrf.mxu0
      %v2146 = vadd.f32 0.0, %v2145
      %v2147 = vpop.f32.mrf.mxu0
      %v2148 = vpop.f32.mrf.mxu0
      %v2149 = vadd.f32 0.0, %v2148
      %v2150 = vpop.f32.mrf.mxu0
      %2151 = vmatprep.mubr.bf16.mxu0 0
      %2152 = vmatmul.mubr.bf16.gmra.mxu0 %v2009
      %v2153 = vpop.f32.mrf.mxu0
      %v2154 = vadd.f32 0.0, %v2153
      %v2155 = vpop.f32.mrf.mxu0
      %v2156 = vpop.f32.mrf.mxu0
      %v2157 = vadd.f32 0.0, %v2156
      %v2158 = vpop.f32.mrf.mxu0
      %2159 = vmatprep.mubr.bf16.mxu0 0
      %2160 = vmatmul.mubr.bf16.gmra.mxu0 %v2012
      %v2161 = vpop.f32.mrf.mxu0
      %v2162 = vadd.f32 0.0, %v2161
      %v2163 = vpop.f32.mrf.mxu0
      %v2164 = vpop.f32.mrf.mxu0
      %v2165 = vadd.f32 0.0, %v2164
      %v2166 = vpop.f32.mrf.mxu0
      %2167 = vmatprep.mubr.bf16.mxu0 0
      %2168 = vmatmul.mubr.bf16.gmra.mxu0 %v2015
      %v2169 = vpop.f32.mrf.mxu0
      %v2170 = vadd.f32 0.0, %v2169
      %v2171 = vpop.f32.mrf.mxu0
      %v2172 = vpop.f32.mrf.mxu0
      %v2173 = vadd.f32 0.0, %v2172
      %v2174 = vpop.f32.mrf.mxu0
      %2175 = vmatprep.mubr.bf16.mxu0 0
      %2176 = vmatmul.mubr.bf16.gmra.mxu0 %v2018
      %v2177 = vpop.f32.mrf.mxu0
      %v2178 = vadd.f32 0.0, %v2177
      %v2179 = vpop.f32.mrf.mxu0
      %v2180 = vpop.f32.mrf.mxu0
      %v2181 = vadd.f32 0.0, %v2180
      %v2182 = vpop.f32.mrf.mxu0
      %2183 = vmatprep.mubr.bf16.mxu0 0
      %2184 = vmatmul.mubr.bf16.gmra.mxu0 %v2021
      %v2185 = vpop.f32.mrf.mxu0
      %v2186 = vadd.f32 0.0, %v2185
      %v2187 = vpop.f32.mrf.mxu0
      %v2188 = vpop.f32.mrf.mxu0
      %v2189 = vadd.f32 0.0, %v2188
      %v2190 = vpop.f32.mrf.mxu0
      %2191 = vmatprep.mubr.bf16.mxu0 0
      %2192 = vmatmul.mubr.bf16.gmra.mxu0 %v2024
      %v2193 = vpop.f32.mrf.mxu0
      %v2194 = vadd.f32 0.0, %v2193
      %v2195 = vpop.f32.mrf.mxu0
      %v2196 = vpop.f32.mrf.mxu0
      %v2197 = vadd.f32 0.0, %v2196
      %v2198 = vpop.f32.mrf.mxu0
      %2199 = vmatprep.mubr.bf16.mxu0 0
      %2200 = vmatmul.mubr.bf16.gmra.mxu0 %v2027
      %v2201 = vpop.f32.mrf.mxu0
      %v2202 = vadd.f32 0.0, %v2201
      %v2203 = vpop.f32.mrf.mxu0
      %v2204 = vpop.f32.mrf.mxu0
      %v2205 = vadd.f32 0.0, %v2204
      %v2206 = vpop.f32.mrf.mxu0
      %2207 = vmatprep.mubr.bf16.mxu0 0
      %2208 = vmatmul.mubr.bf16.gmra.mxu0 %v2030
      %v2209 = vpop.f32.mrf.mxu0
      %v2210 = vadd.f32 0.0, %v2209
      %v2211 = vpop.f32.mrf.mxu0
      %v2212 = vpop.f32.mrf.mxu0
      %v2213 = vadd.f32 0.0, %v2212
      %v2214 = vpop.f32.mrf.mxu0
      %2215 = vmatprep.mubr.bf16.mxu0 0
      %2216 = vmatmul.mubr.bf16.gmra.mxu0 %v2033
      %v2217 = vpop.f32.mrf.mxu0
      %v2218 = vadd.f32 0.0, %v2217
      %v2219 = vpop.f32.mrf.mxu0
      %v2220 = vpop.f32.mrf.mxu0
      %v2221 = vadd.f32 0.0, %v2220
      %v2222 = vpop.f32.mrf.mxu0
      %2223 = vmatprep.mubr.bf16.mxu0 0
      %2224 = vmatmul.mubr.bf16.gmra.mxu0 %v2036
      %v2225 = vpop.f32.mrf.mxu0
      %v2226 = vadd.f32 0.0, %v2225
      %v2227 = vpop.f32.mrf.mxu0
      %v2228 = vpop.f32.mrf.mxu0
      %v2229 = vadd.f32 0.0, %v2228
      %v2230 = vpop.f32.mrf.mxu0
      %2231 = vmatprep.mubr.bf16.mxu0 0
      %2232 = vmatmul.mubr.bf16.gmra.mxu0 %v2039
      %v2233 = vpop.f32.mrf.mxu0
      %v2234 = vadd.f32 0.0, %v2233
      %v2235 = vpop.f32.mrf.mxu0
      %v2236 = vpop.f32.mrf.mxu0
      %v2237 = vadd.f32 0.0, %v2236
      %v2238 = vpop.f32.mrf.mxu0
      %2239 = vmatprep.mubr.bf16.mxu0 0
      %2240 = vmatmul.mubr.bf16.gmra.mxu0 %v2042
      %v2241 = vpop.f32.mrf.mxu0
      %v2242 = vadd.f32 0.0, %v2241
      %v2243 = vpop.f32.mrf.mxu0
      %v2244 = vpop.f32.mrf.mxu0
      %v2245 = vpop.f32.mrf.mxu0
      %2246 = vdwg.mxu0
      %v2247 = vadd.f32 %v1628, %v2082
      %v2248 = vadd.f32 %v1629, %v2085
      %v2249 = vadd.f32 %v1630, %v2090
      %v2250 = vadd.f32 %v1631, %v2093
      %v2251 = vadd.f32 %v1632, %v2098
      %v2252 = vadd.f32 %v1633, %v2101
      %v2253 = vadd.f32 %v1634, %v2106
      %v2254 = vadd.f32 %v1635, %v2109
      %v2255 = vadd.f32 %v1636, %v2114
      %v2256 = vadd.f32 %v1637, %v2117
      %v2257 = vadd.f32 %v1638, %v2122
      %v2258 = vadd.f32 %v1639, %v2125
      %v2259 = vadd.f32 %v1640, %v2130
      %v2260 = vadd.f32 %v1641, %v2133
      %v2261 = vadd.f32 %v1642, %v2138
      %v2262 = vadd.f32 %v1643, %v2141
      %v2263 = vadd.f32 %v1644, %v2146
      %v2264 = vadd.f32 %v1645, %v2149
      %v2265 = vadd.f32 %v1646, %v2154
      %v2266 = vadd.f32 %v1647, %v2157
      %v2267 = vadd.f32 %v1648, %v2162
      %v2268 = vadd.f32 %v1649, %v2165
      %v2269 = vadd.f32 %v1650, %v2170
      %v2270 = vadd.f32 %v1651, %v2173
      %v2271 = vadd.f32 %v1652, %v2178
      %v2272 = vadd.f32 %v1653, %v2181
      %v2273 = vadd.f32 %v1654, %v2186
      %v2274 = vadd.f32 %v1655, %v2189
      %v2275 = vadd.f32 %v1656, %v2194
      %v2276 = vadd.f32 %v1657, %v2197
      %v2277 = vadd.f32 %v1658, %v2202
      %v2278 = vadd.f32 %v1659, %v2205
      %v2279 = vadd.f32 %v1660, %v2210
      %v2280 = vadd.f32 %v1661, %v2213
      %v2281 = vadd.f32 %v1662, %v2218
      %v2282 = vadd.f32 %v1663, %v2221
      %v2283 = vadd.f32 %v1664, %v2226
      %v2284 = vadd.f32 %v1665, %v2229
      %v2285 = vadd.f32 %v1666, %v2234
      %v2286 = vadd.f32 %v1667, %v2237
      %v2287 = vadd.f32 %v1668, %v2242
      %v2288 = vld [vmem:[%s305 + $0xc] sm:$0xe]
      %v2289 = vld [vmem:[%s1 + $0x10] sm:$0xf]
      %v2291 = vunpack.c.l.b16 %v2288
      %v2292 = vpack.c.b16 %v1753, %v2291
      %vm2293 = vcmask 1046528
      %v2294 = vrot.slane %v2292, 1
      %v2295 = vrot.slane %v1794, 1
      %v2296 = vsel %vm2293, %v2294, %v2295
      %v2297 = vrot.slane %v1795, 1
      %v2298 = vsel %vm2293, %v2295, %v2297
      %v2299 = vrot.slane %v1796, 1
      %v2300 = vsel %vm2293, %v2297, %v2299
      %v2301 = vrot.slane %v1797, 1
      %v2302 = vsel %vm2293, %v2299, %v2301
      %v2303 = vrot.slane %v1798, 1
      %v2304 = vsel %vm2293, %v2301, %v2303
      %v2305 = vrot.slane %v1799, 1
      %v2306 = vsel %vm2293, %v2303, %v2305
      %v2307 = vrot.slane %v1800, 1
      %v2308 = vsel %vm2293, %v2305, %v2307
      %v2309 = vrot.slane %v1801, 1
      %v2310 = vsel %vm2293, %v2307, %v2309
      %v2311 = vrot.slane %v1802, 1
      %v2312 = vsel %vm2293, %v2309, %v2311
      %v2313 = vrot.slane %v1803, 1
      %v2314 = vsel %vm2293, %v2311, %v2313
      %v2315 = vrot.slane %v1804, 1
      %v2316 = vsel %vm2293, %v2313, %v2315
      %v2317 = vrot.slane %v1805, 1
      %v2318 = vsel %vm2293, %v2315, %v2317
      %v2319 = vrot.slane %v1806, 1
      %v2320 = vsel %vm2293, %v2317, %v2319
      %v2321 = vrot.slane %v1807, 1
      %v2322 = vsel %vm2293, %v2319, %v2321
      %v2323 = vrot.slane %v1808, 1
      %v2324 = vsel %vm2293, %v2321, %v2323
      %v2325 = vrot.slane %v1809, 1
      %v2326 = vsel %vm2293, %v2323, %v2325
      %v2327 = vrot.slane %v1810, 1
      %v2328 = vsel %vm2293, %v2325, %v2327
      %v2329 = vrot.slane %v1811, 1
      %v2330 = vsel %vm2293, %v2327, %v2329
      %v2331 = vrot.slane %v1812, 1
      %v2332 = vsel %vm2293, %v2329, %v2331
      %v2333 = vrot.slane %v1813, 1
      %v2334 = vsel %vm2293, %v2331, %v2333
      %v2336 = vsel %vm463, %v2296, 0
      %v2339 = vsel %vm463, %v2298, 0
      %v2342 = vsel %vm463, %v2300, 0
      %v2345 = vsel %vm463, %v2302, 0
      %v2348 = vsel %vm463, %v2304, 0
      %v2351 = vsel %vm463, %v2306, 0
      %v2354 = vsel %vm463, %v2308, 0
      %v2357 = vsel %vm463, %v2310, 0
      %v2360 = vsel %vm463, %v2312, 0
      %v2363 = vsel %vm463, %v2314, 0
      %v2366 = vsel %vm463, %v2316, 0
      %v2369 = vsel %vm463, %v2318, 0
      %v2372 = vsel %vm463, %v2320, 0
      %v2375 = vsel %vm463, %v2322, 0
      %v2378 = vsel %vm463, %v2324, 0
      %v2381 = vsel %vm463, %v2326, 0
      %v2384 = vsel %vm463, %v2328, 0
      %v2387 = vsel %vm463, %v2330, 0
      %v2390 = vsel %vm463, %v2332, 0
      %v2393 = vsel %vm463, %v2334, 0
      %v2396 = vsel %vm463, %v2333, 0
      %v2399 = vsel %vm527, %v2289, 0
      %2401 = vmatprep.subr.bf16.mxu0 0
      %2402 = vmatpush1.bf16.msra.mxu0 0
      %2403 = vmatprep.subr.bf16.mxu0 0
      %2404 = vmatpush1.bf16.msra.mxu0 0
      %2405 = vmatprep.subr.bf16.mxu0 0
      %2406 = vmatpush1.bf16.msra.mxu0 0
      %2407 = vmatprep.subr.bf16.mxu0 0
      %2408 = vmatpush1.bf16.msra.mxu0 0
      %2409 = vmatprep.subr.bf16.mxu0 0
      %2410 = vmatpush1.bf16.msra.mxu0 0
      %2411 = vmatprep.subr.bf16.mxu0 0
      %2412 = vmatpush1.bf16.msra.mxu0 0
      %2413 = vmatprep.subr.bf16.mxu0 0
      %2414 = vmatpush1.bf16.msra.mxu0 0
      %2415 = vmatprep.subr.bf16.mxu0 0
      %2416 = vmatpush1.bf16.msra.mxu0 %v2399
      %2417 = vmatprep.subr.bf16.mxu0 0
      %2418 = vmatpush2.bf16.msra.mxu0 0
      %2419 = vmatprep.subr.bf16.mxu0 0
      %2420 = vmatpush2.bf16.msra.mxu0 0
      %2421 = vmatprep.subr.bf16.mxu0 0
      %2422 = vmatpush2.bf16.msra.mxu0 0
      %2423 = vmatprep.subr.bf16.mxu0 0
      %2424 = vmatpush2.bf16.msra.mxu0 0
      %2425 = vmatprep.subr.bf16.mxu0 0
      %2426 = vmatpush2.bf16.msra.mxu0 0
      %2427 = vmatprep.subr.bf16.mxu0 0
      %2428 = vmatpush2.bf16.msra.mxu0 0
      %2429 = vmatprep.subr.bf16.mxu0 0
      %2430 = vmatpush2.bf16.msra.mxu0 0
      %2431 = vmatprep.subr.bf16.mxu0 0
      %2432 = vmatpush2.bf16.msra.mxu0 0
      %2433 = vmatprep.mubr.bf16.mxu0 0
      %2434 = vmatmul.mubr.bf16.gmra.mxu0 %v2336
      %v2435 = vpop.f32.mrf.mxu0
      %v2436 = vadd.f32 0.0, %v2435
      %v2437 = vpop.f32.mrf.mxu0
      %v2438 = vpop.f32.mrf.mxu0
      %v2439 = vadd.f32 0.0, %v2438
      %v2440 = vpop.f32.mrf.mxu0
      %2441 = vmatprep.mubr.bf16.mxu0 0
      %2442 = vmatmul.mubr.bf16.gmra.mxu0 %v2339
      %v2443 = vpop.f32.mrf.mxu0
      %v2444 = vadd.f32 0.0, %v2443
      %v2445 = vpop.f32.mrf.mxu0
      %v2446 = vpop.f32.mrf.mxu0
      %v2447 = vadd.f32 0.0, %v2446
      %v2448 = vpop.f32.mrf.mxu0
      %2449 = vmatprep.mubr.bf16.mxu0 0
      %2450 = vmatmul.mubr.bf16.gmra.mxu0 %v2342
      %v2451 = vpop.f32.mrf.mxu0
      %v2452 = vadd.f32 0.0, %v2451
      %v2453 = vpop.f32.mrf.mxu0
      %v2454 = vpop.f32.mrf.mxu0
      %v2455 = vadd.f32 0.0, %v2454
      %v2456 = vpop.f32.mrf.mxu0
      %2457 = vmatprep.mubr.bf16.mxu0 0
      %2458 = vmatmul.mubr.bf16.gmra.mxu0 %v2345
      %v2459 = vpop.f32.mrf.mxu0
      %v2460 = vadd.f32 0.0, %v2459
      %v2461 = vpop.f32.mrf.mxu0
      %v2462 = vpop.f32.mrf.mxu0
      %v2463 = vadd.f32 0.0, %v2462
      %v2464 = vpop.f32.mrf.mxu0
      %2465 = vmatprep.mubr.bf16.mxu0 0
      %2466 = vmatmul.mubr.bf16.gmra.mxu0 %v2348
      %v2467 = vpop.f32.mrf.mxu0
      %v2468 = vadd.f32 0.0, %v2467
      %v2469 = vpop.f32.mrf.mxu0
      %v2470 = vpop.f32.mrf.mxu0
      %v2471 = vadd.f32 0.0, %v2470
      %v2472 = vpop.f32.mrf.mxu0
      %2473 = vmatprep.mubr.bf16.mxu0 0
      %2474 = vmatmul.mubr.bf16.gmra.mxu0 %v2351
      %v2475 = vpop.f32.mrf.mxu0
      %v2476 = vadd.f32 0.0, %v2475
      %v2477 = vpop.f32.mrf.mxu0
      %v2478 = vpop.f32.mrf.mxu0
      %v2479 = vadd.f32 0.0, %v2478
      %v2480 = vpop.f32.mrf.mxu0
      %2481 = vmatprep.mubr.bf16.mxu0 0
      %2482 = vmatmul.mubr.bf16.gmra.mxu0 %v2354
      %v2483 = vpop.f32.mrf.mxu0
      %v2484 = vadd.f32 0.0, %v2483
      %v2485 = vpop.f32.mrf.mxu0
      %v2486 = vpop.f32.mrf.mxu0
      %v2487 = vadd.f32 0.0, %v2486
      %v2488 = vpop.f32.mrf.mxu0
      %2489 = vmatprep.mubr.bf16.mxu0 0
      %2490 = vmatmul.mubr.bf16.gmra.mxu0 %v2357
      %v2491 = vpop.f32.mrf.mxu0
      %v2492 = vadd.f32 0.0, %v2491
      %v2493 = vpop.f32.mrf.mxu0
      %v2494 = vpop.f32.mrf.mxu0
      %v2495 = vadd.f32 0.0, %v2494
      %v2496 = vpop.f32.mrf.mxu0
      %2497 = vmatprep.mubr.bf16.mxu0 0
      %2498 = vmatmul.mubr.bf16.gmra.mxu0 %v2360
      %v2499 = vpop.f32.mrf.mxu0
      %v2500 = vadd.f32 0.0, %v2499
      %v2501 = vpop.f32.mrf.mxu0
      %v2502 = vpop.f32.mrf.mxu0
      %v2503 = vadd.f32 0.0, %v2502
      %v2504 = vpop.f32.mrf.mxu0
      %2505 = vmatprep.mubr.bf16.mxu0 0
      %2506 = vmatmul.mubr.bf16.gmra.mxu0 %v2363
      %v2507 = vpop.f32.mrf.mxu0
      %v2508 = vadd.f32 0.0, %v2507
      %v2509 = vpop.f32.mrf.mxu0
      %v2510 = vpop.f32.mrf.mxu0
      %v2511 = vadd.f32 0.0, %v2510
      %v2512 = vpop.f32.mrf.mxu0
      %2513 = vmatprep.mubr.bf16.mxu0 0
      %2514 = vmatmul.mubr.bf16.gmra.mxu0 %v2366
      %v2515 = vpop.f32.mrf.mxu0
      %v2516 = vadd.f32 0.0, %v2515
      %v2517 = vpop.f32.mrf.mxu0
      %v2518 = vpop.f32.mrf.mxu0
      %v2519 = vadd.f32 0.0, %v2518
      %v2520 = vpop.f32.mrf.mxu0
      %2521 = vmatprep.mubr.bf16.mxu0 0
      %2522 = vmatmul.mubr.bf16.gmra.mxu0 %v2369
      %v2523 = vpop.f32.mrf.mxu0
      %v2524 = vadd.f32 0.0, %v2523
      %v2525 = vpop.f32.mrf.mxu0
      %v2526 = vpop.f32.mrf.mxu0
      %v2527 = vadd.f32 0.0, %v2526
      %v2528 = vpop.f32.mrf.mxu0
      %2529 = vmatprep.mubr.bf16.mxu0 0
      %2530 = vmatmul.mubr.bf16.gmra.mxu0 %v2372
      %v2531 = vpop.f32.mrf.mxu0
      %v2532 = vadd.f32 0.0, %v2531
      %v2533 = vpop.f32.mrf.mxu0
      %v2534 = vpop.f32.mrf.mxu0
      %v2535 = vadd.f32 0.0, %v2534
      %v2536 = vpop.f32.mrf.mxu0
      %2537 = vmatprep.mubr.bf16.mxu0 0
      %2538 = vmatmul.mubr.bf16.gmra.mxu0 %v2375
      %v2539 = vpop.f32.mrf.mxu0
      %v2540 = vadd.f32 0.0, %v2539
      %v2541 = vpop.f32.mrf.mxu0
      %v2542 = vpop.f32.mrf.mxu0
      %v2543 = vadd.f32 0.0, %v2542
      %v2544 = vpop.f32.mrf.mxu0
      %2545 = vmatprep.mubr.bf16.mxu0 0
      %2546 = vmatmul.mubr.bf16.gmra.mxu0 %v2378
      %v2547 = vpop.f32.mrf.mxu0
      %v2548 = vadd.f32 0.0, %v2547
      %v2549 = vpop.f32.mrf.mxu0
      %v2550 = vpop.f32.mrf.mxu0
      %v2551 = vadd.f32 0.0, %v2550
      %v2552 = vpop.f32.mrf.mxu0
      %2553 = vmatprep.mubr.bf16.mxu0 0
      %2554 = vmatmul.mubr.bf16.gmra.mxu0 %v2381
      %v2555 = vpop.f32.mrf.mxu0
      %v2556 = vadd.f32 0.0, %v2555
      %v2557 = vpop.f32.mrf.mxu0
      %v2558 = vpop.f32.mrf.mxu0
      %v2559 = vadd.f32 0.0, %v2558
      %v2560 = vpop.f32.mrf.mxu0
      %2561 = vmatprep.mubr.bf16.mxu0 0
      %2562 = vmatmul.mubr.bf16.gmra.mxu0 %v2384
      %v2563 = vpop.f32.mrf.mxu0
      %v2564 = vadd.f32 0.0, %v2563
      %v2565 = vpop.f32.mrf.mxu0
      %v2566 = vpop.f32.mrf.mxu0
      %v2567 = vadd.f32 0.0, %v2566
      %v2568 = vpop.f32.mrf.mxu0
      %2569 = vmatprep.mubr.bf16.mxu0 0
      %2570 = vmatmul.mubr.bf16.gmra.mxu0 %v2387
      %v2571 = vpop.f32.mrf.mxu0
      %v2572 = vadd.f32 0.0, %v2571
      %v2573 = vpop.f32.mrf.mxu0
      %v2574 = vpop.f32.mrf.mxu0
      %v2575 = vadd.f32 0.0, %v2574
      %v2576 = vpop.f32.mrf.mxu0
      %2577 = vmatprep.mubr.bf16.mxu0 0
      %2578 = vmatmul.mubr.bf16.gmra.mxu0 %v2390
      %v2579 = vpop.f32.mrf.mxu0
      %v2580 = vadd.f32 0.0, %v2579
      %v2581 = vpop.f32.mrf.mxu0
      %v2582 = vpop.f32.mrf.mxu0
      %v2583 = vadd.f32 0.0, %v2582
      %v2584 = vpop.f32.mrf.mxu0
      %2585 = vmatprep.mubr.bf16.mxu0 0
      %2586 = vmatmul.mubr.bf16.gmra.mxu0 %v2393
      %v2587 = vpop.f32.mrf.mxu0
      %v2588 = vadd.f32 0.0, %v2587
      %v2589 = vpop.f32.mrf.mxu0
      %v2590 = vpop.f32.mrf.mxu0
      %v2591 = vadd.f32 0.0, %v2590
      %v2592 = vpop.f32.mrf.mxu0
      %2593 = vmatprep.mubr.bf16.mxu0 0
      %2594 = vmatmul.mubr.bf16.gmra.mxu0 %v2396
      %v2595 = vpop.f32.mrf.mxu0
      %v2596 = vadd.f32 0.0, %v2595
      %v2597 = vpop.f32.mrf.mxu0
      %v2598 = vpop.f32.mrf.mxu0
      %v2599 = vpop.f32.mrf.mxu0
      %2600 = vdwg.mxu0
      %v2601 = vadd.f32 %v2247, %v2436
      %v2602 = vadd.f32 %v2248, %v2439
      %v2603 = vadd.f32 %v2249, %v2444
      %v2604 = vadd.f32 %v2250, %v2447
      %v2605 = vadd.f32 %v2251, %v2452
      %v2606 = vadd.f32 %v2252, %v2455
      %v2607 = vadd.f32 %v2253, %v2460
      %v2608 = vadd.f32 %v2254, %v2463
      %v2609 = vadd.f32 %v2255, %v2468
      %v2610 = vadd.f32 %v2256, %v2471
      %v2611 = vadd.f32 %v2257, %v2476
      %v2612 = vadd.f32 %v2258, %v2479
      %v2613 = vadd.f32 %v2259, %v2484
      %v2614 = vadd.f32 %v2260, %v2487
      %v2615 = vadd.f32 %v2261, %v2492
      %v2616 = vadd.f32 %v2262, %v2495
      %v2617 = vadd.f32 %v2263, %v2500
      %v2618 = vadd.f32 %v2264, %v2503
      %v2619 = vadd.f32 %v2265, %v2508
      %v2620 = vadd.f32 %v2266, %v2511
      %v2621 = vadd.f32 %v2267, %v2516
      %v2622 = vadd.f32 %v2268, %v2519
      %v2623 = vadd.f32 %v2269, %v2524
      %v2624 = vadd.f32 %v2270, %v2527
      %v2625 = vadd.f32 %v2271, %v2532
      %v2626 = vadd.f32 %v2272, %v2535
      %v2627 = vadd.f32 %v2273, %v2540
      %v2628 = vadd.f32 %v2274, %v2543
      %v2629 = vadd.f32 %v2275, %v2548
      %v2630 = vadd.f32 %v2276, %v2551
      %v2631 = vadd.f32 %v2277, %v2556
      %v2632 = vadd.f32 %v2278, %v2559
      %v2633 = vadd.f32 %v2279, %v2564
      %v2634 = vadd.f32 %v2280, %v2567
      %v2635 = vadd.f32 %v2281, %v2572
      %v2636 = vadd.f32 %v2282, %v2575
      %v2637 = vadd.f32 %v2283, %v2580
      %v2638 = vadd.f32 %v2284, %v2583
      %v2639 = vadd.f32 %v2285, %v2588
      %v2640 = vadd.f32 %v2286, %v2591
      %v2641 = vadd.f32 %v2287, %v2596
      %v2642 = vld [vmem:[%s305 + $0xac] sm:$0xf]
      %v2643 = vld [vmem:[%s1 + $0x14] sm:$0xf]
      %v2645 = vunpack.c.l.b16 %v2642
      %v2646 = vpack.c.b16 %v2645, %v2645
      %vm2647 = vsmask.f32 6400
      %v2649 = vshrl.u32 %v2292, 16
      %v2651 = vrot.slane %v2649, 1
      %v2652 = vshll.u32 %v2292, 16
      %v2654 = vrot.slane %v2652, 2
      %v2655 = vor.u32 %v2651, %v2654
      %v2656 = vrot.slane %v1826, 1
      %v2657 = vrot.slane %v1822, 2
      %v2658 = vor.u32 %v2656, %v2657
      %v2659 = vsel %vm2647, %v2655, %v2658
      %v2660 = vrot.slane %v1834, 1
      %v2661 = vrot.slane %v1830, 2
      %v2662 = vor.u32 %v2660, %v2661
      %v2663 = vsel %vm2647, %v2658, %v2662
      %v2664 = vrot.slane %v1842, 1
      %v2665 = vrot.slane %v1838, 2
      %v2666 = vor.u32 %v2664, %v2665
      %v2667 = vsel %vm2647, %v2662, %v2666
      %v2668 = vrot.slane %v1850, 1
      %v2669 = vrot.slane %v1846, 2
      %v2670 = vor.u32 %v2668, %v2669
      %v2671 = vsel %vm2647, %v2666, %v2670
      %v2672 = vrot.slane %v1858, 1
      %v2673 = vrot.slane %v1854, 2
      %v2674 = vor.u32 %v2672, %v2673
      %v2675 = vsel %vm2647, %v2670, %v2674
      %v2676 = vrot.slane %v1866, 1
      %v2677 = vrot.slane %v1862, 2
      %v2678 = vor.u32 %v2676, %v2677
      %v2679 = vsel %vm2647, %v2674, %v2678
      %v2680 = vrot.slane %v1874, 1
      %v2681 = vrot.slane %v1870, 2
      %v2682 = vor.u32 %v2680, %v2681
      %v2683 = vsel %vm2647, %v2678, %v2682
      %v2684 = vrot.slane %v1882, 1
      %v2685 = vrot.slane %v1878, 2
      %v2686 = vor.u32 %v2684, %v2685
      %v2687 = vsel %vm2647, %v2682, %v2686
      %v2688 = vrot.slane %v1890, 1
      %v2689 = vrot.slane %v1886, 2
      %v2690 = vor.u32 %v2688, %v2689
      %v2691 = vsel %vm2647, %v2686, %v2690
      %v2692 = vrot.slane %v1898, 1
      %v2693 = vrot.slane %v1894, 2
      %v2694 = vor.u32 %v2692, %v2693
      %v2695 = vsel %vm2647, %v2690, %v2694
      %v2696 = vrot.slane %v1906, 1
      %v2697 = vrot.slane %v1902, 2
      %v2698 = vor.u32 %v2696, %v2697
      %v2699 = vsel %vm2647, %v2694, %v2698
      %v2700 = vrot.slane %v1914, 1
      %v2701 = vrot.slane %v1910, 2
      %v2702 = vor.u32 %v2700, %v2701
      %v2703 = vsel %vm2647, %v2698, %v2702
      %v2704 = vrot.slane %v1922, 1
      %v2705 = vrot.slane %v1918, 2
      %v2706 = vor.u32 %v2704, %v2705
      %v2707 = vsel %vm2647, %v2702, %v2706
      %v2708 = vrot.slane %v1930, 1
      %v2709 = vrot.slane %v1926, 2
      %v2710 = vor.u32 %v2708, %v2709
      %v2711 = vsel %vm2647, %v2706, %v2710
      %v2712 = vrot.slane %v1938, 1
      %v2713 = vrot.slane %v1934, 2
      %v2714 = vor.u32 %v2712, %v2713
      %v2715 = vsel %vm2647, %v2710, %v2714
      %v2716 = vrot.slane %v1946, 1
      %v2717 = vrot.slane %v1942, 2
      %v2718 = vor.u32 %v2716, %v2717
      %v2719 = vsel %vm2647, %v2714, %v2718
      %v2720 = vrot.slane %v1954, 1
      %v2721 = vrot.slane %v1950, 2
      %v2722 = vor.u32 %v2720, %v2721
      %v2723 = vsel %vm2647, %v2718, %v2722
      %v2724 = vrot.slane %v1962, 1
      %v2725 = vrot.slane %v1958, 2
      %v2726 = vor.u32 %v2724, %v2725
      %v2727 = vsel %vm2647, %v2722, %v2726
      %v2728 = vrot.slane %v1970, 1
      %v2729 = vrot.slane %v1966, 2
      %v2730 = vor.u32 %v2728, %v2729
      %v2731 = vsel %vm2647, %v2726, %v2730
      %v2733 = vshrl.u32 %v2646, 16
      %v2735 = vrot.slane %v2733, 1
      %v2736 = vshll.u32 %v2646, 16
      %v2738 = vrot.slane %v2736, 2
      %v2739 = vor.u32 %v2735, %v2738
      %v2740 = vsel %vm2647, %v2730, %v2739
      %v2742 = vsel %vm463, %v2659, 0
      %v2745 = vsel %vm463, %v2663, 0
      %v2748 = vsel %vm463, %v2667, 0
      %v2751 = vsel %vm463, %v2671, 0
      %v2754 = vsel %vm463, %v2675, 0
      %v2757 = vsel %vm463, %v2679, 0
      %v2760 = vsel %vm463, %v2683, 0
      %v2763 = vsel %vm463, %v2687, 0
      %v2766 = vsel %vm463, %v2691, 0
      %v2769 = vsel %vm463, %v2695, 0
      %v2772 = vsel %vm463, %v2699, 0
      %v2775 = vsel %vm463, %v2703, 0
      %v2778 = vsel %vm463, %v2707, 0
      %v2781 = vsel %vm463, %v2711, 0
      %v2784 = vsel %vm463, %v2715, 0
      %v2787 = vsel %vm463, %v2719, 0
      %v2790 = vsel %vm463, %v2723, 0
      %v2793 = vsel %vm463, %v2727, 0
      %v2796 = vsel %vm463, %v2731, 0
      %v2799 = vsel %vm463, %v2740, 0
      %v2802 = vsel %vm463, %v2739, 0
      %v2805 = vsel %vm527, %v2643, 0
      %2807 = vmatprep.subr.bf16.mxu0 0
      %2808 = vmatpush1.bf16.msra.mxu0 0
      %2809 = vmatprep.subr.bf16.mxu0 0
      %2810 = vmatpush1.bf16.msra.mxu0 0
      %2811 = vmatprep.subr.bf16.mxu0 0
      %2812 = vmatpush1.bf16.msra.mxu0 0
      %2813 = vmatprep.subr.bf16.mxu0 0
      %2814 = vmatpush1.bf16.msra.mxu0 0
      %2815 = vmatprep.subr.bf16.mxu0 0
      %2816 = vmatpush1.bf16.msra.mxu0 0
      %2817 = vmatprep.subr.bf16.mxu0 0
      %2818 = vmatpush1.bf16.msra.mxu0 0
      %2819 = vmatprep.subr.bf16.mxu0 0
      %2820 = vmatpush1.bf16.msra.mxu0 0
      %2821 = vmatprep.subr.bf16.mxu0 0
      %2822 = vmatpush1.bf16.msra.mxu0 %v2805
      %2823 = vmatprep.subr.bf16.mxu0 0
      %2824 = vmatpush2.bf16.msra.mxu0 0
      %2825 = vmatprep.subr.bf16.mxu0 0
      %2826 = vmatpush2.bf16.msra.mxu0 0
      %2827 = vmatprep.subr.bf16.mxu0 0
      %2828 = vmatpush2.bf16.msra.mxu0 0
      %2829 = vmatprep.subr.bf16.mxu0 0
      %2830 = vmatpush2.bf16.msra.mxu0 0
      %2831 = vmatprep.subr.bf16.mxu0 0
      %2832 = vmatpush2.bf16.msra.mxu0 0
      %2833 = vmatprep.subr.bf16.mxu0 0
      %2834 = vmatpush2.bf16.msra.mxu0 0
      %2835 = vmatprep.subr.bf16.mxu0 0
      %2836 = vmatpush2.bf16.msra.mxu0 0
      %2837 = vmatprep.subr.bf16.mxu0 0
      %2838 = vmatpush2.bf16.msra.mxu0 0
      %2839 = vmatprep.mubr.bf16.mxu0 0
      %2840 = vmatmul.mubr.bf16.gmra.mxu0 %v2742
      %v2841 = vpop.f32.mrf.mxu0
      %v2842 = vadd.f32 0.0, %v2841
      %v2843 = vpop.f32.mrf.mxu0
      %v2844 = vpop.f32.mrf.mxu0
      %v2845 = vadd.f32 0.0, %v2844
      %v2846 = vpop.f32.mrf.mxu0
      %2847 = vmatprep.mubr.bf16.mxu0 0
      %2848 = vmatmul.mubr.bf16.gmra.mxu0 %v2745
      %v2849 = vpop.f32.mrf.mxu0
      %v2850 = vadd.f32 0.0, %v2849
      %v2851 = vpop.f32.mrf.mxu0
      %v2852 = vpop.f32.mrf.mxu0
      %v2853 = vadd.f32 0.0, %v2852
      %v2854 = vpop.f32.mrf.mxu0
      %2855 = vmatprep.mubr.bf16.mxu0 0
      %2856 = vmatmul.mubr.bf16.gmra.mxu0 %v2748
      %v2857 = vpop.f32.mrf.mxu0
      %v2858 = vadd.f32 0.0, %v2857
      %v2859 = vpop.f32.mrf.mxu0
      %v2860 = vpop.f32.mrf.mxu0
      %v2861 = vadd.f32 0.0, %v2860
      %v2862 = vpop.f32.mrf.mxu0
      %2863 = vmatprep.mubr.bf16.mxu0 0
      %2864 = vmatmul.mubr.bf16.gmra.mxu0 %v2751
      %v2865 = vpop.f32.mrf.mxu0
      %v2866 = vadd.f32 0.0, %v2865
      %v2867 = vpop.f32.mrf.mxu0
      %v2868 = vpop.f32.mrf.mxu0
      %v2869 = vadd.f32 0.0, %v2868
      %v2870 = vpop.f32.mrf.mxu0
      %2871 = vmatprep.mubr.bf16.mxu0 0
      %2872 = vmatmul.mubr.bf16.gmra.mxu0 %v2754
      %v2873 = vpop.f32.mrf.mxu0
      %v2874 = vadd.f32 0.0, %v2873
      %v2875 = vpop.f32.mrf.mxu0
      %v2876 = vpop.f32.mrf.mxu0
      %v2877 = vadd.f32 0.0, %v2876
      %v2878 = vpop.f32.mrf.mxu0
      %2879 = vmatprep.mubr.bf16.mxu0 0
      %2880 = vmatmul.mubr.bf16.gmra.mxu0 %v2757
      %v2881 = vpop.f32.mrf.mxu0
      %v2882 = vadd.f32 0.0, %v2881
      %v2883 = vpop.f32.mrf.mxu0
      %v2884 = vpop.f32.mrf.mxu0
      %v2885 = vadd.f32 0.0, %v2884
      %v2886 = vpop.f32.mrf.mxu0
      %2887 = vmatprep.mubr.bf16.mxu0 0
      %2888 = vmatmul.mubr.bf16.gmra.mxu0 %v2760
      %v2889 = vpop.f32.mrf.mxu0
      %v2890 = vadd.f32 0.0, %v2889
      %v2891 = vpop.f32.mrf.mxu0
      %v2892 = vpop.f32.mrf.mxu0
      %v2893 = vadd.f32 0.0, %v2892
      %v2894 = vpop.f32.mrf.mxu0
      %2895 = vmatprep.mubr.bf16.mxu0 0
      %2896 = vmatmul.mubr.bf16.gmra.mxu0 %v2763
      %v2897 = vpop.f32.mrf.mxu0
      %v2898 = vadd.f32 0.0, %v2897
      %v2899 = vpop.f32.mrf.mxu0
      %v2900 = vpop.f32.mrf.mxu0
      %v2901 = vadd.f32 0.0, %v2900
      %v2902 = vpop.f32.mrf.mxu0
      %2903 = vmatprep.mubr.bf16.mxu0 0
      %2904 = vmatmul.mubr.bf16.gmra.mxu0 %v2766
      %v2905 = vpop.f32.mrf.mxu0
      %v2906 = vadd.f32 0.0, %v2905
      %v2907 = vpop.f32.mrf.mxu0
      %v2908 = vpop.f32.mrf.mxu0
      %v2909 = vadd.f32 0.0, %v2908
      %v2910 = vpop.f32.mrf.mxu0
      %2911 = vmatprep.mubr.bf16.mxu0 0
      %2912 = vmatmul.mubr.bf16.gmra.mxu0 %v2769
      %v2913 = vpop.f32.mrf.mxu0
      %v2914 = vadd.f32 0.0, %v2913
      %v2915 = vpop.f32.mrf.mxu0
      %v2916 = vpop.f32.mrf.mxu0
      %v2917 = vadd.f32 0.0, %v2916
      %v2918 = vpop.f32.mrf.mxu0
      %2919 = vmatprep.mubr.bf16.mxu0 0
      %2920 = vmatmul.mubr.bf16.gmra.mxu0 %v2772
      %v2921 = vpop.f32.mrf.mxu0
      %v2922 = vadd.f32 0.0, %v2921
      %v2923 = vpop.f32.mrf.mxu0
      %v2924 = vpop.f32.mrf.mxu0
      %v2925 = vadd.f32 0.0, %v2924
      %v2926 = vpop.f32.mrf.mxu0
      %2927 = vmatprep.mubr.bf16.mxu0 0
      %2928 = vmatmul.mubr.bf16.gmra.mxu0 %v2775
      %v2929 = vpop.f32.mrf.mxu0
      %v2930 = vadd.f32 0.0, %v2929
      %v2931 = vpop.f32.mrf.mxu0
      %v2932 = vpop.f32.mrf.mxu0
      %v2933 = vadd.f32 0.0, %v2932
      %v2934 = vpop.f32.mrf.mxu0
      %2935 = vmatprep.mubr.bf16.mxu0 0
      %2936 = vmatmul.mubr.bf16.gmra.mxu0 %v2778
      %v2937 = vpop.f32.mrf.mxu0
      %v2938 = vadd.f32 0.0, %v2937
      %v2939 = vpop.f32.mrf.mxu0
      %v2940 = vpop.f32.mrf.mxu0
      %v2941 = vadd.f32 0.0, %v2940
      %v2942 = vpop.f32.mrf.mxu0
      %2943 = vmatprep.mubr.bf16.mxu0 0
      %2944 = vmatmul.mubr.bf16.gmra.mxu0 %v2781
      %v2945 = vpop.f32.mrf.mxu0
      %v2946 = vadd.f32 0.0, %v2945
      %v2947 = vpop.f32.mrf.mxu0
      %v2948 = vpop.f32.mrf.mxu0
      %v2949 = vadd.f32 0.0, %v2948
      %v2950 = vpop.f32.mrf.mxu0
      %2951 = vmatprep.mubr.bf16.mxu0 0
      %2952 = vmatmul.mubr.bf16.gmra.mxu0 %v2784
      %v2953 = vpop.f32.mrf.mxu0
      %v2954 = vadd.f32 0.0, %v2953
      %v2955 = vpop.f32.mrf.mxu0
      %v2956 = vpop.f32.mrf.mxu0
      %v2957 = vadd.f32 0.0, %v2956
      %v2958 = vpop.f32.mrf.mxu0
      %2959 = vmatprep.mubr.bf16.mxu0 0
      %2960 = vmatmul.mubr.bf16.gmra.mxu0 %v2787
      %v2961 = vpop.f32.mrf.mxu0
      %v2962 = vadd.f32 0.0, %v2961
      %v2963 = vpop.f32.mrf.mxu0
      %v2964 = vpop.f32.mrf.mxu0
      %v2965 = vadd.f32 0.0, %v2964
      %v2966 = vpop.f32.mrf.mxu0
      %2967 = vmatprep.mubr.bf16.mxu0 0
      %2968 = vmatmul.mubr.bf16.gmra.mxu0 %v2790
      %v2969 = vpop.f32.mrf.mxu0
      %v2970 = vadd.f32 0.0, %v2969
      %v2971 = vpop.f32.mrf.mxu0
      %v2972 = vpop.f32.mrf.mxu0
      %v2973 = vadd.f32 0.0, %v2972
      %v2974 = vpop.f32.mrf.mxu0
      %2975 = vmatprep.mubr.bf16.mxu0 0
      %2976 = vmatmul.mubr.bf16.gmra.mxu0 %v2793
      %v2977 = vpop.f32.mrf.mxu0
      %v2978 = vadd.f32 0.0, %v2977
      %v2979 = vpop.f32.mrf.mxu0
      %v2980 = vpop.f32.mrf.mxu0
      %v2981 = vadd.f32 0.0, %v2980
      %v2982 = vpop.f32.mrf.mxu0
      %2983 = vmatprep.mubr.bf16.mxu0 0
      %2984 = vmatmul.mubr.bf16.gmra.mxu0 %v2796
      %v2985 = vpop.f32.mrf.mxu0
      %v2986 = vadd.f32 0.0, %v2985
      %v2987 = vpop.f32.mrf.mxu0
      %v2988 = vpop.f32.mrf.mxu0
      %v2989 = vadd.f32 0.0, %v2988
      %v2990 = vpop.f32.mrf.mxu0
      %2991 = vmatprep.mubr.bf16.mxu0 0
      %2992 = vmatmul.mubr.bf16.gmra.mxu0 %v2799
      %v2993 = vpop.f32.mrf.mxu0
      %v2994 = vadd.f32 0.0, %v2993
      %v2995 = vpop.f32.mrf.mxu0
      %v2996 = vpop.f32.mrf.mxu0
      %v2997 = vadd.f32 0.0, %v2996
      %v2998 = vpop.f32.mrf.mxu0
      %2999 = vmatprep.mubr.bf16.mxu0 0
      %3000 = vmatmul.mubr.bf16.gmra.mxu0 %v2802
      %v3001 = vpop.f32.mrf.mxu0
      %v3002 = vadd.f32 0.0, %v3001
      %v3003 = vpop.f32.mrf.mxu0
      %v3004 = vpop.f32.mrf.mxu0
      %v3005 = vpop.f32.mrf.mxu0
      %3006 = vdwg.mxu0
      %v3007 = vadd.f32 %v2601, %v2842
      %v3008 = vadd.f32 %v2602, %v2845
      %v3009 = vadd.f32 %v2603, %v2850
      %v3010 = vadd.f32 %v2604, %v2853
      %v3011 = vadd.f32 %v2605, %v2858
      %v3012 = vadd.f32 %v2606, %v2861
      %v3013 = vadd.f32 %v2607, %v2866
      %v3014 = vadd.f32 %v2608, %v2869
      %v3015 = vadd.f32 %v2609, %v2874
      %v3016 = vadd.f32 %v2610, %v2877
      %v3017 = vadd.f32 %v2611, %v2882
      %v3018 = vadd.f32 %v2612, %v2885
      %v3019 = vadd.f32 %v2613, %v2890
      %v3020 = vadd.f32 %v2614, %v2893
      %v3021 = vadd.f32 %v2615, %v2898
      %v3022 = vadd.f32 %v2616, %v2901
      %v3023 = vadd.f32 %v2617, %v2906
      %v3024 = vadd.f32 %v2618, %v2909
      %v3025 = vadd.f32 %v2619, %v2914
      %v3026 = vadd.f32 %v2620, %v2917
      %v3027 = vadd.f32 %v2621, %v2922
      %v3028 = vadd.f32 %v2622, %v2925
      %v3029 = vadd.f32 %v2623, %v2930
      %v3030 = vadd.f32 %v2624, %v2933
      %v3031 = vadd.f32 %v2625, %v2938
      %v3032 = vadd.f32 %v2626, %v2941
      %v3033 = vadd.f32 %v2627, %v2946
      %v3034 = vadd.f32 %v2628, %v2949
      %v3035 = vadd.f32 %v2629, %v2954
      %v3036 = vadd.f32 %v2630, %v2957
      %v3037 = vadd.f32 %v2631, %v2962
      %v3038 = vadd.f32 %v2632, %v2965
      %v3039 = vadd.f32 %v2633, %v2970
      %v3040 = vadd.f32 %v2634, %v2973
      %v3041 = vadd.f32 %v2635, %v2978
      %v3042 = vadd.f32 %v2636, %v2981
      %v3043 = vadd.f32 %v2637, %v2986
      %v3044 = vadd.f32 %v2638, %v2989
      %v3045 = vadd.f32 %v2639, %v2994
      %v3046 = vadd.f32 %v2640, %v2997
      %v3047 = vadd.f32 %v2641, %v3002
      %v3048 = vld [vmem:[%s305 + $0x14] sm:$0xe]
      %v3049 = vld [vmem:[%s305 + $0x18] sm:$0xf]
      %v3050 = vld [vmem:[%s305 + $0x1c] sm:$0xf]
      %v3051 = vld [vmem:[%s305 + $0x20] sm:$0xf]
      %v3052 = vld [vmem:[%s305 + $0x24] sm:$0xf]
      %v3053 = vld [vmem:[%s305 + $0x28] sm:$0xf]
      %v3054 = vld [vmem:[%s305 + $0x2c] sm:$0xf]
      %v3055 = vld [vmem:[%s305 + $0x30] sm:$0xf]
      %v3056 = vld [vmem:[%s305 + $0x34] sm:$0xf]
      %v3057 = vld [vmem:[%s305 + $0x38] sm:$0xf]
      %v3058 = vld [vmem:[%s305 + $0x3c] sm:$0xf]
      %v3059 = vld [vmem:[%s305 + $0x40] sm:$0xf]
      %v3060 = vld [vmem:[%s305 + $0x44] sm:$0xf]
      %v3061 = vld [vmem:[%s305 + $0x48] sm:$0xf]
      %v3062 = vld [vmem:[%s305 + $0x4c] sm:$0xf]
      %v3063 = vld [vmem:[%s305 + $0x50] sm:$0xf]
      %v3064 = vld [vmem:[%s305 + $0x54] sm:$0xf]
      %v3065 = vld [vmem:[%s305 + $0x58] sm:$0xf]
      %v3066 = vld [vmem:[%s305 + $0x5c] sm:$0xf]
      %v3067 = vld [vmem:[%s305 + $0x60] sm:$0xf]
      %v3068 = vld [vmem:[%s305 + $0x64] sm:$0xf]
      %v3069 = vld [vmem:[%s305 + $0x68] sm:$0xf]
      %v3070 = vld [vmem:[%s305 + $0x6c] sm:$0xf]
      %v3071 = vld [vmem:[%s305 + $0x70] sm:$0xf]
      %v3072 = vld [vmem:[%s305 + $0x74] sm:$0xf]
      %v3073 = vld [vmem:[%s305 + $0x78] sm:$0xf]
      %v3074 = vld [vmem:[%s305 + $0x7c] sm:$0xf]
      %v3075 = vld [vmem:[%s305 + $0x80] sm:$0xf]
      %v3076 = vld [vmem:[%s305 + $0x84] sm:$0xf]
      %v3077 = vld [vmem:[%s305 + $0x88] sm:$0xf]
      %v3078 = vld [vmem:[%s305 + $0x8c] sm:$0xf]
      %v3079 = vld [vmem:[%s305 + $0x90] sm:$0xf]
      %v3080 = vld [vmem:[%s305 + $0x94] sm:$0xf]
      %v3081 = vld [vmem:[%s305 + $0x98] sm:$0xf]
      %v3082 = vld [vmem:[%s305 + $0x9c] sm:$0xf]
      %v3083 = vld [vmem:[%s305 + $0xa0] sm:$0xf]
      %v3084 = vld [vmem:[%s305 + $0xa4] sm:$0xf]
      %v3085 = vld [vmem:[%s305 + $0xa8] sm:$0xf]
      %v3086 = vld [vmem:[%s305 + $0xac] sm:$0xf]
      %v3087 = vld [vmem:[%s305 + $0xb0] sm:$0xf]
      %v3088 = vld [vmem:[%s305 + $0xb4] sm:$0xf]
      %v3089 = vld [vmem:[%s1 + $0x18] sm:$0xf]
      %v3131 = vunpack.c.l.b16 %v3048
      %v3132 = vunpack.c.l.b16 %v3049
      %v3133 = vunpack.c.l.b16 %v3050
      %v3134 = vunpack.c.l.b16 %v3051
      %v3135 = vunpack.c.l.b16 %v3052
      %v3136 = vunpack.c.l.b16 %v3053
      %v3137 = vunpack.c.l.b16 %v3054
      %v3138 = vunpack.c.l.b16 %v3055
      %v3139 = vunpack.c.l.b16 %v3056
      %v3140 = vunpack.c.l.b16 %v3057
      %v3141 = vunpack.c.l.b16 %v3058
      %v3142 = vunpack.c.l.b16 %v3059
      %v3143 = vunpack.c.l.b16 %v3060
      %v3144 = vunpack.c.l.b16 %v3061
      %v3145 = vunpack.c.l.b16 %v3062
      %v3146 = vunpack.c.l.b16 %v3063
      %v3147 = vunpack.c.l.b16 %v3064
      %v3148 = vunpack.c.l.b16 %v3065
      %v3149 = vunpack.c.l.b16 %v3066
      %v3150 = vunpack.c.l.b16 %v3067
      %v3151 = vunpack.c.l.b16 %v3068
      %v3152 = vunpack.c.l.b16 %v3069
      %v3153 = vunpack.c.l.b16 %v3070
      %v3154 = vunpack.c.l.b16 %v3071
      %v3155 = vunpack.c.l.b16 %v3072
      %v3156 = vunpack.c.l.b16 %v3073
      %v3157 = vunpack.c.l.b16 %v3074
      %v3158 = vunpack.c.l.b16 %v3075
      %v3159 = vunpack.c.l.b16 %v3076
      %v3160 = vunpack.c.l.b16 %v3077
      %v3161 = vunpack.c.l.b16 %v3078
      %v3162 = vunpack.c.l.b16 %v3079
      %v3163 = vunpack.c.l.b16 %v3080
      %v3164 = vunpack.c.l.b16 %v3081
      %v3165 = vunpack.c.l.b16 %v3082
      %v3166 = vunpack.c.l.b16 %v3083
      %v3167 = vunpack.c.l.b16 %v3084
      %v3168 = vunpack.c.l.b16 %v3085
      %v3169 = vunpack.c.l.b16 %v3086
      %v3170 = vunpack.c.l.b16 %v3087
      %v3171 = vunpack.c.l.b16 %v3088
      %v3172 = vpack.c.b16 %v3132, %v3131
      %v3173 = vpack.c.b16 %v3134, %v3133
      %v3174 = vpack.c.b16 %v3136, %v3135
      %v3175 = vpack.c.b16 %v3138, %v3137
      %v3176 = vpack.c.b16 %v3140, %v3139
      %v3177 = vpack.c.b16 %v3142, %v3141
      %v3178 = vpack.c.b16 %v3144, %v3143
      %v3179 = vpack.c.b16 %v3146, %v3145
      %v3180 = vpack.c.b16 %v3148, %v3147
      %v3181 = vpack.c.b16 %v3150, %v3149
      %v3182 = vpack.c.b16 %v3152, %v3151
      %v3183 = vpack.c.b16 %v3154, %v3153
      %v3184 = vpack.c.b16 %v3156, %v3155
      %v3185 = vpack.c.b16 %v3158, %v3157
      %v3186 = vpack.c.b16 %v3160, %v3159
      %v3187 = vpack.c.b16 %v3162, %v3161
      %v3188 = vpack.c.b16 %v3164, %v3163
      %v3189 = vpack.c.b16 %v3166, %v3165
      %v3190 = vpack.c.b16 %v3168, %v3167
      %v3191 = vpack.c.b16 %v3170, %v3169
      %v3192 = vpack.c.b16 %v3171, %v3171
      %v3194 = vshrl.u32 %v3172, 16
      %v3196 = vrot.slane %v3194, 1
      %v3197 = vshll.u32 %v3172, 16
      %v3199 = vrot.slane %v3197, 2
      %v3200 = vor.u32 %v3196, %v3199
      %v3202 = vshrl.u32 %v3173, 16
      %v3204 = vrot.slane %v3202, 1
      %v3205 = vshll.u32 %v3173, 16
      %v3207 = vrot.slane %v3205, 2
      %v3208 = vor.u32 %v3204, %v3207
      %v3209 = vsel %vm2647, %v3200, %v3208
      %v3211 = vshrl.u32 %v3174, 16
      %v3213 = vrot.slane %v3211, 1
      %v3214 = vshll.u32 %v3174, 16
      %v3216 = vrot.slane %v3214, 2
      %v3217 = vor.u32 %v3213, %v3216
      %v3218 = vsel %vm2647, %v3208, %v3217
      %v3220 = vshrl.u32 %v3175, 16
      %v3222 = vrot.slane %v3220, 1
      %v3223 = vshll.u32 %v3175, 16
      %v3225 = vrot.slane %v3223, 2
      %v3226 = vor.u32 %v3222, %v3225
      %v3227 = vsel %vm2647, %v3217, %v3226
      %v3229 = vshrl.u32 %v3176, 16
      %v3231 = vrot.slane %v3229, 1
      %v3232 = vshll.u32 %v3176, 16
      %v3234 = vrot.slane %v3232, 2
      %v3235 = vor.u32 %v3231, %v3234
      %v3236 = vsel %vm2647, %v3226, %v3235
      %v3238 = vshrl.u32 %v3177, 16
      %v3240 = vrot.slane %v3238, 1
      %v3241 = vshll.u32 %v3177, 16
      %v3243 = vrot.slane %v3241, 2
      %v3244 = vor.u32 %v3240, %v3243
      %v3245 = vsel %vm2647, %v3235, %v3244
      %v3247 = vshrl.u32 %v3178, 16
      %v3249 = vrot.slane %v3247, 1
      %v3250 = vshll.u32 %v3178, 16
      %v3252 = vrot.slane %v3250, 2
      %v3253 = vor.u32 %v3249, %v3252
      %v3254 = vsel %vm2647, %v3244, %v3253
      %v3256 = vshrl.u32 %v3179, 16
      %v3258 = vrot.slane %v3256, 1
      %v3259 = vshll.u32 %v3179, 16
      %v3261 = vrot.slane %v3259, 2
      %v3262 = vor.u32 %v3258, %v3261
      %v3263 = vsel %vm2647, %v3253, %v3262
      %v3265 = vshrl.u32 %v3180, 16
      %v3267 = vrot.slane %v3265, 1
      %v3268 = vshll.u32 %v3180, 16
      %v3270 = vrot.slane %v3268, 2
      %v3271 = vor.u32 %v3267, %v3270
      %v3272 = vsel %vm2647, %v3262, %v3271
      %v3274 = vshrl.u32 %v3181, 16
      %v3276 = vrot.slane %v3274, 1
      %v3277 = vshll.u32 %v3181, 16
      %v3279 = vrot.slane %v3277, 2
      %v3280 = vor.u32 %v3276, %v3279
      %v3281 = vsel %vm2647, %v3271, %v3280
      %v3283 = vshrl.u32 %v3182, 16
      %v3285 = vrot.slane %v3283, 1
      %v3286 = vshll.u32 %v3182, 16
      %v3288 = vrot.slane %v3286, 2
      %v3289 = vor.u32 %v3285, %v3288
      %v3290 = vsel %vm2647, %v3280, %v3289
      %v3292 = vshrl.u32 %v3183, 16
      %v3294 = vrot.slane %v3292, 1
      %v3295 = vshll.u32 %v3183, 16
      %v3297 = vrot.slane %v3295, 2
      %v3298 = vor.u32 %v3294, %v3297
      %v3299 = vsel %vm2647, %v3289, %v3298
      %v3301 = vshrl.u32 %v3184, 16
      %v3303 = vrot.slane %v3301, 1
      %v3304 = vshll.u32 %v3184, 16
      %v3306 = vrot.slane %v3304, 2
      %v3307 = vor.u32 %v3303, %v3306
      %v3308 = vsel %vm2647, %v3298, %v3307
      %v3310 = vshrl.u32 %v3185, 16
      %v3312 = vrot.slane %v3310, 1
      %v3313 = vshll.u32 %v3185, 16
      %v3315 = vrot.slane %v3313, 2
      %v3316 = vor.u32 %v3312, %v3315
      %v3317 = vsel %vm2647, %v3307, %v3316
      %v3319 = vshrl.u32 %v3186, 16
      %v3321 = vrot.slane %v3319, 1
      %v3322 = vshll.u32 %v3186, 16
      %v3324 = vrot.slane %v3322, 2
      %v3325 = vor.u32 %v3321, %v3324
      %v3326 = vsel %vm2647, %v3316, %v3325
      %v3328 = vshrl.u32 %v3187, 16
      %v3330 = vrot.slane %v3328, 1
      %v3331 = vshll.u32 %v3187, 16
      %v3333 = vrot.slane %v3331, 2
      %v3334 = vor.u32 %v3330, %v3333
      %v3335 = vsel %vm2647, %v3325, %v3334
      %v3337 = vshrl.u32 %v3188, 16
      %v3339 = vrot.slane %v3337, 1
      %v3340 = vshll.u32 %v3188, 16
      %v3342 = vrot.slane %v3340, 2
      %v3343 = vor.u32 %v3339, %v3342
      %v3344 = vsel %vm2647, %v3334, %v3343
      %v3346 = vshrl.u32 %v3189, 16
      %v3348 = vrot.slane %v3346, 1
      %v3349 = vshll.u32 %v3189, 16
      %v3351 = vrot.slane %v3349, 2
      %v3352 = vor.u32 %v3348, %v3351
      %v3353 = vsel %vm2647, %v3343, %v3352
      %v3355 = vshrl.u32 %v3190, 16
      %v3357 = vrot.slane %v3355, 1
      %v3358 = vshll.u32 %v3190, 16
      %v3360 = vrot.slane %v3358, 2
      %v3361 = vor.u32 %v3357, %v3360
      %v3362 = vsel %vm2647, %v3352, %v3361
      %v3364 = vshrl.u32 %v3191, 16
      %v3366 = vrot.slane %v3364, 1
      %v3367 = vshll.u32 %v3191, 16
      %v3369 = vrot.slane %v3367, 2
      %v3370 = vor.u32 %v3366, %v3369
      %v3371 = vsel %vm2647, %v3361, %v3370
      %v3373 = vshrl.u32 %v3192, 16
      %v3375 = vrot.slane %v3373, 1
      %v3376 = vshll.u32 %v3192, 16
      %v3378 = vrot.slane %v3376, 2
      %v3379 = vor.u32 %v3375, %v3378
      %v3380 = vsel %vm2647, %v3370, %v3379
      %v3382 = vsel %vm463, %v3209, 0
      %v3385 = vsel %vm463, %v3218, 0
      %v3388 = vsel %vm463, %v3227, 0
      %v3391 = vsel %vm463, %v3236, 0
      %v3394 = vsel %vm463, %v3245, 0
      %v3397 = vsel %vm463, %v3254, 0
      %v3400 = vsel %vm463, %v3263, 0
      %v3403 = vsel %vm463, %v3272, 0
      %v3406 = vsel %vm463, %v3281, 0
      %v3409 = vsel %vm463, %v3290, 0
      %v3412 = vsel %vm463, %v3299, 0
      %v3415 = vsel %vm463, %v3308, 0
      %v3418 = vsel %vm463, %v3317, 0
      %v3421 = vsel %vm463, %v3326, 0
      %v3424 = vsel %vm463, %v3335, 0
      %v3427 = vsel %vm463, %v3344, 0
      %v3430 = vsel %vm463, %v3353, 0
      %v3433 = vsel %vm463, %v3362, 0
      %v3436 = vsel %vm463, %v3371, 0
      %v3439 = vsel %vm463, %v3380, 0
      %v3442 = vsel %vm463, %v3379, 0
      %v3445 = vsel %vm527, %v3089, 0
      %3447 = vmatprep.subr.bf16.mxu0 0
      %3448 = vmatpush1.bf16.msra.mxu0 0
      %3449 = vmatprep.subr.bf16.mxu0 0
      %3450 = vmatpush1.bf16.msra.mxu0 0
      %3451 = vmatprep.subr.bf16.mxu0 0
      %3452 = vmatpush1.bf16.msra.mxu0 0
      %3453 = vmatprep.subr.bf16.mxu0 0
      %3454 = vmatpush1.bf16.msra.mxu0 0
      %3455 = vmatprep.subr.bf16.mxu0 0
      %3456 = vmatpush1.bf16.msra.mxu0 0
      %3457 = vmatprep.subr.bf16.mxu0 0
      %3458 = vmatpush1.bf16.msra.mxu0 0
      %3459 = vmatprep.subr.bf16.mxu0 0
      %3460 = vmatpush1.bf16.msra.mxu0 0
      %3461 = vmatprep.subr.bf16.mxu0 0
      %3462 = vmatpush1.bf16.msra.mxu0 %v3445
      %3463 = vmatprep.subr.bf16.mxu0 0
      %3464 = vmatpush2.bf16.msra.mxu0 0
      %3465 = vmatprep.subr.bf16.mxu0 0
      %3466 = vmatpush2.bf16.msra.mxu0 0
      %3467 = vmatprep.subr.bf16.mxu0 0
      %3468 = vmatpush2.bf16.msra.mxu0 0
      %3469 = vmatprep.subr.bf16.mxu0 0
      %3470 = vmatpush2.bf16.msra.mxu0 0
      %3471 = vmatprep.subr.bf16.mxu0 0
      %3472 = vmatpush2.bf16.msra.mxu0 0
      %3473 = vmatprep.subr.bf16.mxu0 0
      %3474 = vmatpush2.bf16.msra.mxu0 0
      %3475 = vmatprep.subr.bf16.mxu0 0
      %3476 = vmatpush2.bf16.msra.mxu0 0
      %3477 = vmatprep.subr.bf16.mxu0 0
      %3478 = vmatpush2.bf16.msra.mxu0 0
      %3479 = vmatprep.mubr.bf16.mxu0 0
      %3480 = vmatmul.mubr.bf16.gmra.mxu0 %v3382
      %v3481 = vpop.f32.mrf.mxu0
      %v3482 = vadd.f32 0.0, %v3481
      %v3483 = vpop.f32.mrf.mxu0
      %v3484 = vpop.f32.mrf.mxu0
      %v3485 = vadd.f32 0.0, %v3484
      %v3486 = vpop.f32.mrf.mxu0
      %3487 = vmatprep.mubr.bf16.mxu0 0
      %3488 = vmatmul.mubr.bf16.gmra.mxu0 %v3385
      %v3489 = vpop.f32.mrf.mxu0
      %v3490 = vadd.f32 0.0, %v3489
      %v3491 = vpop.f32.mrf.mxu0
      %v3492 = vpop.f32.mrf.mxu0
      %v3493 = vadd.f32 0.0, %v3492
      %v3494 = vpop.f32.mrf.mxu0
      %3495 = vmatprep.mubr.bf16.mxu0 0
      %3496 = vmatmul.mubr.bf16.gmra.mxu0 %v3388
      %v3497 = vpop.f32.mrf.mxu0
      %v3498 = vadd.f32 0.0, %v3497
      %v3499 = vpop.f32.mrf.mxu0
      %v3500 = vpop.f32.mrf.mxu0
      %v3501 = vadd.f32 0.0, %v3500
      %v3502 = vpop.f32.mrf.mxu0
      %3503 = vmatprep.mubr.bf16.mxu0 0
      %3504 = vmatmul.mubr.bf16.gmra.mxu0 %v3391
      %v3505 = vpop.f32.mrf.mxu0
      %v3506 = vadd.f32 0.0, %v3505
      %v3507 = vpop.f32.mrf.mxu0
      %v3508 = vpop.f32.mrf.mxu0
      %v3509 = vadd.f32 0.0, %v3508
      %v3510 = vpop.f32.mrf.mxu0
      %3511 = vmatprep.mubr.bf16.mxu0 0
      %3512 = vmatmul.mubr.bf16.gmra.mxu0 %v3394
      %v3513 = vpop.f32.mrf.mxu0
      %v3514 = vadd.f32 0.0, %v3513
      %v3515 = vpop.f32.mrf.mxu0
      %v3516 = vpop.f32.mrf.mxu0
      %v3517 = vadd.f32 0.0, %v3516
      %v3518 = vpop.f32.mrf.mxu0
      %3519 = vmatprep.mubr.bf16.mxu0 0
      %3520 = vmatmul.mubr.bf16.gmra.mxu0 %v3397
      %v3521 = vpop.f32.mrf.mxu0
      %v3522 = vadd.f32 0.0, %v3521
      %v3523 = vpop.f32.mrf.mxu0
      %v3524 = vpop.f32.mrf.mxu0
      %v3525 = vadd.f32 0.0, %v3524
      %v3526 = vpop.f32.mrf.mxu0
      %3527 = vmatprep.mubr.bf16.mxu0 0
      %3528 = vmatmul.mubr.bf16.gmra.mxu0 %v3400
      %v3529 = vpop.f32.mrf.mxu0
      %v3530 = vadd.f32 0.0, %v3529
      %v3531 = vpop.f32.mrf.mxu0
      %v3532 = vpop.f32.mrf.mxu0
      %v3533 = vadd.f32 0.0, %v3532
      %v3534 = vpop.f32.mrf.mxu0
      %3535 = vmatprep.mubr.bf16.mxu0 0
      %3536 = vmatmul.mubr.bf16.gmra.mxu0 %v3403
      %v3537 = vpop.f32.mrf.mxu0
      %v3538 = vadd.f32 0.0, %v3537
      %v3539 = vpop.f32.mrf.mxu0
      %v3540 = vpop.f32.mrf.mxu0
      %v3541 = vadd.f32 0.0, %v3540
      %v3542 = vpop.f32.mrf.mxu0
      %3543 = vmatprep.mubr.bf16.mxu0 0
      %3544 = vmatmul.mubr.bf16.gmra.mxu0 %v3406
      %v3545 = vpop.f32.mrf.mxu0
      %v3546 = vadd.f32 0.0, %v3545
      %v3547 = vpop.f32.mrf.mxu0
      %v3548 = vpop.f32.mrf.mxu0
      %v3549 = vadd.f32 0.0, %v3548
      %v3550 = vpop.f32.mrf.mxu0
      %3551 = vmatprep.mubr.bf16.mxu0 0
      %3552 = vmatmul.mubr.bf16.gmra.mxu0 %v3409
      %v3553 = vpop.f32.mrf.mxu0
      %v3554 = vadd.f32 0.0, %v3553
      %v3555 = vpop.f32.mrf.mxu0
      %v3556 = vpop.f32.mrf.mxu0
      %v3557 = vadd.f32 0.0, %v3556
      %v3558 = vpop.f32.mrf.mxu0
      %3559 = vmatprep.mubr.bf16.mxu0 0
      %3560 = vmatmul.mubr.bf16.gmra.mxu0 %v3412
      %v3561 = vpop.f32.mrf.mxu0
      %v3562 = vadd.f32 0.0, %v3561
      %v3563 = vpop.f32.mrf.mxu0
      %v3564 = vpop.f32.mrf.mxu0
      %v3565 = vadd.f32 0.0, %v3564
      %v3566 = vpop.f32.mrf.mxu0
      %3567 = vmatprep.mubr.bf16.mxu0 0
      %3568 = vmatmul.mubr.bf16.gmra.mxu0 %v3415
      %v3569 = vpop.f32.mrf.mxu0
      %v3570 = vadd.f32 0.0, %v3569
      %v3571 = vpop.f32.mrf.mxu0
      %v3572 = vpop.f32.mrf.mxu0
      %v3573 = vadd.f32 0.0, %v3572
      %v3574 = vpop.f32.mrf.mxu0
      %3575 = vmatprep.mubr.bf16.mxu0 0
      %3576 = vmatmul.mubr.bf16.gmra.mxu0 %v3418
      %v3577 = vpop.f32.mrf.mxu0
      %v3578 = vadd.f32 0.0, %v3577
      %v3579 = vpop.f32.mrf.mxu0
      %v3580 = vpop.f32.mrf.mxu0
      %v3581 = vadd.f32 0.0, %v3580
      %v3582 = vpop.f32.mrf.mxu0
      %3583 = vmatprep.mubr.bf16.mxu0 0
      %3584 = vmatmul.mubr.bf16.gmra.mxu0 %v3421
      %v3585 = vpop.f32.mrf.mxu0
      %v3586 = vadd.f32 0.0, %v3585
      %v3587 = vpop.f32.mrf.mxu0
      %v3588 = vpop.f32.mrf.mxu0
      %v3589 = vadd.f32 0.0, %v3588
      %v3590 = vpop.f32.mrf.mxu0
      %3591 = vmatprep.mubr.bf16.mxu0 0
      %3592 = vmatmul.mubr.bf16.gmra.mxu0 %v3424
      %v3593 = vpop.f32.mrf.mxu0
      %v3594 = vadd.f32 0.0, %v3593
      %v3595 = vpop.f32.mrf.mxu0
      %v3596 = vpop.f32.mrf.mxu0
      %v3597 = vadd.f32 0.0, %v3596
      %v3598 = vpop.f32.mrf.mxu0
      %3599 = vmatprep.mubr.bf16.mxu0 0
      %3600 = vmatmul.mubr.bf16.gmra.mxu0 %v3427
      %v3601 = vpop.f32.mrf.mxu0
      %v3602 = vadd.f32 0.0, %v3601
      %v3603 = vpop.f32.mrf.mxu0
      %v3604 = vpop.f32.mrf.mxu0
      %v3605 = vadd.f32 0.0, %v3604
      %v3606 = vpop.f32.mrf.mxu0
      %3607 = vmatprep.mubr.bf16.mxu0 0
      %3608 = vmatmul.mubr.bf16.gmra.mxu0 %v3430
      %v3609 = vpop.f32.mrf.mxu0
      %v3610 = vadd.f32 0.0, %v3609
      %v3611 = vpop.f32.mrf.mxu0
      %v3612 = vpop.f32.mrf.mxu0
      %v3613 = vadd.f32 0.0, %v3612
      %v3614 = vpop.f32.mrf.mxu0
      %3615 = vmatprep.mubr.bf16.mxu0 0
      %3616 = vmatmul.mubr.bf16.gmra.mxu0 %v3433
      %v3617 = vpop.f32.mrf.mxu0
      %v3618 = vadd.f32 0.0, %v3617
      %v3619 = vpop.f32.mrf.mxu0
      %v3620 = vpop.f32.mrf.mxu0
      %v3621 = vadd.f32 0.0, %v3620
      %v3622 = vpop.f32.mrf.mxu0
      %3623 = vmatprep.mubr.bf16.mxu0 0
      %3624 = vmatmul.mubr.bf16.gmra.mxu0 %v3436
      %v3625 = vpop.f32.mrf.mxu0
      %v3626 = vadd.f32 0.0, %v3625
      %v3627 = vpop.f32.mrf.mxu0
      %v3628 = vpop.f32.mrf.mxu0
      %v3629 = vadd.f32 0.0, %v3628
      %v3630 = vpop.f32.mrf.mxu0
      %3631 = vmatprep.mubr.bf16.mxu0 0
      %3632 = vmatmul.mubr.bf16.gmra.mxu0 %v3439
      %v3633 = vpop.f32.mrf.mxu0
      %v3634 = vadd.f32 0.0, %v3633
      %v3635 = vpop.f32.mrf.mxu0
      %v3636 = vpop.f32.mrf.mxu0
      %v3637 = vadd.f32 0.0, %v3636
      %v3638 = vpop.f32.mrf.mxu0
      %3639 = vmatprep.mubr.bf16.mxu0 0
      %3640 = vmatmul.mubr.bf16.gmra.mxu0 %v3442
      %v3641 = vpop.f32.mrf.mxu0
      %v3642 = vadd.f32 0.0, %v3641
      %v3643 = vpop.f32.mrf.mxu0
      %v3644 = vpop.f32.mrf.mxu0
      %v3645 = vpop.f32.mrf.mxu0
      %3646 = vdwg.mxu0
      %v3647 = vadd.f32 %v3007, %v3482
      %v3648 = vadd.f32 %v3008, %v3485
      %v3649 = vadd.f32 %v3009, %v3490
      %v3650 = vadd.f32 %v3010, %v3493
      %v3651 = vadd.f32 %v3011, %v3498
      %v3652 = vadd.f32 %v3012, %v3501
      %v3653 = vadd.f32 %v3013, %v3506
      %v3654 = vadd.f32 %v3014, %v3509
      %v3655 = vadd.f32 %v3015, %v3514
      %v3656 = vadd.f32 %v3016, %v3517
      %v3657 = vadd.f32 %v3017, %v3522
      %v3658 = vadd.f32 %v3018, %v3525
      %v3659 = vadd.f32 %v3019, %v3530
      %v3660 = vadd.f32 %v3020, %v3533
      %v3661 = vadd.f32 %v3021, %v3538
      %v3662 = vadd.f32 %v3022, %v3541
      %v3663 = vadd.f32 %v3023, %v3546
      %v3664 = vadd.f32 %v3024, %v3549
      %v3665 = vadd.f32 %v3025, %v3554
      %v3666 = vadd.f32 %v3026, %v3557
      %v3667 = vadd.f32 %v3027, %v3562
      %v3668 = vadd.f32 %v3028, %v3565
      %v3669 = vadd.f32 %v3029, %v3570
      %v3670 = vadd.f32 %v3030, %v3573
      %v3671 = vadd.f32 %v3031, %v3578
      %v3672 = vadd.f32 %v3032, %v3581
      %v3673 = vadd.f32 %v3033, %v3586
      %v3674 = vadd.f32 %v3034, %v3589
      %v3675 = vadd.f32 %v3035, %v3594
      %v3676 = vadd.f32 %v3036, %v3597
      %v3677 = vadd.f32 %v3037, %v3602
      %v3678 = vadd.f32 %v3038, %v3605
      %v3679 = vadd.f32 %v3039, %v3610
      %v3680 = vadd.f32 %v3040, %v3613
      %v3681 = vadd.f32 %v3041, %v3618
      %v3682 = vadd.f32 %v3042, %v3621
      %v3683 = vadd.f32 %v3043, %v3626
      %v3684 = vadd.f32 %v3044, %v3629
      %v3685 = vadd.f32 %v3045, %v3634
      %v3686 = vadd.f32 %v3046, %v3637
      %v3687 = vadd.f32 %v3047, %v3642
      %v3688 = vld [vmem:[%s305 + $0x14] sm:$0xc]
      %v3689 = vld [vmem:[%s1 + $0x1c] sm:$0xf]
      %v3691 = vunpack.c.l.b16 %v3688
      %v3692 = vpack.c.b16 %v3132, %v3691
      %vm3693 = vcmask 1045504
      %v3694 = vrot.slane %v3692, 2
      %v3695 = vrot.slane %v3173, 2
      %v3696 = vsel %vm3693, %v3694, %v3695
      %v3697 = vrot.slane %v3174, 2
      %v3698 = vsel %vm3693, %v3695, %v3697
      %v3699 = vrot.slane %v3175, 2
      %v3700 = vsel %vm3693, %v3697, %v3699
      %v3701 = vrot.slane %v3176, 2
      %v3702 = vsel %vm3693, %v3699, %v3701
      %v3703 = vrot.slane %v3177, 2
      %v3704 = vsel %vm3693, %v3701, %v3703
      %v3705 = vrot.slane %v3178, 2
      %v3706 = vsel %vm3693, %v3703, %v3705
      %v3707 = vrot.slane %v3179, 2
      %v3708 = vsel %vm3693, %v3705, %v3707
      %v3709 = vrot.slane %v3180, 2
      %v3710 = vsel %vm3693, %v3707, %v3709
      %v3711 = vrot.slane %v3181, 2
      %v3712 = vsel %vm3693, %v3709, %v3711
      %v3713 = vrot.slane %v3182, 2
      %v3714 = vsel %vm3693, %v3711, %v3713
      %v3715 = vrot.slane %v3183, 2
      %v3716 = vsel %vm3693, %v3713, %v3715
      %v3717 = vrot.slane %v3184, 2
      %v3718 = vsel %vm3693, %v3715, %v3717
      %v3719 = vrot.slane %v3185, 2
      %v3720 = vsel %vm3693, %v3717, %v3719
      %v3721 = vrot.slane %v3186, 2
      %v3722 = vsel %vm3693, %v3719, %v3721
      %v3723 = vrot.slane %v3187, 2
      %v3724 = vsel %vm3693, %v3721, %v3723
      %v3725 = vrot.slane %v3188, 2
      %v3726 = vsel %vm3693, %v3723, %v3725
      %v3727 = vrot.slane %v3189, 2
      %v3728 = vsel %vm3693, %v3725, %v3727
      %v3729 = vrot.slane %v3190, 2
      %v3730 = vsel %vm3693, %v3727, %v3729
      %v3731 = vrot.slane %v3191, 2
      %v3732 = vsel %vm3693, %v3729, %v3731
      %v3733 = vrot.slane %v3192, 2
      %v3734 = vsel %vm3693, %v3731, %v3733
      %v3736 = vsel %vm463, %v3696, 0
      %v3739 = vsel %vm463, %v3698, 0
      %v3742 = vsel %vm463, %v3700, 0
      %v3745 = vsel %vm463, %v3702, 0
      %v3748 = vsel %vm463, %v3704, 0
      %v3751 = vsel %vm463, %v3706, 0
      %v3754 = vsel %vm463, %v3708, 0
      %v3757 = vsel %vm463, %v3710, 0
      %v3760 = vsel %vm463, %v3712, 0
      %v3763 = vsel %vm463, %v3714, 0
      %v3766 = vsel %vm463, %v3716, 0
      %v3769 = vsel %vm463, %v3718, 0
      %v3772 = vsel %vm463, %v3720, 0
      %v3775 = vsel %vm463, %v3722, 0
      %v3778 = vsel %vm463, %v3724, 0
      %v3781 = vsel %vm463, %v3726, 0
      %v3784 = vsel %vm463, %v3728, 0
      %v3787 = vsel %vm463, %v3730, 0
      %v3790 = vsel %vm463, %v3732, 0
      %v3793 = vsel %vm463, %v3734, 0
      %v3796 = vsel %vm463, %v3733, 0
      %v3799 = vsel %vm527, %v3689, 0
      %3801 = vmatprep.subr.bf16.mxu0 0
      %3802 = vmatpush1.bf16.msra.mxu0 0
      %3803 = vmatprep.subr.bf16.mxu0 0
      %3804 = vmatpush1.bf16.msra.mxu0 0
      %3805 = vmatprep.subr.bf16.mxu0 0
      %3806 = vmatpush1.bf16.msra.mxu0 0
      %3807 = vmatprep.subr.bf16.mxu0 0
      %3808 = vmatpush1.bf16.msra.mxu0 0
      %3809 = vmatprep.subr.bf16.mxu0 0
      %3810 = vmatpush1.bf16.msra.mxu0 0
      %3811 = vmatprep.subr.bf16.mxu0 0
      %3812 = vmatpush1.bf16.msra.mxu0 0
      %3813 = vmatprep.subr.bf16.mxu0 0
      %3814 = vmatpush1.bf16.msra.mxu0 0
      %3815 = vmatprep.subr.bf16.mxu0 0
      %3816 = vmatpush1.bf16.msra.mxu0 %v3799
      %3817 = vmatprep.subr.bf16.mxu0 0
      %3818 = vmatpush2.bf16.msra.mxu0 0
      %3819 = vmatprep.subr.bf16.mxu0 0
      %3820 = vmatpush2.bf16.msra.mxu0 0
      %3821 = vmatprep.subr.bf16.mxu0 0
      %3822 = vmatpush2.bf16.msra.mxu0 0
      %3823 = vmatprep.subr.bf16.mxu0 0
      %3824 = vmatpush2.bf16.msra.mxu0 0
      %3825 = vmatprep.subr.bf16.mxu0 0
      %3826 = vmatpush2.bf16.msra.mxu0 0
      %3827 = vmatprep.subr.bf16.mxu0 0
      %3828 = vmatpush2.bf16.msra.mxu0 0
      %3829 = vmatprep.subr.bf16.mxu0 0
      %3830 = vmatpush2.bf16.msra.mxu0 0
      %3831 = vmatprep.subr.bf16.mxu0 0
      %3832 = vmatpush2.bf16.msra.mxu0 0
      %3833 = vmatprep.mubr.bf16.mxu0 0
      %3834 = vmatmul.mubr.bf16.gmra.mxu0 %v3736
      %v3835 = vpop.f32.mrf.mxu0
      %v3836 = vadd.f32 0.0, %v3835
      %v3837 = vpop.f32.mrf.mxu0
      %v3838 = vpop.f32.mrf.mxu0
      %v3839 = vadd.f32 0.0, %v3838
      %v3840 = vpop.f32.mrf.mxu0
      %3841 = vmatprep.mubr.bf16.mxu0 0
      %3842 = vmatmul.mubr.bf16.gmra.mxu0 %v3739
      %v3843 = vpop.f32.mrf.mxu0
      %v3844 = vadd.f32 0.0, %v3843
      %v3845 = vpop.f32.mrf.mxu0
      %v3846 = vpop.f32.mrf.mxu0
      %v3847 = vadd.f32 0.0, %v3846
      %v3848 = vpop.f32.mrf.mxu0
      %3849 = vmatprep.mubr.bf16.mxu0 0
      %3850 = vmatmul.mubr.bf16.gmra.mxu0 %v3742
      %v3851 = vpop.f32.mrf.mxu0
      %v3852 = vadd.f32 0.0, %v3851
      %v3853 = vpop.f32.mrf.mxu0
      %v3854 = vpop.f32.mrf.mxu0
      %v3855 = vadd.f32 0.0, %v3854
      %v3856 = vpop.f32.mrf.mxu0
      %3857 = vmatprep.mubr.bf16.mxu0 0
      %3858 = vmatmul.mubr.bf16.gmra.mxu0 %v3745
      %v3859 = vpop.f32.mrf.mxu0
      %v3860 = vadd.f32 0.0, %v3859
      %v3861 = vpop.f32.mrf.mxu0
      %v3862 = vpop.f32.mrf.mxu0
      %v3863 = vadd.f32 0.0, %v3862
      %v3864 = vpop.f32.mrf.mxu0
      %3865 = vmatprep.mubr.bf16.mxu0 0
      %3866 = vmatmul.mubr.bf16.gmra.mxu0 %v3748
      %v3867 = vpop.f32.mrf.mxu0
      %v3868 = vadd.f32 0.0, %v3867
      %v3869 = vpop.f32.mrf.mxu0
      %v3870 = vpop.f32.mrf.mxu0
      %v3871 = vadd.f32 0.0, %v3870
      %v3872 = vpop.f32.mrf.mxu0
      %3873 = vmatprep.mubr.bf16.mxu0 0
      %3874 = vmatmul.mubr.bf16.gmra.mxu0 %v3751
      %v3875 = vpop.f32.mrf.mxu0
      %v3876 = vadd.f32 0.0, %v3875
      %v3877 = vpop.f32.mrf.mxu0
      %v3878 = vpop.f32.mrf.mxu0
      %v3879 = vadd.f32 0.0, %v3878
      %v3880 = vpop.f32.mrf.mxu0
      %3881 = vmatprep.mubr.bf16.mxu0 0
      %3882 = vmatmul.mubr.bf16.gmra.mxu0 %v3754
      %v3883 = vpop.f32.mrf.mxu0
      %v3884 = vadd.f32 0.0, %v3883
      %v3885 = vpop.f32.mrf.mxu0
      %v3886 = vpop.f32.mrf.mxu0
      %v3887 = vadd.f32 0.0, %v3886
      %v3888 = vpop.f32.mrf.mxu0
      %3889 = vmatprep.mubr.bf16.mxu0 0
      %3890 = vmatmul.mubr.bf16.gmra.mxu0 %v3757
      %v3891 = vpop.f32.mrf.mxu0
      %v3892 = vadd.f32 0.0, %v3891
      %v3893 = vpop.f32.mrf.mxu0
      %v3894 = vpop.f32.mrf.mxu0
      %v3895 = vadd.f32 0.0, %v3894
      %v3896 = vpop.f32.mrf.mxu0
      %3897 = vmatprep.mubr.bf16.mxu0 0
      %3898 = vmatmul.mubr.bf16.gmra.mxu0 %v3760
      %v3899 = vpop.f32.mrf.mxu0
      %v3900 = vadd.f32 0.0, %v3899
      %v3901 = vpop.f32.mrf.mxu0
      %v3902 = vpop.f32.mrf.mxu0
      %v3903 = vadd.f32 0.0, %v3902
      %v3904 = vpop.f32.mrf.mxu0
      %3905 = vmatprep.mubr.bf16.mxu0 0
      %3906 = vmatmul.mubr.bf16.gmra.mxu0 %v3763
      %v3907 = vpop.f32.mrf.mxu0
      %v3908 = vadd.f32 0.0, %v3907
      %v3909 = vpop.f32.mrf.mxu0
      %v3910 = vpop.f32.mrf.mxu0
      %v3911 = vadd.f32 0.0, %v3910
      %v3912 = vpop.f32.mrf.mxu0
      %3913 = vmatprep.mubr.bf16.mxu0 0
      %3914 = vmatmul.mubr.bf16.gmra.mxu0 %v3766
      %v3915 = vpop.f32.mrf.mxu0
      %v3916 = vadd.f32 0.0, %v3915
      %v3917 = vpop.f32.mrf.mxu0
      %v3918 = vpop.f32.mrf.mxu0
      %v3919 = vadd.f32 0.0, %v3918
      %v3920 = vpop.f32.mrf.mxu0
      %3921 = vmatprep.mubr.bf16.mxu0 0
      %3922 = vmatmul.mubr.bf16.gmra.mxu0 %v3769
      %v3923 = vpop.f32.mrf.mxu0
      %v3924 = vadd.f32 0.0, %v3923
      %v3925 = vpop.f32.mrf.mxu0
      %v3926 = vpop.f32.mrf.mxu0
      %v3927 = vadd.f32 0.0, %v3926
      %v3928 = vpop.f32.mrf.mxu0
      %3929 = vmatprep.mubr.bf16.mxu0 0
      %3930 = vmatmul.mubr.bf16.gmra.mxu0 %v3772
      %v3931 = vpop.f32.mrf.mxu0
      %v3932 = vadd.f32 0.0, %v3931
      %v3933 = vpop.f32.mrf.mxu0
      %v3934 = vpop.f32.mrf.mxu0
      %v3935 = vadd.f32 0.0, %v3934
      %v3936 = vpop.f32.mrf.mxu0
      %3937 = vmatprep.mubr.bf16.mxu0 0
      %3938 = vmatmul.mubr.bf16.gmra.mxu0 %v3775
      %v3939 = vpop.f32.mrf.mxu0
      %v3940 = vadd.f32 0.0, %v3939
      %v3941 = vpop.f32.mrf.mxu0
      %v3942 = vpop.f32.mrf.mxu0
      %v3943 = vadd.f32 0.0, %v3942
      %v3944 = vpop.f32.mrf.mxu0
      %3945 = vmatprep.mubr.bf16.mxu0 0
      %3946 = vmatmul.mubr.bf16.gmra.mxu0 %v3778
      %v3947 = vpop.f32.mrf.mxu0
      %v3948 = vadd.f32 0.0, %v3947
      %v3949 = vpop.f32.mrf.mxu0
      %v3950 = vpop.f32.mrf.mxu0
      %v3951 = vadd.f32 0.0, %v3950
      %v3952 = vpop.f32.mrf.mxu0
      %3953 = vmatprep.mubr.bf16.mxu0 0
      %3954 = vmatmul.mubr.bf16.gmra.mxu0 %v3781
      %v3955 = vpop.f32.mrf.mxu0
      %v3956 = vadd.f32 0.0, %v3955
      %v3957 = vpop.f32.mrf.mxu0
      %v3958 = vpop.f32.mrf.mxu0
      %v3959 = vadd.f32 0.0, %v3958
      %v3960 = vpop.f32.mrf.mxu0
      %3961 = vmatprep.mubr.bf16.mxu0 0
      %3962 = vmatmul.mubr.bf16.gmra.mxu0 %v3784
      %v3963 = vpop.f32.mrf.mxu0
      %v3964 = vadd.f32 0.0, %v3963
      %v3965 = vpop.f32.mrf.mxu0
      %v3966 = vpop.f32.mrf.mxu0
      %v3967 = vadd.f32 0.0, %v3966
      %v3968 = vpop.f32.mrf.mxu0
      %3969 = vmatprep.mubr.bf16.mxu0 0
      %3970 = vmatmul.mubr.bf16.gmra.mxu0 %v3787
      %v3971 = vpop.f32.mrf.mxu0
      %v3972 = vadd.f32 0.0, %v3971
      %v3973 = vpop.f32.mrf.mxu0
      %v3974 = vpop.f32.mrf.mxu0
      %v3975 = vadd.f32 0.0, %v3974
      %v3976 = vpop.f32.mrf.mxu0
      %3977 = vmatprep.mubr.bf16.mxu0 0
      %3978 = vmatmul.mubr.bf16.gmra.mxu0 %v3790
      %v3979 = vpop.f32.mrf.mxu0
      %v3980 = vadd.f32 0.0, %v3979
      %v3981 = vpop.f32.mrf.mxu0
      %v3982 = vpop.f32.mrf.mxu0
      %v3983 = vadd.f32 0.0, %v3982
      %v3984 = vpop.f32.mrf.mxu0
      %3985 = vmatprep.mubr.bf16.mxu0 0
      %3986 = vmatmul.mubr.bf16.gmra.mxu0 %v3793
      %v3987 = vpop.f32.mrf.mxu0
      %v3988 = vadd.f32 0.0, %v3987
      %v3989 = vpop.f32.mrf.mxu0
      %v3990 = vpop.f32.mrf.mxu0
      %v3991 = vadd.f32 0.0, %v3990
      %v3992 = vpop.f32.mrf.mxu0
      %3993 = vmatprep.mubr.bf16.mxu0 0
      %3994 = vmatmul.mubr.bf16.gmra.mxu0 %v3796
      %v3995 = vpop.f32.mrf.mxu0
      %v3996 = vadd.f32 0.0, %v3995
      %v3997 = vpop.f32.mrf.mxu0
      %v3998 = vpop.f32.mrf.mxu0
      %v3999 = vpop.f32.mrf.mxu0
      %4000 = vdwg.mxu0
      %v4001 = vadd.f32 %v3647, %v3836
      %v4002 = vadd.f32 %v3648, %v3839
      %v4003 = vadd.f32 %v3649, %v3844
      %v4004 = vadd.f32 %v3650, %v3847
      %v4005 = vadd.f32 %v3651, %v3852
      %v4006 = vadd.f32 %v3652, %v3855
      %v4007 = vadd.f32 %v3653, %v3860
      %v4008 = vadd.f32 %v3654, %v3863
      %v4009 = vadd.f32 %v3655, %v3868
      %v4010 = vadd.f32 %v3656, %v3871
      %v4011 = vadd.f32 %v3657, %v3876
      %v4012 = vadd.f32 %v3658, %v3879
      %v4013 = vadd.f32 %v3659, %v3884
      %v4014 = vadd.f32 %v3660, %v3887
      %v4015 = vadd.f32 %v3661, %v3892
      %v4016 = vadd.f32 %v3662, %v3895
      %v4017 = vadd.f32 %v3663, %v3900
      %v4018 = vadd.f32 %v3664, %v3903
      %v4019 = vadd.f32 %v3665, %v3908
      %v4020 = vadd.f32 %v3666, %v3911
      %v4021 = vadd.f32 %v3667, %v3916
      %v4022 = vadd.f32 %v3668, %v3919
      %v4023 = vadd.f32 %v3669, %v3924
      %v4024 = vadd.f32 %v3670, %v3927
      %v4025 = vadd.f32 %v3671, %v3932
      %v4026 = vadd.f32 %v3672, %v3935
      %v4027 = vadd.f32 %v3673, %v3940
      %v4028 = vadd.f32 %v3674, %v3943
      %v4029 = vadd.f32 %v3675, %v3948
      %v4030 = vadd.f32 %v3676, %v3951
      %v4031 = vadd.f32 %v3677, %v3956
      %v4032 = vadd.f32 %v3678, %v3959
      %v4033 = vadd.f32 %v3679, %v3964
      %v4034 = vadd.f32 %v3680, %v3967
      %v4035 = vadd.f32 %v3681, %v3972
      %v4036 = vadd.f32 %v3682, %v3975
      %v4037 = vadd.f32 %v3683, %v3980
      %v4038 = vadd.f32 %v3684, %v3983
      %v4039 = vadd.f32 %v3685, %v3988
      %v4040 = vadd.f32 %v3686, %v3991
      %v4041 = vadd.f32 %v3687, %v3996
      %v4042 = vld [vmem:[%s305 + $0x14] sm:$0xc]
      %v4043 = vld [vmem:[%s305 + $0x18] sm:$0xf]
      %v4044 = vld [vmem:[%s305 + $0x1c] sm:$0xf]
      %v4045 = vld [vmem:[%s305 + $0x20] sm:$0xf]
      %v4046 = vld [vmem:[%s305 + $0x24] sm:$0xf]
      %v4047 = vld [vmem:[%s305 + $0x28] sm:$0xf]
      %v4048 = vld [vmem:[%s305 + $0x2c] sm:$0xf]
      %v4049 = vld [vmem:[%s305 + $0x30] sm:$0xf]
      %v4050 = vld [vmem:[%s305 + $0x34] sm:$0xf]
      %v4051 = vld [vmem:[%s305 + $0x38] sm:$0xf]
      %v4052 = vld [vmem:[%s305 + $0x3c] sm:$0xf]
      %v4053 = vld [vmem:[%s305 + $0x40] sm:$0xf]
      %v4054 = vld [vmem:[%s305 + $0x44] sm:$0xf]
      %v4055 = vld [vmem:[%s305 + $0x48] sm:$0xf]
      %v4056 = vld [vmem:[%s305 + $0x4c] sm:$0xf]
      %v4057 = vld [vmem:[%s305 + $0x50] sm:$0xf]
      %v4058 = vld [vmem:[%s305 + $0x54] sm:$0xf]
      %v4059 = vld [vmem:[%s305 + $0x58] sm:$0xf]
      %v4060 = vld [vmem:[%s305 + $0x5c] sm:$0xf]
      %v4061 = vld [vmem:[%s305 + $0x60] sm:$0xf]
      %v4062 = vld [vmem:[%s305 + $0x64] sm:$0xf]
      %v4063 = vld [vmem:[%s305 + $0x68] sm:$0xf]
      %v4064 = vld [vmem:[%s305 + $0x6c] sm:$0xf]
      %v4065 = vld [vmem:[%s305 + $0x70] sm:$0xf]
      %v4066 = vld [vmem:[%s305 + $0x74] sm:$0xf]
      %v4067 = vld [vmem:[%s305 + $0x78] sm:$0xf]
      %v4068 = vld [vmem:[%s305 + $0x7c] sm:$0xf]
      %v4069 = vld [vmem:[%s305 + $0x80] sm:$0xf]
      %v4070 = vld [vmem:[%s305 + $0x84] sm:$0xf]
      %v4071 = vld [vmem:[%s305 + $0x88] sm:$0xf]
      %v4072 = vld [vmem:[%s305 + $0x8c] sm:$0xf]
      %v4073 = vld [vmem:[%s305 + $0x90] sm:$0xf]
      %v4074 = vld [vmem:[%s305 + $0x94] sm:$0xf]
      %v4075 = vld [vmem:[%s305 + $0x98] sm:$0xf]
      %v4076 = vld [vmem:[%s305 + $0x9c] sm:$0xf]
      %v4077 = vld [vmem:[%s305 + $0xa0] sm:$0xf]
      %v4078 = vld [vmem:[%s305 + $0xa4] sm:$0xf]
      %v4079 = vld [vmem:[%s305 + $0xa8] sm:$0xf]
      %v4080 = vld [vmem:[%s305 + $0xac] sm:$0xf]
      %v4081 = vld [vmem:[%s305 + $0xb0] sm:$0xf]
      %v4082 = vld [vmem:[%s305 + $0xb4] sm:$0xf]
      %v4083 = vld [vmem:[%s305 + $0xb8] sm:$0x1]
      %v4084 = vld [vmem:[%s1 + $0x20] sm:$0xf]
      %v4127 = vunpack.c.l.b16 %v4042
      %v4128 = vunpack.c.l.b16 %v4043
      %v4129 = vunpack.c.l.b16 %v4044
      %v4130 = vunpack.c.l.b16 %v4045
      %v4131 = vunpack.c.l.b16 %v4046
      %v4132 = vunpack.c.l.b16 %v4047
      %v4133 = vunpack.c.l.b16 %v4048
      %v4134 = vunpack.c.l.b16 %v4049
      %v4135 = vunpack.c.l.b16 %v4050
      %v4136 = vunpack.c.l.b16 %v4051
      %v4137 = vunpack.c.l.b16 %v4052
      %v4138 = vunpack.c.l.b16 %v4053
      %v4139 = vunpack.c.l.b16 %v4054
      %v4140 = vunpack.c.l.b16 %v4055
      %v4141 = vunpack.c.l.b16 %v4056
      %v4142 = vunpack.c.l.b16 %v4057
      %v4143 = vunpack.c.l.b16 %v4058
      %v4144 = vunpack.c.l.b16 %v4059
      %v4145 = vunpack.c.l.b16 %v4060
      %v4146 = vunpack.c.l.b16 %v4061
      %v4147 = vunpack.c.l.b16 %v4062
      %v4148 = vunpack.c.l.b16 %v4063
      %v4149 = vunpack.c.l.b16 %v4064
      %v4150 = vunpack.c.l.b16 %v4065
      %v4151 = vunpack.c.l.b16 %v4066
      %v4152 = vunpack.c.l.b16 %v4067
      %v4153 = vunpack.c.l.b16 %v4068
      %v4154 = vunpack.c.l.b16 %v4069
      %v4155 = vunpack.c.l.b16 %v4070
      %v4156 = vunpack.c.l.b16 %v4071
      %v4157 = vunpack.c.l.b16 %v4072
      %v4158 = vunpack.c.l.b16 %v4073
      %v4159 = vunpack.c.l.b16 %v4074
      %v4160 = vunpack.c.l.b16 %v4075
      %v4161 = vunpack.c.l.b16 %v4076
      %v4162 = vunpack.c.l.b16 %v4077
      %v4163 = vunpack.c.l.b16 %v4078
      %v4164 = vunpack.c.l.b16 %v4079
      %v4165 = vunpack.c.l.b16 %v4080
      %v4166 = vunpack.c.l.b16 %v4081
      %v4167 = vunpack.c.l.b16 %v4082
      %v4168 = vunpack.c.l.b16 %v4083
      %v4169 = vpack.c.b16 %v4128, %v4127
      %v4170 = vpack.c.b16 %v4130, %v4129
      %v4171 = vpack.c.b16 %v4132, %v4131
      %v4172 = vpack.c.b16 %v4134, %v4133
      %v4173 = vpack.c.b16 %v4136, %v4135
      %v4174 = vpack.c.b16 %v4138, %v4137
      %v4175 = vpack.c.b16 %v4140, %v4139
      %v4176 = vpack.c.b16 %v4142, %v4141
      %v4177 = vpack.c.b16 %v4144, %v4143
      %v4178 = vpack.c.b16 %v4146, %v4145
      %v4179 = vpack.c.b16 %v4148, %v4147
      %v4180 = vpack.c.b16 %v4150, %v4149
      %v4181 = vpack.c.b16 %v4152, %v4151
      %v4182 = vpack.c.b16 %v4154, %v4153
      %v4183 = vpack.c.b16 %v4156, %v4155
      %v4184 = vpack.c.b16 %v4158, %v4157
      %v4185 = vpack.c.b16 %v4160, %v4159
      %v4186 = vpack.c.b16 %v4162, %v4161
      %v4187 = vpack.c.b16 %v4164, %v4163
      %v4188 = vpack.c.b16 %v4166, %v4165
      %v4189 = vpack.c.b16 %v4168, %v4167
      %vm4190 = vsmask.f32 5376
      %v4192 = vshrl.u32 %v4169, 16
      %v4194 = vrot.slane %v4192, 2
      %v4195 = vshll.u32 %v4169, 16
      %v4197 = vrot.slane %v4195, 3
      %v4198 = vor.u32 %v4194, %v4197
      %v4200 = vshrl.u32 %v4170, 16
      %v4202 = vrot.slane %v4200, 2
      %v4203 = vshll.u32 %v4170, 16
      %v4205 = vrot.slane %v4203, 3
      %v4206 = vor.u32 %v4202, %v4205
      %v4207 = vsel %vm4190, %v4198, %v4206
      %v4209 = vshrl.u32 %v4171, 16
      %v4211 = vrot.slane %v4209, 2
      %v4212 = vshll.u32 %v4171, 16
      %v4214 = vrot.slane %v4212, 3
      %v4215 = vor.u32 %v4211, %v4214
      %v4216 = vsel %vm4190, %v4206, %v4215
      %v4218 = vshrl.u32 %v4172, 16
      %v4220 = vrot.slane %v4218, 2
      %v4221 = vshll.u32 %v4172, 16
      %v4223 = vrot.slane %v4221, 3
      %v4224 = vor.u32 %v4220, %v4223
      %v4225 = vsel %vm4190, %v4215, %v4224
      %v4227 = vshrl.u32 %v4173, 16
      %v4229 = vrot.slane %v4227, 2
      %v4230 = vshll.u32 %v4173, 16
      %v4232 = vrot.slane %v4230, 3
      %v4233 = vor.u32 %v4229, %v4232
      %v4234 = vsel %vm4190, %v4224, %v4233
      %v4236 = vshrl.u32 %v4174, 16
      %v4238 = vrot.slane %v4236, 2
      %v4239 = vshll.u32 %v4174, 16
      %v4241 = vrot.slane %v4239, 3
      %v4242 = vor.u32 %v4238, %v4241
      %v4243 = vsel %vm4190, %v4233, %v4242
      %v4245 = vshrl.u32 %v4175, 16
      %v4247 = vrot.slane %v4245, 2
      %v4248 = vshll.u32 %v4175, 16
      %v4250 = vrot.slane %v4248, 3
      %v4251 = vor.u32 %v4247, %v4250
      %v4252 = vsel %vm4190, %v4242, %v4251
      %v4254 = vshrl.u32 %v4176, 16
      %v4256 = vrot.slane %v4254, 2
      %v4257 = vshll.u32 %v4176, 16
      %v4259 = vrot.slane %v4257, 3
      %v4260 = vor.u32 %v4256, %v4259
      %v4261 = vsel %vm4190, %v4251, %v4260
      %v4263 = vshrl.u32 %v4177, 16
      %v4265 = vrot.slane %v4263, 2
      %v4266 = vshll.u32 %v4177, 16
      %v4268 = vrot.slane %v4266, 3
      %v4269 = vor.u32 %v4265, %v4268
      %v4270 = vsel %vm4190, %v4260, %v4269
      %v4272 = vshrl.u32 %v4178, 16
      %v4274 = vrot.slane %v4272, 2
      %v4275 = vshll.u32 %v4178, 16
      %v4277 = vrot.slane %v4275, 3
      %v4278 = vor.u32 %v4274, %v4277
      %v4279 = vsel %vm4190, %v4269, %v4278
      %v4281 = vshrl.u32 %v4179, 16
      %v4283 = vrot.slane %v4281, 2
      %v4284 = vshll.u32 %v4179, 16
      %v4286 = vrot.slane %v4284, 3
      %v4287 = vor.u32 %v4283, %v4286
      %v4288 = vsel %vm4190, %v4278, %v4287
      %v4290 = vshrl.u32 %v4180, 16
      %v4292 = vrot.slane %v4290, 2
      %v4293 = vshll.u32 %v4180, 16
      %v4295 = vrot.slane %v4293, 3
      %v4296 = vor.u32 %v4292, %v4295
      %v4297 = vsel %vm4190, %v4287, %v4296
      %v4299 = vshrl.u32 %v4181, 16
      %v4301 = vrot.slane %v4299, 2
      %v4302 = vshll.u32 %v4181, 16
      %v4304 = vrot.slane %v4302, 3
      %v4305 = vor.u32 %v4301, %v4304
      %v4306 = vsel %vm4190, %v4296, %v4305
      %v4308 = vshrl.u32 %v4182, 16
      %v4310 = vrot.slane %v4308, 2
      %v4311 = vshll.u32 %v4182, 16
      %v4313 = vrot.slane %v4311, 3
      %v4314 = vor.u32 %v4310, %v4313
      %v4315 = vsel %vm4190, %v4305, %v4314
      %v4317 = vshrl.u32 %v4183, 16
      %v4319 = vrot.slane %v4317, 2
      %v4320 = vshll.u32 %v4183, 16
      %v4322 = vrot.slane %v4320, 3
      %v4323 = vor.u32 %v4319, %v4322
      %v4324 = vsel %vm4190, %v4314, %v4323
      %v4326 = vshrl.u32 %v4184, 16
      %v4328 = vrot.slane %v4326, 2
      %v4329 = vshll.u32 %v4184, 16
      %v4331 = vrot.slane %v4329, 3
      %v4332 = vor.u32 %v4328, %v4331
      %v4333 = vsel %vm4190, %v4323, %v4332
      %v4335 = vshrl.u32 %v4185, 16
      %v4337 = vrot.slane %v4335, 2
      %v4338 = vshll.u32 %v4185, 16
      %v4340 = vrot.slane %v4338, 3
      %v4341 = vor.u32 %v4337, %v4340
      %v4342 = vsel %vm4190, %v4332, %v4341
      %v4344 = vshrl.u32 %v4186, 16
      %v4346 = vrot.slane %v4344, 2
      %v4347 = vshll.u32 %v4186, 16
      %v4349 = vrot.slane %v4347, 3
      %v4350 = vor.u32 %v4346, %v4349
      %v4351 = vsel %vm4190, %v4341, %v4350
      %v4353 = vshrl.u32 %v4187, 16
      %v4355 = vrot.slane %v4353, 2
      %v4356 = vshll.u32 %v4187, 16
      %v4358 = vrot.slane %v4356, 3
      %v4359 = vor.u32 %v4355, %v4358
      %v4360 = vsel %vm4190, %v4350, %v4359
      %v4362 = vshrl.u32 %v4188, 16
      %v4364 = vrot.slane %v4362, 2
      %v4365 = vshll.u32 %v4188, 16
      %v4367 = vrot.slane %v4365, 3
      %v4368 = vor.u32 %v4364, %v4367
      %v4369 = vsel %vm4190, %v4359, %v4368
      %v4371 = vshrl.u32 %v4189, 16
      %v4373 = vrot.slane %v4371, 2
      %v4374 = vshll.u32 %v4189, 16
      %v4376 = vrot.slane %v4374, 3
      %v4377 = vor.u32 %v4373, %v4376
      %v4378 = vsel %vm4190, %v4368, %v4377
      %v4380 = vsel %vm463, %v4207, 0
      %v4383 = vsel %vm463, %v4216, 0
      %v4386 = vsel %vm463, %v4225, 0
      %v4389 = vsel %vm463, %v4234, 0
      %v4392 = vsel %vm463, %v4243, 0
      %v4395 = vsel %vm463, %v4252, 0
      %v4398 = vsel %vm463, %v4261, 0
      %v4401 = vsel %vm463, %v4270, 0
      %v4404 = vsel %vm463, %v4279, 0
      %v4407 = vsel %vm463, %v4288, 0
      %v4410 = vsel %vm463, %v4297, 0
      %v4413 = vsel %vm463, %v4306, 0
      %v4416 = vsel %vm463, %v4315, 0
      %v4419 = vsel %vm463, %v4324, 0
      %v4422 = vsel %vm463, %v4333, 0
      %v4425 = vsel %vm463, %v4342, 0
      %v4428 = vsel %vm463, %v4351, 0
      %v4431 = vsel %vm463, %v4360, 0
      %v4434 = vsel %vm463, %v4369, 0
      %v4437 = vsel %vm463, %v4378, 0
      %v4440 = vsel %vm463, %v4377, 0
      %v4443 = vsel %vm527, %v4084, 0
      %4445 = vmatprep.subr.bf16.mxu0 0
      %4446 = vmatpush1.bf16.msra.mxu0 0
      %4447 = vmatprep.subr.bf16.mxu0 0
      %4448 = vmatpush1.bf16.msra.mxu0 0
      %4449 = vmatprep.subr.bf16.mxu0 0
      %4450 = vmatpush1.bf16.msra.mxu0 0
      %4451 = vmatprep.subr.bf16.mxu0 0
      %4452 = vmatpush1.bf16.msra.mxu0 0
      %4453 = vmatprep.subr.bf16.mxu0 0
      %4454 = vmatpush1.bf16.msra.mxu0 0
      %4455 = vmatprep.subr.bf16.mxu0 0
      %4456 = vmatpush1.bf16.msra.mxu0 0
      %4457 = vmatprep.subr.bf16.mxu0 0
      %4458 = vmatpush1.bf16.msra.mxu0 0
      %4459 = vmatprep.subr.bf16.mxu0 0
      %4460 = vmatpush1.bf16.msra.mxu0 %v4443
      %4461 = vmatprep.subr.bf16.mxu0 0
      %4462 = vmatpush2.bf16.msra.mxu0 0
      %4463 = vmatprep.subr.bf16.mxu0 0
      %4464 = vmatpush2.bf16.msra.mxu0 0
      %4465 = vmatprep.subr.bf16.mxu0 0
      %4466 = vmatpush2.bf16.msra.mxu0 0
      %4467 = vmatprep.subr.bf16.mxu0 0
      %4468 = vmatpush2.bf16.msra.mxu0 0
      %4469 = vmatprep.subr.bf16.mxu0 0
      %4470 = vmatpush2.bf16.msra.mxu0 0
      %4471 = vmatprep.subr.bf16.mxu0 0
      %4472 = vmatpush2.bf16.msra.mxu0 0
      %4473 = vmatprep.subr.bf16.mxu0 0
      %4474 = vmatpush2.bf16.msra.mxu0 0
      %4475 = vmatprep.subr.bf16.mxu0 0
      %4476 = vmatpush2.bf16.msra.mxu0 0
      %4477 = vmatprep.mubr.bf16.mxu0 0
      %4478 = vmatmul.mubr.bf16.gmra.mxu0 %v4380
      %v4479 = vpop.f32.mrf.mxu0
      %v4480 = vadd.f32 0.0, %v4479
      %v4481 = vpop.f32.mrf.mxu0
      %v4482 = vpop.f32.mrf.mxu0
      %v4483 = vadd.f32 0.0, %v4482
      %v4484 = vpop.f32.mrf.mxu0
      %4485 = vmatprep.mubr.bf16.mxu0 0
      %4486 = vmatmul.mubr.bf16.gmra.mxu0 %v4383
      %v4487 = vpop.f32.mrf.mxu0
      %v4488 = vadd.f32 0.0, %v4487
      %v4489 = vpop.f32.mrf.mxu0
      %v4490 = vpop.f32.mrf.mxu0
      %v4491 = vadd.f32 0.0, %v4490
      %v4492 = vpop.f32.mrf.mxu0
      %4493 = vmatprep.mubr.bf16.mxu0 0
      %4494 = vmatmul.mubr.bf16.gmra.mxu0 %v4386
      %v4495 = vpop.f32.mrf.mxu0
      %v4496 = vadd.f32 0.0, %v4495
      %v4497 = vpop.f32.mrf.mxu0
      %v4498 = vpop.f32.mrf.mxu0
      %v4499 = vadd.f32 0.0, %v4498
      %v4500 = vpop.f32.mrf.mxu0
      %4501 = vmatprep.mubr.bf16.mxu0 0
      %4502 = vmatmul.mubr.bf16.gmra.mxu0 %v4389
      %v4503 = vpop.f32.mrf.mxu0
      %v4504 = vadd.f32 0.0, %v4503
      %v4505 = vpop.f32.mrf.mxu0
      %v4506 = vpop.f32.mrf.mxu0
      %v4507 = vadd.f32 0.0, %v4506
      %v4508 = vpop.f32.mrf.mxu0
      %4509 = vmatprep.mubr.bf16.mxu0 0
      %4510 = vmatmul.mubr.bf16.gmra.mxu0 %v4392
      %v4511 = vpop.f32.mrf.mxu0
      %v4512 = vadd.f32 0.0, %v4511
      %v4513 = vpop.f32.mrf.mxu0
      %v4514 = vpop.f32.mrf.mxu0
      %v4515 = vadd.f32 0.0, %v4514
      %v4516 = vpop.f32.mrf.mxu0
      %4517 = vmatprep.mubr.bf16.mxu0 0
      %4518 = vmatmul.mubr.bf16.gmra.mxu0 %v4395
      %v4519 = vpop.f32.mrf.mxu0
      %v4520 = vadd.f32 0.0, %v4519
      %v4521 = vpop.f32.mrf.mxu0
      %v4522 = vpop.f32.mrf.mxu0
      %v4523 = vadd.f32 0.0, %v4522
      %v4524 = vpop.f32.mrf.mxu0
      %4525 = vmatprep.mubr.bf16.mxu0 0
      %4526 = vmatmul.mubr.bf16.gmra.mxu0 %v4398
      %v4527 = vpop.f32.mrf.mxu0
      %v4528 = vadd.f32 0.0, %v4527
      %v4529 = vpop.f32.mrf.mxu0
      %v4530 = vpop.f32.mrf.mxu0
      %v4531 = vadd.f32 0.0, %v4530
      %v4532 = vpop.f32.mrf.mxu0
      %4533 = vmatprep.mubr.bf16.mxu0 0
      %4534 = vmatmul.mubr.bf16.gmra.mxu0 %v4401
      %v4535 = vpop.f32.mrf.mxu0
      %v4536 = vadd.f32 0.0, %v4535
      %v4537 = vpop.f32.mrf.mxu0
      %v4538 = vpop.f32.mrf.mxu0
      %v4539 = vadd.f32 0.0, %v4538
      %v4540 = vpop.f32.mrf.mxu0
      %4541 = vmatprep.mubr.bf16.mxu0 0
      %4542 = vmatmul.mubr.bf16.gmra.mxu0 %v4404
      %v4543 = vpop.f32.mrf.mxu0
      %v4544 = vadd.f32 0.0, %v4543
      %v4545 = vpop.f32.mrf.mxu0
      %v4546 = vpop.f32.mrf.mxu0
      %v4547 = vadd.f32 0.0, %v4546
      %v4548 = vpop.f32.mrf.mxu0
      %4549 = vmatprep.mubr.bf16.mxu0 0
      %4550 = vmatmul.mubr.bf16.gmra.mxu0 %v4407
      %v4551 = vpop.f32.mrf.mxu0
      %v4552 = vadd.f32 0.0, %v4551
      %v4553 = vpop.f32.mrf.mxu0
      %v4554 = vpop.f32.mrf.mxu0
      %v4555 = vadd.f32 0.0, %v4554
      %v4556 = vpop.f32.mrf.mxu0
      %4557 = vmatprep.mubr.bf16.mxu0 0
      %4558 = vmatmul.mubr.bf16.gmra.mxu0 %v4410
      %v4559 = vpop.f32.mrf.mxu0
      %v4560 = vadd.f32 0.0, %v4559
      %v4561 = vpop.f32.mrf.mxu0
      %v4562 = vpop.f32.mrf.mxu0
      %v4563 = vadd.f32 0.0, %v4562
      %v4564 = vpop.f32.mrf.mxu0
      %4565 = vmatprep.mubr.bf16.mxu0 0
      %4566 = vmatmul.mubr.bf16.gmra.mxu0 %v4413
      %v4567 = vpop.f32.mrf.mxu0
      %v4568 = vadd.f32 0.0, %v4567
      %v4569 = vpop.f32.mrf.mxu0
      %v4570 = vpop.f32.mrf.mxu0
      %v4571 = vadd.f32 0.0, %v4570
      %v4572 = vpop.f32.mrf.mxu0
      %4573 = vmatprep.mubr.bf16.mxu0 0
      %4574 = vmatmul.mubr.bf16.gmra.mxu0 %v4416
      %v4575 = vpop.f32.mrf.mxu0
      %v4576 = vadd.f32 0.0, %v4575
      %v4577 = vpop.f32.mrf.mxu0
      %v4578 = vpop.f32.mrf.mxu0
      %v4579 = vadd.f32 0.0, %v4578
      %v4580 = vpop.f32.mrf.mxu0
      %4581 = vmatprep.mubr.bf16.mxu0 0
      %4582 = vmatmul.mubr.bf16.gmra.mxu0 %v4419
      %v4583 = vpop.f32.mrf.mxu0
      %v4584 = vadd.f32 0.0, %v4583
      %v4585 = vpop.f32.mrf.mxu0
      %v4586 = vpop.f32.mrf.mxu0
      %v4587 = vadd.f32 0.0, %v4586
      %v4588 = vpop.f32.mrf.mxu0
      %4589 = vmatprep.mubr.bf16.mxu0 0
      %4590 = vmatmul.mubr.bf16.gmra.mxu0 %v4422
      %v4591 = vpop.f32.mrf.mxu0
      %v4592 = vadd.f32 0.0, %v4591
      %v4593 = vpop.f32.mrf.mxu0
      %v4594 = vpop.f32.mrf.mxu0
      %v4595 = vadd.f32 0.0, %v4594
      %v4596 = vpop.f32.mrf.mxu0
      %4597 = vmatprep.mubr.bf16.mxu0 0
      %4598 = vmatmul.mubr.bf16.gmra.mxu0 %v4425
      %v4599 = vpop.f32.mrf.mxu0
      %v4600 = vadd.f32 0.0, %v4599
      %v4601 = vpop.f32.mrf.mxu0
      %v4602 = vpop.f32.mrf.mxu0
      %v4603 = vadd.f32 0.0, %v4602
      %v4604 = vpop.f32.mrf.mxu0
      %4605 = vmatprep.mubr.bf16.mxu0 0
      %4606 = vmatmul.mubr.bf16.gmra.mxu0 %v4428
      %v4607 = vpop.f32.mrf.mxu0
      %v4608 = vadd.f32 0.0, %v4607
      %v4609 = vpop.f32.mrf.mxu0
      %v4610 = vpop.f32.mrf.mxu0
      %v4611 = vadd.f32 0.0, %v4610
      %v4612 = vpop.f32.mrf.mxu0
      %4613 = vmatprep.mubr.bf16.mxu0 0
      %4614 = vmatmul.mubr.bf16.gmra.mxu0 %v4431
      %v4615 = vpop.f32.mrf.mxu0
      %v4616 = vadd.f32 0.0, %v4615
      %v4617 = vpop.f32.mrf.mxu0
      %v4618 = vpop.f32.mrf.mxu0
      %v4619 = vadd.f32 0.0, %v4618
      %v4620 = vpop.f32.mrf.mxu0
      %4621 = vmatprep.mubr.bf16.mxu0 0
      %4622 = vmatmul.mubr.bf16.gmra.mxu0 %v4434
      %v4623 = vpop.f32.mrf.mxu0
      %v4624 = vadd.f32 0.0, %v4623
      %v4625 = vpop.f32.mrf.mxu0
      %v4626 = vpop.f32.mrf.mxu0
      %v4627 = vadd.f32 0.0, %v4626
      %v4628 = vpop.f32.mrf.mxu0
      %4629 = vmatprep.mubr.bf16.mxu0 0
      %4630 = vmatmul.mubr.bf16.gmra.mxu0 %v4437
      %v4631 = vpop.f32.mrf.mxu0
      %v4632 = vadd.f32 0.0, %v4631
      %v4633 = vpop.f32.mrf.mxu0
      %v4634 = vpop.f32.mrf.mxu0
      %v4635 = vadd.f32 0.0, %v4634
      %v4636 = vpop.f32.mrf.mxu0
      %4637 = vmatprep.mubr.bf16.mxu0 0
      %4638 = vmatmul.mubr.bf16.gmra.mxu0 %v4440
      %v4639 = vpop.f32.mrf.mxu0
      %v4640 = vadd.f32 0.0, %v4639
      %v4641 = vpop.f32.mrf.mxu0
      %v4642 = vpop.f32.mrf.mxu0
      %v4643 = vpop.f32.mrf.mxu0
      %4644 = vdwg.mxu0
      %v4645 = vadd.f32 %v4001, %v4480
      %v4646 = vadd.f32 %v4002, %v4483
      %v4647 = vadd.f32 %v4003, %v4488
      %v4648 = vadd.f32 %v4004, %v4491
      %v4649 = vadd.f32 %v4005, %v4496
      %v4650 = vadd.f32 %v4006, %v4499
      %v4651 = vadd.f32 %v4007, %v4504
      %v4652 = vadd.f32 %v4008, %v4507
      %v4653 = vadd.f32 %v4009, %v4512
      %v4654 = vadd.f32 %v4010, %v4515
      %v4655 = vadd.f32 %v4011, %v4520
      %v4656 = vadd.f32 %v4012, %v4523
      %v4657 = vadd.f32 %v4013, %v4528
      %v4658 = vadd.f32 %v4014, %v4531
      %v4659 = vadd.f32 %v4015, %v4536
      %v4660 = vadd.f32 %v4016, %v4539
      %v4661 = vadd.f32 %v4017, %v4544
      %v4662 = vadd.f32 %v4018, %v4547
      %v4663 = vadd.f32 %v4019, %v4552
      %v4664 = vadd.f32 %v4020, %v4555
      %v4665 = vadd.f32 %v4021, %v4560
      %v4666 = vadd.f32 %v4022, %v4563
      %v4667 = vadd.f32 %v4023, %v4568
      %v4668 = vadd.f32 %v4024, %v4571
      %v4669 = vadd.f32 %v4025, %v4576
      %v4670 = vadd.f32 %v4026, %v4579
      %v4671 = vadd.f32 %v4027, %v4584
      %v4672 = vadd.f32 %v4028, %v4587
      %v4673 = vadd.f32 %v4029, %v4592
      %v4674 = vadd.f32 %v4030, %v4595
      %v4675 = vadd.f32 %v4031, %v4600
      %v4676 = vadd.f32 %v4032, %v4603
      %v4677 = vadd.f32 %v4033, %v4608
      %v4678 = vadd.f32 %v4034, %v4611
      %v4679 = vadd.f32 %v4035, %v4616
      %v4680 = vadd.f32 %v4036, %v4619
      %v4681 = vadd.f32 %v4037, %v4624
      %v4682 = vadd.f32 %v4038, %v4627
      %v4683 = vadd.f32 %v4039, %v4632
      %v4684 = vadd.f32 %v4040, %v4635
      %v4685 = vadd.f32 %v4041, %v4640
      %v4686 = vld [vmem:[%s2] sm:$0x1]
      %v4688 = vlaneseq
      %v4689 = vshrl.u32 %v4688, 7
      %v4690 = vsub.s32 0, %v4689
      %v4691 = vrot.slane %v4686, %v4690
      %v4693 = vmul.f32 %v4645, %v4691
      %v4694 = vmul.f32 %v4646, %v4691
      %v4695 = vmul.f32 %v4647, %v4691
      %v4696 = vmul.f32 %v4648, %v4691
      %v4697 = vmul.f32 %v4649, %v4691
      %v4698 = vmul.f32 %v4650, %v4691
      %v4699 = vmul.f32 %v4651, %v4691
      %v4700 = vmul.f32 %v4652, %v4691
      %v4701 = vmul.f32 %v4653, %v4691
      %v4702 = vmul.f32 %v4654, %v4691
      %v4703 = vmul.f32 %v4655, %v4691
      %v4704 = vmul.f32 %v4656, %v4691
      %v4705 = vmul.f32 %v4657, %v4691
      %v4706 = vmul.f32 %v4658, %v4691
      %v4707 = vmul.f32 %v4659, %v4691
      %v4708 = vmul.f32 %v4660, %v4691
      %v4709 = vmul.f32 %v4661, %v4691
      %v4710 = vmul.f32 %v4662, %v4691
      %v4711 = vmul.f32 %v4663, %v4691
      %v4712 = vmul.f32 %v4664, %v4691
      %v4713 = vmul.f32 %v4665, %v4691
      %v4714 = vmul.f32 %v4666, %v4691
      %v4715 = vmul.f32 %v4667, %v4691
      %v4716 = vmul.f32 %v4668, %v4691
      %v4717 = vmul.f32 %v4669, %v4691
      %v4718 = vmul.f32 %v4670, %v4691
      %v4719 = vmul.f32 %v4671, %v4691
      %v4720 = vmul.f32 %v4672, %v4691
      %v4721 = vmul.f32 %v4673, %v4691
      %v4722 = vmul.f32 %v4674, %v4691
      %v4723 = vmul.f32 %v4675, %v4691
      %v4724 = vmul.f32 %v4676, %v4691
      %v4725 = vmul.f32 %v4677, %v4691
      %v4726 = vmul.f32 %v4678, %v4691
      %v4727 = vmul.f32 %v4679, %v4691
      %v4728 = vmul.f32 %v4680, %v4691
      %v4729 = vmul.f32 %v4681, %v4691
      %v4730 = vmul.f32 %v4682, %v4691
      %v4731 = vmul.f32 %v4683, %v4691
      %v4732 = vmul.f32 %v4684, %v4691
      %v4733 = vmul.f32 %v4685, %v4691
      %v4734 = vld [vmem:[%s3] sm:$0x1]
      %v4736 = vlaneseq
      %v4737 = vshrl.u32 %v4736, 7
      %v4738 = vsub.s32 0, %v4737
      %v4739 = vrot.slane %v4734, %v4738
      %v4741 = vadd.f32 %v4693, %v4739
      %v4742 = vadd.f32 %v4694, %v4739
      %v4743 = vadd.f32 %v4695, %v4739
      %v4744 = vadd.f32 %v4696, %v4739
      %v4745 = vadd.f32 %v4697, %v4739
      %v4746 = vadd.f32 %v4698, %v4739
      %v4747 = vadd.f32 %v4699, %v4739
      %v4748 = vadd.f32 %v4700, %v4739
      %v4749 = vadd.f32 %v4701, %v4739
      %v4750 = vadd.f32 %v4702, %v4739
      %v4751 = vadd.f32 %v4703, %v4739
      %v4752 = vadd.f32 %v4704, %v4739
      %v4753 = vadd.f32 %v4705, %v4739
      %v4754 = vadd.f32 %v4706, %v4739
      %v4755 = vadd.f32 %v4707, %v4739
      %v4756 = vadd.f32 %v4708, %v4739
      %v4757 = vadd.f32 %v4709, %v4739
      %v4758 = vadd.f32 %v4710, %v4739
      %v4759 = vadd.f32 %v4711, %v4739
      %v4760 = vadd.f32 %v4712, %v4739
      %v4761 = vadd.f32 %v4713, %v4739
      %v4762 = vadd.f32 %v4714, %v4739
      %v4763 = vadd.f32 %v4715, %v4739
      %v4764 = vadd.f32 %v4716, %v4739
      %v4765 = vadd.f32 %v4717, %v4739
      %v4766 = vadd.f32 %v4718, %v4739
      %v4767 = vadd.f32 %v4719, %v4739
      %v4768 = vadd.f32 %v4720, %v4739
      %v4769 = vadd.f32 %v4721, %v4739
      %v4770 = vadd.f32 %v4722, %v4739
      %v4771 = vadd.f32 %v4723, %v4739
      %v4772 = vadd.f32 %v4724, %v4739
      %v4773 = vadd.f32 %v4725, %v4739
      %v4774 = vadd.f32 %v4726, %v4739
      %v4775 = vadd.f32 %v4727, %v4739
      %v4776 = vadd.f32 %v4728, %v4739
      %v4777 = vadd.f32 %v4729, %v4739
      %v4778 = vadd.f32 %v4730, %v4739
      %v4779 = vadd.f32 %v4731, %v4739
      %v4780 = vadd.f32 %v4732, %v4739
      %v4781 = vadd.f32 %v4733, %v4739
      %v4782 = vmax.f32 %v4741, 0.0
      %v4783 = vmax.f32 %v4742, 0.0
      %v4784 = vmax.f32 %v4743, 0.0
      %v4785 = vmax.f32 %v4744, 0.0
      %v4786 = vmax.f32 %v4745, 0.0
      %v4787 = vmax.f32 %v4746, 0.0
      %v4788 = vmax.f32 %v4747, 0.0
      %v4789 = vmax.f32 %v4748, 0.0
      %v4790 = vmax.f32 %v4749, 0.0
      %v4791 = vmax.f32 %v4750, 0.0
      %v4792 = vmax.f32 %v4751, 0.0
      %v4793 = vmax.f32 %v4752, 0.0
      %v4794 = vmax.f32 %v4753, 0.0
      %v4795 = vmax.f32 %v4754, 0.0
      %v4796 = vmax.f32 %v4755, 0.0
      %v4797 = vmax.f32 %v4756, 0.0
      %v4798 = vmax.f32 %v4757, 0.0
      %v4799 = vmax.f32 %v4758, 0.0
      %v4800 = vmax.f32 %v4759, 0.0
      %v4801 = vmax.f32 %v4760, 0.0
      %v4802 = vmax.f32 %v4761, 0.0
      %v4803 = vmax.f32 %v4762, 0.0
      %v4804 = vmax.f32 %v4763, 0.0
      %v4805 = vmax.f32 %v4764, 0.0
      %v4806 = vmax.f32 %v4765, 0.0
      %v4807 = vmax.f32 %v4766, 0.0
      %v4808 = vmax.f32 %v4767, 0.0
      %v4809 = vmax.f32 %v4768, 0.0
      %v4810 = vmax.f32 %v4769, 0.0
      %v4811 = vmax.f32 %v4770, 0.0
      %v4812 = vmax.f32 %v4771, 0.0
      %v4813 = vmax.f32 %v4772, 0.0
      %v4814 = vmax.f32 %v4773, 0.0
      %v4815 = vmax.f32 %v4774, 0.0
      %v4816 = vmax.f32 %v4775, 0.0
      %v4817 = vmax.f32 %v4776, 0.0
      %v4818 = vmax.f32 %v4777, 0.0
      %v4819 = vmax.f32 %v4778, 0.0
      %v4820 = vmax.f32 %v4779, 0.0
      %v4821 = vmax.f32 %v4780, 0.0
      %v4822 = vmax.f32 %v4781, 0.0
      %v4823 = vlaneseq
      %v4824 = vshrl.u32 %v4823, 7
      %v4825 = vadd.s32 %v4824, 8
      %v4826 = vadd.s32 %v4824, 16
      %v4827 = vadd.s32 %v4824, 24
      %v4828 = vadd.s32 %v4824, 32
      %v4829 = vadd.s32 %v4824, 40
      %v4830 = vadd.s32 %v4824, 48
      %v4831 = vadd.s32 %v4824, 56
      %v4832 = vadd.s32 %v4824, 64
      %v4833 = vadd.s32 %v4824, 72
      %v4834 = vadd.s32 %v4824, 80
      %v4835 = vadd.s32 %v4824, 88
      %v4836 = vadd.s32 %v4824, 96
      %v4837 = vadd.s32 %v4824, 104
      %v4838 = vadd.s32 %v4824, 112
      %v4839 = vadd.s32 %v4824, 120
      %v4840 = vadd.s32 %v4824, 128
      %v4841 = vadd.s32 %v4824, 136
      %v4842 = vadd.s32 %v4824, 144
      %v4843 = vadd.s32 %v4824, 152
      %v4844 = vadd.s32 %v4824, 160
      %v4845 = vadd.s32 %v4824, 168
      %v4846 = vadd.s32 %v4824, 176
      %v4847 = vadd.s32 %v4824, 184
      %v4848 = vadd.s32 %v4824, 192
      %v4849 = vadd.s32 %v4824, 200
      %v4850 = vadd.s32 %v4824, 208
      %v4851 = vadd.s32 %v4824, 216
      %v4852 = vadd.s32 %v4824, 224
      %v4853 = vadd.s32 %v4824, 232
      %v4854 = vadd.s32 %v4824, 240
      %v4855 = vadd.s32 %v4824, 248
      %v4856 = vadd.s32 %v4824, 256
      %v4857 = vadd.s32 %v4824, 264
      %v4858 = vadd.s32 %v4824, 272
      %v4859 = vadd.s32 %v4824, 280
      %v4860 = vadd.s32 %v4824, 288
      %v4861 = vadd.s32 %v4824, 296
      %v4862 = vadd.s32 %v4824, 304
      %v4863 = vadd.s32 %v4824, 312
      %v4864 = vadd.s32 %v4824, 320
      %vm4865 = vcmp.lt.s32.totalorder %v4824, 0
      %v4866 = vsub.s32 0, %v4824
      %v4867 = vsel %vm4865, %v4866, %v4824
      %v4868 = vmul.u32.u64.compose %v4867, 3817748708
      %v4869 = vextract.low.u32 %v4868
      %v4870 = vextract.high.u32 %v4868
      %v4871 = vshrl.u32 %v4870, 4
      %v4872 = vmul.u32 %v4871, 18
      %v4873 = vsub.s32 %v4867, %v4872
      %v4874 = vsub.s32 0, %v4873
      %v4875 = vsel %vm4865, %v4874, %v4873
      %vm4876 = vcmp.lt.s32.totalorder %v4825, 0
      %v4877 = vsub.s32 0, %v4825
      %v4878 = vsel %vm4876, %v4877, %v4825
      %v4879 = vmul.u32.u64.compose %v4878, 3817748708
      %v4880 = vextract.low.u32 %v4879
      %v4881 = vextract.high.u32 %v4879
      %v4882 = vshrl.u32 %v4881, 4
      %v4883 = vmul.u32 %v4882, 18
      %v4884 = vsub.s32 %v4878, %v4883
      %v4885 = vsub.s32 0, %v4884
      %v4886 = vsel %vm4876, %v4885, %v4884
      %vm4887 = vcmp.lt.s32.totalorder %v4826, 0
      %v4888 = vsub.s32 0, %v4826
      %v4889 = vsel %vm4887, %v4888, %v4826
      %v4890 = vmul.u32.u64.compose %v4889, 3817748708
      %v4891 = vextract.low.u32 %v4890
      %v4892 = vextract.high.u32 %v4890
      %v4893 = vshrl.u32 %v4892, 4
      %v4894 = vmul.u32 %v4893, 18
      %v4895 = vsub.s32 %v4889, %v4894
      %v4896 = vsub.s32 0, %v4895
      %v4897 = vsel %vm4887, %v4896, %v4895
      %vm4898 = vcmp.lt.s32.totalorder %v4827, 0
      %v4899 = vsub.s32 0, %v4827
      %v4900 = vsel %vm4898, %v4899, %v4827
      %v4901 = vmul.u32.u64.compose %v4900, 3817748708
      %v4902 = vextract.low.u32 %v4901
      %v4903 = vextract.high.u32 %v4901
      %v4904 = vshrl.u32 %v4903, 4
      %v4905 = vmul.u32 %v4904, 18
      %v4906 = vsub.s32 %v4900, %v4905
      %v4907 = vsub.s32 0, %v4906
      %v4908 = vsel %vm4898, %v4907, %v4906
      %vm4909 = vcmp.lt.s32.totalorder %v4828, 0
      %v4910 = vsub.s32 0, %v4828
      %v4911 = vsel %vm4909, %v4910, %v4828
      %v4912 = vmul.u32.u64.compose %v4911, 3817748708
      %v4913 = vextract.low.u32 %v4912
      %v4914 = vextract.high.u32 %v4912
      %v4915 = vshrl.u32 %v4914, 4
      %v4916 = vmul.u32 %v4915, 18
      %v4917 = vsub.s32 %v4911, %v4916
      %v4918 = vsub.s32 0, %v4917
      %v4919 = vsel %vm4909, %v4918, %v4917
      %vm4920 = vcmp.lt.s32.totalorder %v4829, 0
      %v4921 = vsub.s32 0, %v4829
      %v4922 = vsel %vm4920, %v4921, %v4829
      %v4923 = vmul.u32.u64.compose %v4922, 3817748708
      %v4924 = vextract.low.u32 %v4923
      %v4925 = vextract.high.u32 %v4923
      %v4926 = vshrl.u32 %v4925, 4
      %v4927 = vmul.u32 %v4926, 18
      %v4928 = vsub.s32 %v4922, %v4927
      %v4929 = vsub.s32 0, %v4928
      %v4930 = vsel %vm4920, %v4929, %v4928
      %vm4931 = vcmp.lt.s32.totalorder %v4830, 0
      %v4932 = vsub.s32 0, %v4830
      %v4933 = vsel %vm4931, %v4932, %v4830
      %v4934 = vmul.u32.u64.compose %v4933, 3817748708
      %v4935 = vextract.low.u32 %v4934
      %v4936 = vextract.high.u32 %v4934
      %v4937 = vshrl.u32 %v4936, 4
      %v4938 = vmul.u32 %v4937, 18
      %v4939 = vsub.s32 %v4933, %v4938
      %v4940 = vsub.s32 0, %v4939
      %v4941 = vsel %vm4931, %v4940, %v4939
      %vm4942 = vcmp.lt.s32.totalorder %v4831, 0
      %v4943 = vsub.s32 0, %v4831
      %v4944 = vsel %vm4942, %v4943, %v4831
      %v4945 = vmul.u32.u64.compose %v4944, 3817748708
      %v4946 = vextract.low.u32 %v4945
      %v4947 = vextract.high.u32 %v4945
      %v4948 = vshrl.u32 %v4947, 4
      %v4949 = vmul.u32 %v4948, 18
      %v4950 = vsub.s32 %v4944, %v4949
      %v4951 = vsub.s32 0, %v4950
      %v4952 = vsel %vm4942, %v4951, %v4950
      %vm4953 = vcmp.lt.s32.totalorder %v4832, 0
      %v4954 = vsub.s32 0, %v4832
      %v4955 = vsel %vm4953, %v4954, %v4832
      %v4956 = vmul.u32.u64.compose %v4955, 3817748708
      %v4957 = vextract.low.u32 %v4956
      %v4958 = vextract.high.u32 %v4956
      %v4959 = vshrl.u32 %v4958, 4
      %v4960 = vmul.u32 %v4959, 18
      %v4961 = vsub.s32 %v4955, %v4960
      %v4962 = vsub.s32 0, %v4961
      %v4963 = vsel %vm4953, %v4962, %v4961
      %vm4964 = vcmp.lt.s32.totalorder %v4833, 0
      %v4965 = vsub.s32 0, %v4833
      %v4966 = vsel %vm4964, %v4965, %v4833
      %v4967 = vmul.u32.u64.compose %v4966, 3817748708
      %v4968 = vextract.low.u32 %v4967
      %v4969 = vextract.high.u32 %v4967
      %v4970 = vshrl.u32 %v4969, 4
      %v4971 = vmul.u32 %v4970, 18
      %v4972 = vsub.s32 %v4966, %v4971
      %v4973 = vsub.s32 0, %v4972
      %v4974 = vsel %vm4964, %v4973, %v4972
      %vm4975 = vcmp.lt.s32.totalorder %v4834, 0
      %v4976 = vsub.s32 0, %v4834
      %v4977 = vsel %vm4975, %v4976, %v4834
      %v4978 = vmul.u32.u64.compose %v4977, 3817748708
      %v4979 = vextract.low.u32 %v4978
      %v4980 = vextract.high.u32 %v4978
      %v4981 = vshrl.u32 %v4980, 4
      %v4982 = vmul.u32 %v4981, 18
      %v4983 = vsub.s32 %v4977, %v4982
      %v4984 = vsub.s32 0, %v4983
      %v4985 = vsel %vm4975, %v4984, %v4983
      %vm4986 = vcmp.lt.s32.totalorder %v4835, 0
      %v4987 = vsub.s32 0, %v4835
      %v4988 = vsel %vm4986, %v4987, %v4835
      %v4989 = vmul.u32.u64.compose %v4988, 3817748708
      %v4990 = vextract.low.u32 %v4989
      %v4991 = vextract.high.u32 %v4989
      %v4992 = vshrl.u32 %v4991, 4
      %v4993 = vmul.u32 %v4992, 18
      %v4994 = vsub.s32 %v4988, %v4993
      %v4995 = vsub.s32 0, %v4994
      %v4996 = vsel %vm4986, %v4995, %v4994
      %vm4997 = vcmp.lt.s32.totalorder %v4836, 0
      %v4998 = vsub.s32 0, %v4836
      %v4999 = vsel %vm4997, %v4998, %v4836
      %v5000 = vmul.u32.u64.compose %v4999, 3817748708
      %v5001 = vextract.low.u32 %v5000
      %v5002 = vextract.high.u32 %v5000
      %v5003 = vshrl.u32 %v5002, 4
      %v5004 = vmul.u32 %v5003, 18
      %v5005 = vsub.s32 %v4999, %v5004
      %v5006 = vsub.s32 0, %v5005
      %v5007 = vsel %vm4997, %v5006, %v5005
      %vm5008 = vcmp.lt.s32.totalorder %v4837, 0
      %v5009 = vsub.s32 0, %v4837
      %v5010 = vsel %vm5008, %v5009, %v4837
      %v5011 = vmul.u32.u64.compose %v5010, 3817748708
      %v5012 = vextract.low.u32 %v5011
      %v5013 = vextract.high.u32 %v5011
      %v5014 = vshrl.u32 %v5013, 4
      %v5015 = vmul.u32 %v5014, 18
      %v5016 = vsub.s32 %v5010, %v5015
      %v5017 = vsub.s32 0, %v5016
      %v5018 = vsel %vm5008, %v5017, %v5016
      %vm5019 = vcmp.lt.s32.totalorder %v4838, 0
      %v5020 = vsub.s32 0, %v4838
      %v5021 = vsel %vm5019, %v5020, %v4838
      %v5022 = vmul.u32.u64.compose %v5021, 3817748708
      %v5023 = vextract.low.u32 %v5022
      %v5024 = vextract.high.u32 %v5022
      %v5025 = vshrl.u32 %v5024, 4
      %v5026 = vmul.u32 %v5025, 18
      %v5027 = vsub.s32 %v5021, %v5026
      %v5028 = vsub.s32 0, %v5027
      %v5029 = vsel %vm5019, %v5028, %v5027
      %vm5030 = vcmp.lt.s32.totalorder %v4839, 0
      %v5031 = vsub.s32 0, %v4839
      %v5032 = vsel %vm5030, %v5031, %v4839
      %v5033 = vmul.u32.u64.compose %v5032, 3817748708
      %v5034 = vextract.low.u32 %v5033
      %v5035 = vextract.high.u32 %v5033
      %v5036 = vshrl.u32 %v5035, 4
      %v5037 = vmul.u32 %v5036, 18
      %v5038 = vsub.s32 %v5032, %v5037
      %v5039 = vsub.s32 0, %v5038
      %v5040 = vsel %vm5030, %v5039, %v5038
      %vm5041 = vcmp.lt.s32.totalorder %v4840, 0
      %v5042 = vsub.s32 0, %v4840
      %v5043 = vsel %vm5041, %v5042, %v4840
      %v5044 = vmul.u32.u64.compose %v5043, 3817748708
      %v5045 = vextract.low.u32 %v5044
      %v5046 = vextract.high.u32 %v5044
      %v5047 = vshrl.u32 %v5046, 4
      %v5048 = vmul.u32 %v5047, 18
      %v5049 = vsub.s32 %v5043, %v5048
      %v5050 = vsub.s32 0, %v5049
      %v5051 = vsel %vm5041, %v5050, %v5049
      %vm5052 = vcmp.lt.s32.totalorder %v4841, 0
      %v5053 = vsub.s32 0, %v4841
      %v5054 = vsel %vm5052, %v5053, %v4841
      %v5055 = vmul.u32.u64.compose %v5054, 3817748708
      %v5056 = vextract.low.u32 %v5055
      %v5057 = vextract.high.u32 %v5055
      %v5058 = vshrl.u32 %v5057, 4
      %v5059 = vmul.u32 %v5058, 18
      %v5060 = vsub.s32 %v5054, %v5059
      %v5061 = vsub.s32 0, %v5060
      %v5062 = vsel %vm5052, %v5061, %v5060
      %vm5063 = vcmp.lt.s32.totalorder %v4842, 0
      %v5064 = vsub.s32 0, %v4842
      %v5065 = vsel %vm5063, %v5064, %v4842
      %v5066 = vmul.u32.u64.compose %v5065, 3817748708
      %v5067 = vextract.low.u32 %v5066
      %v5068 = vextract.high.u32 %v5066
      %v5069 = vshrl.u32 %v5068, 4
      %v5070 = vmul.u32 %v5069, 18
      %v5071 = vsub.s32 %v5065, %v5070
      %v5072 = vsub.s32 0, %v5071
      %v5073 = vsel %vm5063, %v5072, %v5071
      %vm5074 = vcmp.lt.s32.totalorder %v4843, 0
      %v5075 = vsub.s32 0, %v4843
      %v5076 = vsel %vm5074, %v5075, %v4843
      %v5077 = vmul.u32.u64.compose %v5076, 3817748708
      %v5078 = vextract.low.u32 %v5077
      %v5079 = vextract.high.u32 %v5077
      %v5080 = vshrl.u32 %v5079, 4
      %v5081 = vmul.u32 %v5080, 18
      %v5082 = vsub.s32 %v5076, %v5081
      %v5083 = vsub.s32 0, %v5082
      %v5084 = vsel %vm5074, %v5083, %v5082
      %vm5085 = vcmp.lt.s32.totalorder %v4844, 0
      %v5086 = vsub.s32 0, %v4844
      %v5087 = vsel %vm5085, %v5086, %v4844
      %v5088 = vmul.u32.u64.compose %v5087, 3817748708
      %v5089 = vextract.low.u32 %v5088
      %v5090 = vextract.high.u32 %v5088
      %v5091 = vshrl.u32 %v5090, 4
      %v5092 = vmul.u32 %v5091, 18
      %v5093 = vsub.s32 %v5087, %v5092
      %v5094 = vsub.s32 0, %v5093
      %v5095 = vsel %vm5085, %v5094, %v5093
      %vm5096 = vcmp.lt.s32.totalorder %v4845, 0
      %v5097 = vsub.s32 0, %v4845
      %v5098 = vsel %vm5096, %v5097, %v4845
      %v5099 = vmul.u32.u64.compose %v5098, 3817748708
      %v5100 = vextract.low.u32 %v5099
      %v5101 = vextract.high.u32 %v5099
      %v5102 = vshrl.u32 %v5101, 4
      %v5103 = vmul.u32 %v5102, 18
      %v5104 = vsub.s32 %v5098, %v5103
      %v5105 = vsub.s32 0, %v5104
      %v5106 = vsel %vm5096, %v5105, %v5104
      %vm5107 = vcmp.lt.s32.totalorder %v4846, 0
      %v5108 = vsub.s32 0, %v4846
      %v5109 = vsel %vm5107, %v5108, %v4846
      %v5110 = vmul.u32.u64.compose %v5109, 3817748708
      %v5111 = vextract.low.u32 %v5110
      %v5112 = vextract.high.u32 %v5110
      %v5113 = vshrl.u32 %v5112, 4
      %v5114 = vmul.u32 %v5113, 18
      %v5115 = vsub.s32 %v5109, %v5114
      %v5116 = vsub.s32 0, %v5115
      %v5117 = vsel %vm5107, %v5116, %v5115
      %vm5118 = vcmp.lt.s32.totalorder %v4847, 0
      %v5119 = vsub.s32 0, %v4847
      %v5120 = vsel %vm5118, %v5119, %v4847
      %v5121 = vmul.u32.u64.compose %v5120, 3817748708
      %v5122 = vextract.low.u32 %v5121
      %v5123 = vextract.high.u32 %v5121
      %v5124 = vshrl.u32 %v5123, 4
      %v5125 = vmul.u32 %v5124, 18
      %v5126 = vsub.s32 %v5120, %v5125
      %v5127 = vsub.s32 0, %v5126
      %v5128 = vsel %vm5118, %v5127, %v5126
      %vm5129 = vcmp.lt.s32.totalorder %v4848, 0
      %v5130 = vsub.s32 0, %v4848
      %v5131 = vsel %vm5129, %v5130, %v4848
      %v5132 = vmul.u32.u64.compose %v5131, 3817748708
      %v5133 = vextract.low.u32 %v5132
      %v5134 = vextract.high.u32 %v5132
      %v5135 = vshrl.u32 %v5134, 4
      %v5136 = vmul.u32 %v5135, 18
      %v5137 = vsub.s32 %v5131, %v5136
      %v5138 = vsub.s32 0, %v5137
      %v5139 = vsel %vm5129, %v5138, %v5137
      %vm5140 = vcmp.lt.s32.totalorder %v4849, 0
      %v5141 = vsub.s32 0, %v4849
      %v5142 = vsel %vm5140, %v5141, %v4849
      %v5143 = vmul.u32.u64.compose %v5142, 3817748708
      %v5144 = vextract.low.u32 %v5143
      %v5145 = vextract.high.u32 %v5143
      %v5146 = vshrl.u32 %v5145, 4
      %v5147 = vmul.u32 %v5146, 18
      %v5148 = vsub.s32 %v5142, %v5147
      %v5149 = vsub.s32 0, %v5148
      %v5150 = vsel %vm5140, %v5149, %v5148
      %vm5151 = vcmp.lt.s32.totalorder %v4850, 0
      %v5152 = vsub.s32 0, %v4850
      %v5153 = vsel %vm5151, %v5152, %v4850
      %v5154 = vmul.u32.u64.compose %v5153, 3817748708
      %v5155 = vextract.low.u32 %v5154
      %v5156 = vextract.high.u32 %v5154
      %v5157 = vshrl.u32 %v5156, 4
      %v5158 = vmul.u32 %v5157, 18
      %v5159 = vsub.s32 %v5153, %v5158
      %v5160 = vsub.s32 0, %v5159
      %v5161 = vsel %vm5151, %v5160, %v5159
      %vm5162 = vcmp.lt.s32.totalorder %v4851, 0
      %v5163 = vsub.s32 0, %v4851
      %v5164 = vsel %vm5162, %v5163, %v4851
      %v5165 = vmul.u32.u64.compose %v5164, 3817748708
      %v5166 = vextract.low.u32 %v5165
      %v5167 = vextract.high.u32 %v5165
      %v5168 = vshrl.u32 %v5167, 4
      %v5169 = vmul.u32 %v5168, 18
      %v5170 = vsub.s32 %v5164, %v5169
      %v5171 = vsub.s32 0, %v5170
      %v5172 = vsel %vm5162, %v5171, %v5170
      %vm5173 = vcmp.lt.s32.totalorder %v4852, 0
      %v5174 = vsub.s32 0, %v4852
      %v5175 = vsel %vm5173, %v5174, %v4852
      %v5176 = vmul.u32.u64.compose %v5175, 3817748708
      %v5177 = vextract.low.u32 %v5176
      %v5178 = vextract.high.u32 %v5176
      %v5179 = vshrl.u32 %v5178, 4
      %v5180 = vmul.u32 %v5179, 18
      %v5181 = vsub.s32 %v5175, %v5180
      %v5182 = vsub.s32 0, %v5181
      %v5183 = vsel %vm5173, %v5182, %v5181
      %vm5184 = vcmp.lt.s32.totalorder %v4853, 0
      %v5185 = vsub.s32 0, %v4853
      %v5186 = vsel %vm5184, %v5185, %v4853
      %v5187 = vmul.u32.u64.compose %v5186, 3817748708
      %v5188 = vextract.low.u32 %v5187
      %v5189 = vextract.high.u32 %v5187
      %v5190 = vshrl.u32 %v5189, 4
      %v5191 = vmul.u32 %v5190, 18
      %v5192 = vsub.s32 %v5186, %v5191
      %v5193 = vsub.s32 0, %v5192
      %v5194 = vsel %vm5184, %v5193, %v5192
      %vm5195 = vcmp.lt.s32.totalorder %v4854, 0
      %v5196 = vsub.s32 0, %v4854
      %v5197 = vsel %vm5195, %v5196, %v4854
      %v5198 = vmul.u32.u64.compose %v5197, 3817748708
      %v5199 = vextract.low.u32 %v5198
      %v5200 = vextract.high.u32 %v5198
      %v5201 = vshrl.u32 %v5200, 4
      %v5202 = vmul.u32 %v5201, 18
      %v5203 = vsub.s32 %v5197, %v5202
      %v5204 = vsub.s32 0, %v5203
      %v5205 = vsel %vm5195, %v5204, %v5203
      %vm5206 = vcmp.lt.s32.totalorder %v4855, 0
      %v5207 = vsub.s32 0, %v4855
      %v5208 = vsel %vm5206, %v5207, %v4855
      %v5209 = vmul.u32.u64.compose %v5208, 3817748708
      %v5210 = vextract.low.u32 %v5209
      %v5211 = vextract.high.u32 %v5209
      %v5212 = vshrl.u32 %v5211, 4
      %v5213 = vmul.u32 %v5212, 18
      %v5214 = vsub.s32 %v5208, %v5213
      %v5215 = vsub.s32 0, %v5214
      %v5216 = vsel %vm5206, %v5215, %v5214
      %vm5217 = vcmp.lt.s32.totalorder %v4856, 0
      %v5218 = vsub.s32 0, %v4856
      %v5219 = vsel %vm5217, %v5218, %v4856
      %v5220 = vmul.u32.u64.compose %v5219, 3817748708
      %v5221 = vextract.low.u32 %v5220
      %v5222 = vextract.high.u32 %v5220
      %v5223 = vshrl.u32 %v5222, 4
      %v5224 = vmul.u32 %v5223, 18
      %v5225 = vsub.s32 %v5219, %v5224
      %v5226 = vsub.s32 0, %v5225
      %v5227 = vsel %vm5217, %v5226, %v5225
      %vm5228 = vcmp.lt.s32.totalorder %v4857, 0
      %v5229 = vsub.s32 0, %v4857
      %v5230 = vsel %vm5228, %v5229, %v4857
      %v5231 = vmul.u32.u64.compose %v5230, 3817748708
      %v5232 = vextract.low.u32 %v5231
      %v5233 = vextract.high.u32 %v5231
      %v5234 = vshrl.u32 %v5233, 4
      %v5235 = vmul.u32 %v5234, 18
      %v5236 = vsub.s32 %v5230, %v5235
      %v5237 = vsub.s32 0, %v5236
      %v5238 = vsel %vm5228, %v5237, %v5236
      %vm5239 = vcmp.lt.s32.totalorder %v4858, 0
      %v5240 = vsub.s32 0, %v4858
      %v5241 = vsel %vm5239, %v5240, %v4858
      %v5242 = vmul.u32.u64.compose %v5241, 3817748708
      %v5243 = vextract.low.u32 %v5242
      %v5244 = vextract.high.u32 %v5242
      %v5245 = vshrl.u32 %v5244, 4
      %v5246 = vmul.u32 %v5245, 18
      %v5247 = vsub.s32 %v5241, %v5246
      %v5248 = vsub.s32 0, %v5247
      %v5249 = vsel %vm5239, %v5248, %v5247
      %vm5250 = vcmp.lt.s32.totalorder %v4859, 0
      %v5251 = vsub.s32 0, %v4859
      %v5252 = vsel %vm5250, %v5251, %v4859
      %v5253 = vmul.u32.u64.compose %v5252, 3817748708
      %v5254 = vextract.low.u32 %v5253
      %v5255 = vextract.high.u32 %v5253
      %v5256 = vshrl.u32 %v5255, 4
      %v5257 = vmul.u32 %v5256, 18
      %v5258 = vsub.s32 %v5252, %v5257
      %v5259 = vsub.s32 0, %v5258
      %v5260 = vsel %vm5250, %v5259, %v5258
      %vm5261 = vcmp.lt.s32.totalorder %v4860, 0
      %v5262 = vsub.s32 0, %v4860
      %v5263 = vsel %vm5261, %v5262, %v4860
      %v5264 = vmul.u32.u64.compose %v5263, 3817748708
      %v5265 = vextract.low.u32 %v5264
      %v5266 = vextract.high.u32 %v5264
      %v5267 = vshrl.u32 %v5266, 4
      %v5268 = vmul.u32 %v5267, 18
      %v5269 = vsub.s32 %v5263, %v5268
      %v5270 = vsub.s32 0, %v5269
      %v5271 = vsel %vm5261, %v5270, %v5269
      %vm5272 = vcmp.lt.s32.totalorder %v4861, 0
      %v5273 = vsub.s32 0, %v4861
      %v5274 = vsel %vm5272, %v5273, %v4861
      %v5275 = vmul.u32.u64.compose %v5274, 3817748708
      %v5276 = vextract.low.u32 %v5275
      %v5277 = vextract.high.u32 %v5275
      %v5278 = vshrl.u32 %v5277, 4
      %v5279 = vmul.u32 %v5278, 18
      %v5280 = vsub.s32 %v5274, %v5279
      %v5281 = vsub.s32 0, %v5280
      %v5282 = vsel %vm5272, %v5281, %v5280
      %vm5283 = vcmp.lt.s32.totalorder %v4862, 0
      %v5284 = vsub.s32 0, %v4862
      %v5285 = vsel %vm5283, %v5284, %v4862
      %v5286 = vmul.u32.u64.compose %v5285, 3817748708
      %v5287 = vextract.low.u32 %v5286
      %v5288 = vextract.high.u32 %v5286
      %v5289 = vshrl.u32 %v5288, 4
      %v5290 = vmul.u32 %v5289, 18
      %v5291 = vsub.s32 %v5285, %v5290
      %v5292 = vsub.s32 0, %v5291
      %v5293 = vsel %vm5283, %v5292, %v5291
      %vm5294 = vcmp.lt.s32.totalorder %v4863, 0
      %v5295 = vsub.s32 0, %v4863
      %v5296 = vsel %vm5294, %v5295, %v4863
      %v5297 = vmul.u32.u64.compose %v5296, 3817748708
      %v5298 = vextract.low.u32 %v5297
      %v5299 = vextract.high.u32 %v5297
      %v5300 = vshrl.u32 %v5299, 4
      %v5301 = vmul.u32 %v5300, 18
      %v5302 = vsub.s32 %v5296, %v5301
      %v5303 = vsub.s32 0, %v5302
      %v5304 = vsel %vm5294, %v5303, %v5302
      %vm5305 = vcmp.lt.s32.totalorder %v4864, 0
      %v5306 = vsub.s32 0, %v4864
      %v5307 = vsel %vm5305, %v5306, %v4864
      %v5308 = vmul.u32.u64.compose %v5307, 3817748708
      %v5309 = vextract.low.u32 %v5308
      %v5310 = vextract.high.u32 %v5308
      %v5311 = vshrl.u32 %v5310, 4
      %v5312 = vmul.u32 %v5311, 18
      %v5313 = vsub.s32 %v5307, %v5312
      %v5314 = vsub.s32 0, %v5313
      %v5315 = vsel %vm5305, %v5314, %v5313
      %vm5316 = vcmp.ne.s32.totalorder %v4875, 0
      %vm5317 = vcmp.ne.s32.totalorder %v4886, 0
      %vm5318 = vcmp.ne.s32.totalorder %v4897, 0
      %vm5319 = vcmp.ne.s32.totalorder %v4908, 0
      %vm5320 = vcmp.ne.s32.totalorder %v4919, 0
      %vm5321 = vcmp.ne.s32.totalorder %v4930, 0
      %vm5322 = vcmp.ne.s32.totalorder %v4941, 0
      %vm5323 = vcmp.ne.s32.totalorder %v4952, 0
      %vm5324 = vcmp.ne.s32.totalorder %v4963, 0
      %vm5325 = vcmp.ne.s32.totalorder %v4974, 0
      %vm5326 = vcmp.ne.s32.totalorder %v4985, 0
      %vm5327 = vcmp.ne.s32.totalorder %v4996, 0
      %vm5328 = vcmp.ne.s32.totalorder %v5007, 0
      %vm5329 = vcmp.ne.s32.totalorder %v5018, 0
      %vm5330 = vcmp.ne.s32.totalorder %v5029, 0
      %vm5331 = vcmp.ne.s32.totalorder %v5040, 0
      %vm5332 = vcmp.ne.s32.totalorder %v5051, 0
      %vm5333 = vcmp.ne.s32.totalorder %v5062, 0
      %vm5334 = vcmp.ne.s32.totalorder %v5073, 0
      %vm5335 = vcmp.ne.s32.totalorder %v5084, 0
      %vm5336 = vcmp.ne.s32.totalorder %v5095, 0
      %vm5337 = vcmp.ne.s32.totalorder %v5106, 0
      %vm5338 = vcmp.ne.s32.totalorder %v5117, 0
      %vm5339 = vcmp.ne.s32.totalorder %v5128, 0
      %vm5340 = vcmp.ne.s32.totalorder %v5139, 0
      %vm5341 = vcmp.ne.s32.totalorder %v5150, 0
      %vm5342 = vcmp.ne.s32.totalorder %v5161, 0
      %vm5343 = vcmp.ne.s32.totalorder %v5172, 0
      %vm5344 = vcmp.ne.s32.totalorder %v5183, 0
      %vm5345 = vcmp.ne.s32.totalorder %v5194, 0
      %vm5346 = vcmp.ne.s32.totalorder %v5205, 0
      %vm5347 = vcmp.ne.s32.totalorder %v5216, 0
      %vm5348 = vcmp.ne.s32.totalorder %v5227, 0
      %vm5349 = vcmp.ne.s32.totalorder %v5238, 0
      %vm5350 = vcmp.ne.s32.totalorder %v5249, 0
      %vm5351 = vcmp.ne.s32.totalorder %v5260, 0
      %vm5352 = vcmp.ne.s32.totalorder %v5271, 0
      %vm5353 = vcmp.ne.s32.totalorder %v5282, 0
      %vm5354 = vcmp.ne.s32.totalorder %v5293, 0
      %vm5355 = vcmp.ne.s32.totalorder %v5304, 0
      %vm5356 = vcmp.ne.s32.totalorder %v5315, 0
      %vm5357 = vcmp.lt.s32.totalorder %v4875, 0
      %vm5358 = vcmp.lt.s32.totalorder %v4886, 0
      %vm5359 = vcmp.lt.s32.totalorder %v4897, 0
      %vm5360 = vcmp.lt.s32.totalorder %v4908, 0
      %vm5361 = vcmp.lt.s32.totalorder %v4919, 0
      %vm5362 = vcmp.lt.s32.totalorder %v4930, 0
      %vm5363 = vcmp.lt.s32.totalorder %v4941, 0
      %vm5364 = vcmp.lt.s32.totalorder %v4952, 0
      %vm5365 = vcmp.lt.s32.totalorder %v4963, 0
      %vm5366 = vcmp.lt.s32.totalorder %v4974, 0
      %vm5367 = vcmp.lt.s32.totalorder %v4985, 0
      %vm5368 = vcmp.lt.s32.totalorder %v4996, 0
      %vm5369 = vcmp.lt.s32.totalorder %v5007, 0
      %vm5370 = vcmp.lt.s32.totalorder %v5018, 0
      %vm5371 = vcmp.lt.s32.totalorder %v5029, 0
      %vm5372 = vcmp.lt.s32.totalorder %v5040, 0
      %vm5373 = vcmp.lt.s32.totalorder %v5051, 0
      %vm5374 = vcmp.lt.s32.totalorder %v5062, 0
      %vm5375 = vcmp.lt.s32.totalorder %v5073, 0
      %vm5376 = vcmp.lt.s32.totalorder %v5084, 0
      %vm5377 = vcmp.lt.s32.totalorder %v5095, 0
      %vm5378 = vcmp.lt.s32.totalorder %v5106, 0
      %vm5379 = vcmp.lt.s32.totalorder %v5117, 0
      %vm5380 = vcmp.lt.s32.totalorder %v5128, 0
      %vm5381 = vcmp.lt.s32.totalorder %v5139, 0
      %vm5382 = vcmp.lt.s32.totalorder %v5150, 0
      %vm5383 = vcmp.lt.s32.totalorder %v5161, 0
      %vm5384 = vcmp.lt.s32.totalorder %v5172, 0
      %vm5385 = vcmp.lt.s32.totalorder %v5183, 0
      %vm5386 = vcmp.lt.s32.totalorder %v5194, 0
      %vm5387 = vcmp.lt.s32.totalorder %v5205, 0
      %vm5388 = vcmp.lt.s32.totalorder %v5216, 0
      %vm5389 = vcmp.lt.s32.totalorder %v5227, 0
      %vm5390 = vcmp.lt.s32.totalorder %v5238, 0
      %vm5391 = vcmp.lt.s32.totalorder %v5249, 0
      %vm5392 = vcmp.lt.s32.totalorder %v5260, 0
      %vm5393 = vcmp.lt.s32.totalorder %v5271, 0
      %vm5394 = vcmp.lt.s32.totalorder %v5282, 0
      %vm5395 = vcmp.lt.s32.totalorder %v5293, 0
      %vm5396 = vcmp.lt.s32.totalorder %v5304, 0
      %vm5397 = vcmp.lt.s32.totalorder %v5315, 0
      %vm5398 = vmand %vm5357, %vm5316
      %vm5399 = vmand %vm5358, %vm5317
      %vm5400 = vmand %vm5359, %vm5318
      %vm5401 = vmand %vm5360, %vm5319
      %vm5402 = vmand %vm5361, %vm5320
      %vm5403 = vmand %vm5362, %vm5321
      %vm5404 = vmand %vm5363, %vm5322
      %vm5405 = vmand %vm5364, %vm5323
      %vm5406 = vmand %vm5365, %vm5324
      %vm5407 = vmand %vm5366, %vm5325
      %vm5408 = vmand %vm5367, %vm5326
      %vm5409 = vmand %vm5368, %vm5327
      %vm5410 = vmand %vm5369, %vm5328
      %vm5411 = vmand %vm5370, %vm5329
      %vm5412 = vmand %vm5371, %vm5330
      %vm5413 = vmand %vm5372, %vm5331
      %vm5414 = vmand %vm5373, %vm5332
      %vm5415 = vmand %vm5374, %vm5333
      %vm5416 = vmand %vm5375, %vm5334
      %vm5417 = vmand %vm5376, %vm5335
      %vm5418 = vmand %vm5377, %vm5336
      %vm5419 = vmand %vm5378, %vm5337
      %vm5420 = vmand %vm5379, %vm5338
      %vm5421 = vmand %vm5380, %vm5339
      %vm5422 = vmand %vm5381, %vm5340
      %vm5423 = vmand %vm5382, %vm5341
      %vm5424 = vmand %vm5383, %vm5342
      %vm5425 = vmand %vm5384, %vm5343
      %vm5426 = vmand %vm5385, %vm5344
      %vm5427 = vmand %vm5386, %vm5345
      %vm5428 = vmand %vm5387, %vm5346
      %vm5429 = vmand %vm5388, %vm5347
      %vm5430 = vmand %vm5389, %vm5348
      %vm5431 = vmand %vm5390, %vm5349
      %vm5432 = vmand %vm5391, %vm5350
      %vm5433 = vmand %vm5392, %vm5351
      %vm5434 = vmand %vm5393, %vm5352
      %vm5435 = vmand %vm5394, %vm5353
      %vm5436 = vmand %vm5395, %vm5354
      %vm5437 = vmand %vm5396, %vm5355
      %vm5438 = vmand %vm5397, %vm5356
      %v5439 = vadd.s32 %v4875, 18
      %v5440 = vadd.s32 %v4886, 18
      %v5441 = vadd.s32 %v4897, 18
      %v5442 = vadd.s32 %v4908, 18
      %v5443 = vadd.s32 %v4919, 18
      %v5444 = vadd.s32 %v4930, 18
      %v5445 = vadd.s32 %v4941, 18
      %v5446 = vadd.s32 %v4952, 18
      %v5447 = vadd.s32 %v4963, 18
      %v5448 = vadd.s32 %v4974, 18
      %v5449 = vadd.s32 %v4985, 18
      %v5450 = vadd.s32 %v4996, 18
      %v5451 = vadd.s32 %v5007, 18
      %v5452 = vadd.s32 %v5018, 18
      %v5453 = vadd.s32 %v5029, 18
      %v5454 = vadd.s32 %v5040, 18
      %v5455 = vadd.s32 %v5051, 18
      %v5456 = vadd.s32 %v5062, 18
      %v5457 = vadd.s32 %v5073, 18
      %v5458 = vadd.s32 %v5084, 18
      %v5459 = vadd.s32 %v5095, 18
      %v5460 = vadd.s32 %v5106, 18
      %v5461 = vadd.s32 %v5117, 18
      %v5462 = vadd.s32 %v5128, 18
      %v5463 = vadd.s32 %v5139, 18
      %v5464 = vadd.s32 %v5150, 18
      %v5465 = vadd.s32 %v5161, 18
      %v5466 = vadd.s32 %v5172, 18
      %v5467 = vadd.s32 %v5183, 18
      %v5468 = vadd.s32 %v5194, 18
      %v5469 = vadd.s32 %v5205, 18
      %v5470 = vadd.s32 %v5216, 18
      %v5471 = vadd.s32 %v5227, 18
      %v5472 = vadd.s32 %v5238, 18
      %v5473 = vadd.s32 %v5249, 18
      %v5474 = vadd.s32 %v5260, 18
      %v5475 = vadd.s32 %v5271, 18
      %v5476 = vadd.s32 %v5282, 18
      %v5477 = vadd.s32 %v5293, 18
      %v5478 = vadd.s32 %v5304, 18
      %v5479 = vadd.s32 %v5315, 18
      %v5480 = vsel %vm5398, %v5439, %v4875
      %v5481 = vsel %vm5399, %v5440, %v4886
      %v5482 = vsel %vm5400, %v5441, %v4897
      %v5483 = vsel %vm5401, %v5442, %v4908
      %v5484 = vsel %vm5402, %v5443, %v4919
      %v5485 = vsel %vm5403, %v5444, %v4930
      %v5486 = vsel %vm5404, %v5445, %v4941
      %v5487 = vsel %vm5405, %v5446, %v4952
      %v5488 = vsel %vm5406, %v5447, %v4963
      %v5489 = vsel %vm5407, %v5448, %v4974
      %v5490 = vsel %vm5408, %v5449, %v4985
      %v5491 = vsel %vm5409, %v5450, %v4996
      %v5492 = vsel %vm5410, %v5451, %v5007
      %v5493 = vsel %vm5411, %v5452, %v5018
      %v5494 = vsel %vm5412, %v5453, %v5029
      %v5495 = vsel %vm5413, %v5454, %v5040
      %v5496 = vsel %vm5414, %v5455, %v5051
      %v5497 = vsel %vm5415, %v5456, %v5062
      %v5498 = vsel %vm5416, %v5457, %v5073
      %v5499 = vsel %vm5417, %v5458, %v5084
      %v5500 = vsel %vm5418, %v5459, %v5095
      %v5501 = vsel %vm5419, %v5460, %v5106
      %v5502 = vsel %vm5420, %v5461, %v5117
      %v5503 = vsel %vm5421, %v5462, %v5128
      %v5504 = vsel %vm5422, %v5463, %v5139
      %v5505 = vsel %vm5423, %v5464, %v5150
      %v5506 = vsel %vm5424, %v5465, %v5161
      %v5507 = vsel %vm5425, %v5466, %v5172
      %v5508 = vsel %vm5426, %v5467, %v5183
      %v5509 = vsel %vm5427, %v5468, %v5194
      %v5510 = vsel %vm5428, %v5469, %v5205
      %v5511 = vsel %vm5429, %v5470, %v5216
      %v5512 = vsel %vm5430, %v5471, %v5227
      %v5513 = vsel %vm5431, %v5472, %v5238
      %v5514 = vsel %vm5432, %v5473, %v5249
      %v5515 = vsel %vm5433, %v5474, %v5260
      %v5516 = vsel %vm5434, %v5475, %v5271
      %v5517 = vsel %vm5435, %v5476, %v5282
      %v5518 = vsel %vm5436, %v5477, %v5293
      %v5519 = vsel %vm5437, %v5478, %v5304
      %v5520 = vsel %vm5438, %v5479, %v5315
      %vm5521 = vcmp.eq.s32.totalorder %v5480, 0
      %vm5522 = vcmp.eq.s32.totalorder %v5481, 0
      %vm5523 = vcmp.eq.s32.totalorder %v5482, 0
      %vm5524 = vcmp.eq.s32.totalorder %v5483, 0
      %vm5525 = vcmp.eq.s32.totalorder %v5484, 0
      %vm5526 = vcmp.eq.s32.totalorder %v5485, 0
      %vm5527 = vcmp.eq.s32.totalorder %v5486, 0
      %vm5528 = vcmp.eq.s32.totalorder %v5487, 0
      %vm5529 = vcmp.eq.s32.totalorder %v5488, 0
      %vm5530 = vcmp.eq.s32.totalorder %v5489, 0
      %vm5531 = vcmp.eq.s32.totalorder %v5490, 0
      %vm5532 = vcmp.eq.s32.totalorder %v5491, 0
      %vm5533 = vcmp.eq.s32.totalorder %v5492, 0
      %vm5534 = vcmp.eq.s32.totalorder %v5493, 0
      %vm5535 = vcmp.eq.s32.totalorder %v5494, 0
      %vm5536 = vcmp.eq.s32.totalorder %v5495, 0
      %vm5537 = vcmp.eq.s32.totalorder %v5496, 0
      %vm5538 = vcmp.eq.s32.totalorder %v5497, 0
      %vm5539 = vcmp.eq.s32.totalorder %v5498, 0
      %vm5540 = vcmp.eq.s32.totalorder %v5499, 0
      %vm5541 = vcmp.eq.s32.totalorder %v5500, 0
      %vm5542 = vcmp.eq.s32.totalorder %v5501, 0
      %vm5543 = vcmp.eq.s32.totalorder %v5502, 0
      %vm5544 = vcmp.eq.s32.totalorder %v5503, 0
      %vm5545 = vcmp.eq.s32.totalorder %v5504, 0
      %vm5546 = vcmp.eq.s32.totalorder %v5505, 0
      %vm5547 = vcmp.eq.s32.totalorder %v5506, 0
      %vm5548 = vcmp.eq.s32.totalorder %v5507, 0
      %vm5549 = vcmp.eq.s32.totalorder %v5508, 0
      %vm5550 = vcmp.eq.s32.totalorder %v5509, 0
      %vm5551 = vcmp.eq.s32.totalorder %v5510, 0
      %vm5552 = vcmp.eq.s32.totalorder %v5511, 0
      %vm5553 = vcmp.eq.s32.totalorder %v5512, 0
      %vm5554 = vcmp.eq.s32.totalorder %v5513, 0
      %vm5555 = vcmp.eq.s32.totalorder %v5514, 0
      %vm5556 = vcmp.eq.s32.totalorder %v5515, 0
      %vm5557 = vcmp.eq.s32.totalorder %v5516, 0
      %vm5558 = vcmp.eq.s32.totalorder %v5517, 0
      %vm5559 = vcmp.eq.s32.totalorder %v5518, 0
      %vm5560 = vcmp.eq.s32.totalorder %v5519, 0
      %vm5561 = vcmp.eq.s32.totalorder %v5520, 0
      %vm5562 = vcmp.eq.s32.totalorder %v5480, 17
      %vm5563 = vcmp.eq.s32.totalorder %v5481, 17
      %vm5564 = vcmp.eq.s32.totalorder %v5482, 17
      %vm5565 = vcmp.eq.s32.totalorder %v5483, 17
      %vm5566 = vcmp.eq.s32.totalorder %v5484, 17
      %vm5567 = vcmp.eq.s32.totalorder %v5485, 17
      %vm5568 = vcmp.eq.s32.totalorder %v5486, 17
      %vm5569 = vcmp.eq.s32.totalorder %v5487, 17
      %vm5570 = vcmp.eq.s32.totalorder %v5488, 17
      %vm5571 = vcmp.eq.s32.totalorder %v5489, 17
      %vm5572 = vcmp.eq.s32.totalorder %v5490, 17
      %vm5573 = vcmp.eq.s32.totalorder %v5491, 17
      %vm5574 = vcmp.eq.s32.totalorder %v5492, 17
      %vm5575 = vcmp.eq.s32.totalorder %v5493, 17
      %vm5576 = vcmp.eq.s32.totalorder %v5494, 17
      %vm5577 = vcmp.eq.s32.totalorder %v5495, 17
      %vm5578 = vcmp.eq.s32.totalorder %v5496, 17
      %vm5579 = vcmp.eq.s32.totalorder %v5497, 17
      %vm5580 = vcmp.eq.s32.totalorder %v5498, 17
      %vm5581 = vcmp.eq.s32.totalorder %v5499, 17
      %vm5582 = vcmp.eq.s32.totalorder %v5500, 17
      %vm5583 = vcmp.eq.s32.totalorder %v5501, 17
      %vm5584 = vcmp.eq.s32.totalorder %v5502, 17
      %vm5585 = vcmp.eq.s32.totalorder %v5503, 17
      %vm5586 = vcmp.eq.s32.totalorder %v5504, 17
      %vm5587 = vcmp.eq.s32.totalorder %v5505, 17
      %vm5588 = vcmp.eq.s32.totalorder %v5506, 17
      %vm5589 = vcmp.eq.s32.totalorder %v5507, 17
      %vm5590 = vcmp.eq.s32.totalorder %v5508, 17
      %vm5591 = vcmp.eq.s32.totalorder %v5509, 17
      %vm5592 = vcmp.eq.s32.totalorder %v5510, 17
      %vm5593 = vcmp.eq.s32.totalorder %v5511, 17
      %vm5594 = vcmp.eq.s32.totalorder %v5512, 17
      %vm5595 = vcmp.eq.s32.totalorder %v5513, 17
      %vm5596 = vcmp.eq.s32.totalorder %v5514, 17
      %vm5597 = vcmp.eq.s32.totalorder %v5515, 17
      %vm5598 = vcmp.eq.s32.totalorder %v5516, 17
      %vm5599 = vcmp.eq.s32.totalorder %v5517, 17
      %vm5600 = vcmp.eq.s32.totalorder %v5518, 17
      %vm5601 = vcmp.eq.s32.totalorder %v5519, 17
      %vm5602 = vcmp.eq.s32.totalorder %v5520, 17
      %vm5603 = vmor %vm5521, %vm5562
      %vm5604 = vmor %vm5522, %vm5563
      %vm5605 = vmor %vm5523, %vm5564
      %vm5606 = vmor %vm5524, %vm5565
      %vm5607 = vmor %vm5525, %vm5566
      %vm5608 = vmor %vm5526, %vm5567
      %vm5609 = vmor %vm5527, %vm5568
      %vm5610 = vmor %vm5528, %vm5569
      %vm5611 = vmor %vm5529, %vm5570
      %vm5612 = vmor %vm5530, %vm5571
      %vm5613 = vmor %vm5531, %vm5572
      %vm5614 = vmor %vm5532, %vm5573
      %vm5615 = vmor %vm5533, %vm5574
      %vm5616 = vmor %vm5534, %vm5575
      %vm5617 = vmor %vm5535, %vm5576
      %vm5618 = vmor %vm5536, %vm5577
      %vm5619 = vmor %vm5537, %vm5578
      %vm5620 = vmor %vm5538, %vm5579
      %vm5621 = vmor %vm5539, %vm5580
      %vm5622 = vmor %vm5540, %vm5581
      %vm5623 = vmor %vm5541, %vm5582
      %vm5624 = vmor %vm5542, %vm5583
      %vm5625 = vmor %vm5543, %vm5584
      %vm5626 = vmor %vm5544, %vm5585
      %vm5627 = vmor %vm5545, %vm5586
      %vm5628 = vmor %vm5546, %vm5587
      %vm5629 = vmor %vm5547, %vm5588
      %vm5630 = vmor %vm5548, %vm5589
      %vm5631 = vmor %vm5549, %vm5590
      %vm5632 = vmor %vm5550, %vm5591
      %vm5633 = vmor %vm5551, %vm5592
      %vm5634 = vmor %vm5552, %vm5593
      %vm5635 = vmor %vm5553, %vm5594
      %vm5636 = vmor %vm5554, %vm5595
      %vm5637 = vmor %vm5555, %vm5596
      %vm5638 = vmor %vm5556, %vm5597
      %vm5639 = vmor %vm5557, %vm5598
      %vm5640 = vmor %vm5558, %vm5599
      %vm5641 = vmor %vm5559, %vm5600
      %vm5642 = vmor %vm5560, %vm5601
      %vm5643 = vmor %vm5561, %vm5602
      %v5644 = vsel %vm5603, 1, 0
      %v5645 = vsel %vm5604, 1, 0
      %v5646 = vsel %vm5605, 1, 0
      %v5647 = vsel %vm5606, 1, 0
      %v5648 = vsel %vm5607, 1, 0
      %v5649 = vsel %vm5608, 1, 0
      %v5650 = vsel %vm5609, 1, 0
      %v5651 = vsel %vm5610, 1, 0
      %v5652 = vsel %vm5611, 1, 0
      %v5653 = vsel %vm5612, 1, 0
      %v5654 = vsel %vm5613, 1, 0
      %v5655 = vsel %vm5614, 1, 0
      %v5656 = vsel %vm5615, 1, 0
      %v5657 = vsel %vm5616, 1, 0
      %v5658 = vsel %vm5617, 1, 0
      %v5659 = vsel %vm5618, 1, 0
      %v5660 = vsel %vm5619, 1, 0
      %v5661 = vsel %vm5620, 1, 0
      %v5662 = vsel %vm5621, 1, 0
      %v5663 = vsel %vm5622, 1, 0
      %v5664 = vsel %vm5623, 1, 0
      %v5665 = vsel %vm5624, 1, 0
      %v5666 = vsel %vm5625, 1, 0
      %v5667 = vsel %vm5626, 1, 0
      %v5668 = vsel %vm5627, 1, 0
      %v5669 = vsel %vm5628, 1, 0
      %v5670 = vsel %vm5629, 1, 0
      %v5671 = vsel %vm5630, 1, 0
      %v5672 = vsel %vm5631, 1, 0
      %v5673 = vsel %vm5632, 1, 0
      %v5674 = vsel %vm5633, 1, 0
      %v5675 = vsel %vm5634, 1, 0
      %v5676 = vsel %vm5635, 1, 0
      %v5677 = vsel %vm5636, 1, 0
      %v5678 = vsel %vm5637, 1, 0
      %v5679 = vsel %vm5638, 1, 0
      %v5680 = vsel %vm5639, 1, 0
      %v5681 = vsel %vm5640, 1, 0
      %v5682 = vsel %vm5641, 1, 0
      %v5683 = vsel %vm5642, 1, 0
      %v5684 = vsel %vm5643, 1, 0
      %vm5685 = vcmp.eq.s32.totalorder %v5644, 1
      %vm5686 = vcmp.eq.s32.totalorder %v5645, 1
      %vm5687 = vcmp.eq.s32.totalorder %v5646, 1
      %vm5688 = vcmp.eq.s32.totalorder %v5647, 1
      %vm5689 = vcmp.eq.s32.totalorder %v5648, 1
      %vm5690 = vcmp.eq.s32.totalorder %v5649, 1
      %vm5691 = vcmp.eq.s32.totalorder %v5650, 1
      %vm5692 = vcmp.eq.s32.totalorder %v5651, 1
      %vm5693 = vcmp.eq.s32.totalorder %v5652, 1
      %vm5694 = vcmp.eq.s32.totalorder %v5653, 1
      %vm5695 = vcmp.eq.s32.totalorder %v5654, 1
      %vm5696 = vcmp.eq.s32.totalorder %v5655, 1
      %vm5697 = vcmp.eq.s32.totalorder %v5656, 1
      %vm5698 = vcmp.eq.s32.totalorder %v5657, 1
      %vm5699 = vcmp.eq.s32.totalorder %v5658, 1
      %vm5700 = vcmp.eq.s32.totalorder %v5659, 1
      %vm5701 = vcmp.eq.s32.totalorder %v5660, 1
      %vm5702 = vcmp.eq.s32.totalorder %v5661, 1
      %vm5703 = vcmp.eq.s32.totalorder %v5662, 1
      %vm5704 = vcmp.eq.s32.totalorder %v5663, 1
      %vm5705 = vcmp.eq.s32.totalorder %v5664, 1
      %vm5706 = vcmp.eq.s32.totalorder %v5665, 1
      %vm5707 = vcmp.eq.s32.totalorder %v5666, 1
      %vm5708 = vcmp.eq.s32.totalorder %v5667, 1
      %vm5709 = vcmp.eq.s32.totalorder %v5668, 1
      %vm5710 = vcmp.eq.s32.totalorder %v5669, 1
      %vm5711 = vcmp.eq.s32.totalorder %v5670, 1
      %vm5712 = vcmp.eq.s32.totalorder %v5671, 1
      %vm5713 = vcmp.eq.s32.totalorder %v5672, 1
      %vm5714 = vcmp.eq.s32.totalorder %v5673, 1
      %vm5715 = vcmp.eq.s32.totalorder %v5674, 1
      %vm5716 = vcmp.eq.s32.totalorder %v5675, 1
      %vm5717 = vcmp.eq.s32.totalorder %v5676, 1
      %vm5718 = vcmp.eq.s32.totalorder %v5677, 1
      %vm5719 = vcmp.eq.s32.totalorder %v5678, 1
      %vm5720 = vcmp.eq.s32.totalorder %v5679, 1
      %vm5721 = vcmp.eq.s32.totalorder %v5680, 1
      %vm5722 = vcmp.eq.s32.totalorder %v5681, 1
      %vm5723 = vcmp.eq.s32.totalorder %v5682, 1
      %vm5724 = vcmp.eq.s32.totalorder %v5683, 1
      %vm5725 = vcmp.eq.s32.totalorder %v5684, 1
      %v5726 = vsel %vm5685, 0.0, %v4782
      %v5727 = vsel %vm5686, 0.0, %v4783
      %v5728 = vsel %vm5687, 0.0, %v4784
      %v5729 = vsel %vm5688, 0.0, %v4785
      %v5730 = vsel %vm5689, 0.0, %v4786
      %v5731 = vsel %vm5690, 0.0, %v4787
      %v5732 = vsel %vm5691, 0.0, %v4788
      %v5733 = vsel %vm5692, 0.0, %v4789
      %v5734 = vsel %vm5693, 0.0, %v4790
      %v5735 = vsel %vm5694, 0.0, %v4791
      %v5736 = vsel %vm5695, 0.0, %v4792
      %v5737 = vsel %vm5696, 0.0, %v4793
      %v5738 = vsel %vm5697, 0.0, %v4794
      %v5739 = vsel %vm5698, 0.0, %v4795
      %v5740 = vsel %vm5699, 0.0, %v4796
      %v5741 = vsel %vm5700, 0.0, %v4797
      %v5742 = vsel %vm5701, 0.0, %v4798
      %v5743 = vsel %vm5702, 0.0, %v4799
      %v5744 = vsel %vm5703, 0.0, %v4800
      %v5745 = vsel %vm5704, 0.0, %v4801
      %v5746 = vsel %vm5705, 0.0, %v4802
      %v5747 = vsel %vm5706, 0.0, %v4803
      %v5748 = vsel %vm5707, 0.0, %v4804
      %v5749 = vsel %vm5708, 0.0, %v4805
      %v5750 = vsel %vm5709, 0.0, %v4806
      %v5751 = vsel %vm5710, 0.0, %v4807
      %v5752 = vsel %vm5711, 0.0, %v4808
      %v5753 = vsel %vm5712, 0.0, %v4809
      %v5754 = vsel %vm5713, 0.0, %v4810
      %v5755 = vsel %vm5714, 0.0, %v4811
      %v5756 = vsel %vm5715, 0.0, %v4812
      %v5757 = vsel %vm5716, 0.0, %v4813
      %v5758 = vsel %vm5717, 0.0, %v4814
      %v5759 = vsel %vm5718, 0.0, %v4815
      %v5760 = vsel %vm5719, 0.0, %v4816
      %v5761 = vsel %vm5720, 0.0, %v4817
      %v5762 = vsel %vm5721, 0.0, %v4818
      %v5763 = vsel %vm5722, 0.0, %v4819
      %v5764 = vsel %vm5723, 0.0, %v4820
      %v5765 = vsel %vm5724, 0.0, %v4821
      %v5766 = vsel %vm5725, 0.0, %v4822
      %v5767 = vpack.c.bf16 %v5727, %v5726
      %v5768 = vpack.c.bf16 %v5729, %v5728
      %v5769 = vpack.c.bf16 %v5731, %v5730
      %v5770 = vpack.c.bf16 %v5733, %v5732
      %v5771 = vpack.c.bf16 %v5735, %v5734
      %v5772 = vpack.c.bf16 %v5737, %v5736
      %v5773 = vpack.c.bf16 %v5739, %v5738
      %v5774 = vpack.c.bf16 %v5741, %v5740
      %v5775 = vpack.c.bf16 %v5743, %v5742
      %v5776 = vpack.c.bf16 %v5745, %v5744
      %v5777 = vpack.c.bf16 %v5747, %v5746
      %v5778 = vpack.c.bf16 %v5749, %v5748
      %v5779 = vpack.c.bf16 %v5751, %v5750
      %v5780 = vpack.c.bf16 %v5753, %v5752
      %v5781 = vpack.c.bf16 %v5755, %v5754
      %v5782 = vpack.c.bf16 %v5757, %v5756
      %v5783 = vpack.c.bf16 %v5759, %v5758
      %v5784 = vpack.c.bf16 %v5761, %v5760
      %v5785 = vpack.c.bf16 %v5763, %v5762
      %v5786 = vpack.c.bf16 %v5765, %v5764
      %v5787 = vpack.c.bf16 %v5766, %v5766
      %v5809 = vunpack.c.l.b16 %v5767
      %v5810 = vunpack.c.h.b16 %v5767
      %v5811 = vunpack.c.l.b16 %v5768
      %v5812 = vunpack.c.h.b16 %v5768
      %v5813 = vunpack.c.l.b16 %v5769
      %v5814 = vunpack.c.h.b16 %v5769
      %v5815 = vunpack.c.l.b16 %v5770
      %v5816 = vunpack.c.h.b16 %v5770
      %v5817 = vunpack.c.l.b16 %v5771
      %v5818 = vunpack.c.h.b16 %v5771
      %v5819 = vunpack.c.l.b16 %v5772
      %v5820 = vunpack.c.h.b16 %v5772
      %v5821 = vunpack.c.l.b16 %v5773
      %v5822 = vunpack.c.h.b16 %v5773
      %v5823 = vunpack.c.l.b16 %v5774
      %v5824 = vunpack.c.h.b16 %v5774
      %v5825 = vunpack.c.l.b16 %v5775
      %v5826 = vunpack.c.h.b16 %v5775
      %v5827 = vunpack.c.l.b16 %v5776
      %v5828 = vunpack.c.h.b16 %v5776
      %v5829 = vunpack.c.l.b16 %v5777
      %v5830 = vunpack.c.h.b16 %v5777
      %v5831 = vunpack.c.l.b16 %v5778
      %v5832 = vunpack.c.h.b16 %v5778
      %v5833 = vunpack.c.l.b16 %v5779
      %v5834 = vunpack.c.h.b16 %v5779
      %v5835 = vunpack.c.l.b16 %v5780
      %v5836 = vunpack.c.h.b16 %v5780
      %v5837 = vunpack.c.l.b16 %v5781
      %v5838 = vunpack.c.h.b16 %v5781
      %v5839 = vunpack.c.l.b16 %v5782
      %v5840 = vunpack.c.h.b16 %v5782
      %v5841 = vunpack.c.l.b16 %v5783
      %v5842 = vunpack.c.h.b16 %v5783
      %v5843 = vunpack.c.l.b16 %v5784
      %v5844 = vunpack.c.h.b16 %v5784
      %v5845 = vunpack.c.l.b16 %v5785
      %v5846 = vunpack.c.h.b16 %v5785
      %v5847 = vunpack.c.l.b16 %v5786
      %v5848 = vunpack.c.h.b16 %v5786
      %v5849 = vunpack.c.l.b16 %v5787
      %v5850 = vpack.c.b16 %v5809, %v5809
      %v5851 = vpack.c.b16 %v5810, %v5810
      %v5852 = vpack.c.b16 %v5811, %v5811
      %v5853 = vpack.c.b16 %v5812, %v5812
      %v5854 = vpack.c.b16 %v5813, %v5813
      %v5855 = vpack.c.b16 %v5814, %v5814
      %v5856 = vpack.c.b16 %v5815, %v5815
      %v5857 = vpack.c.b16 %v5816, %v5816
      %v5858 = vpack.c.b16 %v5817, %v5817
      %v5859 = vpack.c.b16 %v5818, %v5818
      %v5860 = vpack.c.b16 %v5819, %v5819
      %v5861 = vpack.c.b16 %v5820, %v5820
      %v5862 = vpack.c.b16 %v5821, %v5821
      %v5863 = vpack.c.b16 %v5822, %v5822
      %v5864 = vpack.c.b16 %v5823, %v5823
      %v5865 = vpack.c.b16 %v5824, %v5824
      %v5866 = vpack.c.b16 %v5825, %v5825
      %v5867 = vpack.c.b16 %v5826, %v5826
      %v5868 = vpack.c.b16 %v5827, %v5827
      %v5869 = vpack.c.b16 %v5828, %v5828
      %v5870 = vpack.c.b16 %v5829, %v5829
      %v5871 = vpack.c.b16 %v5830, %v5830
      %v5872 = vpack.c.b16 %v5831, %v5831
      %v5873 = vpack.c.b16 %v5832, %v5832
      %v5874 = vpack.c.b16 %v5833, %v5833
      %v5875 = vpack.c.b16 %v5834, %v5834
      %v5876 = vpack.c.b16 %v5835, %v5835
      %v5877 = vpack.c.b16 %v5836, %v5836
      %v5878 = vpack.c.b16 %v5837, %v5837
      %v5879 = vpack.c.b16 %v5838, %v5838
      %v5880 = vpack.c.b16 %v5839, %v5839
      %v5881 = vpack.c.b16 %v5840, %v5840
      %v5882 = vpack.c.b16 %v5841, %v5841
      %v5883 = vpack.c.b16 %v5842, %v5842
      %v5884 = vpack.c.b16 %v5843, %v5843
      %v5885 = vpack.c.b16 %v5844, %v5844
      %v5886 = vpack.c.b16 %v5845, %v5845
      %v5887 = vpack.c.b16 %v5846, %v5846
      %v5888 = vpack.c.b16 %v5847, %v5847
      %v5889 = vpack.c.b16 %v5848, %v5848
      %v5890 = vpack.c.b16 %v5849, %v5849
      %5932 = vst [vmem:[#allocation2 + $0x4] sm:$0xf] %v5850
      %5933 = vst [vmem:[#allocation2 + $0x8] sm:$0xf] %v5851
      %5934 = vst [vmem:[#allocation2 + $0xc] sm:$0xf] %v5852
      %5935 = vst [vmem:[#allocation2 + $0x10] sm:$0xf] %v5853
      %5936 = vst [vmem:[#allocation2 + $0x14] sm:$0xf] %v5854
      %5937 = vst [vmem:[#allocation2 + $0x18] sm:$0xf] %v5855
      %5938 = vst [vmem:[#allocation2 + $0x1c] sm:$0xf] %v5856
      %5939 = vst [vmem:[#allocation2 + $0x20] sm:$0xf] %v5857
      %5940 = vst [vmem:[#allocation2 + $0x24] sm:$0xf] %v5858
      %5941 = vst [vmem:[#allocation2 + $0x28] sm:$0xf] %v5859
      %5942 = vst [vmem:[#allocation2 + $0x2c] sm:$0xf] %v5860
      %5943 = vst [vmem:[#allocation2 + $0x30] sm:$0xf] %v5861
      %5944 = vst [vmem:[#allocation2 + $0x34] sm:$0xf] %v5862
      %5945 = vst [vmem:[#allocation2 + $0x38] sm:$0xf] %v5863
      %5946 = vst [vmem:[#allocation2 + $0x3c] sm:$0xf] %v5864
      %5947 = vst [vmem:[#allocation2 + $0x40] sm:$0xf] %v5865
      %5948 = vst [vmem:[#allocation2 + $0x44] sm:$0xf] %v5866
      %5949 = vst [vmem:[#allocation2 + $0x48] sm:$0xf] %v5867
      %5950 = vst [vmem:[#allocation2 + $0x4c] sm:$0xf] %v5868
      %5951 = vst [vmem:[#allocation2 + $0x50] sm:$0xf] %v5869
      %5952 = vst [vmem:[#allocation2 + $0x54] sm:$0xf] %v5870
      %5953 = vst [vmem:[#allocation2 + $0x58] sm:$0xf] %v5871
      %5954 = vst [vmem:[#allocation2 + $0x5c] sm:$0xf] %v5872
      %5955 = vst [vmem:[#allocation2 + $0x60] sm:$0xf] %v5873
      %5956 = vst [vmem:[#allocation2 + $0x64] sm:$0xf] %v5874
      %5957 = vst [vmem:[#allocation2 + $0x68] sm:$0xf] %v5875
      %5958 = vst [vmem:[#allocation2 + $0x6c] sm:$0xf] %v5876
      %5959 = vst [vmem:[#allocation2 + $0x70] sm:$0xf] %v5877
      %5960 = vst [vmem:[#allocation2 + $0x74] sm:$0xf] %v5878
      %5961 = vst [vmem:[#allocation2 + $0x78] sm:$0xf] %v5879
      %5962 = vst [vmem:[#allocation2 + $0x7c] sm:$0xf] %v5880
      %5963 = vst [vmem:[#allocation2 + $0x80] sm:$0xf] %v5881
      %5964 = vst [vmem:[#allocation2 + $0x84] sm:$0xf] %v5882
      %5965 = vst [vmem:[#allocation2 + $0x88] sm:$0xf] %v5883
      %5966 = vst [vmem:[#allocation2 + $0x8c] sm:$0xf] %v5884
      %5967 = vst [vmem:[#allocation2 + $0x90] sm:$0xf] %v5885
      %5968 = vst [vmem:[#allocation2 + $0x94] sm:$0xf] %v5886
      %5969 = vst [vmem:[#allocation2 + $0x98] sm:$0xf] %v5887
      %5970 = vst [vmem:[#allocation2 + $0x9c] sm:$0xf] %v5888
      %5971 = vst [vmem:[#allocation2 + $0xa0] sm:$0xf] %v5889
      %5972 = vst [vmem:[#allocation2 + $0xa4] sm:$0x3] %v5890
      %p5973 = scmp.eq.s32.totalorder %s23, 0
      // Predicated region
      $region49: #{double_conv.1} parent=47 // pred_check
        %p5974 = pneg %p5973
      $region50: #{double_conv.1} parent=47 // pred_check_branch
        %5976 = sbr.rel (%p5974) target = $region52
      $region51: #{double_conv.1} parent=47 // pred_region
        %5977 = vst [vmem:[#allocation2 + $0x4] sm:$0xf] 0
        %5978 = vst [vmem:[#allocation2 + $0x8] sm:$0xf] 0
        %5979 = vst [vmem:[#allocation2 + $0xc] sm:$0x1] 0
        %5980 = vst [vmem:[#allocation2 + $0x9c] sm:$0xe] 0
        %5981 = vst [vmem:[#allocation2 + $0xa0] sm:$0xf] 0
        %5982 = vst [vmem:[#allocation2 + $0xa4] sm:$0x3] 0
      $region52: #{double_conv.1} parent=47 // pred_fallthru
        _
      %v5983 = vld [vmem:[#allocation2] sm:$0x8]
      %v5984 = vld [vmem:[#allocation2 + $0x4] sm:$0xf]
      %v5985 = vld [vmem:[#allocation2 + $0x8] sm:$0xf]
      %v5986 = vld [vmem:[#allocation2 + $0xc] sm:$0xf]
      %v5987 = vld [vmem:[#allocation2 + $0x10] sm:$0xf]
      %v5988 = vld [vmem:[#allocation2 + $0x14] sm:$0xf]
      %v5989 = vld [vmem:[#allocation2 + $0x18] sm:$0xf]
      %v5990 = vld [vmem:[#allocation2 + $0x1c] sm:$0xf]
      %v5991 = vld [vmem:[#allocation2 + $0x20] sm:$0xf]
      %v5992 = vld [vmem:[#allocation2 + $0x24] sm:$0xf]
      %v5993 = vld [vmem:[#allocation2 + $0x28] sm:$0xf]
      %v5994 = vld [vmem:[#allocation2 + $0x2c] sm:$0xf]
      %v5995 = vld [vmem:[#allocation2 + $0x30] sm:$0xf]
      %v5996 = vld [vmem:[#allocation2 + $0x34] sm:$0xf]
      %v5997 = vld [vmem:[#allocation2 + $0x38] sm:$0xf]
      %v5998 = vld [vmem:[#allocation2 + $0x3c] sm:$0xf]
      %v5999 = vld [vmem:[#allocation2 + $0x40] sm:$0xf]
      %v6000 = vld [vmem:[#allocation2 + $0x44] sm:$0xf]
      %v6001 = vld [vmem:[#allocation2 + $0x48] sm:$0xf]
      %v6002 = vld [vmem:[#allocation2 + $0x4c] sm:$0xf]
      %v6003 = vld [vmem:[#allocation2 + $0x50] sm:$0xf]
      %v6004 = vld [vmem:[#allocation2 + $0x54] sm:$0xf]
      %v6005 = vld [vmem:[#allocation2 + $0x58] sm:$0xf]
      %v6006 = vld [vmem:[#allocation2 + $0x5c] sm:$0xf]
      %v6007 = vld [vmem:[#allocation2 + $0x60] sm:$0xf]
      %v6008 = vld [vmem:[#allocation2 + $0x64] sm:$0xf]
      %v6009 = vld [vmem:[#allocation2 + $0x68] sm:$0xf]
      %v6010 = vld [vmem:[#allocation2 + $0x6c] sm:$0xf]
      %v6011 = vld [vmem:[#allocation2 + $0x70] sm:$0xf]
      %v6012 = vld [vmem:[#allocation2 + $0x74] sm:$0xf]
      %v6013 = vld [vmem:[#allocation2 + $0x78] sm:$0xf]
      %v6014 = vld [vmem:[#allocation2 + $0x7c] sm:$0xf]
      %v6015 = vld [vmem:[#allocation2 + $0x80] sm:$0xf]
      %v6016 = vld [vmem:[#allocation2 + $0x84] sm:$0xf]
      %v6017 = vld [vmem:[#allocation2 + $0x88] sm:$0xf]
      %v6018 = vld [vmem:[#allocation2 + $0x8c] sm:$0xf]
      %v6019 = vld [vmem:[#allocation2 + $0x90] sm:$0xf]
      %v6020 = vld [vmem:[%s4] sm:$0xf]
      %v6021 = vld [vmem:[%s4 + $0x4] sm:$0xf]
      %v6022 = vld [vmem:[%s4 + $0x8] sm:$0xf]
      %v6023 = vld [vmem:[%s4 + $0xc] sm:$0xf]
      %v6024 = vld [vmem:[%s4 + $0x10] sm:$0xf]
      %v6025 = vld [vmem:[%s4 + $0x14] sm:$0xf]
      %v6026 = vld [vmem:[%s4 + $0x18] sm:$0xf]
      %v6027 = vld [vmem:[%s4 + $0x1c] sm:$0xf]
      %v6028 = vld [vmem:[%s4 + $0x20] sm:$0xf]
      %v6029 = vld [vmem:[%s4 + $0x24] sm:$0xf]
      %v6030 = vld [vmem:[%s4 + $0x28] sm:$0xf]
      %v6031 = vld [vmem:[%s4 + $0x2c] sm:$0xf]
      %v6032 = vld [vmem:[%s4 + $0x30] sm:$0xf]
      %v6033 = vld [vmem:[%s4 + $0x34] sm:$0xf]
      %v6034 = vld [vmem:[%s4 + $0x38] sm:$0xf]
      %v6035 = vld [vmem:[%s4 + $0x3c] sm:$0xf]
      %v6036 = vld [vmem:[%s4 + $0x40] sm:$0xf]
      %v6037 = vld [vmem:[%s4 + $0x44] sm:$0xf]
      %v6038 = vld [vmem:[%s4 + $0x48] sm:$0xf]
      %v6039 = vld [vmem:[%s4 + $0x4c] sm:$0xf]
      %v6040 = vld [vmem:[%s4 + $0x50] sm:$0xf]
      %v6041 = vld [vmem:[%s4 + $0x54] sm:$0xf]
      %v6042 = vld [vmem:[%s4 + $0x58] sm:$0xf]
      %v6043 = vld [vmem:[%s4 + $0x5c] sm:$0xf]
      %v6044 = vld [vmem:[%s4 + $0x60] sm:$0xf]
      %v6045 = vld [vmem:[%s4 + $0x64] sm:$0xf]
      %v6046 = vld [vmem:[%s4 + $0x68] sm:$0xf]
      %v6047 = vld [vmem:[%s4 + $0x6c] sm:$0xf]
      %v6048 = vld [vmem:[%s4 + $0x70] sm:$0xf]
      %v6049 = vld [vmem:[%s4 + $0x74] sm:$0xf]
      %v6050 = vld [vmem:[%s4 + $0x78] sm:$0xf]
      %v6051 = vld [vmem:[%s4 + $0x7c] sm:$0xf]
      %v6088 = vunpack.c.l.b16 %v5984
      %v6089 = vunpack.c.l.b16 %v5985
      %v6090 = vunpack.c.l.b16 %v5986
      %v6091 = vunpack.c.l.b16 %v5987
      %v6092 = vunpack.c.l.b16 %v5988
      %v6093 = vunpack.c.l.b16 %v5989
      %v6094 = vunpack.c.l.b16 %v5990
      %v6095 = vunpack.c.l.b16 %v5991
      %v6096 = vunpack.c.l.b16 %v5992
      %v6097 = vunpack.c.l.b16 %v5993
      %v6098 = vunpack.c.l.b16 %v5994
      %v6099 = vunpack.c.l.b16 %v5995
      %v6100 = vunpack.c.l.b16 %v5996
      %v6101 = vunpack.c.l.b16 %v5997
      %v6102 = vunpack.c.l.b16 %v5998
      %v6103 = vunpack.c.l.b16 %v5999
      %v6104 = vunpack.c.l.b16 %v6000
      %v6105 = vunpack.c.l.b16 %v6001
      %v6106 = vunpack.c.l.b16 %v6002
      %v6107 = vunpack.c.l.b16 %v6003
      %v6108 = vunpack.c.l.b16 %v6004
      %v6109 = vunpack.c.l.b16 %v6005
      %v6110 = vunpack.c.l.b16 %v6006
      %v6111 = vunpack.c.l.b16 %v6007
      %v6112 = vunpack.c.l.b16 %v6008
      %v6113 = vunpack.c.l.b16 %v6009
      %v6114 = vunpack.c.l.b16 %v6010
      %v6115 = vunpack.c.l.b16 %v6011
      %v6116 = vunpack.c.l.b16 %v6012
      %v6117 = vunpack.c.l.b16 %v6013
      %v6118 = vunpack.c.l.b16 %v6014
      %v6119 = vunpack.c.l.b16 %v6015
      %v6120 = vunpack.c.l.b16 %v6016
      %v6121 = vunpack.c.l.b16 %v6017
      %v6122 = vunpack.c.l.b16 %v6018
      %v6123 = vunpack.c.l.b16 %v6019
      %v6124 = vpack.c.b16 %v6089, %v6088
      %v6125 = vpack.c.b16 %v6091, %v6090
      %v6126 = vpack.c.b16 %v6093, %v6092
      %v6127 = vpack.c.b16 %v6095, %v6094
      %v6128 = vpack.c.b16 %v6097, %v6096
      %v6129 = vpack.c.b16 %v6099, %v6098
      %v6130 = vpack.c.b16 %v6101, %v6100
      %v6131 = vpack.c.b16 %v6103, %v6102
      %v6132 = vpack.c.b16 %v6105, %v6104
      %v6133 = vpack.c.b16 %v6107, %v6106
      %v6134 = vpack.c.b16 %v6109, %v6108
      %v6135 = vpack.c.b16 %v6111, %v6110
      %v6136 = vpack.c.b16 %v6113, %v6112
      %v6137 = vpack.c.b16 %v6115, %v6114
      %v6138 = vpack.c.b16 %v6117, %v6116
      %v6139 = vpack.c.b16 %v6119, %v6118
      %v6140 = vpack.c.b16 %v6121, %v6120
      %v6141 = vpack.c.b16 %v6123, %v6122
      %v6176 = vunpack.c.l.b16 %v6036
      %v6177 = vunpack.c.l.b16 %v6037
      %v6178 = vunpack.c.l.b16 %v6038
      %v6179 = vunpack.c.l.b16 %v6039
      %v6180 = vunpack.c.l.b16 %v6040
      %v6181 = vunpack.c.l.b16 %v6041
      %v6182 = vunpack.c.l.b16 %v6042
      %v6183 = vunpack.c.l.b16 %v6043
      %v6184 = vunpack.c.l.b16 %v6044
      %v6185 = vunpack.c.l.b16 %v6045
      %v6186 = vunpack.c.l.b16 %v6046
      %v6187 = vunpack.c.l.b16 %v6047
      %v6188 = vunpack.c.l.b16 %v6048
      %v6189 = vunpack.c.l.b16 %v6049
      %v6190 = vunpack.c.l.b16 %v6050
      %v6191 = vunpack.c.l.b16 %v6051
      %v6192 = vpack.c.b16 %v6177, %v6176
      %v6193 = vpack.c.b16 %v6179, %v6178
      %v6194 = vpack.c.b16 %v6181, %v6180
      %v6195 = vpack.c.b16 %v6183, %v6182
      %v6196 = vpack.c.b16 %v6185, %v6184
      %v6197 = vpack.c.b16 %v6187, %v6186
      %v6198 = vpack.c.b16 %v6189, %v6188
      %v6199 = vpack.c.b16 %v6191, %v6190
      %6208 = vmatprep.subr.bf16.mxu0 0
      %6209 = vmatpush1.bf16.msra.mxu0 %v6199
      %6210 = vmatprep.subr.bf16.mxu0 0
      %6211 = vmatpush1.bf16.msra.mxu0 %v6198
      %6212 = vmatprep.subr.bf16.mxu0 0
      %6213 = vmatpush1.bf16.msra.mxu0 %v6197
      %6214 = vmatprep.subr.bf16.mxu0 0
      %6215 = vmatpush1.bf16.msra.mxu0 %v6196
      %6216 = vmatprep.subr.bf16.mxu0 0
      %6217 = vmatpush1.bf16.msra.mxu0 %v6195
      %6218 = vmatprep.subr.bf16.mxu0 0
      %6219 = vmatpush1.bf16.msra.mxu0 %v6194
      %6220 = vmatprep.subr.bf16.mxu0 0
      %6221 = vmatpush1.bf16.msra.mxu0 %v6193
      %6222 = vmatprep.subr.bf16.mxu0 0
      %6223 = vmatpush1.bf16.msra.mxu0 %v6192
      %6224 = vmatprep.subr.bf16.mxu0 0
      %6225 = vmatpush2.bf16.msra.mxu0 0
      %6226 = vmatprep.subr.bf16.mxu0 0
      %6227 = vmatpush2.bf16.msra.mxu0 0
      %6228 = vmatprep.subr.bf16.mxu0 0
      %6229 = vmatpush2.bf16.msra.mxu0 0
      %6230 = vmatprep.subr.bf16.mxu0 0
      %6231 = vmatpush2.bf16.msra.mxu0 0
      %6232 = vmatprep.subr.bf16.mxu0 0
      %6233 = vmatpush2.bf16.msra.mxu0 0
      %6234 = vmatprep.subr.bf16.mxu0 0
      %6235 = vmatpush2.bf16.msra.mxu0 0
      %6236 = vmatprep.subr.bf16.mxu0 0
      %6237 = vmatpush2.bf16.msra.mxu0 0
      %6238 = vmatprep.subr.bf16.mxu0 0
      %6239 = vmatpush2.bf16.msra.mxu0 0
      %6240 = vmatprep.mubr.bf16.mxu0 0
      %6241 = vmatmul.mubr.bf16.gmra.mxu0 %v6124
      %v6242 = vpop.f32.mrf.mxu0
      %v6243 = vadd.f32 0.0, %v6242
      %v6244 = vpop.f32.mrf.mxu0
      %v6245 = vpop.f32.mrf.mxu0
      %v6246 = vadd.f32 0.0, %v6245
      %v6247 = vpop.f32.mrf.mxu0
      %6248 = vmatprep.mubr.bf16.mxu0 0
      %6249 = vmatmul.mubr.bf16.gmra.mxu0 %v6125
      %v6250 = vpop.f32.mrf.mxu0
      %v6251 = vadd.f32 0.0, %v6250
      %v6252 = vpop.f32.mrf.mxu0
      %v6253 = vpop.f32.mrf.mxu0
      %v6254 = vadd.f32 0.0, %v6253
      %v6255 = vpop.f32.mrf.mxu0
      %6256 = vmatprep.mubr.bf16.mxu0 0
      %6257 = vmatmul.mubr.bf16.gmra.mxu0 %v6126
      %v6258 = vpop.f32.mrf.mxu0
      %v6259 = vadd.f32 0.0, %v6258
      %v6260 = vpop.f32.mrf.mxu0
      %v6261 = vpop.f32.mrf.mxu0
      %v6262 = vadd.f32 0.0, %v6261
      %v6263 = vpop.f32.mrf.mxu0
      %6264 = vmatprep.mubr.bf16.mxu0 0
      %6265 = vmatmul.mubr.bf16.gmra.mxu0 %v6127
      %v6266 = vpop.f32.mrf.mxu0
      %v6267 = vadd.f32 0.0, %v6266
      %v6268 = vpop.f32.mrf.mxu0
      %v6269 = vpop.f32.mrf.mxu0
      %v6270 = vadd.f32 0.0, %v6269
      %v6271 = vpop.f32.mrf.mxu0
      %6272 = vmatprep.mubr.bf16.mxu0 0
      %6273 = vmatmul.mubr.bf16.gmra.mxu0 %v6128
      %v6274 = vpop.f32.mrf.mxu0
      %v6275 = vadd.f32 0.0, %v6274
      %v6276 = vpop.f32.mrf.mxu0
      %v6277 = vpop.f32.mrf.mxu0
      %v6278 = vadd.f32 0.0, %v6277
      %v6279 = vpop.f32.mrf.mxu0
      %6280 = vmatprep.mubr.bf16.mxu0 0
      %6281 = vmatmul.mubr.bf16.gmra.mxu0 %v6129
      %v6282 = vpop.f32.mrf.mxu0
      %v6283 = vadd.f32 0.0, %v6282
      %v6284 = vpop.f32.mrf.mxu0
      %v6285 = vpop.f32.mrf.mxu0
      %v6286 = vadd.f32 0.0, %v6285
      %v6287 = vpop.f32.mrf.mxu0
      %6288 = vmatprep.mubr.bf16.mxu0 0
      %6289 = vmatmul.mubr.bf16.gmra.mxu0 %v6130
      %v6290 = vpop.f32.mrf.mxu0
      %v6291 = vadd.f32 0.0, %v6290
      %v6292 = vpop.f32.mrf.mxu0
      %v6293 = vpop.f32.mrf.mxu0
      %v6294 = vadd.f32 0.0, %v6293
      %v6295 = vpop.f32.mrf.mxu0
      %6296 = vmatprep.mubr.bf16.mxu0 0
      %6297 = vmatmul.mubr.bf16.gmra.mxu0 %v6131
      %v6298 = vpop.f32.mrf.mxu0
      %v6299 = vadd.f32 0.0, %v6298
      %v6300 = vpop.f32.mrf.mxu0
      %v6301 = vpop.f32.mrf.mxu0
      %v6302 = vadd.f32 0.0, %v6301
      %v6303 = vpop.f32.mrf.mxu0
      %6304 = vmatprep.mubr.bf16.mxu0 0
      %6305 = vmatmul.mubr.bf16.gmra.mxu0 %v6132
      %v6306 = vpop.f32.mrf.mxu0
      %v6307 = vadd.f32 0.0, %v6306
      %v6308 = vpop.f32.mrf.mxu0
      %v6309 = vpop.f32.mrf.mxu0
      %v6310 = vadd.f32 0.0, %v6309
      %v6311 = vpop.f32.mrf.mxu0
      %6312 = vmatprep.mubr.bf16.mxu0 0
      %6313 = vmatmul.mubr.bf16.gmra.mxu0 %v6133
      %v6314 = vpop.f32.mrf.mxu0
      %v6315 = vadd.f32 0.0, %v6314
      %v6316 = vpop.f32.mrf.mxu0
      %v6317 = vpop.f32.mrf.mxu0
      %v6318 = vadd.f32 0.0, %v6317
      %v6319 = vpop.f32.mrf.mxu0
      %6320 = vmatprep.mubr.bf16.mxu0 0
      %6321 = vmatmul.mubr.bf16.gmra.mxu0 %v6134
      %v6322 = vpop.f32.mrf.mxu0
      %v6323 = vadd.f32 0.0, %v6322
      %v6324 = vpop.f32.mrf.mxu0
      %v6325 = vpop.f32.mrf.mxu0
      %v6326 = vadd.f32 0.0, %v6325
      %v6327 = vpop.f32.mrf.mxu0
      %6328 = vmatprep.mubr.bf16.mxu0 0
      %6329 = vmatmul.mubr.bf16.gmra.mxu0 %v6135
      %v6330 = vpop.f32.mrf.mxu0
      %v6331 = vadd.f32 0.0, %v6330
      %v6332 = vpop.f32.mrf.mxu0
      %v6333 = vpop.f32.mrf.mxu0
      %v6334 = vadd.f32 0.0, %v6333
      %v6335 = vpop.f32.mrf.mxu0
      %6336 = vmatprep.mubr.bf16.mxu0 0
      %6337 = vmatmul.mubr.bf16.gmra.mxu0 %v6136
      %v6338 = vpop.f32.mrf.mxu0
      %v6339 = vadd.f32 0.0, %v6338
      %v6340 = vpop.f32.mrf.mxu0
      %v6341 = vpop.f32.mrf.mxu0
      %v6342 = vadd.f32 0.0, %v6341
      %v6343 = vpop.f32.mrf.mxu0
      %6344 = vmatprep.mubr.bf16.mxu0 0
      %6345 = vmatmul.mubr.bf16.gmra.mxu0 %v6137
      %v6346 = vpop.f32.mrf.mxu0
      %v6347 = vadd.f32 0.0, %v6346
      %v6348 = vpop.f32.mrf.mxu0
      %v6349 = vpop.f32.mrf.mxu0
      %v6350 = vadd.f32 0.0, %v6349
      %v6351 = vpop.f32.mrf.mxu0
      %6352 = vmatprep.mubr.bf16.mxu0 0
      %6353 = vmatmul.mubr.bf16.gmra.mxu0 %v6138
      %v6354 = vpop.f32.mrf.mxu0
      %v6355 = vadd.f32 0.0, %v6354
      %v6356 = vpop.f32.mrf.mxu0
      %v6357 = vpop.f32.mrf.mxu0
      %v6358 = vadd.f32 0.0, %v6357
      %v6359 = vpop.f32.mrf.mxu0
      %6360 = vmatprep.mubr.bf16.mxu0 0
      %6361 = vmatmul.mubr.bf16.gmra.mxu0 %v6139
      %v6362 = vpop.f32.mrf.mxu0
      %v6363 = vadd.f32 0.0, %v6362
      %v6364 = vpop.f32.mrf.mxu0
      %v6365 = vpop.f32.mrf.mxu0
      %v6366 = vadd.f32 0.0, %v6365
      %v6367 = vpop.f32.mrf.mxu0
      %6368 = vmatprep.mubr.bf16.mxu0 0
      %6369 = vmatmul.mubr.bf16.gmra.mxu0 %v6140
      %v6370 = vpop.f32.mrf.mxu0
      %v6371 = vadd.f32 0.0, %v6370
      %v6372 = vpop.f32.mrf.mxu0
      %v6373 = vpop.f32.mrf.mxu0
      %v6374 = vadd.f32 0.0, %v6373
      %v6375 = vpop.f32.mrf.mxu0
      %6376 = vmatprep.mubr.bf16.mxu0 0
      %6377 = vmatmul.mubr.bf16.gmra.mxu0 %v6141
      %v6378 = vpop.f32.mrf.mxu0
      %v6379 = vadd.f32 0.0, %v6378
      %v6380 = vpop.f32.mrf.mxu0
      %v6381 = vpop.f32.mrf.mxu0
      %v6382 = vadd.f32 0.0, %v6381
      %v6383 = vpop.f32.mrf.mxu0
      %6384 = vdwg.mxu0
      %v6386 = vunpack.c.l.b16 %v5983
      %v6387 = vpack.c.b16 %v6088, %v6386
      %v6388 = vpack.c.b16 %v6090, %v6089
      %v6389 = vpack.c.b16 %v6092, %v6091
      %v6390 = vpack.c.b16 %v6094, %v6093
      %v6391 = vpack.c.b16 %v6096, %v6095
      %v6392 = vpack.c.b16 %v6098, %v6097
      %v6393 = vpack.c.b16 %v6100, %v6099
      %v6394 = vpack.c.b16 %v6102, %v6101
      %v6395 = vpack.c.b16 %v6104, %v6103
      %v6396 = vpack.c.b16 %v6106, %v6105
      %v6397 = vpack.c.b16 %v6108, %v6107
      %v6398 = vpack.c.b16 %v6110, %v6109
      %v6399 = vpack.c.b16 %v6112, %v6111
      %v6400 = vpack.c.b16 %v6114, %v6113
      %v6401 = vpack.c.b16 %v6116, %v6115
      %v6402 = vpack.c.b16 %v6118, %v6117
      %v6403 = vpack.c.b16 %v6120, %v6119
      %v6404 = vpack.c.b16 %v6122, %v6121
      %v6405 = vpack.c.b16 %v6123, %v6123
      %v6407 = vshrl.u32 %v6387, 16
      %v6409 = vrot.slane %v6407, 3
      %v6410 = vshll.u32 %v6387, 16
      %v6412 = vrot.slane %v6410, 4
      %v6413 = vor.u32 %v6409, %v6412
      %v6415 = vshrl.u32 %v6388, 16
      %v6417 = vrot.slane %v6415, 3
      %v6418 = vshll.u32 %v6388, 16
      %v6420 = vrot.slane %v6418, 4
      %v6421 = vor.u32 %v6417, %v6420
      %v6422 = vsel %vm754, %v6413, %v6421
      %v6424 = vshrl.u32 %v6389, 16
      %v6426 = vrot.slane %v6424, 3
      %v6427 = vshll.u32 %v6389, 16
      %v6429 = vrot.slane %v6427, 4
      %v6430 = vor.u32 %v6426, %v6429
      %v6431 = vsel %vm754, %v6421, %v6430
      %v6433 = vshrl.u32 %v6390, 16
      %v6435 = vrot.slane %v6433, 3
      %v6436 = vshll.u32 %v6390, 16
      %v6438 = vrot.slane %v6436, 4
      %v6439 = vor.u32 %v6435, %v6438
      %v6440 = vsel %vm754, %v6430, %v6439
      %v6442 = vshrl.u32 %v6391, 16
      %v6444 = vrot.slane %v6442, 3
      %v6445 = vshll.u32 %v6391, 16
      %v6447 = vrot.slane %v6445, 4
      %v6448 = vor.u32 %v6444, %v6447
      %v6449 = vsel %vm754, %v6439, %v6448
      %v6451 = vshrl.u32 %v6392, 16
      %v6453 = vrot.slane %v6451, 3
      %v6454 = vshll.u32 %v6392, 16
      %v6456 = vrot.slane %v6454, 4
      %v6457 = vor.u32 %v6453, %v6456
      %v6458 = vsel %vm754, %v6448, %v6457
      %v6460 = vshrl.u32 %v6393, 16
      %v6462 = vrot.slane %v6460, 3
      %v6463 = vshll.u32 %v6393, 16
      %v6465 = vrot.slane %v6463, 4
      %v6466 = vor.u32 %v6462, %v6465
      %v6467 = vsel %vm754, %v6457, %v6466
      %v6469 = vshrl.u32 %v6394, 16
      %v6471 = vrot.slane %v6469, 3
      %v6472 = vshll.u32 %v6394, 16
      %v6474 = vrot.slane %v6472, 4
      %v6475 = vor.u32 %v6471, %v6474
      %v6476 = vsel %vm754, %v6466, %v6475
      %v6478 = vshrl.u32 %v6395, 16
      %v6480 = vrot.slane %v6478, 3
      %v6481 = vshll.u32 %v6395, 16
      %v6483 = vrot.slane %v6481, 4
      %v6484 = vor.u32 %v6480, %v6483
      %v6485 = vsel %vm754, %v6475, %v6484
      %v6487 = vshrl.u32 %v6396, 16
      %v6489 = vrot.slane %v6487, 3
      %v6490 = vshll.u32 %v6396, 16
      %v6492 = vrot.slane %v6490, 4
      %v6493 = vor.u32 %v6489, %v6492
      %v6494 = vsel %vm754, %v6484, %v6493
      %v6496 = vshrl.u32 %v6397, 16
      %v6498 = vrot.slane %v6496, 3
      %v6499 = vshll.u32 %v6397, 16
      %v6501 = vrot.slane %v6499, 4
      %v6502 = vor.u32 %v6498, %v6501
      %v6503 = vsel %vm754, %v6493, %v6502
      %v6505 = vshrl.u32 %v6398, 16
      %v6507 = vrot.slane %v6505, 3
      %v6508 = vshll.u32 %v6398, 16
      %v6510 = vrot.slane %v6508, 4
      %v6511 = vor.u32 %v6507, %v6510
      %v6512 = vsel %vm754, %v6502, %v6511
      %v6514 = vshrl.u32 %v6399, 16
      %v6516 = vrot.slane %v6514, 3
      %v6517 = vshll.u32 %v6399, 16
      %v6519 = vrot.slane %v6517, 4
      %v6520 = vor.u32 %v6516, %v6519
      %v6521 = vsel %vm754, %v6511, %v6520
      %v6523 = vshrl.u32 %v6400, 16
      %v6525 = vrot.slane %v6523, 3
      %v6526 = vshll.u32 %v6400, 16
      %v6528 = vrot.slane %v6526, 4
      %v6529 = vor.u32 %v6525, %v6528
      %v6530 = vsel %vm754, %v6520, %v6529
      %v6532 = vshrl.u32 %v6401, 16
      %v6534 = vrot.slane %v6532, 3
      %v6535 = vshll.u32 %v6401, 16
      %v6537 = vrot.slane %v6535, 4
      %v6538 = vor.u32 %v6534, %v6537
      %v6539 = vsel %vm754, %v6529, %v6538
      %v6541 = vshrl.u32 %v6402, 16
      %v6543 = vrot.slane %v6541, 3
      %v6544 = vshll.u32 %v6402, 16
      %v6546 = vrot.slane %v6544, 4
      %v6547 = vor.u32 %v6543, %v6546
      %v6548 = vsel %vm754, %v6538, %v6547
      %v6550 = vshrl.u32 %v6403, 16
      %v6552 = vrot.slane %v6550, 3
      %v6553 = vshll.u32 %v6403, 16
      %v6555 = vrot.slane %v6553, 4
      %v6556 = vor.u32 %v6552, %v6555
      %v6557 = vsel %vm754, %v6547, %v6556
      %v6559 = vshrl.u32 %v6404, 16
      %v6561 = vrot.slane %v6559, 3
      %v6562 = vshll.u32 %v6404, 16
      %v6564 = vrot.slane %v6562, 4
      %v6565 = vor.u32 %v6561, %v6564
      %v6566 = vsel %vm754, %v6556, %v6565
      %v6568 = vshrl.u32 %v6405, 16
      %v6570 = vrot.slane %v6568, 3
      %v6571 = vshll.u32 %v6405, 16
      %v6573 = vrot.slane %v6571, 4
      %v6574 = vor.u32 %v6570, %v6573
      %v6575 = vsel %vm754, %v6565, %v6574
      %v6610 = vunpack.c.l.b16 %v6020
      %v6611 = vunpack.c.l.b16 %v6021
      %v6612 = vunpack.c.l.b16 %v6022
      %v6613 = vunpack.c.l.b16 %v6023
      %v6614 = vunpack.c.l.b16 %v6024
      %v6615 = vunpack.c.l.b16 %v6025
      %v6616 = vunpack.c.l.b16 %v6026
      %v6617 = vunpack.c.l.b16 %v6027
      %v6618 = vunpack.c.l.b16 %v6028
      %v6619 = vunpack.c.l.b16 %v6029
      %v6620 = vunpack.c.l.b16 %v6030
      %v6621 = vunpack.c.l.b16 %v6031
      %v6622 = vunpack.c.l.b16 %v6032
      %v6623 = vunpack.c.l.b16 %v6033
      %v6624 = vunpack.c.l.b16 %v6034
      %v6625 = vunpack.c.l.b16 %v6035
      %v6626 = vpack.c.b16 %v6611, %v6610
      %v6627 = vpack.c.b16 %v6613, %v6612
      %v6628 = vpack.c.b16 %v6615, %v6614
      %v6629 = vpack.c.b16 %v6617, %v6616
      %v6630 = vpack.c.b16 %v6619, %v6618
      %v6631 = vpack.c.b16 %v6621, %v6620
      %v6632 = vpack.c.b16 %v6623, %v6622
      %v6633 = vpack.c.b16 %v6625, %v6624
      %6642 = vmatprep.subr.bf16.mxu0 0
      %6643 = vmatpush1.bf16.msra.mxu0 %v6633
      %6644 = vmatprep.subr.bf16.mxu0 0
      %6645 = vmatpush1.bf16.msra.mxu0 %v6632
      %6646 = vmatprep.subr.bf16.mxu0 0
      %6647 = vmatpush1.bf16.msra.mxu0 %v6631
      %6648 = vmatprep.subr.bf16.mxu0 0
      %6649 = vmatpush1.bf16.msra.mxu0 %v6630
      %6650 = vmatprep.subr.bf16.mxu0 0
      %6651 = vmatpush1.bf16.msra.mxu0 %v6629
      %6652 = vmatprep.subr.bf16.mxu0 0
      %6653 = vmatpush1.bf16.msra.mxu0 %v6628
      %6654 = vmatprep.subr.bf16.mxu0 0
      %6655 = vmatpush1.bf16.msra.mxu0 %v6627
      %6656 = vmatprep.subr.bf16.mxu0 0
      %6657 = vmatpush1.bf16.msra.mxu0 %v6626
      %6658 = vmatprep.subr.bf16.mxu0 0
      %6659 = vmatpush2.bf16.msra.mxu0 0
      %6660 = vmatprep.subr.bf16.mxu0 0
      %6661 = vmatpush2.bf16.msra.mxu0 0
      %6662 = vmatprep.subr.bf16.mxu0 0
      %6663 = vmatpush2.bf16.msra.mxu0 0
      %6664 = vmatprep.subr.bf16.mxu0 0
      %6665 = vmatpush2.bf16.msra.mxu0 0
      %6666 = vmatprep.subr.bf16.mxu0 0
      %6667 = vmatpush2.bf16.msra.mxu0 0
      %6668 = vmatprep.subr.bf16.mxu0 0
      %6669 = vmatpush2.bf16.msra.mxu0 0
      %6670 = vmatprep.subr.bf16.mxu0 0
      %6671 = vmatpush2.bf16.msra.mxu0 0
      %6672 = vmatprep.subr.bf16.mxu0 0
      %6673 = vmatpush2.bf16.msra.mxu0 0
      %6674 = vmatprep.mubr.bf16.mxu0 0
      %6675 = vmatmul.mubr.bf16.gmra.mxu0 %v6422
      %v6676 = vpop.f32.mrf.mxu0
      %v6677 = vadd.f32 %v6243, %v6676
      %v6678 = vpop.f32.mrf.mxu0
      %v6679 = vpop.f32.mrf.mxu0
      %v6680 = vadd.f32 %v6246, %v6679
      %v6681 = vpop.f32.mrf.mxu0
      %6682 = vmatprep.mubr.bf16.mxu0 0
      %6683 = vmatmul.mubr.bf16.gmra.mxu0 %v6431
      %v6684 = vpop.f32.mrf.mxu0
      %v6685 = vadd.f32 %v6251, %v6684
      %v6686 = vpop.f32.mrf.mxu0
      %v6687 = vpop.f32.mrf.mxu0
      %v6688 = vadd.f32 %v6254, %v6687
      %v6689 = vpop.f32.mrf.mxu0
      %6690 = vmatprep.mubr.bf16.mxu0 0
      %6691 = vmatmul.mubr.bf16.gmra.mxu0 %v6440
      %v6692 = vpop.f32.mrf.mxu0
      %v6693 = vadd.f32 %v6259, %v6692
      %v6694 = vpop.f32.mrf.mxu0
      %v6695 = vpop.f32.mrf.mxu0
      %v6696 = vadd.f32 %v6262, %v6695
      %v6697 = vpop.f32.mrf.mxu0
      %6698 = vmatprep.mubr.bf16.mxu0 0
      %6699 = vmatmul.mubr.bf16.gmra.mxu0 %v6449
      %v6700 = vpop.f32.mrf.mxu0
      %v6701 = vadd.f32 %v6267, %v6700
      %v6702 = vpop.f32.mrf.mxu0
      %v6703 = vpop.f32.mrf.mxu0
      %v6704 = vadd.f32 %v6270, %v6703
      %v6705 = vpop.f32.mrf.mxu0
      %6706 = vmatprep.mubr.bf16.mxu0 0
      %6707 = vmatmul.mubr.bf16.gmra.mxu0 %v6458
      %v6708 = vpop.f32.mrf.mxu0
      %v6709 = vadd.f32 %v6275, %v6708
      %v6710 = vpop.f32.mrf.mxu0
      %v6711 = vpop.f32.mrf.mxu0
      %v6712 = vadd.f32 %v6278, %v6711
      %v6713 = vpop.f32.mrf.mxu0
      %6714 = vmatprep.mubr.bf16.mxu0 0
      %6715 = vmatmul.mubr.bf16.gmra.mxu0 %v6467
      %v6716 = vpop.f32.mrf.mxu0
      %v6717 = vadd.f32 %v6283, %v6716
      %v6718 = vpop.f32.mrf.mxu0
      %v6719 = vpop.f32.mrf.mxu0
      %v6720 = vadd.f32 %v6286, %v6719
      %v6721 = vpop.f32.mrf.mxu0
      %6722 = vmatprep.mubr.bf16.mxu0 0
      %6723 = vmatmul.mubr.bf16.gmra.mxu0 %v6476
      %v6724 = vpop.f32.mrf.mxu0
      %v6725 = vadd.f32 %v6291, %v6724
      %v6726 = vpop.f32.mrf.mxu0
      %v6727 = vpop.f32.mrf.mxu0
      %v6728 = vadd.f32 %v6294, %v6727
      %v6729 = vpop.f32.mrf.mxu0
      %6730 = vmatprep.mubr.bf16.mxu0 0
      %6731 = vmatmul.mubr.bf16.gmra.mxu0 %v6485
      %v6732 = vpop.f32.mrf.mxu0
      %v6733 = vadd.f32 %v6299, %v6732
      %v6734 = vpop.f32.mrf.mxu0
      %v6735 = vpop.f32.mrf.mxu0
      %v6736 = vadd.f32 %v6302, %v6735
      %v6737 = vpop.f32.mrf.mxu0
      %6738 = vmatprep.mubr.bf16.mxu0 0
      %6739 = vmatmul.mubr.bf16.gmra.mxu0 %v6494
      %v6740 = vpop.f32.mrf.mxu0
      %v6741 = vadd.f32 %v6307, %v6740
      %v6742 = vpop.f32.mrf.mxu0
      %v6743 = vpop.f32.mrf.mxu0
      %v6744 = vadd.f32 %v6310, %v6743
      %v6745 = vpop.f32.mrf.mxu0
      %6746 = vmatprep.mubr.bf16.mxu0 0
      %6747 = vmatmul.mubr.bf16.gmra.mxu0 %v6503
      %v6748 = vpop.f32.mrf.mxu0
      %v6749 = vadd.f32 %v6315, %v6748
      %v6750 = vpop.f32.mrf.mxu0
      %v6751 = vpop.f32.mrf.mxu0
      %v6752 = vadd.f32 %v6318, %v6751
      %v6753 = vpop.f32.mrf.mxu0
      %6754 = vmatprep.mubr.bf16.mxu0 0
      %6755 = vmatmul.mubr.bf16.gmra.mxu0 %v6512
      %v6756 = vpop.f32.mrf.mxu0
      %v6757 = vadd.f32 %v6323, %v6756
      %v6758 = vpop.f32.mrf.mxu0
      %v6759 = vpop.f32.mrf.mxu0
      %v6760 = vadd.f32 %v6326, %v6759
      %v6761 = vpop.f32.mrf.mxu0
      %6762 = vmatprep.mubr.bf16.mxu0 0
      %6763 = vmatmul.mubr.bf16.gmra.mxu0 %v6521
      %v6764 = vpop.f32.mrf.mxu0
      %v6765 = vadd.f32 %v6331, %v6764
      %v6766 = vpop.f32.mrf.mxu0
      %v6767 = vpop.f32.mrf.mxu0
      %v6768 = vadd.f32 %v6334, %v6767
      %v6769 = vpop.f32.mrf.mxu0
      %6770 = vmatprep.mubr.bf16.mxu0 0
      %6771 = vmatmul.mubr.bf16.gmra.mxu0 %v6530
      %v6772 = vpop.f32.mrf.mxu0
      %v6773 = vadd.f32 %v6339, %v6772
      %v6774 = vpop.f32.mrf.mxu0
      %v6775 = vpop.f32.mrf.mxu0
      %v6776 = vadd.f32 %v6342, %v6775
      %v6777 = vpop.f32.mrf.mxu0
      %6778 = vmatprep.mubr.bf16.mxu0 0
      %6779 = vmatmul.mubr.bf16.gmra.mxu0 %v6539
      %v6780 = vpop.f32.mrf.mxu0
      %v6781 = vadd.f32 %v6347, %v6780
      %v6782 = vpop.f32.mrf.mxu0
      %v6783 = vpop.f32.mrf.mxu0
      %v6784 = vadd.f32 %v6350, %v6783
      %v6785 = vpop.f32.mrf.mxu0
      %6786 = vmatprep.mubr.bf16.mxu0 0
      %6787 = vmatmul.mubr.bf16.gmra.mxu0 %v6548
      %v6788 = vpop.f32.mrf.mxu0
      %v6789 = vadd.f32 %v6355, %v6788
      %v6790 = vpop.f32.mrf.mxu0
      %v6791 = vpop.f32.mrf.mxu0
      %v6792 = vadd.f32 %v6358, %v6791
      %v6793 = vpop.f32.mrf.mxu0
      %6794 = vmatprep.mubr.bf16.mxu0 0
      %6795 = vmatmul.mubr.bf16.gmra.mxu0 %v6557
      %v6796 = vpop.f32.mrf.mxu0
      %v6797 = vadd.f32 %v6363, %v6796
      %v6798 = vpop.f32.mrf.mxu0
      %v6799 = vpop.f32.mrf.mxu0
      %v6800 = vadd.f32 %v6366, %v6799
      %v6801 = vpop.f32.mrf.mxu0
      %6802 = vmatprep.mubr.bf16.mxu0 0
      %6803 = vmatmul.mubr.bf16.gmra.mxu0 %v6566
      %v6804 = vpop.f32.mrf.mxu0
      %v6805 = vadd.f32 %v6371, %v6804
      %v6806 = vpop.f32.mrf.mxu0
      %v6807 = vpop.f32.mrf.mxu0
      %v6808 = vadd.f32 %v6374, %v6807
      %v6809 = vpop.f32.mrf.mxu0
      %6810 = vmatprep.mubr.bf16.mxu0 0
      %6811 = vmatmul.mubr.bf16.gmra.mxu0 %v6575
      %v6812 = vpop.f32.mrf.mxu0
      %v6813 = vadd.f32 %v6379, %v6812
      %v6814 = vpop.f32.mrf.mxu0
      %v6815 = vpop.f32.mrf.mxu0
      %v6816 = vadd.f32 %v6382, %v6815
      %v6817 = vpop.f32.mrf.mxu0
      %6818 = vdwg.mxu0
      %v6819 = vld [vmem:[#allocation2 + $0x4] sm:$0xf]
      %v6820 = vld [vmem:[#allocation2 + $0x8] sm:$0xf]
      %v6821 = vld [vmem:[#allocation2 + $0xc] sm:$0xf]
      %v6822 = vld [vmem:[#allocation2 + $0x10] sm:$0xf]
      %v6823 = vld [vmem:[#allocation2 + $0x14] sm:$0xf]
      %v6824 = vld [vmem:[#allocation2 + $0x18] sm:$0xf]
      %v6825 = vld [vmem:[#allocation2 + $0x1c] sm:$0xf]
      %v6826 = vld [vmem:[#allocation2 + $0x20] sm:$0xf]
      %v6827 = vld [vmem:[#allocation2 + $0x24] sm:$0xf]
      %v6828 = vld [vmem:[#allocation2 + $0x28] sm:$0xf]
      %v6829 = vld [vmem:[#allocation2 + $0x2c] sm:$0xf]
      %v6830 = vld [vmem:[#allocation2 + $0x30] sm:$0xf]
      %v6831 = vld [vmem:[#allocation2 + $0x34] sm:$0xf]
      %v6832 = vld [vmem:[#allocation2 + $0x38] sm:$0xf]
      %v6833 = vld [vmem:[#allocation2 + $0x3c] sm:$0xf]
      %v6834 = vld [vmem:[#allocation2 + $0x40] sm:$0xf]
      %v6835 = vld [vmem:[#allocation2 + $0x44] sm:$0xf]
      %v6836 = vld [vmem:[#allocation2 + $0x48] sm:$0xf]
      %v6837 = vld [vmem:[#allocation2 + $0x4c] sm:$0xf]
      %v6838 = vld [vmem:[#allocation2 + $0x50] sm:$0xf]
      %v6839 = vld [vmem:[#allocation2 + $0x54] sm:$0xf]
      %v6840 = vld [vmem:[#allocation2 + $0x58] sm:$0xf]
      %v6841 = vld [vmem:[#allocation2 + $0x5c] sm:$0xf]
      %v6842 = vld [vmem:[#allocation2 + $0x60] sm:$0xf]
      %v6843 = vld [vmem:[#allocation2 + $0x64] sm:$0xf]
      %v6844 = vld [vmem:[#allocation2 + $0x68] sm:$0xf]
      %v6845 = vld [vmem:[#allocation2 + $0x6c] sm:$0xf]
      %v6846 = vld [vmem:[#allocation2 + $0x70] sm:$0xf]
      %v6847 = vld [vmem:[#allocation2 + $0x74] sm:$0xf]
      %v6848 = vld [vmem:[#allocation2 + $0x78] sm:$0xf]
      %v6849 = vld [vmem:[#allocation2 + $0x7c] sm:$0xf]
      %v6850 = vld [vmem:[#allocation2 + $0x80] sm:$0xf]
      %v6851 = vld [vmem:[#allocation2 + $0x84] sm:$0xf]
      %v6852 = vld [vmem:[#allocation2 + $0x88] sm:$0xf]
      %v6853 = vld [vmem:[#allocation2 + $0x8c] sm:$0xf]
      %v6854 = vld [vmem:[#allocation2 + $0x90] sm:$0xf]
      %v6855 = vld [vmem:[#allocation2 + $0x94] sm:$0x1]
      %v6856 = vld [vmem:[%s4 + $0x80] sm:$0xf]
      %v6857 = vld [vmem:[%s4 + $0x84] sm:$0xf]
      %v6858 = vld [vmem:[%s4 + $0x88] sm:$0xf]
      %v6859 = vld [vmem:[%s4 + $0x8c] sm:$0xf]
      %v6860 = vld [vmem:[%s4 + $0x90] sm:$0xf]
      %v6861 = vld [vmem:[%s4 + $0x94] sm:$0xf]
      %v6862 = vld [vmem:[%s4 + $0x98] sm:$0xf]
      %v6863 = vld [vmem:[%s4 + $0x9c] sm:$0xf]
      %v6864 = vld [vmem:[%s4 + $0xa0] sm:$0xf]
      %v6865 = vld [vmem:[%s4 + $0xa4] sm:$0xf]
      %v6866 = vld [vmem:[%s4 + $0xa8] sm:$0xf]
      %v6867 = vld [vmem:[%s4 + $0xac] sm:$0xf]
      %v6868 = vld [vmem:[%s4 + $0xb0] sm:$0xf]
      %v6869 = vld [vmem:[%s4 + $0xb4] sm:$0xf]
      %v6870 = vld [vmem:[%s4 + $0xb8] sm:$0xf]
      %v6871 = vld [vmem:[%s4 + $0xbc] sm:$0xf]
      %v6909 = vunpack.c.l.b16 %v6819
      %v6910 = vunpack.c.l.b16 %v6820
      %v6911 = vunpack.c.l.b16 %v6821
      %v6912 = vunpack.c.l.b16 %v6822
      %v6913 = vunpack.c.l.b16 %v6823
      %v6914 = vunpack.c.l.b16 %v6824
      %v6915 = vunpack.c.l.b16 %v6825
      %v6916 = vunpack.c.l.b16 %v6826
      %v6917 = vunpack.c.l.b16 %v6827
      %v6918 = vunpack.c.l.b16 %v6828
      %v6919 = vunpack.c.l.b16 %v6829
      %v6920 = vunpack.c.l.b16 %v6830
      %v6921 = vunpack.c.l.b16 %v6831
      %v6922 = vunpack.c.l.b16 %v6832
      %v6923 = vunpack.c.l.b16 %v6833
      %v6924 = vunpack.c.l.b16 %v6834
      %v6925 = vunpack.c.l.b16 %v6835
      %v6926 = vunpack.c.l.b16 %v6836
      %v6927 = vunpack.c.l.b16 %v6837
      %v6928 = vunpack.c.l.b16 %v6838
      %v6929 = vunpack.c.l.b16 %v6839
      %v6930 = vunpack.c.l.b16 %v6840
      %v6931 = vunpack.c.l.b16 %v6841
      %v6932 = vunpack.c.l.b16 %v6842
      %v6933 = vunpack.c.l.b16 %v6843
      %v6934 = vunpack.c.l.b16 %v6844
      %v6935 = vunpack.c.l.b16 %v6845
      %v6936 = vunpack.c.l.b16 %v6846
      %v6937 = vunpack.c.l.b16 %v6847
      %v6938 = vunpack.c.l.b16 %v6848
      %v6939 = vunpack.c.l.b16 %v6849
      %v6940 = vunpack.c.l.b16 %v6850
      %v6941 = vunpack.c.l.b16 %v6851
      %v6942 = vunpack.c.l.b16 %v6852
      %v6943 = vunpack.c.l.b16 %v6853
      %v6944 = vunpack.c.l.b16 %v6854
      %v6945 = vunpack.c.l.b16 %v6855
      %v6946 = vpack.c.b16 %v6910, %v6909
      %v6947 = vpack.c.b16 %v6912, %v6911
      %v6948 = vpack.c.b16 %v6914, %v6913
      %v6949 = vpack.c.b16 %v6916, %v6915
      %v6950 = vpack.c.b16 %v6918, %v6917
      %v6951 = vpack.c.b16 %v6920, %v6919
      %v6952 = vpack.c.b16 %v6922, %v6921
      %v6953 = vpack.c.b16 %v6924, %v6923
      %v6954 = vpack.c.b16 %v6926, %v6925
      %v6955 = vpack.c.b16 %v6928, %v6927
      %v6956 = vpack.c.b16 %v6930, %v6929
      %v6957 = vpack.c.b16 %v6932, %v6931
      %v6958 = vpack.c.b16 %v6934, %v6933
      %v6959 = vpack.c.b16 %v6936, %v6935
      %v6960 = vpack.c.b16 %v6938, %v6937
      %v6961 = vpack.c.b16 %v6940, %v6939
      %v6962 = vpack.c.b16 %v6942, %v6941
      %v6963 = vpack.c.b16 %v6944, %v6943
      %v6964 = vpack.c.b16 %v6945, %v6945
      %v6966 = vshrl.u32 %v6946, 16
      %v6968 = vshll.u32 %v6946, 16
      %v6970 = vrot.slane %v6968, 1
      %v6971 = vor.u32 %v6966, %v6970
      %v6973 = vshll.u32 %v6947, 16
      %v6975 = vrot.slane %v6973, 1
      %v6976 = vsel %vm1214, %v6971, %v6975
      %v6977 = vshrl.u32 %v6947, 16
      %v6979 = vor.u32 %v6977, %v6975
      %v6981 = vshll.u32 %v6948, 16
      %v6983 = vrot.slane %v6981, 1
      %v6984 = vsel %vm1214, %v6979, %v6983
      %v6985 = vshrl.u32 %v6948, 16
      %v6987 = vor.u32 %v6985, %v6983
      %v6989 = vshll.u32 %v6949, 16
      %v6991 = vrot.slane %v6989, 1
      %v6992 = vsel %vm1214, %v6987, %v6991
      %v6993 = vshrl.u32 %v6949, 16
      %v6995 = vor.u32 %v6993, %v6991
      %v6997 = vshll.u32 %v6950, 16
      %v6999 = vrot.slane %v6997, 1
      %v7000 = vsel %vm1214, %v6995, %v6999
      %v7001 = vshrl.u32 %v6950, 16
      %v7003 = vor.u32 %v7001, %v6999
      %v7005 = vshll.u32 %v6951, 16
      %v7007 = vrot.slane %v7005, 1
      %v7008 = vsel %vm1214, %v7003, %v7007
      %v7009 = vshrl.u32 %v6951, 16
      %v7011 = vor.u32 %v7009, %v7007
      %v7013 = vshll.u32 %v6952, 16
      %v7015 = vrot.slane %v7013, 1
      %v7016 = vsel %vm1214, %v7011, %v7015
      %v7017 = vshrl.u32 %v6952, 16
      %v7019 = vor.u32 %v7017, %v7015
      %v7021 = vshll.u32 %v6953, 16
      %v7023 = vrot.slane %v7021, 1
      %v7024 = vsel %vm1214, %v7019, %v7023
      %v7025 = vshrl.u32 %v6953, 16
      %v7027 = vor.u32 %v7025, %v7023
      %v7029 = vshll.u32 %v6954, 16
      %v7031 = vrot.slane %v7029, 1
      %v7032 = vsel %vm1214, %v7027, %v7031
      %v7033 = vshrl.u32 %v6954, 16
      %v7035 = vor.u32 %v7033, %v7031
      %v7037 = vshll.u32 %v6955, 16
      %v7039 = vrot.slane %v7037, 1
      %v7040 = vsel %vm1214, %v7035, %v7039
      %v7041 = vshrl.u32 %v6955, 16
      %v7043 = vor.u32 %v7041, %v7039
      %v7045 = vshll.u32 %v6956, 16
      %v7047 = vrot.slane %v7045, 1
      %v7048 = vsel %vm1214, %v7043, %v7047
      %v7049 = vshrl.u32 %v6956, 16
      %v7051 = vor.u32 %v7049, %v7047
      %v7053 = vshll.u32 %v6957, 16
      %v7055 = vrot.slane %v7053, 1
      %v7056 = vsel %vm1214, %v7051, %v7055
      %v7057 = vshrl.u32 %v6957, 16
      %v7059 = vor.u32 %v7057, %v7055
      %v7061 = vshll.u32 %v6958, 16
      %v7063 = vrot.slane %v7061, 1
      %v7064 = vsel %vm1214, %v7059, %v7063
      %v7065 = vshrl.u32 %v6958, 16
      %v7067 = vor.u32 %v7065, %v7063
      %v7069 = vshll.u32 %v6959, 16
      %v7071 = vrot.slane %v7069, 1
      %v7072 = vsel %vm1214, %v7067, %v7071
      %v7073 = vshrl.u32 %v6959, 16
      %v7075 = vor.u32 %v7073, %v7071
      %v7077 = vshll.u32 %v6960, 16
      %v7079 = vrot.slane %v7077, 1
      %v7080 = vsel %vm1214, %v7075, %v7079
      %v7081 = vshrl.u32 %v6960, 16
      %v7083 = vor.u32 %v7081, %v7079
      %v7085 = vshll.u32 %v6961, 16
      %v7087 = vrot.slane %v7085, 1
      %v7088 = vsel %vm1214, %v7083, %v7087
      %v7089 = vshrl.u32 %v6961, 16
      %v7091 = vor.u32 %v7089, %v7087
      %v7093 = vshll.u32 %v6962, 16
      %v7095 = vrot.slane %v7093, 1
      %v7096 = vsel %vm1214, %v7091, %v7095
      %v7097 = vshrl.u32 %v6962, 16
      %v7099 = vor.u32 %v7097, %v7095
      %v7101 = vshll.u32 %v6963, 16
      %v7103 = vrot.slane %v7101, 1
      %v7104 = vsel %vm1214, %v7099, %v7103
      %v7105 = vshrl.u32 %v6963, 16
      %v7107 = vor.u32 %v7105, %v7103
      %v7109 = vshll.u32 %v6964, 16
      %v7111 = vrot.slane %v7109, 1
      %v7112 = vsel %vm1214, %v7107, %v7111
      %v7147 = vunpack.c.l.b16 %v6856
      %v7148 = vunpack.c.l.b16 %v6857
      %v7149 = vunpack.c.l.b16 %v6858
      %v7150 = vunpack.c.l.b16 %v6859
      %v7151 = vunpack.c.l.b16 %v6860
      %v7152 = vunpack.c.l.b16 %v6861
      %v7153 = vunpack.c.l.b16 %v6862
      %v7154 = vunpack.c.l.b16 %v6863
      %v7155 = vunpack.c.l.b16 %v6864
      %v7156 = vunpack.c.l.b16 %v6865
      %v7157 = vunpack.c.l.b16 %v6866
      %v7158 = vunpack.c.l.b16 %v6867
      %v7159 = vunpack.c.l.b16 %v6868
      %v7160 = vunpack.c.l.b16 %v6869
      %v7161 = vunpack.c.l.b16 %v6870
      %v7162 = vunpack.c.l.b16 %v6871
      %v7163 = vpack.c.b16 %v7148, %v7147
      %v7164 = vpack.c.b16 %v7150, %v7149
      %v7165 = vpack.c.b16 %v7152, %v7151
      %v7166 = vpack.c.b16 %v7154, %v7153
      %v7167 = vpack.c.b16 %v7156, %v7155
      %v7168 = vpack.c.b16 %v7158, %v7157
      %v7169 = vpack.c.b16 %v7160, %v7159
      %v7170 = vpack.c.b16 %v7162, %v7161
      %7179 = vmatprep.subr.bf16.mxu0 0
      %7180 = vmatpush1.bf16.msra.mxu0 %v7170
      %7181 = vmatprep.subr.bf16.mxu0 0
      %7182 = vmatpush1.bf16.msra.mxu0 %v7169
      %7183 = vmatprep.subr.bf16.mxu0 0
      %7184 = vmatpush1.bf16.msra.mxu0 %v7168
      %7185 = vmatprep.subr.bf16.mxu0 0
      %7186 = vmatpush1.bf16.msra.mxu0 %v7167
      %7187 = vmatprep.subr.bf16.mxu0 0
      %7188 = vmatpush1.bf16.msra.mxu0 %v7166
      %7189 = vmatprep.subr.bf16.mxu0 0
      %7190 = vmatpush1.bf16.msra.mxu0 %v7165
      %7191 = vmatprep.subr.bf16.mxu0 0
      %7192 = vmatpush1.bf16.msra.mxu0 %v7164
      %7193 = vmatprep.subr.bf16.mxu0 0
      %7194 = vmatpush1.bf16.msra.mxu0 %v7163
      %7195 = vmatprep.subr.bf16.mxu0 0
      %7196 = vmatpush2.bf16.msra.mxu0 0
      %7197 = vmatprep.subr.bf16.mxu0 0
      %7198 = vmatpush2.bf16.msra.mxu0 0
      %7199 = vmatprep.subr.bf16.mxu0 0
      %7200 = vmatpush2.bf16.msra.mxu0 0
      %7201 = vmatprep.subr.bf16.mxu0 0
      %7202 = vmatpush2.bf16.msra.mxu0 0
      %7203 = vmatprep.subr.bf16.mxu0 0
      %7204 = vmatpush2.bf16.msra.mxu0 0
      %7205 = vmatprep.subr.bf16.mxu0 0
      %7206 = vmatpush2.bf16.msra.mxu0 0
      %7207 = vmatprep.subr.bf16.mxu0 0
      %7208 = vmatpush2.bf16.msra.mxu0 0
      %7209 = vmatprep.subr.bf16.mxu0 0
      %7210 = vmatpush2.bf16.msra.mxu0 0
      %7211 = vmatprep.mubr.bf16.mxu0 0
      %7212 = vmatmul.mubr.bf16.gmra.mxu0 %v6976
      %v7213 = vpop.f32.mrf.mxu0
      %v7214 = vadd.f32 0.0, %v7213
      %v7215 = vpop.f32.mrf.mxu0
      %v7216 = vpop.f32.mrf.mxu0
      %v7217 = vadd.f32 0.0, %v7216
      %v7218 = vpop.f32.mrf.mxu0
      %7219 = vmatprep.mubr.bf16.mxu0 0
      %7220 = vmatmul.mubr.bf16.gmra.mxu0 %v6984
      %v7221 = vpop.f32.mrf.mxu0
      %v7222 = vadd.f32 0.0, %v7221
      %v7223 = vpop.f32.mrf.mxu0
      %v7224 = vpop.f32.mrf.mxu0
      %v7225 = vadd.f32 0.0, %v7224
      %v7226 = vpop.f32.mrf.mxu0
      %7227 = vmatprep.mubr.bf16.mxu0 0
      %7228 = vmatmul.mubr.bf16.gmra.mxu0 %v6992
      %v7229 = vpop.f32.mrf.mxu0
      %v7230 = vadd.f32 0.0, %v7229
      %v7231 = vpop.f32.mrf.mxu0
      %v7232 = vpop.f32.mrf.mxu0
      %v7233 = vadd.f32 0.0, %v7232
      %v7234 = vpop.f32.mrf.mxu0
      %7235 = vmatprep.mubr.bf16.mxu0 0
      %7236 = vmatmul.mubr.bf16.gmra.mxu0 %v7000
      %v7237 = vpop.f32.mrf.mxu0
      %v7238 = vadd.f32 0.0, %v7237
      %v7239 = vpop.f32.mrf.mxu0
      %v7240 = vpop.f32.mrf.mxu0
      %v7241 = vadd.f32 0.0, %v7240
      %v7242 = vpop.f32.mrf.mxu0
      %7243 = vmatprep.mubr.bf16.mxu0 0
      %7244 = vmatmul.mubr.bf16.gmra.mxu0 %v7008
      %v7245 = vpop.f32.mrf.mxu0
      %v7246 = vadd.f32 0.0, %v7245
      %v7247 = vpop.f32.mrf.mxu0
      %v7248 = vpop.f32.mrf.mxu0
      %v7249 = vadd.f32 0.0, %v7248
      %v7250 = vpop.f32.mrf.mxu0
      %7251 = vmatprep.mubr.bf16.mxu0 0
      %7252 = vmatmul.mubr.bf16.gmra.mxu0 %v7016
      %v7253 = vpop.f32.mrf.mxu0
      %v7254 = vadd.f32 0.0, %v7253
      %v7255 = vpop.f32.mrf.mxu0
      %v7256 = vpop.f32.mrf.mxu0
      %v7257 = vadd.f32 0.0, %v7256
      %v7258 = vpop.f32.mrf.mxu0
      %7259 = vmatprep.mubr.bf16.mxu0 0
      %7260 = vmatmul.mubr.bf16.gmra.mxu0 %v7024
      %v7261 = vpop.f32.mrf.mxu0
      %v7262 = vadd.f32 0.0, %v7261
      %v7263 = vpop.f32.mrf.mxu0
      %v7264 = vpop.f32.mrf.mxu0
      %v7265 = vadd.f32 0.0, %v7264
      %v7266 = vpop.f32.mrf.mxu0
      %7267 = vmatprep.mubr.bf16.mxu0 0
      %7268 = vmatmul.mubr.bf16.gmra.mxu0 %v7032
      %v7269 = vpop.f32.mrf.mxu0
      %v7270 = vadd.f32 0.0, %v7269
      %v7271 = vpop.f32.mrf.mxu0
      %v7272 = vpop.f32.mrf.mxu0
      %v7273 = vadd.f32 0.0, %v7272
      %v7274 = vpop.f32.mrf.mxu0
      %7275 = vmatprep.mubr.bf16.mxu0 0
      %7276 = vmatmul.mubr.bf16.gmra.mxu0 %v7040
      %v7277 = vpop.f32.mrf.mxu0
      %v7278 = vadd.f32 0.0, %v7277
      %v7279 = vpop.f32.mrf.mxu0
      %v7280 = vpop.f32.mrf.mxu0
      %v7281 = vadd.f32 0.0, %v7280
      %v7282 = vpop.f32.mrf.mxu0
      %7283 = vmatprep.mubr.bf16.mxu0 0
      %7284 = vmatmul.mubr.bf16.gmra.mxu0 %v7048
      %v7285 = vpop.f32.mrf.mxu0
      %v7286 = vadd.f32 0.0, %v7285
      %v7287 = vpop.f32.mrf.mxu0
      %v7288 = vpop.f32.mrf.mxu0
      %v7289 = vadd.f32 0.0, %v7288
      %v7290 = vpop.f32.mrf.mxu0
      %7291 = vmatprep.mubr.bf16.mxu0 0
      %7292 = vmatmul.mubr.bf16.gmra.mxu0 %v7056
      %v7293 = vpop.f32.mrf.mxu0
      %v7294 = vadd.f32 0.0, %v7293
      %v7295 = vpop.f32.mrf.mxu0
      %v7296 = vpop.f32.mrf.mxu0
      %v7297 = vadd.f32 0.0, %v7296
      %v7298 = vpop.f32.mrf.mxu0
      %7299 = vmatprep.mubr.bf16.mxu0 0
      %7300 = vmatmul.mubr.bf16.gmra.mxu0 %v7064
      %v7301 = vpop.f32.mrf.mxu0
      %v7302 = vadd.f32 0.0, %v7301
      %v7303 = vpop.f32.mrf.mxu0
      %v7304 = vpop.f32.mrf.mxu0
      %v7305 = vadd.f32 0.0, %v7304
      %v7306 = vpop.f32.mrf.mxu0
      %7307 = vmatprep.mubr.bf16.mxu0 0
      %7308 = vmatmul.mubr.bf16.gmra.mxu0 %v7072
      %v7309 = vpop.f32.mrf.mxu0
      %v7310 = vadd.f32 0.0, %v7309
      %v7311 = vpop.f32.mrf.mxu0
      %v7312 = vpop.f32.mrf.mxu0
      %v7313 = vadd.f32 0.0, %v7312
      %v7314 = vpop.f32.mrf.mxu0
      %7315 = vmatprep.mubr.bf16.mxu0 0
      %7316 = vmatmul.mubr.bf16.gmra.mxu0 %v7080
      %v7317 = vpop.f32.mrf.mxu0
      %v7318 = vadd.f32 0.0, %v7317
      %v7319 = vpop.f32.mrf.mxu0
      %v7320 = vpop.f32.mrf.mxu0
      %v7321 = vadd.f32 0.0, %v7320
      %v7322 = vpop.f32.mrf.mxu0
      %7323 = vmatprep.mubr.bf16.mxu0 0
      %7324 = vmatmul.mubr.bf16.gmra.mxu0 %v7088
      %v7325 = vpop.f32.mrf.mxu0
      %v7326 = vadd.f32 0.0, %v7325
      %v7327 = vpop.f32.mrf.mxu0
      %v7328 = vpop.f32.mrf.mxu0
      %v7329 = vadd.f32 0.0, %v7328
      %v7330 = vpop.f32.mrf.mxu0
      %7331 = vmatprep.mubr.bf16.mxu0 0
      %7332 = vmatmul.mubr.bf16.gmra.mxu0 %v7096
      %v7333 = vpop.f32.mrf.mxu0
      %v7334 = vadd.f32 0.0, %v7333
      %v7335 = vpop.f32.mrf.mxu0
      %v7336 = vpop.f32.mrf.mxu0
      %v7337 = vadd.f32 0.0, %v7336
      %v7338 = vpop.f32.mrf.mxu0
      %7339 = vmatprep.mubr.bf16.mxu0 0
      %7340 = vmatmul.mubr.bf16.gmra.mxu0 %v7104
      %v7341 = vpop.f32.mrf.mxu0
      %v7342 = vadd.f32 0.0, %v7341
      %v7343 = vpop.f32.mrf.mxu0
      %v7344 = vpop.f32.mrf.mxu0
      %v7345 = vadd.f32 0.0, %v7344
      %v7346 = vpop.f32.mrf.mxu0
      %7347 = vmatprep.mubr.bf16.mxu0 0
      %7348 = vmatmul.mubr.bf16.gmra.mxu0 %v7112
      %v7349 = vpop.f32.mrf.mxu0
      %v7350 = vadd.f32 0.0, %v7349
      %v7351 = vpop.f32.mrf.mxu0
      %v7352 = vpop.f32.mrf.mxu0
      %v7353 = vadd.f32 0.0, %v7352
      %v7354 = vpop.f32.mrf.mxu0
      %7355 = vdwg.mxu0
      %v7356 = vadd.f32 %v6677, %v7214
      %v7357 = vadd.f32 %v6680, %v7217
      %v7358 = vadd.f32 %v6685, %v7222
      %v7359 = vadd.f32 %v6688, %v7225
      %v7360 = vadd.f32 %v6693, %v7230
      %v7361 = vadd.f32 %v6696, %v7233
      %v7362 = vadd.f32 %v6701, %v7238
      %v7363 = vadd.f32 %v6704, %v7241
      %v7364 = vadd.f32 %v6709, %v7246
      %v7365 = vadd.f32 %v6712, %v7249
      %v7366 = vadd.f32 %v6717, %v7254
      %v7367 = vadd.f32 %v6720, %v7257
      %v7368 = vadd.f32 %v6725, %v7262
      %v7369 = vadd.f32 %v6728, %v7265
      %v7370 = vadd.f32 %v6733, %v7270
      %v7371 = vadd.f32 %v6736, %v7273
      %v7372 = vadd.f32 %v6741, %v7278
      %v7373 = vadd.f32 %v6744, %v7281
      %v7374 = vadd.f32 %v6749, %v7286
      %v7375 = vadd.f32 %v6752, %v7289
      %v7376 = vadd.f32 %v6757, %v7294
      %v7377 = vadd.f32 %v6760, %v7297
      %v7378 = vadd.f32 %v6765, %v7302
      %v7379 = vadd.f32 %v6768, %v7305
      %v7380 = vadd.f32 %v6773, %v7310
      %v7381 = vadd.f32 %v6776, %v7313
      %v7382 = vadd.f32 %v6781, %v7318
      %v7383 = vadd.f32 %v6784, %v7321
      %v7384 = vadd.f32 %v6789, %v7326
      %v7385 = vadd.f32 %v6792, %v7329
      %v7386 = vadd.f32 %v6797, %v7334
      %v7387 = vadd.f32 %v6800, %v7337
      %v7388 = vadd.f32 %v6805, %v7342
      %v7389 = vadd.f32 %v6808, %v7345
      %v7390 = vadd.f32 %v6813, %v7350
      %v7391 = vadd.f32 %v6816, %v7353
      %v7392 = vld [vmem:[#allocation2 + $0xc] sm:$0xf]
      %v7393 = vld [vmem:[#allocation2 + $0x10] sm:$0xf]
      %v7394 = vld [vmem:[#allocation2 + $0x14] sm:$0xf]
      %v7395 = vld [vmem:[#allocation2 + $0x18] sm:$0xf]
      %v7396 = vld [vmem:[#allocation2 + $0x1c] sm:$0xf]
      %v7397 = vld [vmem:[#allocation2 + $0x20] sm:$0xf]
      %v7398 = vld [vmem:[#allocation2 + $0x24] sm:$0xf]
      %v7399 = vld [vmem:[#allocation2 + $0x28] sm:$0xf]
      %v7400 = vld [vmem:[#allocation2 + $0x2c] sm:$0xf]
      %v7401 = vld [vmem:[#allocation2 + $0x30] sm:$0xf]
      %v7402 = vld [vmem:[#allocation2 + $0x34] sm:$0xf]
      %v7403 = vld [vmem:[#allocation2 + $0x38] sm:$0xf]
      %v7404 = vld [vmem:[#allocation2 + $0x3c] sm:$0xf]
      %v7405 = vld [vmem:[#allocation2 + $0x40] sm:$0xf]
      %v7406 = vld [vmem:[#allocation2 + $0x44] sm:$0xf]
      %v7407 = vld [vmem:[#allocation2 + $0x48] sm:$0xf]
      %v7408 = vld [vmem:[#allocation2 + $0x4c] sm:$0xf]
      %v7409 = vld [vmem:[#allocation2 + $0x50] sm:$0xf]
      %v7410 = vld [vmem:[#allocation2 + $0x54] sm:$0xf]
      %v7411 = vld [vmem:[#allocation2 + $0x58] sm:$0xf]
      %v7412 = vld [vmem:[#allocation2 + $0x5c] sm:$0xf]
      %v7413 = vld [vmem:[#allocation2 + $0x60] sm:$0xf]
      %v7414 = vld [vmem:[#allocation2 + $0x64] sm:$0xf]
      %v7415 = vld [vmem:[#allocation2 + $0x68] sm:$0xf]
      %v7416 = vld [vmem:[#allocation2 + $0x6c] sm:$0xf]
      %v7417 = vld [vmem:[#allocation2 + $0x70] sm:$0xf]
      %v7418 = vld [vmem:[#allocation2 + $0x74] sm:$0xf]
      %v7419 = vld [vmem:[#allocation2 + $0x78] sm:$0xf]
      %v7420 = vld [vmem:[#allocation2 + $0x7c] sm:$0xf]
      %v7421 = vld [vmem:[#allocation2 + $0x80] sm:$0xf]
      %v7422 = vld [vmem:[#allocation2 + $0x84] sm:$0xf]
      %v7423 = vld [vmem:[#allocation2 + $0x88] sm:$0xf]
      %v7424 = vld [vmem:[#allocation2 + $0x8c] sm:$0xf]
      %v7425 = vld [vmem:[#allocation2 + $0x90] sm:$0xf]
      %v7426 = vld [vmem:[#allocation2 + $0x94] sm:$0xf]
      %v7427 = vld [vmem:[#allocation2 + $0x98] sm:$0xf]
      %v7428 = vld [vmem:[#allocation2 + $0x9c] sm:$0x1]
      %v7429 = vld [vmem:[%s4 + $0xc0] sm:$0xf]
      %v7430 = vld [vmem:[%s4 + $0xc4] sm:$0xf]
      %v7431 = vld [vmem:[%s4 + $0xc8] sm:$0xf]
      %v7432 = vld [vmem:[%s4 + $0xcc] sm:$0xf]
      %v7433 = vld [vmem:[%s4 + $0xd0] sm:$0xf]
      %v7434 = vld [vmem:[%s4 + $0xd4] sm:$0xf]
      %v7435 = vld [vmem:[%s4 + $0xd8] sm:$0xf]
      %v7436 = vld [vmem:[%s4 + $0xdc] sm:$0xf]
      %v7437 = vld [vmem:[%s4 + $0xe0] sm:$0xf]
      %v7438 = vld [vmem:[%s4 + $0xe4] sm:$0xf]
      %v7439 = vld [vmem:[%s4 + $0xe8] sm:$0xf]
      %v7440 = vld [vmem:[%s4 + $0xec] sm:$0xf]
      %v7441 = vld [vmem:[%s4 + $0xf0] sm:$0xf]
      %v7442 = vld [vmem:[%s4 + $0xf4] sm:$0xf]
      %v7443 = vld [vmem:[%s4 + $0xf8] sm:$0xf]
      %v7444 = vld [vmem:[%s4 + $0xfc] sm:$0xf]
      %v7482 = vunpack.c.l.b16 %v7392
      %v7483 = vunpack.c.l.b16 %v7393
      %v7484 = vunpack.c.l.b16 %v7394
      %v7485 = vunpack.c.l.b16 %v7395
      %v7486 = vunpack.c.l.b16 %v7396
      %v7487 = vunpack.c.l.b16 %v7397
      %v7488 = vunpack.c.l.b16 %v7398
      %v7489 = vunpack.c.l.b16 %v7399
      %v7490 = vunpack.c.l.b16 %v7400
      %v7491 = vunpack.c.l.b16 %v7401
      %v7492 = vunpack.c.l.b16 %v7402
      %v7493 = vunpack.c.l.b16 %v7403
      %v7494 = vunpack.c.l.b16 %v7404
      %v7495 = vunpack.c.l.b16 %v7405
      %v7496 = vunpack.c.l.b16 %v7406
      %v7497 = vunpack.c.l.b16 %v7407
      %v7498 = vunpack.c.l.b16 %v7408
      %v7499 = vunpack.c.l.b16 %v7409
      %v7500 = vunpack.c.l.b16 %v7410
      %v7501 = vunpack.c.l.b16 %v7411
      %v7502 = vunpack.c.l.b16 %v7412
      %v7503 = vunpack.c.l.b16 %v7413
      %v7504 = vunpack.c.l.b16 %v7414
      %v7505 = vunpack.c.l.b16 %v7415
      %v7506 = vunpack.c.l.b16 %v7416
      %v7507 = vunpack.c.l.b16 %v7417
      %v7508 = vunpack.c.l.b16 %v7418
      %v7509 = vunpack.c.l.b16 %v7419
      %v7510 = vunpack.c.l.b16 %v7420
      %v7511 = vunpack.c.l.b16 %v7421
      %v7512 = vunpack.c.l.b16 %v7422
      %v7513 = vunpack.c.l.b16 %v7423
      %v7514 = vunpack.c.l.b16 %v7424
      %v7515 = vunpack.c.l.b16 %v7425
      %v7516 = vunpack.c.l.b16 %v7426
      %v7517 = vunpack.c.l.b16 %v7427
      %v7518 = vunpack.c.l.b16 %v7428
      %v7519 = vpack.c.b16 %v7483, %v7482
      %v7520 = vpack.c.b16 %v7485, %v7484
      %v7521 = vpack.c.b16 %v7487, %v7486
      %v7522 = vpack.c.b16 %v7489, %v7488
      %v7523 = vpack.c.b16 %v7491, %v7490
      %v7524 = vpack.c.b16 %v7493, %v7492
      %v7525 = vpack.c.b16 %v7495, %v7494
      %v7526 = vpack.c.b16 %v7497, %v7496
      %v7527 = vpack.c.b16 %v7499, %v7498
      %v7528 = vpack.c.b16 %v7501, %v7500
      %v7529 = vpack.c.b16 %v7503, %v7502
      %v7530 = vpack.c.b16 %v7505, %v7504
      %v7531 = vpack.c.b16 %v7507, %v7506
      %v7532 = vpack.c.b16 %v7509, %v7508
      %v7533 = vpack.c.b16 %v7511, %v7510
      %v7534 = vpack.c.b16 %v7513, %v7512
      %v7535 = vpack.c.b16 %v7515, %v7514
      %v7536 = vpack.c.b16 %v7517, %v7516
      %v7537 = vpack.c.b16 %v7518, %v7518
      %v7539 = vshrl.u32 %v7519, 16
      %v7541 = vshll.u32 %v7519, 16
      %v7543 = vrot.slane %v7541, 1
      %v7544 = vor.u32 %v7539, %v7543
      %v7546 = vshll.u32 %v7520, 16
      %v7548 = vrot.slane %v7546, 1
      %v7549 = vsel %vm1214, %v7544, %v7548
      %v7550 = vshrl.u32 %v7520, 16
      %v7552 = vor.u32 %v7550, %v7548
      %v7554 = vshll.u32 %v7521, 16
      %v7556 = vrot.slane %v7554, 1
      %v7557 = vsel %vm1214, %v7552, %v7556
      %v7558 = vshrl.u32 %v7521, 16
      %v7560 = vor.u32 %v7558, %v7556
      %v7562 = vshll.u32 %v7522, 16
      %v7564 = vrot.slane %v7562, 1
      %v7565 = vsel %vm1214, %v7560, %v7564
      %v7566 = vshrl.u32 %v7522, 16
      %v7568 = vor.u32 %v7566, %v7564
      %v7570 = vshll.u32 %v7523, 16
      %v7572 = vrot.slane %v7570, 1
      %v7573 = vsel %vm1214, %v7568, %v7572
      %v7574 = vshrl.u32 %v7523, 16
      %v7576 = vor.u32 %v7574, %v7572
      %v7578 = vshll.u32 %v7524, 16
      %v7580 = vrot.slane %v7578, 1
      %v7581 = vsel %vm1214, %v7576, %v7580
      %v7582 = vshrl.u32 %v7524, 16
      %v7584 = vor.u32 %v7582, %v7580
      %v7586 = vshll.u32 %v7525, 16
      %v7588 = vrot.slane %v7586, 1
      %v7589 = vsel %vm1214, %v7584, %v7588
      %v7590 = vshrl.u32 %v7525, 16
      %v7592 = vor.u32 %v7590, %v7588
      %v7594 = vshll.u32 %v7526, 16
      %v7596 = vrot.slane %v7594, 1
      %v7597 = vsel %vm1214, %v7592, %v7596
      %v7598 = vshrl.u32 %v7526, 16
      %v7600 = vor.u32 %v7598, %v7596
      %v7602 = vshll.u32 %v7527, 16
      %v7604 = vrot.slane %v7602, 1
      %v7605 = vsel %vm1214, %v7600, %v7604
      %v7606 = vshrl.u32 %v7527, 16
      %v7608 = vor.u32 %v7606, %v7604
      %v7610 = vshll.u32 %v7528, 16
      %v7612 = vrot.slane %v7610, 1
      %v7613 = vsel %vm1214, %v7608, %v7612
      %v7614 = vshrl.u32 %v7528, 16
      %v7616 = vor.u32 %v7614, %v7612
      %v7618 = vshll.u32 %v7529, 16
      %v7620 = vrot.slane %v7618, 1
      %v7621 = vsel %vm1214, %v7616, %v7620
      %v7622 = vshrl.u32 %v7529, 16
      %v7624 = vor.u32 %v7622, %v7620
      %v7626 = vshll.u32 %v7530, 16
      %v7628 = vrot.slane %v7626, 1
      %v7629 = vsel %vm1214, %v7624, %v7628
      %v7630 = vshrl.u32 %v7530, 16
      %v7632 = vor.u32 %v7630, %v7628
      %v7634 = vshll.u32 %v7531, 16
      %v7636 = vrot.slane %v7634, 1
      %v7637 = vsel %vm1214, %v7632, %v7636
      %v7638 = vshrl.u32 %v7531, 16
      %v7640 = vor.u32 %v7638, %v7636
      %v7642 = vshll.u32 %v7532, 16
      %v7644 = vrot.slane %v7642, 1
      %v7645 = vsel %vm1214, %v7640, %v7644
      %v7646 = vshrl.u32 %v7532, 16
      %v7648 = vor.u32 %v7646, %v7644
      %v7650 = vshll.u32 %v7533, 16
      %v7652 = vrot.slane %v7650, 1
      %v7653 = vsel %vm1214, %v7648, %v7652
      %v7654 = vshrl.u32 %v7533, 16
      %v7656 = vor.u32 %v7654, %v7652
      %v7658 = vshll.u32 %v7534, 16
      %v7660 = vrot.slane %v7658, 1
      %v7661 = vsel %vm1214, %v7656, %v7660
      %v7662 = vshrl.u32 %v7534, 16
      %v7664 = vor.u32 %v7662, %v7660
      %v7666 = vshll.u32 %v7535, 16
      %v7668 = vrot.slane %v7666, 1
      %v7669 = vsel %vm1214, %v7664, %v7668
      %v7670 = vshrl.u32 %v7535, 16
      %v7672 = vor.u32 %v7670, %v7668
      %v7674 = vshll.u32 %v7536, 16
      %v7676 = vrot.slane %v7674, 1
      %v7677 = vsel %vm1214, %v7672, %v7676
      %v7678 = vshrl.u32 %v7536, 16
      %v7680 = vor.u32 %v7678, %v7676
      %v7682 = vshll.u32 %v7537, 16
      %v7684 = vrot.slane %v7682, 1
      %v7685 = vsel %vm1214, %v7680, %v7684
      %v7720 = vunpack.c.l.b16 %v7429
      %v7721 = vunpack.c.l.b16 %v7430
      %v7722 = vunpack.c.l.b16 %v7431
      %v7723 = vunpack.c.l.b16 %v7432
      %v7724 = vunpack.c.l.b16 %v7433
      %v7725 = vunpack.c.l.b16 %v7434
      %v7726 = vunpack.c.l.b16 %v7435
      %v7727 = vunpack.c.l.b16 %v7436
      %v7728 = vunpack.c.l.b16 %v7437
      %v7729 = vunpack.c.l.b16 %v7438
      %v7730 = vunpack.c.l.b16 %v7439
      %v7731 = vunpack.c.l.b16 %v7440
      %v7732 = vunpack.c.l.b16 %v7441
      %v7733 = vunpack.c.l.b16 %v7442
      %v7734 = vunpack.c.l.b16 %v7443
      %v7735 = vunpack.c.l.b16 %v7444
      %v7736 = vpack.c.b16 %v7721, %v7720
      %v7737 = vpack.c.b16 %v7723, %v7722
      %v7738 = vpack.c.b16 %v7725, %v7724
      %v7739 = vpack.c.b16 %v7727, %v7726
      %v7740 = vpack.c.b16 %v7729, %v7728
      %v7741 = vpack.c.b16 %v7731, %v7730
      %v7742 = vpack.c.b16 %v7733, %v7732
      %v7743 = vpack.c.b16 %v7735, %v7734
      %7752 = vmatprep.subr.bf16.mxu0 0
      %7753 = vmatpush1.bf16.msra.mxu0 %v7743
      %7754 = vmatprep.subr.bf16.mxu0 0
      %7755 = vmatpush1.bf16.msra.mxu0 %v7742
      %7756 = vmatprep.subr.bf16.mxu0 0
      %7757 = vmatpush1.bf16.msra.mxu0 %v7741
      %7758 = vmatprep.subr.bf16.mxu0 0
      %7759 = vmatpush1.bf16.msra.mxu0 %v7740
      %7760 = vmatprep.subr.bf16.mxu0 0
      %7761 = vmatpush1.bf16.msra.mxu0 %v7739
      %7762 = vmatprep.subr.bf16.mxu0 0
      %7763 = vmatpush1.bf16.msra.mxu0 %v7738
      %7764 = vmatprep.subr.bf16.mxu0 0
      %7765 = vmatpush1.bf16.msra.mxu0 %v7737
      %7766 = vmatprep.subr.bf16.mxu0 0
      %7767 = vmatpush1.bf16.msra.mxu0 %v7736
      %7768 = vmatprep.subr.bf16.mxu0 0
      %7769 = vmatpush2.bf16.msra.mxu0 0
      %7770 = vmatprep.subr.bf16.mxu0 0
      %7771 = vmatpush2.bf16.msra.mxu0 0
      %7772 = vmatprep.subr.bf16.mxu0 0
      %7773 = vmatpush2.bf16.msra.mxu0 0
      %7774 = vmatprep.subr.bf16.mxu0 0
      %7775 = vmatpush2.bf16.msra.mxu0 0
      %7776 = vmatprep.subr.bf16.mxu0 0
      %7777 = vmatpush2.bf16.msra.mxu0 0
      %7778 = vmatprep.subr.bf16.mxu0 0
      %7779 = vmatpush2.bf16.msra.mxu0 0
      %7780 = vmatprep.subr.bf16.mxu0 0
      %7781 = vmatpush2.bf16.msra.mxu0 0
      %7782 = vmatprep.subr.bf16.mxu0 0
      %7783 = vmatpush2.bf16.msra.mxu0 0
      %7784 = vmatprep.mubr.bf16.mxu0 0
      %7785 = vmatmul.mubr.bf16.gmra.mxu0 %v7549
      %v7786 = vpop.f32.mrf.mxu0
      %v7787 = vadd.f32 0.0, %v7786
      %v7788 = vpop.f32.mrf.mxu0
      %v7789 = vpop.f32.mrf.mxu0
      %v7790 = vadd.f32 0.0, %v7789
      %v7791 = vpop.f32.mrf.mxu0
      %7792 = vmatprep.mubr.bf16.mxu0 0
      %7793 = vmatmul.mubr.bf16.gmra.mxu0 %v7557
      %v7794 = vpop.f32.mrf.mxu0
      %v7795 = vadd.f32 0.0, %v7794
      %v7796 = vpop.f32.mrf.mxu0
      %v7797 = vpop.f32.mrf.mxu0
      %v7798 = vadd.f32 0.0, %v7797
      %v7799 = vpop.f32.mrf.mxu0
      %7800 = vmatprep.mubr.bf16.mxu0 0
      %7801 = vmatmul.mubr.bf16.gmra.mxu0 %v7565
      %v7802 = vpop.f32.mrf.mxu0
      %v7803 = vadd.f32 0.0, %v7802
      %v7804 = vpop.f32.mrf.mxu0
      %v7805 = vpop.f32.mrf.mxu0
      %v7806 = vadd.f32 0.0, %v7805
      %v7807 = vpop.f32.mrf.mxu0
      %7808 = vmatprep.mubr.bf16.mxu0 0
      %7809 = vmatmul.mubr.bf16.gmra.mxu0 %v7573
      %v7810 = vpop.f32.mrf.mxu0
      %v7811 = vadd.f32 0.0, %v7810
      %v7812 = vpop.f32.mrf.mxu0
      %v7813 = vpop.f32.mrf.mxu0
      %v7814 = vadd.f32 0.0, %v7813
      %v7815 = vpop.f32.mrf.mxu0
      %7816 = vmatprep.mubr.bf16.mxu0 0
      %7817 = vmatmul.mubr.bf16.gmra.mxu0 %v7581
      %v7818 = vpop.f32.mrf.mxu0
      %v7819 = vadd.f32 0.0, %v7818
      %v7820 = vpop.f32.mrf.mxu0
      %v7821 = vpop.f32.mrf.mxu0
      %v7822 = vadd.f32 0.0, %v7821
      %v7823 = vpop.f32.mrf.mxu0
      %7824 = vmatprep.mubr.bf16.mxu0 0
      %7825 = vmatmul.mubr.bf16.gmra.mxu0 %v7589
      %v7826 = vpop.f32.mrf.mxu0
      %v7827 = vadd.f32 0.0, %v7826
      %v7828 = vpop.f32.mrf.mxu0
      %v7829 = vpop.f32.mrf.mxu0
      %v7830 = vadd.f32 0.0, %v7829
      %v7831 = vpop.f32.mrf.mxu0
      %7832 = vmatprep.mubr.bf16.mxu0 0
      %7833 = vmatmul.mubr.bf16.gmra.mxu0 %v7597
      %v7834 = vpop.f32.mrf.mxu0
      %v7835 = vadd.f32 0.0, %v7834
      %v7836 = vpop.f32.mrf.mxu0
      %v7837 = vpop.f32.mrf.mxu0
      %v7838 = vadd.f32 0.0, %v7837
      %v7839 = vpop.f32.mrf.mxu0
      %7840 = vmatprep.mubr.bf16.mxu0 0
      %7841 = vmatmul.mubr.bf16.gmra.mxu0 %v7605
      %v7842 = vpop.f32.mrf.mxu0
      %v7843 = vadd.f32 0.0, %v7842
      %v7844 = vpop.f32.mrf.mxu0
      %v7845 = vpop.f32.mrf.mxu0
      %v7846 = vadd.f32 0.0, %v7845
      %v7847 = vpop.f32.mrf.mxu0
      %7848 = vmatprep.mubr.bf16.mxu0 0
      %7849 = vmatmul.mubr.bf16.gmra.mxu0 %v7613
      %v7850 = vpop.f32.mrf.mxu0
      %v7851 = vadd.f32 0.0, %v7850
      %v7852 = vpop.f32.mrf.mxu0
      %v7853 = vpop.f32.mrf.mxu0
      %v7854 = vadd.f32 0.0, %v7853
      %v7855 = vpop.f32.mrf.mxu0
      %7856 = vmatprep.mubr.bf16.mxu0 0
      %7857 = vmatmul.mubr.bf16.gmra.mxu0 %v7621
      %v7858 = vpop.f32.mrf.mxu0
      %v7859 = vadd.f32 0.0, %v7858
      %v7860 = vpop.f32.mrf.mxu0
      %v7861 = vpop.f32.mrf.mxu0
      %v7862 = vadd.f32 0.0, %v7861
      %v7863 = vpop.f32.mrf.mxu0
      %7864 = vmatprep.mubr.bf16.mxu0 0
      %7865 = vmatmul.mubr.bf16.gmra.mxu0 %v7629
      %v7866 = vpop.f32.mrf.mxu0
      %v7867 = vadd.f32 0.0, %v7866
      %v7868 = vpop.f32.mrf.mxu0
      %v7869 = vpop.f32.mrf.mxu0
      %v7870 = vadd.f32 0.0, %v7869
      %v7871 = vpop.f32.mrf.mxu0
      %7872 = vmatprep.mubr.bf16.mxu0 0
      %7873 = vmatmul.mubr.bf16.gmra.mxu0 %v7637
      %v7874 = vpop.f32.mrf.mxu0
      %v7875 = vadd.f32 0.0, %v7874
      %v7876 = vpop.f32.mrf.mxu0
      %v7877 = vpop.f32.mrf.mxu0
      %v7878 = vadd.f32 0.0, %v7877
      %v7879 = vpop.f32.mrf.mxu0
      %7880 = vmatprep.mubr.bf16.mxu0 0
      %7881 = vmatmul.mubr.bf16.gmra.mxu0 %v7645
      %v7882 = vpop.f32.mrf.mxu0
      %v7883 = vadd.f32 0.0, %v7882
      %v7884 = vpop.f32.mrf.mxu0
      %v7885 = vpop.f32.mrf.mxu0
      %v7886 = vadd.f32 0.0, %v7885
      %v7887 = vpop.f32.mrf.mxu0
      %7888 = vmatprep.mubr.bf16.mxu0 0
      %7889 = vmatmul.mubr.bf16.gmra.mxu0 %v7653
      %v7890 = vpop.f32.mrf.mxu0
      %v7891 = vadd.f32 0.0, %v7890
      %v7892 = vpop.f32.mrf.mxu0
      %v7893 = vpop.f32.mrf.mxu0
      %v7894 = vadd.f32 0.0, %v7893
      %v7895 = vpop.f32.mrf.mxu0
      %7896 = vmatprep.mubr.bf16.mxu0 0
      %7897 = vmatmul.mubr.bf16.gmra.mxu0 %v7661
      %v7898 = vpop.f32.mrf.mxu0
      %v7899 = vadd.f32 0.0, %v7898
      %v7900 = vpop.f32.mrf.mxu0
      %v7901 = vpop.f32.mrf.mxu0
      %v7902 = vadd.f32 0.0, %v7901
      %v7903 = vpop.f32.mrf.mxu0
      %7904 = vmatprep.mubr.bf16.mxu0 0
      %7905 = vmatmul.mubr.bf16.gmra.mxu0 %v7669
      %v7906 = vpop.f32.mrf.mxu0
      %v7907 = vadd.f32 0.0, %v7906
      %v7908 = vpop.f32.mrf.mxu0
      %v7909 = vpop.f32.mrf.mxu0
      %v7910 = vadd.f32 0.0, %v7909
      %v7911 = vpop.f32.mrf.mxu0
      %7912 = vmatprep.mubr.bf16.mxu0 0
      %7913 = vmatmul.mubr.bf16.gmra.mxu0 %v7677
      %v7914 = vpop.f32.mrf.mxu0
      %v7915 = vadd.f32 0.0, %v7914
      %v7916 = vpop.f32.mrf.mxu0
      %v7917 = vpop.f32.mrf.mxu0
      %v7918 = vadd.f32 0.0, %v7917
      %v7919 = vpop.f32.mrf.mxu0
      %7920 = vmatprep.mubr.bf16.mxu0 0
      %7921 = vmatmul.mubr.bf16.gmra.mxu0 %v7685
      %v7922 = vpop.f32.mrf.mxu0
      %v7923 = vadd.f32 0.0, %v7922
      %v7924 = vpop.f32.mrf.mxu0
      %v7925 = vpop.f32.mrf.mxu0
      %v7926 = vadd.f32 0.0, %v7925
      %v7927 = vpop.f32.mrf.mxu0
      %7928 = vdwg.mxu0
      %v7929 = vadd.f32 %v7356, %v7787
      %v7930 = vadd.f32 %v7357, %v7790
      %v7931 = vadd.f32 %v7358, %v7795
      %v7932 = vadd.f32 %v7359, %v7798
      %v7933 = vadd.f32 %v7360, %v7803
      %v7934 = vadd.f32 %v7361, %v7806
      %v7935 = vadd.f32 %v7362, %v7811
      %v7936 = vadd.f32 %v7363, %v7814
      %v7937 = vadd.f32 %v7364, %v7819
      %v7938 = vadd.f32 %v7365, %v7822
      %v7939 = vadd.f32 %v7366, %v7827
      %v7940 = vadd.f32 %v7367, %v7830
      %v7941 = vadd.f32 %v7368, %v7835
      %v7942 = vadd.f32 %v7369, %v7838
      %v7943 = vadd.f32 %v7370, %v7843
      %v7944 = vadd.f32 %v7371, %v7846
      %v7945 = vadd.f32 %v7372, %v7851
      %v7946 = vadd.f32 %v7373, %v7854
      %v7947 = vadd.f32 %v7374, %v7859
      %v7948 = vadd.f32 %v7375, %v7862
      %v7949 = vadd.f32 %v7376, %v7867
      %v7950 = vadd.f32 %v7377, %v7870
      %v7951 = vadd.f32 %v7378, %v7875
      %v7952 = vadd.f32 %v7379, %v7878
      %v7953 = vadd.f32 %v7380, %v7883
      %v7954 = vadd.f32 %v7381, %v7886
      %v7955 = vadd.f32 %v7382, %v7891
      %v7956 = vadd.f32 %v7383, %v7894
      %v7957 = vadd.f32 %v7384, %v7899
      %v7958 = vadd.f32 %v7385, %v7902
      %v7959 = vadd.f32 %v7386, %v7907
      %v7960 = vadd.f32 %v7387, %v7910
      %v7961 = vadd.f32 %v7388, %v7915
      %v7962 = vadd.f32 %v7389, %v7918
      %v7963 = vadd.f32 %v7390, %v7923
      %v7964 = vadd.f32 %v7391, %v7926
      %v7965 = vld [vmem:[#allocation2 + $0xc] sm:$0xe]
      %v7966 = vld [vmem:[%s4 + $0x100] sm:$0xf]
      %v7967 = vld [vmem:[%s4 + $0x104] sm:$0xf]
      %v7968 = vld [vmem:[%s4 + $0x108] sm:$0xf]
      %v7969 = vld [vmem:[%s4 + $0x10c] sm:$0xf]
      %v7970 = vld [vmem:[%s4 + $0x110] sm:$0xf]
      %v7971 = vld [vmem:[%s4 + $0x114] sm:$0xf]
      %v7972 = vld [vmem:[%s4 + $0x118] sm:$0xf]
      %v7973 = vld [vmem:[%s4 + $0x11c] sm:$0xf]
      %v7974 = vld [vmem:[%s4 + $0x120] sm:$0xf]
      %v7975 = vld [vmem:[%s4 + $0x124] sm:$0xf]
      %v7976 = vld [vmem:[%s4 + $0x128] sm:$0xf]
      %v7977 = vld [vmem:[%s4 + $0x12c] sm:$0xf]
      %v7978 = vld [vmem:[%s4 + $0x130] sm:$0xf]
      %v7979 = vld [vmem:[%s4 + $0x134] sm:$0xf]
      %v7980 = vld [vmem:[%s4 + $0x138] sm:$0xf]
      %v7981 = vld [vmem:[%s4 + $0x13c] sm:$0xf]
      %v7983 = vunpack.c.l.b16 %v7965
      %v7984 = vpack.c.b16 %v7483, %v7983
      %v7985 = vrot.slane %v7984, 1
      %v7986 = vrot.slane %v7520, 1
      %v7987 = vsel %vm2293, %v7985, %v7986
      %v7988 = vrot.slane %v7521, 1
      %v7989 = vsel %vm2293, %v7986, %v7988
      %v7990 = vrot.slane %v7522, 1
      %v7991 = vsel %vm2293, %v7988, %v7990
      %v7992 = vrot.slane %v7523, 1
      %v7993 = vsel %vm2293, %v7990, %v7992
      %v7994 = vrot.slane %v7524, 1
      %v7995 = vsel %vm2293, %v7992, %v7994
      %v7996 = vrot.slane %v7525, 1
      %v7997 = vsel %vm2293, %v7994, %v7996
      %v7998 = vrot.slane %v7526, 1
      %v7999 = vsel %vm2293, %v7996, %v7998
      %v8000 = vrot.slane %v7527, 1
      %v8001 = vsel %vm2293, %v7998, %v8000
      %v8002 = vrot.slane %v7528, 1
      %v8003 = vsel %vm2293, %v8000, %v8002
      %v8004 = vrot.slane %v7529, 1
      %v8005 = vsel %vm2293, %v8002, %v8004
      %v8006 = vrot.slane %v7530, 1
      %v8007 = vsel %vm2293, %v8004, %v8006
      %v8008 = vrot.slane %v7531, 1
      %v8009 = vsel %vm2293, %v8006, %v8008
      %v8010 = vrot.slane %v7532, 1
      %v8011 = vsel %vm2293, %v8008, %v8010
      %v8012 = vrot.slane %v7533, 1
      %v8013 = vsel %vm2293, %v8010, %v8012
      %v8014 = vrot.slane %v7534, 1
      %v8015 = vsel %vm2293, %v8012, %v8014
      %v8016 = vrot.slane %v7535, 1
      %v8017 = vsel %vm2293, %v8014, %v8016
      %v8018 = vrot.slane %v7536, 1
      %v8019 = vsel %vm2293, %v8016, %v8018
      %v8020 = vrot.slane %v7537, 1
      %v8021 = vsel %vm2293, %v8018, %v8020
      %v8056 = vunpack.c.l.b16 %v7966
      %v8057 = vunpack.c.l.b16 %v7967
      %v8058 = vunpack.c.l.b16 %v7968
      %v8059 = vunpack.c.l.b16 %v7969
      %v8060 = vunpack.c.l.b16 %v7970
      %v8061 = vunpack.c.l.b16 %v7971
      %v8062 = vunpack.c.l.b16 %v7972
      %v8063 = vunpack.c.l.b16 %v7973
      %v8064 = vunpack.c.l.b16 %v7974
      %v8065 = vunpack.c.l.b16 %v7975
      %v8066 = vunpack.c.l.b16 %v7976
      %v8067 = vunpack.c.l.b16 %v7977
      %v8068 = vunpack.c.l.b16 %v7978
      %v8069 = vunpack.c.l.b16 %v7979
      %v8070 = vunpack.c.l.b16 %v7980
      %v8071 = vunpack.c.l.b16 %v7981
      %v8072 = vpack.c.b16 %v8057, %v8056
      %v8073 = vpack.c.b16 %v8059, %v8058
      %v8074 = vpack.c.b16 %v8061, %v8060
      %v8075 = vpack.c.b16 %v8063, %v8062
      %v8076 = vpack.c.b16 %v8065, %v8064
      %v8077 = vpack.c.b16 %v8067, %v8066
      %v8078 = vpack.c.b16 %v8069, %v8068
      %v8079 = vpack.c.b16 %v8071, %v8070
      %8088 = vmatprep.subr.bf16.mxu0 0
      %8089 = vmatpush1.bf16.msra.mxu0 %v8079
      %8090 = vmatprep.subr.bf16.mxu0 0
      %8091 = vmatpush1.bf16.msra.mxu0 %v8078
      %8092 = vmatprep.subr.bf16.mxu0 0
      %8093 = vmatpush1.bf16.msra.mxu0 %v8077
      %8094 = vmatprep.subr.bf16.mxu0 0
      %8095 = vmatpush1.bf16.msra.mxu0 %v8076
      %8096 = vmatprep.subr.bf16.mxu0 0
      %8097 = vmatpush1.bf16.msra.mxu0 %v8075
      %8098 = vmatprep.subr.bf16.mxu0 0
      %8099 = vmatpush1.bf16.msra.mxu0 %v8074
      %8100 = vmatprep.subr.bf16.mxu0 0
      %8101 = vmatpush1.bf16.msra.mxu0 %v8073
      %8102 = vmatprep.subr.bf16.mxu0 0
      %8103 = vmatpush1.bf16.msra.mxu0 %v8072
      %8104 = vmatprep.subr.bf16.mxu0 0
      %8105 = vmatpush2.bf16.msra.mxu0 0
      %8106 = vmatprep.subr.bf16.mxu0 0
      %8107 = vmatpush2.bf16.msra.mxu0 0
      %8108 = vmatprep.subr.bf16.mxu0 0
      %8109 = vmatpush2.bf16.msra.mxu0 0
      %8110 = vmatprep.subr.bf16.mxu0 0
      %8111 = vmatpush2.bf16.msra.mxu0 0
      %8112 = vmatprep.subr.bf16.mxu0 0
      %8113 = vmatpush2.bf16.msra.mxu0 0
      %8114 = vmatprep.subr.bf16.mxu0 0
      %8115 = vmatpush2.bf16.msra.mxu0 0
      %8116 = vmatprep.subr.bf16.mxu0 0
      %8117 = vmatpush2.bf16.msra.mxu0 0
      %8118 = vmatprep.subr.bf16.mxu0 0
      %8119 = vmatpush2.bf16.msra.mxu0 0
      %8120 = vmatprep.mubr.bf16.mxu0 0
      %8121 = vmatmul.mubr.bf16.gmra.mxu0 %v7987
      %v8122 = vpop.f32.mrf.mxu0
      %v8123 = vadd.f32 0.0, %v8122
      %v8124 = vpop.f32.mrf.mxu0
      %v8125 = vpop.f32.mrf.mxu0
      %v8126 = vadd.f32 0.0, %v8125
      %v8127 = vpop.f32.mrf.mxu0
      %8128 = vmatprep.mubr.bf16.mxu0 0
      %8129 = vmatmul.mubr.bf16.gmra.mxu0 %v7989
      %v8130 = vpop.f32.mrf.mxu0
      %v8131 = vadd.f32 0.0, %v8130
      %v8132 = vpop.f32.mrf.mxu0
      %v8133 = vpop.f32.mrf.mxu0
      %v8134 = vadd.f32 0.0, %v8133
      %v8135 = vpop.f32.mrf.mxu0
      %8136 = vmatprep.mubr.bf16.mxu0 0
      %8137 = vmatmul.mubr.bf16.gmra.mxu0 %v7991
      %v8138 = vpop.f32.mrf.mxu0
      %v8139 = vadd.f32 0.0, %v8138
      %v8140 = vpop.f32.mrf.mxu0
      %v8141 = vpop.f32.mrf.mxu0
      %v8142 = vadd.f32 0.0, %v8141
      %v8143 = vpop.f32.mrf.mxu0
      %8144 = vmatprep.mubr.bf16.mxu0 0
      %8145 = vmatmul.mubr.bf16.gmra.mxu0 %v7993
      %v8146 = vpop.f32.mrf.mxu0
      %v8147 = vadd.f32 0.0, %v8146
      %v8148 = vpop.f32.mrf.mxu0
      %v8149 = vpop.f32.mrf.mxu0
      %v8150 = vadd.f32 0.0, %v8149
      %v8151 = vpop.f32.mrf.mxu0
      %8152 = vmatprep.mubr.bf16.mxu0 0
      %8153 = vmatmul.mubr.bf16.gmra.mxu0 %v7995
      %v8154 = vpop.f32.mrf.mxu0
      %v8155 = vadd.f32 0.0, %v8154
      %v8156 = vpop.f32.mrf.mxu0
      %v8157 = vpop.f32.mrf.mxu0
      %v8158 = vadd.f32 0.0, %v8157
      %v8159 = vpop.f32.mrf.mxu0
      %8160 = vmatprep.mubr.bf16.mxu0 0
      %8161 = vmatmul.mubr.bf16.gmra.mxu0 %v7997
      %v8162 = vpop.f32.mrf.mxu0
      %v8163 = vadd.f32 0.0, %v8162
      %v8164 = vpop.f32.mrf.mxu0
      %v8165 = vpop.f32.mrf.mxu0
      %v8166 = vadd.f32 0.0, %v8165
      %v8167 = vpop.f32.mrf.mxu0
      %8168 = vmatprep.mubr.bf16.mxu0 0
      %8169 = vmatmul.mubr.bf16.gmra.mxu0 %v7999
      %v8170 = vpop.f32.mrf.mxu0
      %v8171 = vadd.f32 0.0, %v8170
      %v8172 = vpop.f32.mrf.mxu0
      %v8173 = vpop.f32.mrf.mxu0
      %v8174 = vadd.f32 0.0, %v8173
      %v8175 = vpop.f32.mrf.mxu0
      %8176 = vmatprep.mubr.bf16.mxu0 0
      %8177 = vmatmul.mubr.bf16.gmra.mxu0 %v8001
      %v8178 = vpop.f32.mrf.mxu0
      %v8179 = vadd.f32 0.0, %v8178
      %v8180 = vpop.f32.mrf.mxu0
      %v8181 = vpop.f32.mrf.mxu0
      %v8182 = vadd.f32 0.0, %v8181
      %v8183 = vpop.f32.mrf.mxu0
      %8184 = vmatprep.mubr.bf16.mxu0 0
      %8185 = vmatmul.mubr.bf16.gmra.mxu0 %v8003
      %v8186 = vpop.f32.mrf.mxu0
      %v8187 = vadd.f32 0.0, %v8186
      %v8188 = vpop.f32.mrf.mxu0
      %v8189 = vpop.f32.mrf.mxu0
      %v8190 = vadd.f32 0.0, %v8189
      %v8191 = vpop.f32.mrf.mxu0
      %8192 = vmatprep.mubr.bf16.mxu0 0
      %8193 = vmatmul.mubr.bf16.gmra.mxu0 %v8005
      %v8194 = vpop.f32.mrf.mxu0
      %v8195 = vadd.f32 0.0, %v8194
      %v8196 = vpop.f32.mrf.mxu0
      %v8197 = vpop.f32.mrf.mxu0
      %v8198 = vadd.f32 0.0, %v8197
      %v8199 = vpop.f32.mrf.mxu0
      %8200 = vmatprep.mubr.bf16.mxu0 0
      %8201 = vmatmul.mubr.bf16.gmra.mxu0 %v8007
      %v8202 = vpop.f32.mrf.mxu0
      %v8203 = vadd.f32 0.0, %v8202
      %v8204 = vpop.f32.mrf.mxu0
      %v8205 = vpop.f32.mrf.mxu0
      %v8206 = vadd.f32 0.0, %v8205
      %v8207 = vpop.f32.mrf.mxu0
      %8208 = vmatprep.mubr.bf16.mxu0 0
      %8209 = vmatmul.mubr.bf16.gmra.mxu0 %v8009
      %v8210 = vpop.f32.mrf.mxu0
      %v8211 = vadd.f32 0.0, %v8210
      %v8212 = vpop.f32.mrf.mxu0
      %v8213 = vpop.f32.mrf.mxu0
      %v8214 = vadd.f32 0.0, %v8213
      %v8215 = vpop.f32.mrf.mxu0
      %8216 = vmatprep.mubr.bf16.mxu0 0
      %8217 = vmatmul.mubr.bf16.gmra.mxu0 %v8011
      %v8218 = vpop.f32.mrf.mxu0
      %v8219 = vadd.f32 0.0, %v8218
      %v8220 = vpop.f32.mrf.mxu0
      %v8221 = vpop.f32.mrf.mxu0
      %v8222 = vadd.f32 0.0, %v8221
      %v8223 = vpop.f32.mrf.mxu0
      %8224 = vmatprep.mubr.bf16.mxu0 0
      %8225 = vmatmul.mubr.bf16.gmra.mxu0 %v8013
      %v8226 = vpop.f32.mrf.mxu0
      %v8227 = vadd.f32 0.0, %v8226
      %v8228 = vpop.f32.mrf.mxu0
      %v8229 = vpop.f32.mrf.mxu0
      %v8230 = vadd.f32 0.0, %v8229
      %v8231 = vpop.f32.mrf.mxu0
      %8232 = vmatprep.mubr.bf16.mxu0 0
      %8233 = vmatmul.mubr.bf16.gmra.mxu0 %v8015
      %v8234 = vpop.f32.mrf.mxu0
      %v8235 = vadd.f32 0.0, %v8234
      %v8236 = vpop.f32.mrf.mxu0
      %v8237 = vpop.f32.mrf.mxu0
      %v8238 = vadd.f32 0.0, %v8237
      %v8239 = vpop.f32.mrf.mxu0
      %8240 = vmatprep.mubr.bf16.mxu0 0
      %8241 = vmatmul.mubr.bf16.gmra.mxu0 %v8017
      %v8242 = vpop.f32.mrf.mxu0
      %v8243 = vadd.f32 0.0, %v8242
      %v8244 = vpop.f32.mrf.mxu0
      %v8245 = vpop.f32.mrf.mxu0
      %v8246 = vadd.f32 0.0, %v8245
      %v8247 = vpop.f32.mrf.mxu0
      %8248 = vmatprep.mubr.bf16.mxu0 0
      %8249 = vmatmul.mubr.bf16.gmra.mxu0 %v8019
      %v8250 = vpop.f32.mrf.mxu0
      %v8251 = vadd.f32 0.0, %v8250
      %v8252 = vpop.f32.mrf.mxu0
      %v8253 = vpop.f32.mrf.mxu0
      %v8254 = vadd.f32 0.0, %v8253
      %v8255 = vpop.f32.mrf.mxu0
      %8256 = vmatprep.mubr.bf16.mxu0 0
      %8257 = vmatmul.mubr.bf16.gmra.mxu0 %v8021
      %v8258 = vpop.f32.mrf.mxu0
      %v8259 = vadd.f32 0.0, %v8258
      %v8260 = vpop.f32.mrf.mxu0
      %v8261 = vpop.f32.mrf.mxu0
      %v8262 = vadd.f32 0.0, %v8261
      %v8263 = vpop.f32.mrf.mxu0
      %8264 = vdwg.mxu0
      %v8265 = vadd.f32 %v7929, %v8123
      %v8266 = vadd.f32 %v7930, %v8126
      %v8267 = vadd.f32 %v7931, %v8131
      %v8268 = vadd.f32 %v7932, %v8134
      %v8269 = vadd.f32 %v7933, %v8139
      %v8270 = vadd.f32 %v7934, %v8142
      %v8271 = vadd.f32 %v7935, %v8147
      %v8272 = vadd.f32 %v7936, %v8150
      %v8273 = vadd.f32 %v7937, %v8155
      %v8274 = vadd.f32 %v7938, %v8158
      %v8275 = vadd.f32 %v7939, %v8163
      %v8276 = vadd.f32 %v7940, %v8166
      %v8277 = vadd.f32 %v7941, %v8171
      %v8278 = vadd.f32 %v7942, %v8174
      %v8279 = vadd.f32 %v7943, %v8179
      %v8280 = vadd.f32 %v7944, %v8182
      %v8281 = vadd.f32 %v7945, %v8187
      %v8282 = vadd.f32 %v7946, %v8190
      %v8283 = vadd.f32 %v7947, %v8195
      %v8284 = vadd.f32 %v7948, %v8198
      %v8285 = vadd.f32 %v7949, %v8203
      %v8286 = vadd.f32 %v7950, %v8206
      %v8287 = vadd.f32 %v7951, %v8211
      %v8288 = vadd.f32 %v7952, %v8214
      %v8289 = vadd.f32 %v7953, %v8219
      %v8290 = vadd.f32 %v7954, %v8222
      %v8291 = vadd.f32 %v7955, %v8227
      %v8292 = vadd.f32 %v7956, %v8230
      %v8293 = vadd.f32 %v7957, %v8235
      %v8294 = vadd.f32 %v7958, %v8238
      %v8295 = vadd.f32 %v7959, %v8243
      %v8296 = vadd.f32 %v7960, %v8246
      %v8297 = vadd.f32 %v7961, %v8251
      %v8298 = vadd.f32 %v7962, %v8254
      %v8299 = vadd.f32 %v7963, %v8259
      %v8300 = vadd.f32 %v7964, %v8262
      %v8301 = vld [vmem:[#allocation2 + $0x9c] sm:$0x3]
      %v8302 = vld [vmem:[%s4 + $0x140] sm:$0xf]
      %v8303 = vld [vmem:[%s4 + $0x144] sm:$0xf]
      %v8304 = vld [vmem:[%s4 + $0x148] sm:$0xf]
      %v8305 = vld [vmem:[%s4 + $0x14c] sm:$0xf]
      %v8306 = vld [vmem:[%s4 + $0x150] sm:$0xf]
      %v8307 = vld [vmem:[%s4 + $0x154] sm:$0xf]
      %v8308 = vld [vmem:[%s4 + $0x158] sm:$0xf]
      %v8309 = vld [vmem:[%s4 + $0x15c] sm:$0xf]
      %v8310 = vld [vmem:[%s4 + $0x160] sm:$0xf]
      %v8311 = vld [vmem:[%s4 + $0x164] sm:$0xf]
      %v8312 = vld [vmem:[%s4 + $0x168] sm:$0xf]
      %v8313 = vld [vmem:[%s4 + $0x16c] sm:$0xf]
      %v8314 = vld [vmem:[%s4 + $0x170] sm:$0xf]
      %v8315 = vld [vmem:[%s4 + $0x174] sm:$0xf]
      %v8316 = vld [vmem:[%s4 + $0x178] sm:$0xf]
      %v8317 = vld [vmem:[%s4 + $0x17c] sm:$0xf]
      %v8319 = vunpack.c.l.b16 %v8301
      %v8320 = vpack.c.b16 %v8319, %v8319
      %v8322 = vshrl.u32 %v7984, 16
      %v8324 = vrot.slane %v8322, 1
      %v8325 = vshll.u32 %v7984, 16
      %v8327 = vrot.slane %v8325, 2
      %v8328 = vor.u32 %v8324, %v8327
      %v8329 = vrot.slane %v7550, 1
      %v8330 = vrot.slane %v7546, 2
      %v8331 = vor.u32 %v8329, %v8330
      %v8332 = vsel %vm2647, %v8328, %v8331
      %v8333 = vrot.slane %v7558, 1
      %v8334 = vrot.slane %v7554, 2
      %v8335 = vor.u32 %v8333, %v8334
      %v8336 = vsel %vm2647, %v8331, %v8335
      %v8337 = vrot.slane %v7566, 1
      %v8338 = vrot.slane %v7562, 2
      %v8339 = vor.u32 %v8337, %v8338
      %v8340 = vsel %vm2647, %v8335, %v8339
      %v8341 = vrot.slane %v7574, 1
      %v8342 = vrot.slane %v7570, 2
      %v8343 = vor.u32 %v8341, %v8342
      %v8344 = vsel %vm2647, %v8339, %v8343
      %v8345 = vrot.slane %v7582, 1
      %v8346 = vrot.slane %v7578, 2
      %v8347 = vor.u32 %v8345, %v8346
      %v8348 = vsel %vm2647, %v8343, %v8347
      %v8349 = vrot.slane %v7590, 1
      %v8350 = vrot.slane %v7586, 2
      %v8351 = vor.u32 %v8349, %v8350
      %v8352 = vsel %vm2647, %v8347, %v8351
      %v8353 = vrot.slane %v7598, 1
      %v8354 = vrot.slane %v7594, 2
      %v8355 = vor.u32 %v8353, %v8354
      %v8356 = vsel %vm2647, %v8351, %v8355
      %v8357 = vrot.slane %v7606, 1
      %v8358 = vrot.slane %v7602, 2
      %v8359 = vor.u32 %v8357, %v8358
      %v8360 = vsel %vm2647, %v8355, %v8359
      %v8361 = vrot.slane %v7614, 1
      %v8362 = vrot.slane %v7610, 2
      %v8363 = vor.u32 %v8361, %v8362
      %v8364 = vsel %vm2647, %v8359, %v8363
      %v8365 = vrot.slane %v7622, 1
      %v8366 = vrot.slane %v7618, 2
      %v8367 = vor.u32 %v8365, %v8366
      %v8368 = vsel %vm2647, %v8363, %v8367
      %v8369 = vrot.slane %v7630, 1
      %v8370 = vrot.slane %v7626, 2
      %v8371 = vor.u32 %v8369, %v8370
      %v8372 = vsel %vm2647, %v8367, %v8371
      %v8373 = vrot.slane %v7638, 1
      %v8374 = vrot.slane %v7634, 2
      %v8375 = vor.u32 %v8373, %v8374
      %v8376 = vsel %vm2647, %v8371, %v8375
      %v8377 = vrot.slane %v7646, 1
      %v8378 = vrot.slane %v7642, 2
      %v8379 = vor.u32 %v8377, %v8378
      %v8380 = vsel %vm2647, %v8375, %v8379
      %v8381 = vrot.slane %v7654, 1
      %v8382 = vrot.slane %v7650, 2
      %v8383 = vor.u32 %v8381, %v8382
      %v8384 = vsel %vm2647, %v8379, %v8383
      %v8385 = vrot.slane %v7662, 1
      %v8386 = vrot.slane %v7658, 2
      %v8387 = vor.u32 %v8385, %v8386
      %v8388 = vsel %vm2647, %v8383, %v8387
      %v8389 = vrot.slane %v7670, 1
      %v8390 = vrot.slane %v7666, 2
      %v8391 = vor.u32 %v8389, %v8390
      %v8392 = vsel %vm2647, %v8387, %v8391
      %v8393 = vrot.slane %v7678, 1
      %v8394 = vrot.slane %v7674, 2
      %v8395 = vor.u32 %v8393, %v8394
      %v8396 = vsel %vm2647, %v8391, %v8395
      %v8398 = vshrl.u32 %v8320, 16
      %v8400 = vrot.slane %v8398, 1
      %v8401 = vshll.u32 %v8320, 16
      %v8403 = vrot.slane %v8401, 2
      %v8404 = vor.u32 %v8400, %v8403
      %v8405 = vsel %vm2647, %v8395, %v8404
      %v8440 = vunpack.c.l.b16 %v8302
      %v8441 = vunpack.c.l.b16 %v8303
      %v8442 = vunpack.c.l.b16 %v8304
      %v8443 = vunpack.c.l.b16 %v8305
      %v8444 = vunpack.c.l.b16 %v8306
      %v8445 = vunpack.c.l.b16 %v8307
      %v8446 = vunpack.c.l.b16 %v8308
      %v8447 = vunpack.c.l.b16 %v8309
      %v8448 = vunpack.c.l.b16 %v8310
      %v8449 = vunpack.c.l.b16 %v8311
      %v8450 = vunpack.c.l.b16 %v8312
      %v8451 = vunpack.c.l.b16 %v8313
      %v8452 = vunpack.c.l.b16 %v8314
      %v8453 = vunpack.c.l.b16 %v8315
      %v8454 = vunpack.c.l.b16 %v8316
      %v8455 = vunpack.c.l.b16 %v8317
      %v8456 = vpack.c.b16 %v8441, %v8440
      %v8457 = vpack.c.b16 %v8443, %v8442
      %v8458 = vpack.c.b16 %v8445, %v8444
      %v8459 = vpack.c.b16 %v8447, %v8446
      %v8460 = vpack.c.b16 %v8449, %v8448
      %v8461 = vpack.c.b16 %v8451, %v8450
      %v8462 = vpack.c.b16 %v8453, %v8452
      %v8463 = vpack.c.b16 %v8455, %v8454
      %8472 = vmatprep.subr.bf16.mxu0 0
      %8473 = vmatpush1.bf16.msra.mxu0 %v8463
      %8474 = vmatprep.subr.bf16.mxu0 0
      %8475 = vmatpush1.bf16.msra.mxu0 %v8462
      %8476 = vmatprep.subr.bf16.mxu0 0
      %8477 = vmatpush1.bf16.msra.mxu0 %v8461
      %8478 = vmatprep.subr.bf16.mxu0 0
      %8479 = vmatpush1.bf16.msra.mxu0 %v8460
      %8480 = vmatprep.subr.bf16.mxu0 0
      %8481 = vmatpush1.bf16.msra.mxu0 %v8459
      %8482 = vmatprep.subr.bf16.mxu0 0
      %8483 = vmatpush1.bf16.msra.mxu0 %v8458
      %8484 = vmatprep.subr.bf16.mxu0 0
      %8485 = vmatpush1.bf16.msra.mxu0 %v8457
      %8486 = vmatprep.subr.bf16.mxu0 0
      %8487 = vmatpush1.bf16.msra.mxu0 %v8456
      %8488 = vmatprep.subr.bf16.mxu0 0
      %8489 = vmatpush2.bf16.msra.mxu0 0
      %8490 = vmatprep.subr.bf16.mxu0 0
      %8491 = vmatpush2.bf16.msra.mxu0 0
      %8492 = vmatprep.subr.bf16.mxu0 0
      %8493 = vmatpush2.bf16.msra.mxu0 0
      %8494 = vmatprep.subr.bf16.mxu0 0
      %8495 = vmatpush2.bf16.msra.mxu0 0
      %8496 = vmatprep.subr.bf16.mxu0 0
      %8497 = vmatpush2.bf16.msra.mxu0 0
      %8498 = vmatprep.subr.bf16.mxu0 0
      %8499 = vmatpush2.bf16.msra.mxu0 0
      %8500 = vmatprep.subr.bf16.mxu0 0
      %8501 = vmatpush2.bf16.msra.mxu0 0
      %8502 = vmatprep.subr.bf16.mxu0 0
      %8503 = vmatpush2.bf16.msra.mxu0 0
      %8504 = vmatprep.mubr.bf16.mxu0 0
      %8505 = vmatmul.mubr.bf16.gmra.mxu0 %v8332
      %v8506 = vpop.f32.mrf.mxu0
      %v8507 = vadd.f32 0.0, %v8506
      %v8508 = vpop.f32.mrf.mxu0
      %v8509 = vpop.f32.mrf.mxu0
      %v8510 = vadd.f32 0.0, %v8509
      %v8511 = vpop.f32.mrf.mxu0
      %8512 = vmatprep.mubr.bf16.mxu0 0
      %8513 = vmatmul.mubr.bf16.gmra.mxu0 %v8336
      %v8514 = vpop.f32.mrf.mxu0
      %v8515 = vadd.f32 0.0, %v8514
      %v8516 = vpop.f32.mrf.mxu0
      %v8517 = vpop.f32.mrf.mxu0
      %v8518 = vadd.f32 0.0, %v8517
      %v8519 = vpop.f32.mrf.mxu0
      %8520 = vmatprep.mubr.bf16.mxu0 0
      %8521 = vmatmul.mubr.bf16.gmra.mxu0 %v8340
      %v8522 = vpop.f32.mrf.mxu0
      %v8523 = vadd.f32 0.0, %v8522
      %v8524 = vpop.f32.mrf.mxu0
      %v8525 = vpop.f32.mrf.mxu0
      %v8526 = vadd.f32 0.0, %v8525
      %v8527 = vpop.f32.mrf.mxu0
      %8528 = vmatprep.mubr.bf16.mxu0 0
      %8529 = vmatmul.mubr.bf16.gmra.mxu0 %v8344
      %v8530 = vpop.f32.mrf.mxu0
      %v8531 = vadd.f32 0.0, %v8530
      %v8532 = vpop.f32.mrf.mxu0
      %v8533 = vpop.f32.mrf.mxu0
      %v8534 = vadd.f32 0.0, %v8533
      %v8535 = vpop.f32.mrf.mxu0
      %8536 = vmatprep.mubr.bf16.mxu0 0
      %8537 = vmatmul.mubr.bf16.gmra.mxu0 %v8348
      %v8538 = vpop.f32.mrf.mxu0
      %v8539 = vadd.f32 0.0, %v8538
      %v8540 = vpop.f32.mrf.mxu0
      %v8541 = vpop.f32.mrf.mxu0
      %v8542 = vadd.f32 0.0, %v8541
      %v8543 = vpop.f32.mrf.mxu0
      %8544 = vmatprep.mubr.bf16.mxu0 0
      %8545 = vmatmul.mubr.bf16.gmra.mxu0 %v8352
      %v8546 = vpop.f32.mrf.mxu0
      %v8547 = vadd.f32 0.0, %v8546
      %v8548 = vpop.f32.mrf.mxu0
      %v8549 = vpop.f32.mrf.mxu0
      %v8550 = vadd.f32 0.0, %v8549
      %v8551 = vpop.f32.mrf.mxu0
      %8552 = vmatprep.mubr.bf16.mxu0 0
      %8553 = vmatmul.mubr.bf16.gmra.mxu0 %v8356
      %v8554 = vpop.f32.mrf.mxu0
      %v8555 = vadd.f32 0.0, %v8554
      %v8556 = vpop.f32.mrf.mxu0
      %v8557 = vpop.f32.mrf.mxu0
      %v8558 = vadd.f32 0.0, %v8557
      %v8559 = vpop.f32.mrf.mxu0
      %8560 = vmatprep.mubr.bf16.mxu0 0
      %8561 = vmatmul.mubr.bf16.gmra.mxu0 %v8360
      %v8562 = vpop.f32.mrf.mxu0
      %v8563 = vadd.f32 0.0, %v8562
      %v8564 = vpop.f32.mrf.mxu0
      %v8565 = vpop.f32.mrf.mxu0
      %v8566 = vadd.f32 0.0, %v8565
      %v8567 = vpop.f32.mrf.mxu0
      %8568 = vmatprep.mubr.bf16.mxu0 0
      %8569 = vmatmul.mubr.bf16.gmra.mxu0 %v8364
      %v8570 = vpop.f32.mrf.mxu0
      %v8571 = vadd.f32 0.0, %v8570
      %v8572 = vpop.f32.mrf.mxu0
      %v8573 = vpop.f32.mrf.mxu0
      %v8574 = vadd.f32 0.0, %v8573
      %v8575 = vpop.f32.mrf.mxu0
      %8576 = vmatprep.mubr.bf16.mxu0 0
      %8577 = vmatmul.mubr.bf16.gmra.mxu0 %v8368
      %v8578 = vpop.f32.mrf.mxu0
      %v8579 = vadd.f32 0.0, %v8578
      %v8580 = vpop.f32.mrf.mxu0
      %v8581 = vpop.f32.mrf.mxu0
      %v8582 = vadd.f32 0.0, %v8581
      %v8583 = vpop.f32.mrf.mxu0
      %8584 = vmatprep.mubr.bf16.mxu0 0
      %8585 = vmatmul.mubr.bf16.gmra.mxu0 %v8372
      %v8586 = vpop.f32.mrf.mxu0
      %v8587 = vadd.f32 0.0, %v8586
      %v8588 = vpop.f32.mrf.mxu0
      %v8589 = vpop.f32.mrf.mxu0
      %v8590 = vadd.f32 0.0, %v8589
      %v8591 = vpop.f32.mrf.mxu0
      %8592 = vmatprep.mubr.bf16.mxu0 0
      %8593 = vmatmul.mubr.bf16.gmra.mxu0 %v8376
      %v8594 = vpop.f32.mrf.mxu0
      %v8595 = vadd.f32 0.0, %v8594
      %v8596 = vpop.f32.mrf.mxu0
      %v8597 = vpop.f32.mrf.mxu0
      %v8598 = vadd.f32 0.0, %v8597
      %v8599 = vpop.f32.mrf.mxu0
      %8600 = vmatprep.mubr.bf16.mxu0 0
      %8601 = vmatmul.mubr.bf16.gmra.mxu0 %v8380
      %v8602 = vpop.f32.mrf.mxu0
      %v8603 = vadd.f32 0.0, %v8602
      %v8604 = vpop.f32.mrf.mxu0
      %v8605 = vpop.f32.mrf.mxu0
      %v8606 = vadd.f32 0.0, %v8605
      %v8607 = vpop.f32.mrf.mxu0
      %8608 = vmatprep.mubr.bf16.mxu0 0
      %8609 = vmatmul.mubr.bf16.gmra.mxu0 %v8384
      %v8610 = vpop.f32.mrf.mxu0
      %v8611 = vadd.f32 0.0, %v8610
      %v8612 = vpop.f32.mrf.mxu0
      %v8613 = vpop.f32.mrf.mxu0
      %v8614 = vadd.f32 0.0, %v8613
      %v8615 = vpop.f32.mrf.mxu0
      %8616 = vmatprep.mubr.bf16.mxu0 0
      %8617 = vmatmul.mubr.bf16.gmra.mxu0 %v8388
      %v8618 = vpop.f32.mrf.mxu0
      %v8619 = vadd.f32 0.0, %v8618
      %v8620 = vpop.f32.mrf.mxu0
      %v8621 = vpop.f32.mrf.mxu0
      %v8622 = vadd.f32 0.0, %v8621
      %v8623 = vpop.f32.mrf.mxu0
      %8624 = vmatprep.mubr.bf16.mxu0 0
      %8625 = vmatmul.mubr.bf16.gmra.mxu0 %v8392
      %v8626 = vpop.f32.mrf.mxu0
      %v8627 = vadd.f32 0.0, %v8626
      %v8628 = vpop.f32.mrf.mxu0
      %v8629 = vpop.f32.mrf.mxu0
      %v8630 = vadd.f32 0.0, %v8629
      %v8631 = vpop.f32.mrf.mxu0
      %8632 = vmatprep.mubr.bf16.mxu0 0
      %8633 = vmatmul.mubr.bf16.gmra.mxu0 %v8396
      %v8634 = vpop.f32.mrf.mxu0
      %v8635 = vadd.f32 0.0, %v8634
      %v8636 = vpop.f32.mrf.mxu0
      %v8637 = vpop.f32.mrf.mxu0
      %v8638 = vadd.f32 0.0, %v8637
      %v8639 = vpop.f32.mrf.mxu0
      %8640 = vmatprep.mubr.bf16.mxu0 0
      %8641 = vmatmul.mubr.bf16.gmra.mxu0 %v8405
      %v8642 = vpop.f32.mrf.mxu0
      %v8643 = vadd.f32 0.0, %v8642
      %v8644 = vpop.f32.mrf.mxu0
      %v8645 = vpop.f32.mrf.mxu0
      %v8646 = vadd.f32 0.0, %v8645
      %v8647 = vpop.f32.mrf.mxu0
      %8648 = vdwg.mxu0
      %v8649 = vadd.f32 %v8265, %v8507
      %v8650 = vadd.f32 %v8266, %v8510
      %v8651 = vadd.f32 %v8267, %v8515
      %v8652 = vadd.f32 %v8268, %v8518
      %v8653 = vadd.f32 %v8269, %v8523
      %v8654 = vadd.f32 %v8270, %v8526
      %v8655 = vadd.f32 %v8271, %v8531
      %v8656 = vadd.f32 %v8272, %v8534
      %v8657 = vadd.f32 %v8273, %v8539
      %v8658 = vadd.f32 %v8274, %v8542
      %v8659 = vadd.f32 %v8275, %v8547
      %v8660 = vadd.f32 %v8276, %v8550
      %v8661 = vadd.f32 %v8277, %v8555
      %v8662 = vadd.f32 %v8278, %v8558
      %v8663 = vadd.f32 %v8279, %v8563
      %v8664 = vadd.f32 %v8280, %v8566
      %v8665 = vadd.f32 %v8281, %v8571
      %v8666 = vadd.f32 %v8282, %v8574
      %v8667 = vadd.f32 %v8283, %v8579
      %v8668 = vadd.f32 %v8284, %v8582
      %v8669 = vadd.f32 %v8285, %v8587
      %v8670 = vadd.f32 %v8286, %v8590
      %v8671 = vadd.f32 %v8287, %v8595
      %v8672 = vadd.f32 %v8288, %v8598
      %v8673 = vadd.f32 %v8289, %v8603
      %v8674 = vadd.f32 %v8290, %v8606
      %v8675 = vadd.f32 %v8291, %v8611
      %v8676 = vadd.f32 %v8292, %v8614
      %v8677 = vadd.f32 %v8293, %v8619
      %v8678 = vadd.f32 %v8294, %v8622
      %v8679 = vadd.f32 %v8295, %v8627
      %v8680 = vadd.f32 %v8296, %v8630
      %v8681 = vadd.f32 %v8297, %v8635
      %v8682 = vadd.f32 %v8298, %v8638
      %v8683 = vadd.f32 %v8299, %v8643
      %v8684 = vadd.f32 %v8300, %v8646
      %v8685 = vld [vmem:[#allocation2 + $0x14] sm:$0xe]
      %v8686 = vld [vmem:[#allocation2 + $0x18] sm:$0xf]
      %v8687 = vld [vmem:[#allocation2 + $0x1c] sm:$0xf]
      %v8688 = vld [vmem:[#allocation2 + $0x20] sm:$0xf]
      %v8689 = vld [vmem:[#allocation2 + $0x24] sm:$0xf]
      %v8690 = vld [vmem:[#allocation2 + $0x28] sm:$0xf]
      %v8691 = vld [vmem:[#allocation2 + $0x2c] sm:$0xf]
      %v8692 = vld [vmem:[#allocation2 + $0x30] sm:$0xf]
      %v8693 = vld [vmem:[#allocation2 + $0x34] sm:$0xf]
      %v8694 = vld [vmem:[#allocation2 + $0x38] sm:$0xf]
      %v8695 = vld [vmem:[#allocation2 + $0x3c] sm:$0xf]
      %v8696 = vld [vmem:[#allocation2 + $0x40] sm:$0xf]
      %v8697 = vld [vmem:[#allocation2 + $0x44] sm:$0xf]
      %v8698 = vld [vmem:[#allocation2 + $0x48] sm:$0xf]
      %v8699 = vld [vmem:[#allocation2 + $0x4c] sm:$0xf]
      %v8700 = vld [vmem:[#allocation2 + $0x50] sm:$0xf]
      %v8701 = vld [vmem:[#allocation2 + $0x54] sm:$0xf]
      %v8702 = vld [vmem:[#allocation2 + $0x58] sm:$0xf]
      %v8703 = vld [vmem:[#allocation2 + $0x5c] sm:$0xf]
      %v8704 = vld [vmem:[#allocation2 + $0x60] sm:$0xf]
      %v8705 = vld [vmem:[#allocation2 + $0x64] sm:$0xf]
      %v8706 = vld [vmem:[#allocation2 + $0x68] sm:$0xf]
      %v8707 = vld [vmem:[#allocation2 + $0x6c] sm:$0xf]
      %v8708 = vld [vmem:[#allocation2 + $0x70] sm:$0xf]
      %v8709 = vld [vmem:[#allocation2 + $0x74] sm:$0xf]
      %v8710 = vld [vmem:[#allocation2 + $0x78] sm:$0xf]
      %v8711 = vld [vmem:[#allocation2 + $0x7c] sm:$0xf]
      %v8712 = vld [vmem:[#allocation2 + $0x80] sm:$0xf]
      %v8713 = vld [vmem:[#allocation2 + $0x84] sm:$0xf]
      %v8714 = vld [vmem:[#allocation2 + $0x88] sm:$0xf]
      %v8715 = vld [vmem:[#allocation2 + $0x8c] sm:$0xf]
      %v8716 = vld [vmem:[#allocation2 + $0x90] sm:$0xf]
      %v8717 = vld [vmem:[#allocation2 + $0x94] sm:$0xf]
      %v8718 = vld [vmem:[#allocation2 + $0x98] sm:$0xf]
      %v8719 = vld [vmem:[#allocation2 + $0x9c] sm:$0xf]
      %v8720 = vld [vmem:[#allocation2 + $0xa0] sm:$0xf]
      %v8721 = vld [vmem:[#allocation2 + $0xa4] sm:$0x3]
      %v8722 = vld [vmem:[%s4 + $0x180] sm:$0xf]
      %v8723 = vld [vmem:[%s4 + $0x184] sm:$0xf]
      %v8724 = vld [vmem:[%s4 + $0x188] sm:$0xf]
      %v8725 = vld [vmem:[%s4 + $0x18c] sm:$0xf]
      %v8726 = vld [vmem:[%s4 + $0x190] sm:$0xf]
      %v8727 = vld [vmem:[%s4 + $0x194] sm:$0xf]
      %v8728 = vld [vmem:[%s4 + $0x198] sm:$0xf]
      %v8729 = vld [vmem:[%s4 + $0x19c] sm:$0xf]
      %v8730 = vld [vmem:[%s4 + $0x1a0] sm:$0xf]
      %v8731 = vld [vmem:[%s4 + $0x1a4] sm:$0xf]
      %v8732 = vld [vmem:[%s4 + $0x1a8] sm:$0xf]
      %v8733 = vld [vmem:[%s4 + $0x1ac] sm:$0xf]
      %v8734 = vld [vmem:[%s4 + $0x1b0] sm:$0xf]
      %v8735 = vld [vmem:[%s4 + $0x1b4] sm:$0xf]
      %v8736 = vld [vmem:[%s4 + $0x1b8] sm:$0xf]
      %v8737 = vld [vmem:[%s4 + $0x1bc] sm:$0xf]
      %v8775 = vunpack.c.l.b16 %v8685
      %v8776 = vunpack.c.l.b16 %v8686
      %v8777 = vunpack.c.l.b16 %v8687
      %v8778 = vunpack.c.l.b16 %v8688
      %v8779 = vunpack.c.l.b16 %v8689
      %v8780 = vunpack.c.l.b16 %v8690
      %v8781 = vunpack.c.l.b16 %v8691
      %v8782 = vunpack.c.l.b16 %v8692
      %v8783 = vunpack.c.l.b16 %v8693
      %v8784 = vunpack.c.l.b16 %v8694
      %v8785 = vunpack.c.l.b16 %v8695
      %v8786 = vunpack.c.l.b16 %v8696
      %v8787 = vunpack.c.l.b16 %v8697
      %v8788 = vunpack.c.l.b16 %v8698
      %v8789 = vunpack.c.l.b16 %v8699
      %v8790 = vunpack.c.l.b16 %v8700
      %v8791 = vunpack.c.l.b16 %v8701
      %v8792 = vunpack.c.l.b16 %v8702
      %v8793 = vunpack.c.l.b16 %v8703
      %v8794 = vunpack.c.l.b16 %v8704
      %v8795 = vunpack.c.l.b16 %v8705
      %v8796 = vunpack.c.l.b16 %v8706
      %v8797 = vunpack.c.l.b16 %v8707
      %v8798 = vunpack.c.l.b16 %v8708
      %v8799 = vunpack.c.l.b16 %v8709
      %v8800 = vunpack.c.l.b16 %v8710
      %v8801 = vunpack.c.l.b16 %v8711
      %v8802 = vunpack.c.l.b16 %v8712
      %v8803 = vunpack.c.l.b16 %v8713
      %v8804 = vunpack.c.l.b16 %v8714
      %v8805 = vunpack.c.l.b16 %v8715
      %v8806 = vunpack.c.l.b16 %v8716
      %v8807 = vunpack.c.l.b16 %v8717
      %v8808 = vunpack.c.l.b16 %v8718
      %v8809 = vunpack.c.l.b16 %v8719
      %v8810 = vunpack.c.l.b16 %v8720
      %v8811 = vunpack.c.l.b16 %v8721
      %v8812 = vpack.c.b16 %v8776, %v8775
      %v8813 = vpack.c.b16 %v8778, %v8777
      %v8814 = vpack.c.b16 %v8780, %v8779
      %v8815 = vpack.c.b16 %v8782, %v8781
      %v8816 = vpack.c.b16 %v8784, %v8783
      %v8817 = vpack.c.b16 %v8786, %v8785
      %v8818 = vpack.c.b16 %v8788, %v8787
      %v8819 = vpack.c.b16 %v8790, %v8789
      %v8820 = vpack.c.b16 %v8792, %v8791
      %v8821 = vpack.c.b16 %v8794, %v8793
      %v8822 = vpack.c.b16 %v8796, %v8795
      %v8823 = vpack.c.b16 %v8798, %v8797
      %v8824 = vpack.c.b16 %v8800, %v8799
      %v8825 = vpack.c.b16 %v8802, %v8801
      %v8826 = vpack.c.b16 %v8804, %v8803
      %v8827 = vpack.c.b16 %v8806, %v8805
      %v8828 = vpack.c.b16 %v8808, %v8807
      %v8829 = vpack.c.b16 %v8810, %v8809
      %v8830 = vpack.c.b16 %v8811, %v8811
      %v8832 = vshrl.u32 %v8812, 16
      %v8834 = vrot.slane %v8832, 1
      %v8835 = vshll.u32 %v8812, 16
      %v8837 = vrot.slane %v8835, 2
      %v8838 = vor.u32 %v8834, %v8837
      %v8840 = vshrl.u32 %v8813, 16
      %v8842 = vrot.slane %v8840, 1
      %v8843 = vshll.u32 %v8813, 16
      %v8845 = vrot.slane %v8843, 2
      %v8846 = vor.u32 %v8842, %v8845
      %v8847 = vsel %vm2647, %v8838, %v8846
      %v8849 = vshrl.u32 %v8814, 16
      %v8851 = vrot.slane %v8849, 1
      %v8852 = vshll.u32 %v8814, 16
      %v8854 = vrot.slane %v8852, 2
      %v8855 = vor.u32 %v8851, %v8854
      %v8856 = vsel %vm2647, %v8846, %v8855
      %v8858 = vshrl.u32 %v8815, 16
      %v8860 = vrot.slane %v8858, 1
      %v8861 = vshll.u32 %v8815, 16
      %v8863 = vrot.slane %v8861, 2
      %v8864 = vor.u32 %v8860, %v8863
      %v8865 = vsel %vm2647, %v8855, %v8864
      %v8867 = vshrl.u32 %v8816, 16
      %v8869 = vrot.slane %v8867, 1
      %v8870 = vshll.u32 %v8816, 16
      %v8872 = vrot.slane %v8870, 2
      %v8873 = vor.u32 %v8869, %v8872
      %v8874 = vsel %vm2647, %v8864, %v8873
      %v8876 = vshrl.u32 %v8817, 16
      %v8878 = vrot.slane %v8876, 1
      %v8879 = vshll.u32 %v8817, 16
      %v8881 = vrot.slane %v8879, 2
      %v8882 = vor.u32 %v8878, %v8881
      %v8883 = vsel %vm2647, %v8873, %v8882
      %v8885 = vshrl.u32 %v8818, 16
      %v8887 = vrot.slane %v8885, 1
      %v8888 = vshll.u32 %v8818, 16
      %v8890 = vrot.slane %v8888, 2
      %v8891 = vor.u32 %v8887, %v8890
      %v8892 = vsel %vm2647, %v8882, %v8891
      %v8894 = vshrl.u32 %v8819, 16
      %v8896 = vrot.slane %v8894, 1
      %v8897 = vshll.u32 %v8819, 16
      %v8899 = vrot.slane %v8897, 2
      %v8900 = vor.u32 %v8896, %v8899
      %v8901 = vsel %vm2647, %v8891, %v8900
      %v8903 = vshrl.u32 %v8820, 16
      %v8905 = vrot.slane %v8903, 1
      %v8906 = vshll.u32 %v8820, 16
      %v8908 = vrot.slane %v8906, 2
      %v8909 = vor.u32 %v8905, %v8908
      %v8910 = vsel %vm2647, %v8900, %v8909
      %v8912 = vshrl.u32 %v8821, 16
      %v8914 = vrot.slane %v8912, 1
      %v8915 = vshll.u32 %v8821, 16
      %v8917 = vrot.slane %v8915, 2
      %v8918 = vor.u32 %v8914, %v8917
      %v8919 = vsel %vm2647, %v8909, %v8918
      %v8921 = vshrl.u32 %v8822, 16
      %v8923 = vrot.slane %v8921, 1
      %v8924 = vshll.u32 %v8822, 16
      %v8926 = vrot.slane %v8924, 2
      %v8927 = vor.u32 %v8923, %v8926
      %v8928 = vsel %vm2647, %v8918, %v8927
      %v8930 = vshrl.u32 %v8823, 16
      %v8932 = vrot.slane %v8930, 1
      %v8933 = vshll.u32 %v8823, 16
      %v8935 = vrot.slane %v8933, 2
      %v8936 = vor.u32 %v8932, %v8935
      %v8937 = vsel %vm2647, %v8927, %v8936
      %v8939 = vshrl.u32 %v8824, 16
      %v8941 = vrot.slane %v8939, 1
      %v8942 = vshll.u32 %v8824, 16
      %v8944 = vrot.slane %v8942, 2
      %v8945 = vor.u32 %v8941, %v8944
      %v8946 = vsel %vm2647, %v8936, %v8945
      %v8948 = vshrl.u32 %v8825, 16
      %v8950 = vrot.slane %v8948, 1
      %v8951 = vshll.u32 %v8825, 16
      %v8953 = vrot.slane %v8951, 2
      %v8954 = vor.u32 %v8950, %v8953
      %v8955 = vsel %vm2647, %v8945, %v8954
      %v8957 = vshrl.u32 %v8826, 16
      %v8959 = vrot.slane %v8957, 1
      %v8960 = vshll.u32 %v8826, 16
      %v8962 = vrot.slane %v8960, 2
      %v8963 = vor.u32 %v8959, %v8962
      %v8964 = vsel %vm2647, %v8954, %v8963
      %v8966 = vshrl.u32 %v8827, 16
      %v8968 = vrot.slane %v8966, 1
      %v8969 = vshll.u32 %v8827, 16
      %v8971 = vrot.slane %v8969, 2
      %v8972 = vor.u32 %v8968, %v8971
      %v8973 = vsel %vm2647, %v8963, %v8972
      %v8975 = vshrl.u32 %v8828, 16
      %v8977 = vrot.slane %v8975, 1
      %v8978 = vshll.u32 %v8828, 16
      %v8980 = vrot.slane %v8978, 2
      %v8981 = vor.u32 %v8977, %v8980
      %v8982 = vsel %vm2647, %v8972, %v8981
      %v8984 = vshrl.u32 %v8829, 16
      %v8986 = vrot.slane %v8984, 1
      %v8987 = vshll.u32 %v8829, 16
      %v8989 = vrot.slane %v8987, 2
      %v8990 = vor.u32 %v8986, %v8989
      %v8991 = vsel %vm2647, %v8981, %v8990
      %v8993 = vshrl.u32 %v8830, 16
      %v8995 = vrot.slane %v8993, 1
      %v8996 = vshll.u32 %v8830, 16
      %v8998 = vrot.slane %v8996, 2
      %v8999 = vor.u32 %v8995, %v8998
      %v9000 = vsel %vm2647, %v8990, %v8999
      %v9035 = vunpack.c.l.b16 %v8722
      %v9036 = vunpack.c.l.b16 %v8723
      %v9037 = vunpack.c.l.b16 %v8724
      %v9038 = vunpack.c.l.b16 %v8725
      %v9039 = vunpack.c.l.b16 %v8726
      %v9040 = vunpack.c.l.b16 %v8727
      %v9041 = vunpack.c.l.b16 %v8728
      %v9042 = vunpack.c.l.b16 %v8729
      %v9043 = vunpack.c.l.b16 %v8730
      %v9044 = vunpack.c.l.b16 %v8731
      %v9045 = vunpack.c.l.b16 %v8732
      %v9046 = vunpack.c.l.b16 %v8733
      %v9047 = vunpack.c.l.b16 %v8734
      %v9048 = vunpack.c.l.b16 %v8735
      %v9049 = vunpack.c.l.b16 %v8736
      %v9050 = vunpack.c.l.b16 %v8737
      %v9051 = vpack.c.b16 %v9036, %v9035
      %v9052 = vpack.c.b16 %v9038, %v9037
      %v9053 = vpack.c.b16 %v9040, %v9039
      %v9054 = vpack.c.b16 %v9042, %v9041
      %v9055 = vpack.c.b16 %v9044, %v9043
      %v9056 = vpack.c.b16 %v9046, %v9045
      %v9057 = vpack.c.b16 %v9048, %v9047
      %v9058 = vpack.c.b16 %v9050, %v9049
      %9067 = vmatprep.subr.bf16.mxu0 0
      %9068 = vmatpush1.bf16.msra.mxu0 %v9058
      %9069 = vmatprep.subr.bf16.mxu0 0
      %9070 = vmatpush1.bf16.msra.mxu0 %v9057
      %9071 = vmatprep.subr.bf16.mxu0 0
      %9072 = vmatpush1.bf16.msra.mxu0 %v9056
      %9073 = vmatprep.subr.bf16.mxu0 0
      %9074 = vmatpush1.bf16.msra.mxu0 %v9055
      %9075 = vmatprep.subr.bf16.mxu0 0
      %9076 = vmatpush1.bf16.msra.mxu0 %v9054
      %9077 = vmatprep.subr.bf16.mxu0 0
      %9078 = vmatpush1.bf16.msra.mxu0 %v9053
      %9079 = vmatprep.subr.bf16.mxu0 0
      %9080 = vmatpush1.bf16.msra.mxu0 %v9052
      %9081 = vmatprep.subr.bf16.mxu0 0
      %9082 = vmatpush1.bf16.msra.mxu0 %v9051
      %9083 = vmatprep.subr.bf16.mxu0 0
      %9084 = vmatpush2.bf16.msra.mxu0 0
      %9085 = vmatprep.subr.bf16.mxu0 0
      %9086 = vmatpush2.bf16.msra.mxu0 0
      %9087 = vmatprep.subr.bf16.mxu0 0
      %9088 = vmatpush2.bf16.msra.mxu0 0
      %9089 = vmatprep.subr.bf16.mxu0 0
      %9090 = vmatpush2.bf16.msra.mxu0 0
      %9091 = vmatprep.subr.bf16.mxu0 0
      %9092 = vmatpush2.bf16.msra.mxu0 0
      %9093 = vmatprep.subr.bf16.mxu0 0
      %9094 = vmatpush2.bf16.msra.mxu0 0
      %9095 = vmatprep.subr.bf16.mxu0 0
      %9096 = vmatpush2.bf16.msra.mxu0 0
      %9097 = vmatprep.subr.bf16.mxu0 0
      %9098 = vmatpush2.bf16.msra.mxu0 0
      %9099 = vmatprep.mubr.bf16.mxu0 0
      %9100 = vmatmul.mubr.bf16.gmra.mxu0 %v8847
      %v9101 = vpop.f32.mrf.mxu0
      %v9102 = vadd.f32 0.0, %v9101
      %v9103 = vpop.f32.mrf.mxu0
      %v9104 = vpop.f32.mrf.mxu0
      %v9105 = vadd.f32 0.0, %v9104
      %v9106 = vpop.f32.mrf.mxu0
      %9107 = vmatprep.mubr.bf16.mxu0 0
      %9108 = vmatmul.mubr.bf16.gmra.mxu0 %v8856
      %v9109 = vpop.f32.mrf.mxu0
      %v9110 = vadd.f32 0.0, %v9109
      %v9111 = vpop.f32.mrf.mxu0
      %v9112 = vpop.f32.mrf.mxu0
      %v9113 = vadd.f32 0.0, %v9112
      %v9114 = vpop.f32.mrf.mxu0
      %9115 = vmatprep.mubr.bf16.mxu0 0
      %9116 = vmatmul.mubr.bf16.gmra.mxu0 %v8865
      %v9117 = vpop.f32.mrf.mxu0
      %v9118 = vadd.f32 0.0, %v9117
      %v9119 = vpop.f32.mrf.mxu0
      %v9120 = vpop.f32.mrf.mxu0
      %v9121 = vadd.f32 0.0, %v9120
      %v9122 = vpop.f32.mrf.mxu0
      %9123 = vmatprep.mubr.bf16.mxu0 0
      %9124 = vmatmul.mubr.bf16.gmra.mxu0 %v8874
      %v9125 = vpop.f32.mrf.mxu0
      %v9126 = vadd.f32 0.0, %v9125
      %v9127 = vpop.f32.mrf.mxu0
      %v9128 = vpop.f32.mrf.mxu0
      %v9129 = vadd.f32 0.0, %v9128
      %v9130 = vpop.f32.mrf.mxu0
      %9131 = vmatprep.mubr.bf16.mxu0 0
      %9132 = vmatmul.mubr.bf16.gmra.mxu0 %v8883
      %v9133 = vpop.f32.mrf.mxu0
      %v9134 = vadd.f32 0.0, %v9133
      %v9135 = vpop.f32.mrf.mxu0
      %v9136 = vpop.f32.mrf.mxu0
      %v9137 = vadd.f32 0.0, %v9136
      %v9138 = vpop.f32.mrf.mxu0
      %9139 = vmatprep.mubr.bf16.mxu0 0
      %9140 = vmatmul.mubr.bf16.gmra.mxu0 %v8892
      %v9141 = vpop.f32.mrf.mxu0
      %v9142 = vadd.f32 0.0, %v9141
      %v9143 = vpop.f32.mrf.mxu0
      %v9144 = vpop.f32.mrf.mxu0
      %v9145 = vadd.f32 0.0, %v9144
      %v9146 = vpop.f32.mrf.mxu0
      %9147 = vmatprep.mubr.bf16.mxu0 0
      %9148 = vmatmul.mubr.bf16.gmra.mxu0 %v8901
      %v9149 = vpop.f32.mrf.mxu0
      %v9150 = vadd.f32 0.0, %v9149
      %v9151 = vpop.f32.mrf.mxu0
      %v9152 = vpop.f32.mrf.mxu0
      %v9153 = vadd.f32 0.0, %v9152
      %v9154 = vpop.f32.mrf.mxu0
      %9155 = vmatprep.mubr.bf16.mxu0 0
      %9156 = vmatmul.mubr.bf16.gmra.mxu0 %v8910
      %v9157 = vpop.f32.mrf.mxu0
      %v9158 = vadd.f32 0.0, %v9157
      %v9159 = vpop.f32.mrf.mxu0
      %v9160 = vpop.f32.mrf.mxu0
      %v9161 = vadd.f32 0.0, %v9160
      %v9162 = vpop.f32.mrf.mxu0
      %9163 = vmatprep.mubr.bf16.mxu0 0
      %9164 = vmatmul.mubr.bf16.gmra.mxu0 %v8919
      %v9165 = vpop.f32.mrf.mxu0
      %v9166 = vadd.f32 0.0, %v9165
      %v9167 = vpop.f32.mrf.mxu0
      %v9168 = vpop.f32.mrf.mxu0
      %v9169 = vadd.f32 0.0, %v9168
      %v9170 = vpop.f32.mrf.mxu0
      %9171 = vmatprep.mubr.bf16.mxu0 0
      %9172 = vmatmul.mubr.bf16.gmra.mxu0 %v8928
      %v9173 = vpop.f32.mrf.mxu0
      %v9174 = vadd.f32 0.0, %v9173
      %v9175 = vpop.f32.mrf.mxu0
      %v9176 = vpop.f32.mrf.mxu0
      %v9177 = vadd.f32 0.0, %v9176
      %v9178 = vpop.f32.mrf.mxu0
      %9179 = vmatprep.mubr.bf16.mxu0 0
      %9180 = vmatmul.mubr.bf16.gmra.mxu0 %v8937
      %v9181 = vpop.f32.mrf.mxu0
      %v9182 = vadd.f32 0.0, %v9181
      %v9183 = vpop.f32.mrf.mxu0
      %v9184 = vpop.f32.mrf.mxu0
      %v9185 = vadd.f32 0.0, %v9184
      %v9186 = vpop.f32.mrf.mxu0
      %9187 = vmatprep.mubr.bf16.mxu0 0
      %9188 = vmatmul.mubr.bf16.gmra.mxu0 %v8946
      %v9189 = vpop.f32.mrf.mxu0
      %v9190 = vadd.f32 0.0, %v9189
      %v9191 = vpop.f32.mrf.mxu0
      %v9192 = vpop.f32.mrf.mxu0
      %v9193 = vadd.f32 0.0, %v9192
      %v9194 = vpop.f32.mrf.mxu0
      %9195 = vmatprep.mubr.bf16.mxu0 0
      %9196 = vmatmul.mubr.bf16.gmra.mxu0 %v8955
      %v9197 = vpop.f32.mrf.mxu0
      %v9198 = vadd.f32 0.0, %v9197
      %v9199 = vpop.f32.mrf.mxu0
      %v9200 = vpop.f32.mrf.mxu0
      %v9201 = vadd.f32 0.0, %v9200
      %v9202 = vpop.f32.mrf.mxu0
      %9203 = vmatprep.mubr.bf16.mxu0 0
      %9204 = vmatmul.mubr.bf16.gmra.mxu0 %v8964
      %v9205 = vpop.f32.mrf.mxu0
      %v9206 = vadd.f32 0.0, %v9205
      %v9207 = vpop.f32.mrf.mxu0
      %v9208 = vpop.f32.mrf.mxu0
      %v9209 = vadd.f32 0.0, %v9208
      %v9210 = vpop.f32.mrf.mxu0
      %9211 = vmatprep.mubr.bf16.mxu0 0
      %9212 = vmatmul.mubr.bf16.gmra.mxu0 %v8973
      %v9213 = vpop.f32.mrf.mxu0
      %v9214 = vadd.f32 0.0, %v9213
      %v9215 = vpop.f32.mrf.mxu0
      %v9216 = vpop.f32.mrf.mxu0
      %v9217 = vadd.f32 0.0, %v9216
      %v9218 = vpop.f32.mrf.mxu0
      %9219 = vmatprep.mubr.bf16.mxu0 0
      %9220 = vmatmul.mubr.bf16.gmra.mxu0 %v8982
      %v9221 = vpop.f32.mrf.mxu0
      %v9222 = vadd.f32 0.0, %v9221
      %v9223 = vpop.f32.mrf.mxu0
      %v9224 = vpop.f32.mrf.mxu0
      %v9225 = vadd.f32 0.0, %v9224
      %v9226 = vpop.f32.mrf.mxu0
      %9227 = vmatprep.mubr.bf16.mxu0 0
      %9228 = vmatmul.mubr.bf16.gmra.mxu0 %v8991
      %v9229 = vpop.f32.mrf.mxu0
      %v9230 = vadd.f32 0.0, %v9229
      %v9231 = vpop.f32.mrf.mxu0
      %v9232 = vpop.f32.mrf.mxu0
      %v9233 = vadd.f32 0.0, %v9232
      %v9234 = vpop.f32.mrf.mxu0
      %9235 = vmatprep.mubr.bf16.mxu0 0
      %9236 = vmatmul.mubr.bf16.gmra.mxu0 %v9000
      %v9237 = vpop.f32.mrf.mxu0
      %v9238 = vadd.f32 0.0, %v9237
      %v9239 = vpop.f32.mrf.mxu0
      %v9240 = vpop.f32.mrf.mxu0
      %v9241 = vadd.f32 0.0, %v9240
      %v9242 = vpop.f32.mrf.mxu0
      %9243 = vdwg.mxu0
      %v9244 = vadd.f32 %v8649, %v9102
      %v9245 = vadd.f32 %v8650, %v9105
      %v9246 = vadd.f32 %v8651, %v9110
      %v9247 = vadd.f32 %v8652, %v9113
      %v9248 = vadd.f32 %v8653, %v9118
      %v9249 = vadd.f32 %v8654, %v9121
      %v9250 = vadd.f32 %v8655, %v9126
      %v9251 = vadd.f32 %v8656, %v9129
      %v9252 = vadd.f32 %v8657, %v9134
      %v9253 = vadd.f32 %v8658, %v9137
      %v9254 = vadd.f32 %v8659, %v9142
      %v9255 = vadd.f32 %v8660, %v9145
      %v9256 = vadd.f32 %v8661, %v9150
      %v9257 = vadd.f32 %v8662, %v9153
      %v9258 = vadd.f32 %v8663, %v9158
      %v9259 = vadd.f32 %v8664, %v9161
      %v9260 = vadd.f32 %v8665, %v9166
      %v9261 = vadd.f32 %v8666, %v9169
      %v9262 = vadd.f32 %v8667, %v9174
      %v9263 = vadd.f32 %v8668, %v9177
      %v9264 = vadd.f32 %v8669, %v9182
      %v9265 = vadd.f32 %v8670, %v9185
      %v9266 = vadd.f32 %v8671, %v9190
      %v9267 = vadd.f32 %v8672, %v9193
      %v9268 = vadd.f32 %v8673, %v9198
      %v9269 = vadd.f32 %v8674, %v9201
      %v9270 = vadd.f32 %v8675, %v9206
      %v9271 = vadd.f32 %v8676, %v9209
      %v9272 = vadd.f32 %v8677, %v9214
      %v9273 = vadd.f32 %v8678, %v9217
      %v9274 = vadd.f32 %v8679, %v9222
      %v9275 = vadd.f32 %v8680, %v9225
      %v9276 = vadd.f32 %v8681, %v9230
      %v9277 = vadd.f32 %v8682, %v9233
      %v9278 = vadd.f32 %v8683, %v9238
      %v9279 = vadd.f32 %v8684, %v9241
      %v9280 = vld [vmem:[#allocation2 + $0x14] sm:$0xc]
      %v9281 = vld [vmem:[%s4 + $0x1c0] sm:$0xf]
      %v9282 = vld [vmem:[%s4 + $0x1c4] sm:$0xf]
      %v9283 = vld [vmem:[%s4 + $0x1c8] sm:$0xf]
      %v9284 = vld [vmem:[%s4 + $0x1cc] sm:$0xf]
      %v9285 = vld [vmem:[%s4 + $0x1d0] sm:$0xf]
      %v9286 = vld [vmem:[%s4 + $0x1d4] sm:$0xf]
      %v9287 = vld [vmem:[%s4 + $0x1d8] sm:$0xf]
      %v9288 = vld [vmem:[%s4 + $0x1dc] sm:$0xf]
      %v9289 = vld [vmem:[%s4 + $0x1e0] sm:$0xf]
      %v9290 = vld [vmem:[%s4 + $0x1e4] sm:$0xf]
      %v9291 = vld [vmem:[%s4 + $0x1e8] sm:$0xf]
      %v9292 = vld [vmem:[%s4 + $0x1ec] sm:$0xf]
      %v9293 = vld [vmem:[%s4 + $0x1f0] sm:$0xf]
      %v9294 = vld [vmem:[%s4 + $0x1f4] sm:$0xf]
      %v9295 = vld [vmem:[%s4 + $0x1f8] sm:$0xf]
      %v9296 = vld [vmem:[%s4 + $0x1fc] sm:$0xf]
      %v9298 = vunpack.c.l.b16 %v9280
      %v9299 = vpack.c.b16 %v8776, %v9298
      %v9300 = vrot.slane %v9299, 2
      %v9301 = vrot.slane %v8813, 2
      %v9302 = vsel %vm3693, %v9300, %v9301
      %v9303 = vrot.slane %v8814, 2
      %v9304 = vsel %vm3693, %v9301, %v9303
      %v9305 = vrot.slane %v8815, 2
      %v9306 = vsel %vm3693, %v9303, %v9305
      %v9307 = vrot.slane %v8816, 2
      %v9308 = vsel %vm3693, %v9305, %v9307
      %v9309 = vrot.slane %v8817, 2
      %v9310 = vsel %vm3693, %v9307, %v9309
      %v9311 = vrot.slane %v8818, 2
      %v9312 = vsel %vm3693, %v9309, %v9311
      %v9313 = vrot.slane %v8819, 2
      %v9314 = vsel %vm3693, %v9311, %v9313
      %v9315 = vrot.slane %v8820, 2
      %v9316 = vsel %vm3693, %v9313, %v9315
      %v9317 = vrot.slane %v8821, 2
      %v9318 = vsel %vm3693, %v9315, %v9317
      %v9319 = vrot.slane %v8822, 2
      %v9320 = vsel %vm3693, %v9317, %v9319
      %v9321 = vrot.slane %v8823, 2
      %v9322 = vsel %vm3693, %v9319, %v9321
      %v9323 = vrot.slane %v8824, 2
      %v9324 = vsel %vm3693, %v9321, %v9323
      %v9325 = vrot.slane %v8825, 2
      %v9326 = vsel %vm3693, %v9323, %v9325
      %v9327 = vrot.slane %v8826, 2
      %v9328 = vsel %vm3693, %v9325, %v9327
      %v9329 = vrot.slane %v8827, 2
      %v9330 = vsel %vm3693, %v9327, %v9329
      %v9331 = vrot.slane %v8828, 2
      %v9332 = vsel %vm3693, %v9329, %v9331
      %v9333 = vrot.slane %v8829, 2
      %v9334 = vsel %vm3693, %v9331, %v9333
      %v9335 = vrot.slane %v8830, 2
      %v9336 = vsel %vm3693, %v9333, %v9335
      %v9371 = vunpack.c.l.b16 %v9281
      %v9372 = vunpack.c.l.b16 %v9282
      %v9373 = vunpack.c.l.b16 %v9283
      %v9374 = vunpack.c.l.b16 %v9284
      %v9375 = vunpack.c.l.b16 %v9285
      %v9376 = vunpack.c.l.b16 %v9286
      %v9377 = vunpack.c.l.b16 %v9287
      %v9378 = vunpack.c.l.b16 %v9288
      %v9379 = vunpack.c.l.b16 %v9289
      %v9380 = vunpack.c.l.b16 %v9290
      %v9381 = vunpack.c.l.b16 %v9291
      %v9382 = vunpack.c.l.b16 %v9292
      %v9383 = vunpack.c.l.b16 %v9293
      %v9384 = vunpack.c.l.b16 %v9294
      %v9385 = vunpack.c.l.b16 %v9295
      %v9386 = vunpack.c.l.b16 %v9296
      %v9387 = vpack.c.b16 %v9372, %v9371
      %v9388 = vpack.c.b16 %v9374, %v9373
      %v9389 = vpack.c.b16 %v9376, %v9375
      %v9390 = vpack.c.b16 %v9378, %v9377
      %v9391 = vpack.c.b16 %v9380, %v9379
      %v9392 = vpack.c.b16 %v9382, %v9381
      %v9393 = vpack.c.b16 %v9384, %v9383
      %v9394 = vpack.c.b16 %v9386, %v9385
      %9403 = vmatprep.subr.bf16.mxu0 0
      %9404 = vmatpush1.bf16.msra.mxu0 %v9394
      %9405 = vmatprep.subr.bf16.mxu0 0
      %9406 = vmatpush1.bf16.msra.mxu0 %v9393
      %9407 = vmatprep.subr.bf16.mxu0 0
      %9408 = vmatpush1.bf16.msra.mxu0 %v9392
      %9409 = vmatprep.subr.bf16.mxu0 0
      %9410 = vmatpush1.bf16.msra.mxu0 %v9391
      %9411 = vmatprep.subr.bf16.mxu0 0
      %9412 = vmatpush1.bf16.msra.mxu0 %v9390
      %9413 = vmatprep.subr.bf16.mxu0 0
      %9414 = vmatpush1.bf16.msra.mxu0 %v9389
      %9415 = vmatprep.subr.bf16.mxu0 0
      %9416 = vmatpush1.bf16.msra.mxu0 %v9388
      %9417 = vmatprep.subr.bf16.mxu0 0
      %9418 = vmatpush1.bf16.msra.mxu0 %v9387
      %9419 = vmatprep.subr.bf16.mxu0 0
      %9420 = vmatpush2.bf16.msra.mxu0 0
      %9421 = vmatprep.subr.bf16.mxu0 0
      %9422 = vmatpush2.bf16.msra.mxu0 0
      %9423 = vmatprep.subr.bf16.mxu0 0
      %9424 = vmatpush2.bf16.msra.mxu0 0
      %9425 = vmatprep.subr.bf16.mxu0 0
      %9426 = vmatpush2.bf16.msra.mxu0 0
      %9427 = vmatprep.subr.bf16.mxu0 0
      %9428 = vmatpush2.bf16.msra.mxu0 0
      %9429 = vmatprep.subr.bf16.mxu0 0
      %9430 = vmatpush2.bf16.msra.mxu0 0
      %9431 = vmatprep.subr.bf16.mxu0 0
      %9432 = vmatpush2.bf16.msra.mxu0 0
      %9433 = vmatprep.subr.bf16.mxu0 0
      %9434 = vmatpush2.bf16.msra.mxu0 0
      %9435 = vmatprep.mubr.bf16.mxu0 0
      %9436 = vmatmul.mubr.bf16.gmra.mxu0 %v9302
      %v9437 = vpop.f32.mrf.mxu0
      %v9438 = vadd.f32 0.0, %v9437
      %v9439 = vpop.f32.mrf.mxu0
      %v9440 = vpop.f32.mrf.mxu0
      %v9441 = vadd.f32 0.0, %v9440
      %v9442 = vpop.f32.mrf.mxu0
      %9443 = vmatprep.mubr.bf16.mxu0 0
      %9444 = vmatmul.mubr.bf16.gmra.mxu0 %v9304
      %v9445 = vpop.f32.mrf.mxu0
      %v9446 = vadd.f32 0.0, %v9445
      %v9447 = vpop.f32.mrf.mxu0
      %v9448 = vpop.f32.mrf.mxu0
      %v9449 = vadd.f32 0.0, %v9448
      %v9450 = vpop.f32.mrf.mxu0
      %9451 = vmatprep.mubr.bf16.mxu0 0
      %9452 = vmatmul.mubr.bf16.gmra.mxu0 %v9306
      %v9453 = vpop.f32.mrf.mxu0
      %v9454 = vadd.f32 0.0, %v9453
      %v9455 = vpop.f32.mrf.mxu0
      %v9456 = vpop.f32.mrf.mxu0
      %v9457 = vadd.f32 0.0, %v9456
      %v9458 = vpop.f32.mrf.mxu0
      %9459 = vmatprep.mubr.bf16.mxu0 0
      %9460 = vmatmul.mubr.bf16.gmra.mxu0 %v9308
      %v9461 = vpop.f32.mrf.mxu0
      %v9462 = vadd.f32 0.0, %v9461
      %v9463 = vpop.f32.mrf.mxu0
      %v9464 = vpop.f32.mrf.mxu0
      %v9465 = vadd.f32 0.0, %v9464
      %v9466 = vpop.f32.mrf.mxu0
      %9467 = vmatprep.mubr.bf16.mxu0 0
      %9468 = vmatmul.mubr.bf16.gmra.mxu0 %v9310
      %v9469 = vpop.f32.mrf.mxu0
      %v9470 = vadd.f32 0.0, %v9469
      %v9471 = vpop.f32.mrf.mxu0
      %v9472 = vpop.f32.mrf.mxu0
      %v9473 = vadd.f32 0.0, %v9472
      %v9474 = vpop.f32.mrf.mxu0
      %9475 = vmatprep.mubr.bf16.mxu0 0
      %9476 = vmatmul.mubr.bf16.gmra.mxu0 %v9312
      %v9477 = vpop.f32.mrf.mxu0
      %v9478 = vadd.f32 0.0, %v9477
      %v9479 = vpop.f32.mrf.mxu0
      %v9480 = vpop.f32.mrf.mxu0
      %v9481 = vadd.f32 0.0, %v9480
      %v9482 = vpop.f32.mrf.mxu0
      %9483 = vmatprep.mubr.bf16.mxu0 0
      %9484 = vmatmul.mubr.bf16.gmra.mxu0 %v9314
      %v9485 = vpop.f32.mrf.mxu0
      %v9486 = vadd.f32 0.0, %v9485
      %v9487 = vpop.f32.mrf.mxu0
      %v9488 = vpop.f32.mrf.mxu0
      %v9489 = vadd.f32 0.0, %v9488
      %v9490 = vpop.f32.mrf.mxu0
      %9491 = vmatprep.mubr.bf16.mxu0 0
      %9492 = vmatmul.mubr.bf16.gmra.mxu0 %v9316
      %v9493 = vpop.f32.mrf.mxu0
      %v9494 = vadd.f32 0.0, %v9493
      %v9495 = vpop.f32.mrf.mxu0
      %v9496 = vpop.f32.mrf.mxu0
      %v9497 = vadd.f32 0.0, %v9496
      %v9498 = vpop.f32.mrf.mxu0
      %9499 = vmatprep.mubr.bf16.mxu0 0
      %9500 = vmatmul.mubr.bf16.gmra.mxu0 %v9318
      %v9501 = vpop.f32.mrf.mxu0
      %v9502 = vadd.f32 0.0, %v9501
      %v9503 = vpop.f32.mrf.mxu0
      %v9504 = vpop.f32.mrf.mxu0
      %v9505 = vadd.f32 0.0, %v9504
      %v9506 = vpop.f32.mrf.mxu0
      %9507 = vmatprep.mubr.bf16.mxu0 0
      %9508 = vmatmul.mubr.bf16.gmra.mxu0 %v9320
      %v9509 = vpop.f32.mrf.mxu0
      %v9510 = vadd.f32 0.0, %v9509
      %v9511 = vpop.f32.mrf.mxu0
      %v9512 = vpop.f32.mrf.mxu0
      %v9513 = vadd.f32 0.0, %v9512
      %v9514 = vpop.f32.mrf.mxu0
      %9515 = vmatprep.mubr.bf16.mxu0 0
      %9516 = vmatmul.mubr.bf16.gmra.mxu0 %v9322
      %v9517 = vpop.f32.mrf.mxu0
      %v9518 = vadd.f32 0.0, %v9517
      %v9519 = vpop.f32.mrf.mxu0
      %v9520 = vpop.f32.mrf.mxu0
      %v9521 = vadd.f32 0.0, %v9520
      %v9522 = vpop.f32.mrf.mxu0
      %9523 = vmatprep.mubr.bf16.mxu0 0
      %9524 = vmatmul.mubr.bf16.gmra.mxu0 %v9324
      %v9525 = vpop.f32.mrf.mxu0
      %v9526 = vadd.f32 0.0, %v9525
      %v9527 = vpop.f32.mrf.mxu0
      %v9528 = vpop.f32.mrf.mxu0
      %v9529 = vadd.f32 0.0, %v9528
      %v9530 = vpop.f32.mrf.mxu0
      %9531 = vmatprep.mubr.bf16.mxu0 0
      %9532 = vmatmul.mubr.bf16.gmra.mxu0 %v9326
      %v9533 = vpop.f32.mrf.mxu0
      %v9534 = vadd.f32 0.0, %v9533
      %v9535 = vpop.f32.mrf.mxu0
      %v9536 = vpop.f32.mrf.mxu0
      %v9537 = vadd.f32 0.0, %v9536
      %v9538 = vpop.f32.mrf.mxu0
      %9539 = vmatprep.mubr.bf16.mxu0 0
      %9540 = vmatmul.mubr.bf16.gmra.mxu0 %v9328
      %v9541 = vpop.f32.mrf.mxu0
      %v9542 = vadd.f32 0.0, %v9541
      %v9543 = vpop.f32.mrf.mxu0
      %v9544 = vpop.f32.mrf.mxu0
      %v9545 = vadd.f32 0.0, %v9544
      %v9546 = vpop.f32.mrf.mxu0
      %9547 = vmatprep.mubr.bf16.mxu0 0
      %9548 = vmatmul.mubr.bf16.gmra.mxu0 %v9330
      %v9549 = vpop.f32.mrf.mxu0
      %v9550 = vadd.f32 0.0, %v9549
      %v9551 = vpop.f32.mrf.mxu0
      %v9552 = vpop.f32.mrf.mxu0
      %v9553 = vadd.f32 0.0, %v9552
      %v9554 = vpop.f32.mrf.mxu0
      %9555 = vmatprep.mubr.bf16.mxu0 0
      %9556 = vmatmul.mubr.bf16.gmra.mxu0 %v9332
      %v9557 = vpop.f32.mrf.mxu0
      %v9558 = vadd.f32 0.0, %v9557
      %v9559 = vpop.f32.mrf.mxu0
      %v9560 = vpop.f32.mrf.mxu0
      %v9561 = vadd.f32 0.0, %v9560
      %v9562 = vpop.f32.mrf.mxu0
      %9563 = vmatprep.mubr.bf16.mxu0 0
      %9564 = vmatmul.mubr.bf16.gmra.mxu0 %v9334
      %v9565 = vpop.f32.mrf.mxu0
      %v9566 = vadd.f32 0.0, %v9565
      %v9567 = vpop.f32.mrf.mxu0
      %v9568 = vpop.f32.mrf.mxu0
      %v9569 = vadd.f32 0.0, %v9568
      %v9570 = vpop.f32.mrf.mxu0
      %9571 = vmatprep.mubr.bf16.mxu0 0
      %9572 = vmatmul.mubr.bf16.gmra.mxu0 %v9336
      %v9573 = vpop.f32.mrf.mxu0
      %v9574 = vadd.f32 0.0, %v9573
      %v9575 = vpop.f32.mrf.mxu0
      %v9576 = vpop.f32.mrf.mxu0
      %v9577 = vadd.f32 0.0, %v9576
      %v9578 = vpop.f32.mrf.mxu0
      %9579 = vdwg.mxu0
      %v9580 = vadd.f32 %v9244, %v9438
      %v9581 = vadd.f32 %v9245, %v9441
      %v9582 = vadd.f32 %v9246, %v9446
      %v9583 = vadd.f32 %v9247, %v9449
      %v9584 = vadd.f32 %v9248, %v9454
      %v9585 = vadd.f32 %v9249, %v9457
      %v9586 = vadd.f32 %v9250, %v9462
      %v9587 = vadd.f32 %v9251, %v9465
      %v9588 = vadd.f32 %v9252, %v9470
      %v9589 = vadd.f32 %v9253, %v9473
      %v9590 = vadd.f32 %v9254, %v9478
      %v9591 = vadd.f32 %v9255, %v9481
      %v9592 = vadd.f32 %v9256, %v9486
      %v9593 = vadd.f32 %v9257, %v9489
      %v9594 = vadd.f32 %v9258, %v9494
      %v9595 = vadd.f32 %v9259, %v9497
      %v9596 = vadd.f32 %v9260, %v9502
      %v9597 = vadd.f32 %v9261, %v9505
      %v9598 = vadd.f32 %v9262, %v9510
      %v9599 = vadd.f32 %v9263, %v9513
      %v9600 = vadd.f32 %v9264, %v9518
      %v9601 = vadd.f32 %v9265, %v9521
      %v9602 = vadd.f32 %v9266, %v9526
      %v9603 = vadd.f32 %v9267, %v9529
      %v9604 = vadd.f32 %v9268, %v9534
      %v9605 = vadd.f32 %v9269, %v9537
      %v9606 = vadd.f32 %v9270, %v9542
      %v9607 = vadd.f32 %v9271, %v9545
      %v9608 = vadd.f32 %v9272, %v9550
      %v9609 = vadd.f32 %v9273, %v9553
      %v9610 = vadd.f32 %v9274, %v9558
      %v9611 = vadd.f32 %v9275, %v9561
      %v9612 = vadd.f32 %v9276, %v9566
      %v9613 = vadd.f32 %v9277, %v9569
      %v9614 = vadd.f32 %v9278, %v9574
      %v9615 = vadd.f32 %v9279, %v9577
      %v9616 = vld [vmem:[#allocation2 + $0xa4] sm:$0x7]
      %v9617 = vld [vmem:[%s4 + $0x200] sm:$0xf]
      %v9618 = vld [vmem:[%s4 + $0x204] sm:$0xf]
      %v9619 = vld [vmem:[%s4 + $0x208] sm:$0xf]
      %v9620 = vld [vmem:[%s4 + $0x20c] sm:$0xf]
      %v9621 = vld [vmem:[%s4 + $0x210] sm:$0xf]
      %v9622 = vld [vmem:[%s4 + $0x214] sm:$0xf]
      %v9623 = vld [vmem:[%s4 + $0x218] sm:$0xf]
      %v9624 = vld [vmem:[%s4 + $0x21c] sm:$0xf]
      %v9625 = vld [vmem:[%s4 + $0x220] sm:$0xf]
      %v9626 = vld [vmem:[%s4 + $0x224] sm:$0xf]
      %v9627 = vld [vmem:[%s4 + $0x228] sm:$0xf]
      %v9628 = vld [vmem:[%s4 + $0x22c] sm:$0xf]
      %v9629 = vld [vmem:[%s4 + $0x230] sm:$0xf]
      %v9630 = vld [vmem:[%s4 + $0x234] sm:$0xf]
      %v9631 = vld [vmem:[%s4 + $0x238] sm:$0xf]
      %v9632 = vld [vmem:[%s4 + $0x23c] sm:$0xf]
      %v9634 = vunpack.c.l.b16 %v9616
      %v9635 = vpack.c.b16 %v9634, %v9634
      %v9637 = vshrl.u32 %v9299, 16
      %v9639 = vrot.slane %v9637, 2
      %v9640 = vshll.u32 %v9299, 16
      %v9642 = vrot.slane %v9640, 3
      %v9643 = vor.u32 %v9639, %v9642
      %v9644 = vrot.slane %v8840, 2
      %v9645 = vrot.slane %v8843, 3
      %v9646 = vor.u32 %v9644, %v9645
      %v9647 = vsel %vm4190, %v9643, %v9646
      %v9648 = vrot.slane %v8849, 2
      %v9649 = vrot.slane %v8852, 3
      %v9650 = vor.u32 %v9648, %v9649
      %v9651 = vsel %vm4190, %v9646, %v9650
      %v9652 = vrot.slane %v8858, 2
      %v9653 = vrot.slane %v8861, 3
      %v9654 = vor.u32 %v9652, %v9653
      %v9655 = vsel %vm4190, %v9650, %v9654
      %v9656 = vrot.slane %v8867, 2
      %v9657 = vrot.slane %v8870, 3
      %v9658 = vor.u32 %v9656, %v9657
      %v9659 = vsel %vm4190, %v9654, %v9658
      %v9660 = vrot.slane %v8876, 2
      %v9661 = vrot.slane %v8879, 3
      %v9662 = vor.u32 %v9660, %v9661
      %v9663 = vsel %vm4190, %v9658, %v9662
      %v9664 = vrot.slane %v8885, 2
      %v9665 = vrot.slane %v8888, 3
      %v9666 = vor.u32 %v9664, %v9665
      %v9667 = vsel %vm4190, %v9662, %v9666
      %v9668 = vrot.slane %v8894, 2
      %v9669 = vrot.slane %v8897, 3
      %v9670 = vor.u32 %v9668, %v9669
      %v9671 = vsel %vm4190, %v9666, %v9670
      %v9672 = vrot.slane %v8903, 2
      %v9673 = vrot.slane %v8906, 3
      %v9674 = vor.u32 %v9672, %v9673
      %v9675 = vsel %vm4190, %v9670, %v9674
      %v9676 = vrot.slane %v8912, 2
      %v9677 = vrot.slane %v8915, 3
      %v9678 = vor.u32 %v9676, %v9677
      %v9679 = vsel %vm4190, %v9674, %v9678
      %v9680 = vrot.slane %v8921, 2
      %v9681 = vrot.slane %v8924, 3
      %v9682 = vor.u32 %v9680, %v9681
      %v9683 = vsel %vm4190, %v9678, %v9682
      %v9684 = vrot.slane %v8930, 2
      %v9685 = vrot.slane %v8933, 3
      %v9686 = vor.u32 %v9684, %v9685
      %v9687 = vsel %vm4190, %v9682, %v9686
      %v9688 = vrot.slane %v8939, 2
      %v9689 = vrot.slane %v8942, 3
      %v9690 = vor.u32 %v9688, %v9689
      %v9691 = vsel %vm4190, %v9686, %v9690
      %v9692 = vrot.slane %v8948, 2
      %v9693 = vrot.slane %v8951, 3
      %v9694 = vor.u32 %v9692, %v9693
      %v9695 = vsel %vm4190, %v9690, %v9694
      %v9696 = vrot.slane %v8957, 2
      %v9697 = vrot.slane %v8960, 3
      %v9698 = vor.u32 %v9696, %v9697
      %v9699 = vsel %vm4190, %v9694, %v9698
      %v9700 = vrot.slane %v8966, 2
      %v9701 = vrot.slane %v8969, 3
      %v9702 = vor.u32 %v9700, %v9701
      %v9703 = vsel %vm4190, %v9698, %v9702
      %v9704 = vrot.slane %v8975, 2
      %v9705 = vrot.slane %v8978, 3
      %v9706 = vor.u32 %v9704, %v9705
      %v9707 = vsel %vm4190, %v9702, %v9706
      %v9708 = vrot.slane %v8984, 2
      %v9709 = vrot.slane %v8987, 3
      %v9710 = vor.u32 %v9708, %v9709
      %v9711 = vsel %vm4190, %v9706, %v9710
      %v9713 = vshrl.u32 %v9635, 16
      %v9715 = vrot.slane %v9713, 2
      %v9716 = vshll.u32 %v9635, 16
      %v9718 = vrot.slane %v9716, 3
      %v9719 = vor.u32 %v9715, %v9718
      %v9720 = vsel %vm4190, %v9710, %v9719
      %v9755 = vunpack.c.l.b16 %v9617
      %v9756 = vunpack.c.l.b16 %v9618
      %v9757 = vunpack.c.l.b16 %v9619
      %v9758 = vunpack.c.l.b16 %v9620
      %v9759 = vunpack.c.l.b16 %v9621
      %v9760 = vunpack.c.l.b16 %v9622
      %v9761 = vunpack.c.l.b16 %v9623
      %v9762 = vunpack.c.l.b16 %v9624
      %v9763 = vunpack.c.l.b16 %v9625
      %v9764 = vunpack.c.l.b16 %v9626
      %v9765 = vunpack.c.l.b16 %v9627
      %v9766 = vunpack.c.l.b16 %v9628
      %v9767 = vunpack.c.l.b16 %v9629
      %v9768 = vunpack.c.l.b16 %v9630
      %v9769 = vunpack.c.l.b16 %v9631
      %v9770 = vunpack.c.l.b16 %v9632
      %v9771 = vpack.c.b16 %v9756, %v9755
      %v9772 = vpack.c.b16 %v9758, %v9757
      %v9773 = vpack.c.b16 %v9760, %v9759
      %v9774 = vpack.c.b16 %v9762, %v9761
      %v9775 = vpack.c.b16 %v9764, %v9763
      %v9776 = vpack.c.b16 %v9766, %v9765
      %v9777 = vpack.c.b16 %v9768, %v9767
      %v9778 = vpack.c.b16 %v9770, %v9769
      %9787 = vmatprep.subr.bf16.mxu0 0
      %9788 = vmatpush1.bf16.msra.mxu0 %v9778
      %9789 = vmatprep.subr.bf16.mxu0 0
      %9790 = vmatpush1.bf16.msra.mxu0 %v9777
      %9791 = vmatprep.subr.bf16.mxu0 0
      %9792 = vmatpush1.bf16.msra.mxu0 %v9776
      %9793 = vmatprep.subr.bf16.mxu0 0
      %9794 = vmatpush1.bf16.msra.mxu0 %v9775
      %9795 = vmatprep.subr.bf16.mxu0 0
      %9796 = vmatpush1.bf16.msra.mxu0 %v9774
      %9797 = vmatprep.subr.bf16.mxu0 0
      %9798 = vmatpush1.bf16.msra.mxu0 %v9773
      %9799 = vmatprep.subr.bf16.mxu0 0
      %9800 = vmatpush1.bf16.msra.mxu0 %v9772
      %9801 = vmatprep.subr.bf16.mxu0 0
      %9802 = vmatpush1.bf16.msra.mxu0 %v9771
      %9803 = vmatprep.subr.bf16.mxu0 0
      %9804 = vmatpush2.bf16.msra.mxu0 0
      %9805 = vmatprep.subr.bf16.mxu0 0
      %9806 = vmatpush2.bf16.msra.mxu0 0
      %9807 = vmatprep.subr.bf16.mxu0 0
      %9808 = vmatpush2.bf16.msra.mxu0 0
      %9809 = vmatprep.subr.bf16.mxu0 0
      %9810 = vmatpush2.bf16.msra.mxu0 0
      %9811 = vmatprep.subr.bf16.mxu0 0
      %9812 = vmatpush2.bf16.msra.mxu0 0
      %9813 = vmatprep.subr.bf16.mxu0 0
      %9814 = vmatpush2.bf16.msra.mxu0 0
      %9815 = vmatprep.subr.bf16.mxu0 0
      %9816 = vmatpush2.bf16.msra.mxu0 0
      %9817 = vmatprep.subr.bf16.mxu0 0
      %9818 = vmatpush2.bf16.msra.mxu0 0
      %9819 = vmatprep.mubr.bf16.mxu0 0
      %9820 = vmatmul.mubr.bf16.gmra.mxu0 %v9647
      %v9821 = vpop.f32.mrf.mxu0
      %v9822 = vadd.f32 0.0, %v9821
      %v9823 = vpop.f32.mrf.mxu0
      %v9824 = vpop.f32.mrf.mxu0
      %v9825 = vadd.f32 0.0, %v9824
      %v9826 = vpop.f32.mrf.mxu0
      %9827 = vmatprep.mubr.bf16.mxu0 0
      %9828 = vmatmul.mubr.bf16.gmra.mxu0 %v9651
      %v9829 = vpop.f32.mrf.mxu0
      %v9830 = vadd.f32 0.0, %v9829
      %v9831 = vpop.f32.mrf.mxu0
      %v9832 = vpop.f32.mrf.mxu0
      %v9833 = vadd.f32 0.0, %v9832
      %v9834 = vpop.f32.mrf.mxu0
      %9835 = vmatprep.mubr.bf16.mxu0 0
      %9836 = vmatmul.mubr.bf16.gmra.mxu0 %v9655
      %v9837 = vpop.f32.mrf.mxu0
      %v9838 = vadd.f32 0.0, %v9837
      %v9839 = vpop.f32.mrf.mxu0
      %v9840 = vpop.f32.mrf.mxu0
      %v9841 = vadd.f32 0.0, %v9840
      %v9842 = vpop.f32.mrf.mxu0
      %9843 = vmatprep.mubr.bf16.mxu0 0
      %9844 = vmatmul.mubr.bf16.gmra.mxu0 %v9659
      %v9845 = vpop.f32.mrf.mxu0
      %v9846 = vadd.f32 0.0, %v9845
      %v9847 = vpop.f32.mrf.mxu0
      %v9848 = vpop.f32.mrf.mxu0
      %v9849 = vadd.f32 0.0, %v9848
      %v9850 = vpop.f32.mrf.mxu0
      %9851 = vmatprep.mubr.bf16.mxu0 0
      %9852 = vmatmul.mubr.bf16.gmra.mxu0 %v9663
      %v9853 = vpop.f32.mrf.mxu0
      %v9854 = vadd.f32 0.0, %v9853
      %v9855 = vpop.f32.mrf.mxu0
      %v9856 = vpop.f32.mrf.mxu0
      %v9857 = vadd.f32 0.0, %v9856
      %v9858 = vpop.f32.mrf.mxu0
      %9859 = vmatprep.mubr.bf16.mxu0 0
      %9860 = vmatmul.mubr.bf16.gmra.mxu0 %v9667
      %v9861 = vpop.f32.mrf.mxu0
      %v9862 = vadd.f32 0.0, %v9861
      %v9863 = vpop.f32.mrf.mxu0
      %v9864 = vpop.f32.mrf.mxu0
      %v9865 = vadd.f32 0.0, %v9864
      %v9866 = vpop.f32.mrf.mxu0
      %9867 = vmatprep.mubr.bf16.mxu0 0
      %9868 = vmatmul.mubr.bf16.gmra.mxu0 %v9671
      %v9869 = vpop.f32.mrf.mxu0
      %v9870 = vadd.f32 0.0, %v9869
      %v9871 = vpop.f32.mrf.mxu0
      %v9872 = vpop.f32.mrf.mxu0
      %v9873 = vadd.f32 0.0, %v9872
      %v9874 = vpop.f32.mrf.mxu0
      %9875 = vmatprep.mubr.bf16.mxu0 0
      %9876 = vmatmul.mubr.bf16.gmra.mxu0 %v9675
      %v9877 = vpop.f32.mrf.mxu0
      %v9878 = vadd.f32 0.0, %v9877
      %v9879 = vpop.f32.mrf.mxu0
      %v9880 = vpop.f32.mrf.mxu0
      %v9881 = vadd.f32 0.0, %v9880
      %v9882 = vpop.f32.mrf.mxu0
      %9883 = vmatprep.mubr.bf16.mxu0 0
      %9884 = vmatmul.mubr.bf16.gmra.mxu0 %v9679
      %v9885 = vpop.f32.mrf.mxu0
      %v9886 = vadd.f32 0.0, %v9885
      %v9887 = vpop.f32.mrf.mxu0
      %v9888 = vpop.f32.mrf.mxu0
      %v9889 = vadd.f32 0.0, %v9888
      %v9890 = vpop.f32.mrf.mxu0
      %9891 = vmatprep.mubr.bf16.mxu0 0
      %9892 = vmatmul.mubr.bf16.gmra.mxu0 %v9683
      %v9893 = vpop.f32.mrf.mxu0
      %v9894 = vadd.f32 0.0, %v9893
      %v9895 = vpop.f32.mrf.mxu0
      %v9896 = vpop.f32.mrf.mxu0
      %v9897 = vadd.f32 0.0, %v9896
      %v9898 = vpop.f32.mrf.mxu0
      %9899 = vmatprep.mubr.bf16.mxu0 0
      %9900 = vmatmul.mubr.bf16.gmra.mxu0 %v9687
      %v9901 = vpop.f32.mrf.mxu0
      %v9902 = vadd.f32 0.0, %v9901
      %v9903 = vpop.f32.mrf.mxu0
      %v9904 = vpop.f32.mrf.mxu0
      %v9905 = vadd.f32 0.0, %v9904
      %v9906 = vpop.f32.mrf.mxu0
      %9907 = vmatprep.mubr.bf16.mxu0 0
      %9908 = vmatmul.mubr.bf16.gmra.mxu0 %v9691
      %v9909 = vpop.f32.mrf.mxu0
      %v9910 = vadd.f32 0.0, %v9909
      %v9911 = vpop.f32.mrf.mxu0
      %v9912 = vpop.f32.mrf.mxu0
      %v9913 = vadd.f32 0.0, %v9912
      %v9914 = vpop.f32.mrf.mxu0
      %9915 = vmatprep.mubr.bf16.mxu0 0
      %9916 = vmatmul.mubr.bf16.gmra.mxu0 %v9695
      %v9917 = vpop.f32.mrf.mxu0
      %v9918 = vadd.f32 0.0, %v9917
      %v9919 = vpop.f32.mrf.mxu0
      %v9920 = vpop.f32.mrf.mxu0
      %v9921 = vadd.f32 0.0, %v9920
      %v9922 = vpop.f32.mrf.mxu0
      %9923 = vmatprep.mubr.bf16.mxu0 0
      %9924 = vmatmul.mubr.bf16.gmra.mxu0 %v9699
      %v9925 = vpop.f32.mrf.mxu0
      %v9926 = vadd.f32 0.0, %v9925
      %v9927 = vpop.f32.mrf.mxu0
      %v9928 = vpop.f32.mrf.mxu0
      %v9929 = vadd.f32 0.0, %v9928
      %v9930 = vpop.f32.mrf.mxu0
      %9931 = vmatprep.mubr.bf16.mxu0 0
      %9932 = vmatmul.mubr.bf16.gmra.mxu0 %v9703
      %v9933 = vpop.f32.mrf.mxu0
      %v9934 = vadd.f32 0.0, %v9933
      %v9935 = vpop.f32.mrf.mxu0
      %v9936 = vpop.f32.mrf.mxu0
      %v9937 = vadd.f32 0.0, %v9936
      %v9938 = vpop.f32.mrf.mxu0
      %9939 = vmatprep.mubr.bf16.mxu0 0
      %9940 = vmatmul.mubr.bf16.gmra.mxu0 %v9707
      %v9941 = vpop.f32.mrf.mxu0
      %v9942 = vadd.f32 0.0, %v9941
      %v9943 = vpop.f32.mrf.mxu0
      %v9944 = vpop.f32.mrf.mxu0
      %v9945 = vadd.f32 0.0, %v9944
      %v9946 = vpop.f32.mrf.mxu0
      %9947 = vmatprep.mubr.bf16.mxu0 0
      %9948 = vmatmul.mubr.bf16.gmra.mxu0 %v9711
      %v9949 = vpop.f32.mrf.mxu0
      %v9950 = vadd.f32 0.0, %v9949
      %v9951 = vpop.f32.mrf.mxu0
      %v9952 = vpop.f32.mrf.mxu0
      %v9953 = vadd.f32 0.0, %v9952
      %v9954 = vpop.f32.mrf.mxu0
      %9955 = vmatprep.mubr.bf16.mxu0 0
      %9956 = vmatmul.mubr.bf16.gmra.mxu0 %v9720
      %v9957 = vpop.f32.mrf.mxu0
      %v9958 = vadd.f32 0.0, %v9957
      %v9959 = vpop.f32.mrf.mxu0
      %v9960 = vpop.f32.mrf.mxu0
      %v9961 = vadd.f32 0.0, %v9960
      %v9962 = vpop.f32.mrf.mxu0
      %9963 = vdwg.mxu0
      %v9964 = vadd.f32 %v9580, %v9822
      %v9965 = vadd.f32 %v9581, %v9825
      %v9966 = vadd.f32 %v9582, %v9830
      %v9967 = vadd.f32 %v9583, %v9833
      %v9968 = vadd.f32 %v9584, %v9838
      %v9969 = vadd.f32 %v9585, %v9841
      %v9970 = vadd.f32 %v9586, %v9846
      %v9971 = vadd.f32 %v9587, %v9849
      %v9972 = vadd.f32 %v9588, %v9854
      %v9973 = vadd.f32 %v9589, %v9857
      %v9974 = vadd.f32 %v9590, %v9862
      %v9975 = vadd.f32 %v9591, %v9865
      %v9976 = vadd.f32 %v9592, %v9870
      %v9977 = vadd.f32 %v9593, %v9873
      %v9978 = vadd.f32 %v9594, %v9878
      %v9979 = vadd.f32 %v9595, %v9881
      %v9980 = vadd.f32 %v9596, %v9886
      %v9981 = vadd.f32 %v9597, %v9889
      %v9982 = vadd.f32 %v9598, %v9894
      %v9983 = vadd.f32 %v9599, %v9897
      %v9984 = vadd.f32 %v9600, %v9902
      %v9985 = vadd.f32 %v9601, %v9905
      %v9986 = vadd.f32 %v9602, %v9910
      %v9987 = vadd.f32 %v9603, %v9913
      %v9988 = vadd.f32 %v9604, %v9918
      %v9989 = vadd.f32 %v9605, %v9921
      %v9990 = vadd.f32 %v9606, %v9926
      %v9991 = vadd.f32 %v9607, %v9929
      %v9992 = vadd.f32 %v9608, %v9934
      %v9993 = vadd.f32 %v9609, %v9937
      %v9994 = vadd.f32 %v9610, %v9942
      %v9995 = vadd.f32 %v9611, %v9945
      %v9996 = vadd.f32 %v9612, %v9950
      %v9997 = vadd.f32 %v9613, %v9953
      %v9998 = vadd.f32 %v9614, %v9958
      %v9999 = vadd.f32 %v9615, %v9961
      %v10000 = vld [vmem:[%s5] sm:$0x1]
      %v10002 = vlaneseq
      %v10003 = vshrl.u32 %v10002, 7
      %v10004 = vsub.s32 0, %v10003
      %v10005 = vrot.slane %v10000, %v10004
      %v10007 = vmul.f32 %v9964, %v10005
      %v10008 = vmul.f32 %v9965, %v10005
      %v10009 = vmul.f32 %v9966, %v10005
      %v10010 = vmul.f32 %v9967, %v10005
      %v10011 = vmul.f32 %v9968, %v10005
      %v10012 = vmul.f32 %v9969, %v10005
      %v10013 = vmul.f32 %v9970, %v10005
      %v10014 = vmul.f32 %v9971, %v10005
      %v10015 = vmul.f32 %v9972, %v10005
      %v10016 = vmul.f32 %v9973, %v10005
      %v10017 = vmul.f32 %v9974, %v10005
      %v10018 = vmul.f32 %v9975, %v10005
      %v10019 = vmul.f32 %v9976, %v10005
      %v10020 = vmul.f32 %v9977, %v10005
      %v10021 = vmul.f32 %v9978, %v10005
      %v10022 = vmul.f32 %v9979, %v10005
      %v10023 = vmul.f32 %v9980, %v10005
      %v10024 = vmul.f32 %v9981, %v10005
      %v10025 = vmul.f32 %v9982, %v10005
      %v10026 = vmul.f32 %v9983, %v10005
      %v10027 = vmul.f32 %v9984, %v10005
      %v10028 = vmul.f32 %v9985, %v10005
      %v10029 = vmul.f32 %v9986, %v10005
      %v10030 = vmul.f32 %v9987, %v10005
      %v10031 = vmul.f32 %v9988, %v10005
      %v10032 = vmul.f32 %v9989, %v10005
      %v10033 = vmul.f32 %v9990, %v10005
      %v10034 = vmul.f32 %v9991, %v10005
      %v10035 = vmul.f32 %v9992, %v10005
      %v10036 = vmul.f32 %v9993, %v10005
      %v10037 = vmul.f32 %v9994, %v10005
      %v10038 = vmul.f32 %v9995, %v10005
      %v10039 = vmul.f32 %v9996, %v10005
      %v10040 = vmul.f32 %v9997, %v10005
      %v10041 = vmul.f32 %v9998, %v10005
      %v10042 = vmul.f32 %v9999, %v10005
      %v10043 = vld [vmem:[%s6] sm:$0x1]
      %v10045 = vlaneseq
      %v10046 = vshrl.u32 %v10045, 7
      %v10047 = vsub.s32 0, %v10046
      %v10048 = vrot.slane %v10043, %v10047
      %v10050 = vadd.f32 %v10007, %v10048
      %v10051 = vadd.f32 %v10008, %v10048
      %v10052 = vadd.f32 %v10009, %v10048
      %v10053 = vadd.f32 %v10010, %v10048
      %v10054 = vadd.f32 %v10011, %v10048
      %v10055 = vadd.f32 %v10012, %v10048
      %v10056 = vadd.f32 %v10013, %v10048
      %v10057 = vadd.f32 %v10014, %v10048
      %v10058 = vadd.f32 %v10015, %v10048
      %v10059 = vadd.f32 %v10016, %v10048
      %v10060 = vadd.f32 %v10017, %v10048
      %v10061 = vadd.f32 %v10018, %v10048
      %v10062 = vadd.f32 %v10019, %v10048
      %v10063 = vadd.f32 %v10020, %v10048
      %v10064 = vadd.f32 %v10021, %v10048
      %v10065 = vadd.f32 %v10022, %v10048
      %v10066 = vadd.f32 %v10023, %v10048
      %v10067 = vadd.f32 %v10024, %v10048
      %v10068 = vadd.f32 %v10025, %v10048
      %v10069 = vadd.f32 %v10026, %v10048
      %v10070 = vadd.f32 %v10027, %v10048
      %v10071 = vadd.f32 %v10028, %v10048
      %v10072 = vadd.f32 %v10029, %v10048
      %v10073 = vadd.f32 %v10030, %v10048
      %v10074 = vadd.f32 %v10031, %v10048
      %v10075 = vadd.f32 %v10032, %v10048
      %v10076 = vadd.f32 %v10033, %v10048
      %v10077 = vadd.f32 %v10034, %v10048
      %v10078 = vadd.f32 %v10035, %v10048
      %v10079 = vadd.f32 %v10036, %v10048
      %v10080 = vadd.f32 %v10037, %v10048
      %v10081 = vadd.f32 %v10038, %v10048
      %v10082 = vadd.f32 %v10039, %v10048
      %v10083 = vadd.f32 %v10040, %v10048
      %v10084 = vadd.f32 %v10041, %v10048
      %v10085 = vadd.f32 %v10042, %v10048
      %v10086 = vmax.f32 %v10050, 0.0
      %v10087 = vmax.f32 %v10051, 0.0
      %v10088 = vmax.f32 %v10052, 0.0
      %v10089 = vmax.f32 %v10053, 0.0
      %v10090 = vmax.f32 %v10054, 0.0
      %v10091 = vmax.f32 %v10055, 0.0
      %v10092 = vmax.f32 %v10056, 0.0
      %v10093 = vmax.f32 %v10057, 0.0
      %v10094 = vmax.f32 %v10058, 0.0
      %v10095 = vmax.f32 %v10059, 0.0
      %v10096 = vmax.f32 %v10060, 0.0
      %v10097 = vmax.f32 %v10061, 0.0
      %v10098 = vmax.f32 %v10062, 0.0
      %v10099 = vmax.f32 %v10063, 0.0
      %v10100 = vmax.f32 %v10064, 0.0
      %v10101 = vmax.f32 %v10065, 0.0
      %v10102 = vmax.f32 %v10066, 0.0
      %v10103 = vmax.f32 %v10067, 0.0
      %v10104 = vmax.f32 %v10068, 0.0
      %v10105 = vmax.f32 %v10069, 0.0
      %v10106 = vmax.f32 %v10070, 0.0
      %v10107 = vmax.f32 %v10071, 0.0
      %v10108 = vmax.f32 %v10072, 0.0
      %v10109 = vmax.f32 %v10073, 0.0
      %v10110 = vmax.f32 %v10074, 0.0
      %v10111 = vmax.f32 %v10075, 0.0
      %v10112 = vmax.f32 %v10076, 0.0
      %v10113 = vmax.f32 %v10077, 0.0
      %v10114 = vmax.f32 %v10078, 0.0
      %v10115 = vmax.f32 %v10079, 0.0
      %v10116 = vmax.f32 %v10080, 0.0
      %v10117 = vmax.f32 %v10081, 0.0
      %v10118 = vmax.f32 %v10082, 0.0
      %v10119 = vmax.f32 %v10083, 0.0
      %v10120 = vmax.f32 %v10084, 0.0
      %v10121 = vmax.f32 %v10085, 0.0
      %10122 = vst [vmem:[%s314] sm:$0xff] %v10086
      %10123 = vst [vmem:[%s314 + $0x8] sm:$0xff] %v10087
      %10124 = vst [vmem:[%s314 + $0x10] sm:$0xff] %v10088
      %10125 = vst [vmem:[%s314 + $0x18] sm:$0xff] %v10089
      %10126 = vst [vmem:[%s314 + $0x20] sm:$0xff] %v10090
      %10127 = vst [vmem:[%s314 + $0x28] sm:$0xff] %v10091
      %10128 = vst [vmem:[%s314 + $0x30] sm:$0xff] %v10092
      %10129 = vst [vmem:[%s314 + $0x38] sm:$0xff] %v10093
      %10130 = vst [vmem:[%s314 + $0x40] sm:$0xff] %v10094
      %10131 = vst [vmem:[%s314 + $0x48] sm:$0xff] %v10095
      %10132 = vst [vmem:[%s314 + $0x50] sm:$0xff] %v10096
      %10133 = vst [vmem:[%s314 + $0x58] sm:$0xff] %v10097
      %10134 = vst [vmem:[%s314 + $0x60] sm:$0xff] %v10098
      %10135 = vst [vmem:[%s314 + $0x68] sm:$0xff] %v10099
      %10136 = vst [vmem:[%s314 + $0x70] sm:$0xff] %v10100
      %10137 = vst [vmem:[%s314 + $0x78] sm:$0xff] %v10101
      %10138 = vst [vmem:[%s314 + $0x80] sm:$0xff] %v10102
      %10139 = vst [vmem:[%s314 + $0x88] sm:$0xff] %v10103
      %10140 = vst [vmem:[%s314 + $0x90] sm:$0xff] %v10104
      %10141 = vst [vmem:[%s314 + $0x98] sm:$0xff] %v10105
      %10142 = vst [vmem:[%s314 + $0xa0] sm:$0xff] %v10106
      %10143 = vst [vmem:[%s314 + $0xa8] sm:$0xff] %v10107
      %10144 = vst [vmem:[%s314 + $0xb0] sm:$0xff] %v10108
      %10145 = vst [vmem:[%s314 + $0xb8] sm:$0xff] %v10109
      %10146 = vst [vmem:[%s314 + $0xc0] sm:$0xff] %v10110
      %10147 = vst [vmem:[%s314 + $0xc8] sm:$0xff] %v10111
      %10148 = vst [vmem:[%s314 + $0xd0] sm:$0xff] %v10112
      %10149 = vst [vmem:[%s314 + $0xd8] sm:$0xff] %v10113
      %10150 = vst [vmem:[%s314 + $0xe0] sm:$0xff] %v10114
      %10151 = vst [vmem:[%s314 + $0xe8] sm:$0xff] %v10115
      %10152 = vst [vmem:[%s314 + $0xf0] sm:$0xff] %v10116
      %10153 = vst [vmem:[%s314 + $0xf8] sm:$0xff] %v10117
      %10154 = vst [vmem:[%s314 + $0x100] sm:$0xff] %v10118
      %10155 = vst [vmem:[%s314 + $0x108] sm:$0xff] %v10119
      %10156 = vst [vmem:[%s314 + $0x110] sm:$0xff] %v10120
      %10157 = vst [vmem:[%s314 + $0x118] sm:$0xff] %v10121
      %p10158 = scmp.lt.s32.totalorder %s22, 1
      %s10159 = scalar_select %p10158, %s22, 1
      %p10160 = scmp.lt.s32.totalorder %s23, 0
      %s10161 = scalar_select %p10160, %s23, 0
      %s10162 = smul.addr %s10161, 36
      %s10163 = smul.addr %s10159, 36
      %s10164 = sadd.s32 %s10162, %s10163
      %s10165 = smul.addr %s10164, 8
      %s10166 = scalar_lea.vmem %s7, %s10165
      // Predicated region
      $region53: #{double_conv.1} parent=47 // pred_check
        %p10167 = pneg %p204
      $region54: #{double_conv.1} parent=47 // pred_check_branch
        %10169 = sbr.rel (%p10167) target = $region56
      $region55: #{double_conv.1} parent=47 // pred_region
        _
      $region56: #{double_conv.1} parent=47 // pred_fallthru
        _
    $region48: #{double_conv.1} parent=5 // pred_fallthru
      _
    %p10170 = scmp.le.s32.totalorder 2, %s13
    // Predicated region
    $region57: #{double_conv.1} parent=5 // pred_check
      %p10171 = pneg %p10170
    $region58: #{double_conv.1} parent=5 // pred_check_branch
      %10173 = sbr.rel (%p10171) target = $region60
    $region59: #{double_conv.1} parent=5 // pred_region
      %s10174 = ssub.s32 %s13, 2
      // Predicated region
      $region61: #{double_conv.1} parent=59 // pred_check
        %p10175 = pneg %p210
      $region62: #{double_conv.1} parent=59 // pred_check_branch
        %10177 = sbr.rel (%p10175) target = $region64
      $region63: #{double_conv.1} parent=59 // pred_region
        %p10178 = scmp.lt.s32.totalorder %s24, 1
        %s10179 = scalar_select %p10178, %s24, 1
        %p10180 = scmp.lt.s32.totalorder %s25, 0
        %s10181 = scalar_select %p10180, %s25, 0
        %s10182 = smul.addr %s10181, 36
        %s10183 = smul.addr %s10179, 36
        %s10184 = sadd.s32 %s10182, %s10183
        %s10185 = smul.addr %s10184, 8
        %s10186 = scalar_lea.vmem %s7, %s10185
      $region64: #{double_conv.1} parent=59 // pred_fallthru
        _
    $region60: #{double_conv.1} parent=5 // pred_fallthru
      _
  $region6: #{double_conv.1} parent=0 // loop_footer
    %s17 = sadd.s32 1, %s13
  $region7: #{double_conv.1} parent=0 // loop_footer_branch
    %12 = sbr.rel target = $region3
  $region8: #{double_conv.1} parent=0 // loop_exit
    _

</llo_original>
